<compile_context>
chip_gen: v7x
topology: tpu7x:2x2x1
jax: 0.10.0
libtpu: 0.0.40
codegen_flags: <defaults>
</compile_context>

<pallas_src>
import jax
import jax.numpy as jnp
from jax.experimental import pallas as pl
from jax.experimental.pallas import tpu as pltpu

D = 256              # d_model (fixed by the module)
NHEAD = 4
HEAD_DIM = D // NHEAD
DFF = 2048           # PyTorch TransformerDecoderLayer default dim_feedforward
N_HIER = 8
NUM_LAYERS = 6
N_CLASSES = 4
CLS_PAD = 128        # classifier output padded to a full lane width
LN_EPS = 1e-5


# ----------------------------- kernel helpers ------------------------------

def _layer_norm(x, gamma, beta):
    mu = jnp.mean(x, axis=-1, keepdims=True)
    xc = x - mu
    var = jnp.mean(xc * xc, axis=-1, keepdims=True)
    return xc * jax.lax.rsqrt(var + LN_EPS) * gamma + beta


def _mha(q_in, kv_in, wq, bq, wk, bk, wv, bv, wo, bo):
    """Multi-head attention with fused full-width projections.

    q_in: (T, D) bf16      kv_in: (S, D) bf16
    wq/wk/wv/wo: (D, D) bf16 (heads concatenated along the output/lane axis)
    bq/bk/bv/bo: (1, D) f32
    """
    # Fused full-width (N = 256) MXU projections, f32 accumulation.
    q = jnp.dot(q_in, wq, preferred_element_type=jnp.float32) + bq   # (T, D)
    k = jnp.dot(kv_in, wk, preferred_element_type=jnp.float32) + bk  # (S, D)
    v = jnp.dot(kv_in, wv, preferred_element_type=jnp.float32) + bv  # (S, D)
    q = q * (1.0 / float(HEAD_DIM) ** 0.5)

    # Per-head score / softmax / weighted-sum (K = head_dim is inherent here).
    head_outs = []
    for h in range(NHEAD):
        sl = slice(h * HEAD_DIM, (h + 1) * HEAD_DIM)
        qh = q[:, sl].astype(jnp.bfloat16)                           # (T, hd)
        kh = k[:, sl].astype(jnp.bfloat16)                           # (S, hd)
        vh = v[:, sl].astype(jnp.bfloat16)                           # (S, hd)
        s = jax.lax.dot_general(qh, kh, (((1,), (1,)), ((), ())),
                                preferred_element_type=jnp.float32)  # (T, S)
        s = s - jnp.max(s, axis=-1, keepdims=True)
        p = jnp.exp(s)
        p = p / jnp.sum(p, axis=-1, keepdims=True)                   # exact softmax
        head_outs.append(
            jnp.dot(p.astype(jnp.bfloat16), vh,
                    preferred_element_type=jnp.float32))             # (T, hd)

    o = jnp.concatenate(head_outs, axis=-1)                          # (T, D)
    # Fused output projection: one K = 256 dot instead of 4x K = 64 + adds.
    return jnp.dot(o.astype(jnp.bfloat16), wo,
                   preferred_element_type=jnp.float32) + bo          # (T, D)


# --------------------------------- kernel -----------------------------------

def fused_detr_kernel(
        mem_ref, hq_ref,
        sqw_ref, sqb_ref, skw_ref, skb_ref, svw_ref, svb_ref,
        sow_ref, sob_ref,
        cqw_ref, cqb_ref, ckw_ref, ckb_ref, cvw_ref, cvb_ref,
        cow_ref, cob_ref,
        ln1g_ref, ln1b_ref, ln2g_ref, ln2b_ref, ln3g_ref, ln3b_ref,
        f1w_ref, f1b_ref, f2w_ref, f2b_ref,
        clw_ref, clb_ref,
        out_ref,
        tgt_ref):
    layer = pl.program_id(0)
    b = pl.program_id(1)

    # ---- per-batch seeding of the decoder residual stream at layer 0 ----
    @pl.when(layer == 0)
    def _seed():
        tgt_ref[b] = hq_ref[...]

    x = tgt_ref[b]                    # (T, D) f32 residual stream for batch b
    mem = mem_ref[b]                  # (S, D) bf16 encoder memory for batch b

    # ---- self-attention block (post-norm) ----
    xb = x.astype(jnp.bfloat16)
    sa = _mha(xb, xb,
              sqw_ref[0], sqb_ref[0], skw_ref[0], skb_ref[0],
              svw_ref[0], svb_ref[0], sow_ref[0], sob_ref[0])
    x = _layer_norm(x + sa, ln1g_ref[0], ln1b_ref[0])

    # ---- cross-attention block ----
    ca = _mha(x.astype(jnp.bfloat16), mem,
              cqw_ref[0], cqb_ref[0], ckw_ref[0], ckb_ref[0],
              cvw_ref[0], cvb_ref[0], cow_ref[0], cob_ref[0])
    x = _layer_norm(x + ca, ln2g_ref[0], ln2b_ref[0])

    # ---- feed-forward block (dropout == identity, inference semantics) ----
    h1 = jnp.dot(x.astype(jnp.bfloat16), f1w_ref[0],
                 preferred_element_type=jnp.float32) + f1b_ref[0]
    h1 = jnp.maximum(h1, 0.0)
    ff = jnp.dot(h1.astype(jnp.bfloat16), f2w_ref[0],
                 preferred_element_type=jnp.float32) + f2b_ref[0]
    x = _layer_norm(x + ff, ln3g_ref[0], ln3b_ref[0])

    tgt_ref[b] = x

    # ---- last-layer epilogue: classifier0 on token 0 only, then ReLU ----
    @pl.when(layer == NUM_LAYERS - 1)
    def _classifier():
        logits = jnp.dot(x[0:1, :].astype(jnp.bfloat16), clw_ref[...],
                         preferred_element_type=jnp.float32) + clb_ref[...]
        out_ref[pl.ds(b, 1), :] = jnp.maximum(logits, 0.0)           # F.relu


# ------------------------------- wrapper ------------------------------------

def basic_detr_forward(x, params):
    bs, ch, h, w = x.shape
    s = h * w

    # NCHW -> (B, S, C) tokens, then the DETR stand-in projection to d_model,
    # both in plain XLA (pure layout / tiny matmul work).
    # TODO(synk): pretrained DETR backbone/encoder/decoder replaced by a
    # deterministic linear projection (checkpoint not available in-script).
    x_seq = jnp.transpose(x, (0, 2, 3, 1)).reshape(bs, s, ch)
    memory = (jnp.dot(x_seq, params["proj_w"]) +
              params["proj_b"]).astype(jnp.bfloat16)                  # (B, S, D)

    def _const_spec(shape):
        n = len(shape)
        return pl.BlockSpec(tuple(shape), lambda l, b, n=n: (0,) * n)

    def _layer_spec(shape):
        n = len(shape)
        return pl.BlockSpec((1,) + tuple(shape),
                            lambda l, b, n=n: (l,) + (0,) * n)

    in_specs = [
        _const_spec((bs, s, D)),                 # encoder memory (resident)
        _const_spec((N_HIER, D)),                # hier_query
        # self-attention: fused (D, D) projections + (1, D) biases
        _layer_spec((D, D)), _layer_spec((1, D)),    # q
        _layer_spec((D, D)), _layer_spec((1, D)),    # k
        _layer_spec((D, D)), _layer_spec((1, D)),    # v
        _layer_spec((D, D)), _layer_spec((1, D)),    # out
        # cross-attention
        _layer_spec((D, D)), _layer_spec((1, D)),
        _layer_spec((D, D)), _layer_spec((1, D)),
        _layer_spec((D, D)), _layer_spec((1, D)),
        _layer_spec((D, D)), _layer_spec((1, D)),
        # layer norms (gamma / beta as separate (1, D) refs)
        _layer_spec((1, D)), _layer_spec((1, D)),
        _layer_spec((1, D)), _layer_spec((1, D)),
        _layer_spec((1, D)), _layer_spec((1, D)),
        # feed-forward
        _layer_spec((D, DFF)), _layer_spec((1, DFF)),
        _layer_spec((DFF, D)), _layer_spec((1, D)),
        # classifier (lane-padded to 128, resident)
        _const_spec((D, CLS_PAD)), _const_spec((1, CLS_PAD)),
    ]

    out = pl.pallas_call(
        fused_detr_kernel,
        out_shape=jax.ShapeDtypeStruct((bs, CLS_PAD), jnp.float32),
        # Layer axis OUTER, batch axis INNER: per-layer weight blocks keep the
        # same block index across batch steps => weights DMA'd once total.
        grid=(NUM_LAYERS, bs),
        in_specs=in_specs,
        out_specs=pl.BlockSpec((bs, CLS_PAD), lambda l, b: (0, 0)),
        scratch_shapes=[
            pltpu.VMEM((bs, N_HIER, D), jnp.float32),   # per-batch tgt state
        ],
        compiler_params=pltpu.CompilerParams(
            dimension_semantics=("arbitrary", "arbitrary"),
            vmem_limit_bytes=32 * 1024 * 1024),
    )(memory, params["hier_query"],
      params["sa_q_w"], params["sa_q_b"], params["sa_k_w"], params["sa_k_b"],
      params["sa_v_w"], params["sa_v_b"], params["sa_o_w"], params["sa_o_b"],
      params["ca_q_w"], params["ca_q_b"], params["ca_k_w"], params["ca_k_b"],
      params["ca_v_w"], params["ca_v_b"], params["ca_o_w"], params["ca_o_b"],
      params["ln1_g"], params["ln1_b"], params["ln2_g"], params["ln2_b"],
      params["ln3_g"], params["ln3_b"],
      params["ff1_w"], params["ff1_b"], params["ff2_w"], params["ff2_b"],
      params["cls_w"], params["cls_b"])

    return out[:, :N_CLASSES]


# ------------------------------ parameters -----------------------------------

def init_params(key, ch):
    ks = jax.random.split(key, 13)

    def nrm(k, shape, std=0.02):
        return std * jax.random.normal(k, shape, jnp.float32)

    def w_dd(k):
        # fused projection weights: heads concatenated along the output axis
        return nrm(k, (NUM_LAYERS, D, D)).astype(jnp.bfloat16)

    zeros_d = jnp.zeros((NUM_LAYERS, 1, D), jnp.float32)
    ones_d = jnp.ones((NUM_LAYERS, 1, D), jnp.float32)

    cls_w = nrm(ks[12], (D, N_CLASSES))
    cls_w = jnp.pad(cls_w, ((0, 0), (0, CLS_PAD - N_CLASSES)))

    return {
        "proj_w": nrm(ks[0], (ch, D)),                       # stand-in backbone
        "proj_b": jnp.zeros((1, D), jnp.float32),
        # torch.rand((n_hier, 256)) equivalent: uniform [0, 1)
        "hier_query": jax.random.uniform(ks[1], (N_HIER, D), jnp.float32),
        "sa_q_w": w_dd(ks[2]), "sa_q_b": zeros_d,
        "sa_k_w": w_dd(ks[3]), "sa_k_b": zeros_d,
        "sa_v_w": w_dd(ks[4]), "sa_v_b": zeros_d,
        "sa_o_w": w_dd(ks[5]), "sa_o_b": zeros_d,
        "ca_q_w": w_dd(ks[6]), "ca_q_b": zeros_d,
        "ca_k_w": w_dd(ks[7]), "ca_k_b": zeros_d,
        "ca_v_w": w_dd(ks[8]), "ca_v_b": zeros_d,
        "ca_o_w": w_dd(ks[9]), "ca_o_b": zeros_d,
        "ln1_g": ones_d, "ln1_b": zeros_d,
        "ln2_g": ones_d, "ln2_b": zeros_d,
        "ln3_g": ones_d, "ln3_b": zeros_d,
        "ff1_w": nrm(ks[10], (NUM_LAYERS, D, DFF)).astype(jnp.bfloat16),
        "ff1_b": jnp.zeros((NUM_LAYERS, 1, DFF), jnp.float32),
        "ff2_w": nrm(ks[11], (NUM_LAYERS, DFF, D)).astype(jnp.bfloat16),
        "ff2_b": zeros_d,
        "cls_w": cls_w.astype(jnp.bfloat16),
        "cls_b": jnp.zeros((1, CLS_PAD), jnp.float32),
    }


# --------------------------------- main ---------------------------------------

if __name__ == "__main__":
    key = jax.random.PRNGKey(0)
    k_x, k_p = jax.random.split(key)

    bs, ch, h, w = 2, 4, 16, 16
    x = jax.random.normal(k_x, (bs, ch, h, w), jnp.float32)

    params = init_params(k_p, ch)

    fwd = jax.jit(basic_detr_forward)
    out = jax.block_until_ready(fwd(x, params))

    assert out.shape == (bs, N_CLASSES), out.shape
    assert out.dtype == jnp.float32
    assert bool(jnp.all(out >= 0.0))          # ReLU output
    assert bool(jnp.all(jnp.isfinite(out)))
    print("KERNEL_OK")
</pallas_src>

<mosaic_0001>
module attributes {stable_mosaic.version = 11 : i64} {
  func.func @fused_detr_kernel(%arg0: i32, %arg1: i32, %arg2: memref<2x256x256xbf16, #tpu.memory_space<vmem>>, %arg3: memref<8x256xf32, #tpu.memory_space<vmem>>, %arg4: memref<1x256x256xbf16, #tpu.memory_space<vmem>>, %arg5: memref<1x1x256xf32, #tpu.memory_space<vmem>>, %arg6: memref<1x256x256xbf16, #tpu.memory_space<vmem>>, %arg7: memref<1x1x256xf32, #tpu.memory_space<vmem>>, %arg8: memref<1x256x256xbf16, #tpu.memory_space<vmem>>, %arg9: memref<1x1x256xf32, #tpu.memory_space<vmem>>, %arg10: memref<1x256x256xbf16, #tpu.memory_space<vmem>>, %arg11: memref<1x1x256xf32, #tpu.memory_space<vmem>>, %arg12: memref<1x256x256xbf16, #tpu.memory_space<vmem>>, %arg13: memref<1x1x256xf32, #tpu.memory_space<vmem>>, %arg14: memref<1x256x256xbf16, #tpu.memory_space<vmem>>, %arg15: memref<1x1x256xf32, #tpu.memory_space<vmem>>, %arg16: memref<1x256x256xbf16, #tpu.memory_space<vmem>>, %arg17: memref<1x1x256xf32, #tpu.memory_space<vmem>>, %arg18: memref<1x256x256xbf16, #tpu.memory_space<vmem>>, %arg19: memref<1x1x256xf32, #tpu.memory_space<vmem>>, %arg20: memref<1x1x256xf32, #tpu.memory_space<vmem>>, %arg21: memref<1x1x256xf32, #tpu.memory_space<vmem>>, %arg22: memref<1x1x256xf32, #tpu.memory_space<vmem>>, %arg23: memref<1x1x256xf32, #tpu.memory_space<vmem>>, %arg24: memref<1x1x256xf32, #tpu.memory_space<vmem>>, %arg25: memref<1x1x256xf32, #tpu.memory_space<vmem>>, %arg26: memref<1x256x2048xbf16, #tpu.memory_space<vmem>>, %arg27: memref<1x1x2048xf32, #tpu.memory_space<vmem>>, %arg28: memref<1x2048x256xbf16, #tpu.memory_space<vmem>>, %arg29: memref<1x1x256xf32, #tpu.memory_space<vmem>>, %arg30: memref<256x128xbf16, #tpu.memory_space<vmem>>, %arg31: memref<1x128xf32, #tpu.memory_space<vmem>>, %arg32: memref<2x128xf32, #tpu.memory_space<vmem>>, %arg33: memref<2x8x256xf32, #tpu.memory_space<vmem>>) attributes {dimension_semantics = [#tpu.dimension_semantics<arbitrary>, #tpu.dimension_semantics<arbitrary>], iteration_bounds = array<i64: 6, 2>, scalar_prefetch = 0 : i64, scratch_operands = 1 : i64, tpu.core_type = #tpu.core_type<tc>, window_params = [{pipeline_mode = #tpu.pipeline_mode<synchronous>, transform_indices = @transform_0, window_bounds = array<i64: 2, 256, 256>}, {pipeline_mode = #tpu.pipeline_mode<synchronous>, transform_indices = @transform_1, window_bounds = array<i64: 8, 256>}, {transform_indices = @transform_2, window_bounds = array<i64: 1, 256, 256>}, {transform_indices = @transform_3, window_bounds = array<i64: 1, 1, 256>}, {transform_indices = @transform_4, window_bounds = array<i64: 1, 256, 256>}, {transform_indices = @transform_5, window_bounds = array<i64: 1, 1, 256>}, {transform_indices = @transform_6, window_bounds = array<i64: 1, 256, 256>}, {transform_indices = @transform_7, window_bounds = array<i64: 1, 1, 256>}, {transform_indices = @transform_8, window_bounds = array<i64: 1, 256, 256>}, {transform_indices = @transform_9, window_bounds = array<i64: 1, 1, 256>}, {transform_indices = @transform_10, window_bounds = array<i64: 1, 256, 256>}, {transform_indices = @transform_11, window_bounds = array<i64: 1, 1, 256>}, {transform_indices = @transform_12, window_bounds = array<i64: 1, 256, 256>}, {transform_indices = @transform_13, window_bounds = array<i64: 1, 1, 256>}, {transform_indices = @transform_14, window_bounds = array<i64: 1, 256, 256>}, {transform_indices = @transform_15, window_bounds = array<i64: 1, 1, 256>}, {transform_indices = @transform_16, window_bounds = array<i64: 1, 256, 256>}, {transform_indices = @transform_17, window_bounds = array<i64: 1, 1, 256>}, {transform_indices = @transform_18, window_bounds = array<i64: 1, 1, 256>}, {transform_indices = @transform_19, window_bounds = array<i64: 1, 1, 256>}, {transform_indices = @transform_20, window_bounds = array<i64: 1, 1, 256>}, {transform_indices = @transform_21, window_bounds = array<i64: 1, 1, 256>}, {transform_indices = @transform_22, window_bounds = array<i64: 1, 1, 256>}, {transform_indices = @transform_23, window_bounds = array<i64: 1, 1, 256>}, {transform_indices = @transform_24, window_bounds = array<i64: 1, 256, 2048>}, {transform_indices = @transform_25, window_bounds = array<i64: 1, 1, 2048>}, {transform_indices = @transform_26, window_bounds = array<i64: 1, 2048, 256>}, {transform_indices = @transform_27, window_bounds = array<i64: 1, 1, 256>}, {pipeline_mode = #tpu.pipeline_mode<synchronous>, transform_indices = @transform_28, window_bounds = array<i64: 256, 128>}, {pipeline_mode = #tpu.pipeline_mode<synchronous>, transform_indices = @transform_29, window_bounds = array<i64: 1, 128>}, {pipeline_mode = #tpu.pipeline_mode<synchronous>, transform_indices = @transform_30, window_bounds = array<i64: 2, 128>}]} {
    %c0_i32 = arith.constant 0 : i32
    %0 = arith.cmpi eq, %arg0, %c0_i32 : i32
    %1 = arith.extui %0 : i1 to i32
    %c0_i32_0 = arith.constant 0 : i32
    %2 = arith.cmpi ne, %1, %c0_i32_0 : i32
    scf.if %2 {
      %c0_144 = arith.constant 0 : index
      %c0_145 = arith.constant 0 : index
      %319 = vector.load %arg3[%c0_144, %c0_145] : memref<8x256xf32, #tpu.memory_space<vmem>>, vector<8x256xf32>
      %320 = arith.index_cast %arg1 : i32 to index
      %c0_146 = arith.constant 0 : index
      %c0_147 = arith.constant 0 : index
      %321 = vector.load %arg33[%320, %c0_146, %c0_147] : memref<2x8x256xf32, #tpu.memory_space<vmem>>, vector<1x8x256xf32>
      %322 = vector.shape_cast %321 : vector<1x8x256xf32> to vector<8x256xf32>
      %323 = vector.shape_cast %319 : vector<8x256xf32> to vector<1x8x256xf32>
      tpu.vector_store %arg33[%320, %c0_146, %c0_147], %323 {strides = array<i32>} : memref<2x8x256xf32, #tpu.memory_space<vmem>>, vector<1x8x256xf32>,
    } else {
    }
    %3 = arith.index_cast %arg1 : i32 to index
    %c0 = arith.constant 0 : index
    %c0_1 = arith.constant 0 : index
    %4 = vector.load %arg33[%3, %c0, %c0_1] : memref<2x8x256xf32, #tpu.memory_space<vmem>>, vector<1x8x256xf32>
    %5 = vector.shape_cast %4 : vector<1x8x256xf32> to vector<8x256xf32>
    %6 = arith.index_cast %arg1 : i32 to index
    %c0_2 = arith.constant 0 : index
    %c0_3 = arith.constant 0 : index
    %7 = vector.load %arg2[%6, %c0_2, %c0_3] : memref<2x256x256xbf16, #tpu.memory_space<vmem>>, vector<1x256x256xbf16>
    %8 = vector.shape_cast %7 : vector<1x256x256xbf16> to vector<256x256xbf16>
    %9 = arith.truncf %5 : vector<8x256xf32> to vector<8x256xbf16>
    %c0_4 = arith.constant 0 : index
    %c0_5 = arith.constant 0 : index
    %c0_6 = arith.constant 0 : index
    %10 = vector.load %arg4[%c0_4, %c0_5, %c0_6] : memref<1x256x256xbf16, #tpu.memory_space<vmem>>, vector<1x256x256xbf16>
    %11 = vector.shape_cast %10 : vector<1x256x256xbf16> to vector<256x256xbf16>
    %c0_7 = arith.constant 0 : index
    %c0_8 = arith.constant 0 : index
    %c0_9 = arith.constant 0 : index
    %12 = vector.load %arg5[%c0_7, %c0_8, %c0_9] : memref<1x1x256xf32, #tpu.memory_space<vmem>>, vector<1x1x256xf32>
    %13 = vector.shape_cast %12 : vector<1x1x256xf32> to vector<1x256xf32>
    %c0_10 = arith.constant 0 : index
    %c0_11 = arith.constant 0 : index
    %c0_12 = arith.constant 0 : index
    %14 = vector.load %arg6[%c0_10, %c0_11, %c0_12] : memref<1x256x256xbf16, #tpu.memory_space<vmem>>, vector<1x256x256xbf16>
    %15 = vector.shape_cast %14 : vector<1x256x256xbf16> to vector<256x256xbf16>
    %c0_13 = arith.constant 0 : index
    %c0_14 = arith.constant 0 : index
    %c0_15 = arith.constant 0 : index
    %16 = vector.load %arg7[%c0_13, %c0_14, %c0_15] : memref<1x1x256xf32, #tpu.memory_space<vmem>>, vector<1x1x256xf32>
    %17 = vector.shape_cast %16 : vector<1x1x256xf32> to vector<1x256xf32>
    %c0_16 = arith.constant 0 : index
    %c0_17 = arith.constant 0 : index
    %c0_18 = arith.constant 0 : index
    %18 = vector.load %arg8[%c0_16, %c0_17, %c0_18] : memref<1x256x256xbf16, #tpu.memory_space<vmem>>, vector<1x256x256xbf16>
    %19 = vector.shape_cast %18 : vector<1x256x256xbf16> to vector<256x256xbf16>
    %c0_19 = arith.constant 0 : index
    %c0_20 = arith.constant 0 : index
    %c0_21 = arith.constant 0 : index
    %20 = vector.load %arg9[%c0_19, %c0_20, %c0_21] : memref<1x1x256xf32, #tpu.memory_space<vmem>>, vector<1x1x256xf32>
    %21 = vector.shape_cast %20 : vector<1x1x256xf32> to vector<1x256xf32>
    %c0_22 = arith.constant 0 : index
    %c0_23 = arith.constant 0 : index
    %c0_24 = arith.constant 0 : index
    %22 = vector.load %arg10[%c0_22, %c0_23, %c0_24] : memref<1x256x256xbf16, #tpu.memory_space<vmem>>, vector<1x256x256xbf16>
    %23 = vector.shape_cast %22 : vector<1x256x256xbf16> to vector<256x256xbf16>
    %c0_25 = arith.constant 0 : index
    %c0_26 = arith.constant 0 : index
    %c0_27 = arith.constant 0 : index
    %24 = vector.load %arg11[%c0_25, %c0_26, %c0_27] : memref<1x1x256xf32, #tpu.memory_space<vmem>>, vector<1x1x256xf32>
    %25 = vector.shape_cast %24 : vector<1x1x256xf32> to vector<1x256xf32>
    %cst = arith.constant dense<0.000000e+00> : vector<8x256xf32>
    %26 = tpu.matmul %9, %11, %cst {dimension_numbers = #tpu.dot_dimension_numbers<[1], [0], [0], [1], [0, 0, 1, 1], [], []>} : vector<8x256xbf16>, vector<256x256xbf16>, vector<8x256xf32> -> vector<8x256xf32>
    %27 = vector.broadcast %13 : vector<1x256xf32> to vector<8x256xf32>
    %28 = arith.addf %26, %27 : vector<8x256xf32>
    %cst_28 = arith.constant dense<0.000000e+00> : vector<8x256xf32>
    %29 = tpu.matmul %9, %15, %cst_28 {dimension_numbers = #tpu.dot_dimension_numbers<[1], [0], [0], [1], [0, 0, 1, 1], [], []>} : vector<8x256xbf16>, vector<256x256xbf16>, vector<8x256xf32> -> vector<8x256xf32>
    %30 = vector.broadcast %17 : vector<1x256xf32> to vector<8x256xf32>
    %31 = arith.addf %29, %30 : vector<8x256xf32>
    %cst_29 = arith.constant dense<0.000000e+00> : vector<8x256xf32>
    %32 = tpu.matmul %9, %19, %cst_29 {dimension_numbers = #tpu.dot_dimension_numbers<[1], [0], [0], [1], [0, 0, 1, 1], [], []>} : vector<8x256xbf16>, vector<256x256xbf16>, vector<8x256xf32> -> vector<8x256xf32>
    %33 = vector.broadcast %21 : vector<1x256xf32> to vector<8x256xf32>
    %34 = arith.addf %32, %33 : vector<8x256xf32>
    %cst_30 = arith.constant 1.250000e-01 : f32
    %35 = vector.broadcast %cst_30 : f32 to vector<8x256xf32>
    %36 = arith.mulf %28, %35 : vector<8x256xf32>
    %37 = vector.extract_strided_slice %36 {offsets = [0, 0], sizes = [8, 64], strides = [1, 1]} : vector<8x256xf32> to vector<8x64xf32>
    %38 = arith.truncf %37 : vector<8x64xf32> to vector<8x64xbf16>
    %39 = vector.extract_strided_slice %31 {offsets = [0, 0], sizes = [8, 64], strides = [1, 1]} : vector<8x256xf32> to vector<8x64xf32>
    %40 = arith.truncf %39 : vector<8x64xf32> to vector<8x64xbf16>
    %41 = vector.extract_strided_slice %34 {offsets = [0, 0], sizes = [8, 64], strides = [1, 1]} : vector<8x256xf32> to vector<8x64xf32>
    %42 = arith.truncf %41 : vector<8x64xf32> to vector<8x64xbf16>
    %cst_31 = arith.constant dense<0.000000e+00> : vector<8x8xf32>
    %43 = tpu.matmul %38, %40, %cst_31 {dimension_numbers = #tpu.dot_dimension_numbers<[1], [1], [0], [0], [0, 0, 1, 0], [], []>} : vector<8x64xbf16>, vector<8x64xbf16>, vector<8x8xf32> -> vector<8x8xf32>
    %cst_32 = arith.constant dense<0xFF800000> : vector<8xf32>
    %44 = vector.multi_reduction <maximumf>, %43, %cst_32 [1] : vector<8x8xf32> to vector<8xf32>
    %45 = vector.shape_cast %44 : vector<8xf32> to vector<8x1xf32>
    %46 = vector.broadcast %45 : vector<8x1xf32> to vector<8x8xf32>
    %47 = arith.subf %43, %46 : vector<8x8xf32>
    %48 = math.exp %47 : vector<8x8xf32>
    %cst_33 = arith.constant dense<0.000000e+00> : vector<8xf32>
    %49 = vector.multi_reduction <add>, %48, %cst_33 [1] : vector<8x8xf32> to vector<8xf32>
    %50 = vector.shape_cast %49 : vector<8xf32> to vector<8x1xf32>
    %51 = vector.broadcast %50 : vector<8x1xf32> to vector<8x8xf32>
    %52 = arith.divf %48, %51 : vector<8x8xf32>
    %53 = arith.truncf %52 : vector<8x8xf32> to vector<8x8xbf16>
    %cst_34 = arith.constant dense<0.000000e+00> : vector<8x64xf32>
    %54 = tpu.matmul %53, %42, %cst_34 {dimension_numbers = #tpu.dot_dimension_numbers<[1], [0], [0], [1], [0, 0, 1, 1], [], []>} : vector<8x8xbf16>, vector<8x64xbf16>, vector<8x64xf32> -> vector<8x64xf32>
    %55 = vector.extract_strided_slice %36 {offsets = [0, 64], sizes = [8, 64], strides = [1, 1]} : vector<8x256xf32> to vector<8x64xf32>
    %56 = arith.truncf %55 : vector<8x64xf32> to vector<8x64xbf16>
    %57 = vector.extract_strided_slice %31 {offsets = [0, 64], sizes = [8, 64], strides = [1, 1]} : vector<8x256xf32> to vector<8x64xf32>
    %58 = arith.truncf %57 : vector<8x64xf32> to vector<8x64xbf16>
    %59 = vector.extract_strided_slice %34 {offsets = [0, 64], sizes = [8, 64], strides = [1, 1]} : vector<8x256xf32> to vector<8x64xf32>
    %60 = arith.truncf %59 : vector<8x64xf32> to vector<8x64xbf16>
    %cst_35 = arith.constant dense<0.000000e+00> : vector<8x8xf32>
    %61 = tpu.matmul %56, %58, %cst_35 {dimension_numbers = #tpu.dot_dimension_numbers<[1], [1], [0], [0], [0, 0, 1, 0], [], []>} : vector<8x64xbf16>, vector<8x64xbf16>, vector<8x8xf32> -> vector<8x8xf32>
    %cst_36 = arith.constant dense<0xFF800000> : vector<8xf32>
    %62 = vector.multi_reduction <maximumf>, %61, %cst_36 [1] : vector<8x8xf32> to vector<8xf32>
    %63 = vector.shape_cast %62 : vector<8xf32> to vector<8x1xf32>
    %64 = vector.broadcast %63 : vector<8x1xf32> to vector<8x8xf32>
    %65 = arith.subf %61, %64 : vector<8x8xf32>
    %66 = math.exp %65 : vector<8x8xf32>
    %cst_37 = arith.constant dense<0.000000e+00> : vector<8xf32>
    %67 = vector.multi_reduction <add>, %66, %cst_37 [1] : vector<8x8xf32> to vector<8xf32>
    %68 = vector.shape_cast %67 : vector<8xf32> to vector<8x1xf32>
    %69 = vector.broadcast %68 : vector<8x1xf32> to vector<8x8xf32>
    %70 = arith.divf %66, %69 : vector<8x8xf32>
    %71 = arith.truncf %70 : vector<8x8xf32> to vector<8x8xbf16>
    %cst_38 = arith.constant dense<0.000000e+00> : vector<8x64xf32>
    %72 = tpu.matmul %71, %60, %cst_38 {dimension_numbers = #tpu.dot_dimension_numbers<[1], [0], [0], [1], [0, 0, 1, 1], [], []>} : vector<8x8xbf16>, vector<8x64xbf16>, vector<8x64xf32> -> vector<8x64xf32>
    %73 = vector.extract_strided_slice %36 {offsets = [0, 128], sizes = [8, 64], strides = [1, 1]} : vector<8x256xf32> to vector<8x64xf32>
    %74 = arith.truncf %73 : vector<8x64xf32> to vector<8x64xbf16>
    %75 = vector.extract_strided_slice %31 {offsets = [0, 128], sizes = [8, 64], strides = [1, 1]} : vector<8x256xf32> to vector<8x64xf32>
    %76 = arith.truncf %75 : vector<8x64xf32> to vector<8x64xbf16>
    %77 = vector.extract_strided_slice %34 {offsets = [0, 128], sizes = [8, 64], strides = [1, 1]} : vector<8x256xf32> to vector<8x64xf32>
    %78 = arith.truncf %77 : vector<8x64xf32> to vector<8x64xbf16>
    %cst_39 = arith.constant dense<0.000000e+00> : vector<8x8xf32>
    %79 = tpu.matmul %74, %76, %cst_39 {dimension_numbers = #tpu.dot_dimension_numbers<[1], [1], [0], [0], [0, 0, 1, 0], [], []>} : vector<8x64xbf16>, vector<8x64xbf16>, vector<8x8xf32> -> vector<8x8xf32>
    %cst_40 = arith.constant dense<0xFF800000> : vector<8xf32>
    %80 = vector.multi_reduction <maximumf>, %79, %cst_40 [1] : vector<8x8xf32> to vector<8xf32>
    %81 = vector.shape_cast %80 : vector<8xf32> to vector<8x1xf32>
    %82 = vector.broadcast %81 : vector<8x1xf32> to vector<8x8xf32>
    %83 = arith.subf %79, %82 : vector<8x8xf32>
    %84 = math.exp %83 : vector<8x8xf32>
    %cst_41 = arith.constant dense<0.000000e+00> : vector<8xf32>
    %85 = vector.multi_reduction <add>, %84, %cst_41 [1] : vector<8x8xf32> to vector<8xf32>
    %86 = vector.shape_cast %85 : vector<8xf32> to vector<8x1xf32>
    %87 = vector.broadcast %86 : vector<8x1xf32> to vector<8x8xf32>
    %88 = arith.divf %84, %87 : vector<8x8xf32>
    %89 = arith.truncf %88 : vector<8x8xf32> to vector<8x8xbf16>
    %cst_42 = arith.constant dense<0.000000e+00> : vector<8x64xf32>
    %90 = tpu.matmul %89, %78, %cst_42 {dimension_numbers = #tpu.dot_dimension_numbers<[1], [0], [0], [1], [0, 0, 1, 1], [], []>} : vector<8x8xbf16>, vector<8x64xbf16>, vector<8x64xf32> -> vector<8x64xf32>
    %91 = vector.extract_strided_slice %36 {offsets = [0, 192], sizes = [8, 64], strides = [1, 1]} : vector<8x256xf32> to vector<8x64xf32>
    %92 = arith.truncf %91 : vector<8x64xf32> to vector<8x64xbf16>
    %93 = vector.extract_strided_slice %31 {offsets = [0, 192], sizes = [8, 64], strides = [1, 1]} : vector<8x256xf32> to vector<8x64xf32>
    %94 = arith.truncf %93 : vector<8x64xf32> to vector<8x64xbf16>
    %95 = vector.extract_strided_slice %34 {offsets = [0, 192], sizes = [8, 64], strides = [1, 1]} : vector<8x256xf32> to vector<8x64xf32>
    %96 = arith.truncf %95 : vector<8x64xf32> to vector<8x64xbf16>
    %cst_43 = arith.constant dense<0.000000e+00> : vector<8x8xf32>
    %97 = tpu.matmul %92, %94, %cst_43 {dimension_numbers = #tpu.dot_dimension_numbers<[1], [1], [0], [0], [0, 0, 1, 0], [], []>} : vector<8x64xbf16>, vector<8x64xbf16>, vector<8x8xf32> -> vector<8x8xf32>
    %cst_44 = arith.constant dense<0xFF800000> : vector<8xf32>
    %98 = vector.multi_reduction <maximumf>, %97, %cst_44 [1] : vector<8x8xf32> to vector<8xf32>
    %99 = vector.shape_cast %98 : vector<8xf32> to vector<8x1xf32>
    %100 = vector.broadcast %99 : vector<8x1xf32> to vector<8x8xf32>
    %101 = arith.subf %97, %100 : vector<8x8xf32>
    %102 = math.exp %101 : vector<8x8xf32>
    %cst_45 = arith.constant dense<0.000000e+00> : vector<8xf32>
    %103 = vector.multi_reduction <add>, %102, %cst_45 [1] : vector<8x8xf32> to vector<8xf32>
    %104 = vector.shape_cast %103 : vector<8xf32> to vector<8x1xf32>
    %105 = vector.broadcast %104 : vector<8x1xf32> to vector<8x8xf32>
    %106 = arith.divf %102, %105 : vector<8x8xf32>
    %107 = arith.truncf %106 : vector<8x8xf32> to vector<8x8xbf16>
    %cst_46 = arith.constant dense<0.000000e+00> : vector<8x64xf32>
    %108 = tpu.matmul %107, %96, %cst_46 {dimension_numbers = #tpu.dot_dimension_numbers<[1], [0], [0], [1], [0, 0, 1, 1], [], []>} : vector<8x8xbf16>, vector<8x64xbf16>, vector<8x64xf32> -> vector<8x64xf32>
    %109 = tpu.concatenate %54, %72, %90, %108 in 1 : vector<8x64xf32>, vector<8x64xf32>, vector<8x64xf32>, vector<8x64xf32> -> vector<8x256xf32>
    %110 = arith.truncf %109 : vector<8x256xf32> to vector<8x256xbf16>
    %cst_47 = arith.constant dense<0.000000e+00> : vector<8x256xf32>
    %111 = tpu.matmul %110, %23, %cst_47 {dimension_numbers = #tpu.dot_dimension_numbers<[1], [0], [0], [1], [0, 0, 1, 1], [], []>} : vector<8x256xbf16>, vector<256x256xbf16>, vector<8x256xf32> -> vector<8x256xf32>
    %112 = vector.broadcast %25 : vector<1x256xf32> to vector<8x256xf32>
    %113 = arith.addf %111, %112 : vector<8x256xf32>
    %114 = arith.addf %5, %113 : vector<8x256xf32>
    %c0_48 = arith.constant 0 : index
    %c0_49 = arith.constant 0 : index
    %c0_50 = arith.constant 0 : index
    %115 = vector.load %arg20[%c0_48, %c0_49, %c0_50] : memref<1x1x256xf32, #tpu.memory_space<vmem>>, vector<1x1x256xf32>
    %116 = vector.shape_cast %115 : vector<1x1x256xf32> to vector<1x256xf32>
    %c0_51 = arith.constant 0 : index
    %c0_52 = arith.constant 0 : index
    %c0_53 = arith.constant 0 : index
    %117 = vector.load %arg21[%c0_51, %c0_52, %c0_53] : memref<1x1x256xf32, #tpu.memory_space<vmem>>, vector<1x1x256xf32>
    %118 = vector.shape_cast %117 : vector<1x1x256xf32> to vector<1x256xf32>
    %cst_54 = arith.constant dense<0.000000e+00> : vector<8xf32>
    %119 = vector.multi_reduction <add>, %114, %cst_54 [1] : vector<8x256xf32> to vector<8xf32>
    %120 = vector.shape_cast %119 : vector<8xf32> to vector<8x1xf32>
    %cst_55 = arith.constant 2.560000e+02 : f32
    %121 = vector.broadcast %cst_55 : f32 to vector<8x1xf32>
    %122 = arith.divf %120, %121 : vector<8x1xf32>
    %123 = vector.broadcast %122 : vector<8x1xf32> to vector<8x256xf32>
    %124 = arith.subf %114, %123 : vector<8x256xf32>
    %125 = arith.mulf %124, %124 : vector<8x256xf32>
    %cst_56 = arith.constant dense<0.000000e+00> : vector<8xf32>
    %126 = vector.multi_reduction <add>, %125, %cst_56 [1] : vector<8x256xf32> to vector<8xf32>
    %127 = vector.shape_cast %126 : vector<8xf32> to vector<8x1xf32>
    %cst_57 = arith.constant 2.560000e+02 : f32
    %128 = vector.broadcast %cst_57 : f32 to vector<8x1xf32>
    %129 = arith.divf %127, %128 : vector<8x1xf32>
    %cst_58 = arith.constant 9.99999974E-6 : f32
    %130 = vector.broadcast %cst_58 : f32 to vector<8x1xf32>
    %131 = arith.addf %129, %130 : vector<8x1xf32>
    %132 = math.rsqrt %131 : vector<8x1xf32>
    %133 = vector.broadcast %132 : vector<8x1xf32> to vector<8x256xf32>
    %134 = arith.mulf %124, %133 : vector<8x256xf32>
    %135 = vector.broadcast %116 : vector<1x256xf32> to vector<8x256xf32>
    %136 = arith.mulf %134, %135 : vector<8x256xf32>
    %137 = vector.broadcast %118 : vector<1x256xf32> to vector<8x256xf32>
    %138 = arith.addf %136, %137 : vector<8x256xf32>
    %139 = arith.truncf %138 : vector<8x256xf32> to vector<8x256xbf16>
    %c0_59 = arith.constant 0 : index
    %c0_60 = arith.constant 0 : index
    %c0_61 = arith.constant 0 : index
    %140 = vector.load %arg12[%c0_59, %c0_60, %c0_61] : memref<1x256x256xbf16, #tpu.memory_space<vmem>>, vector<1x256x256xbf16>
    %141 = vector.shape_cast %140 : vector<1x256x256xbf16> to vector<256x256xbf16>
    %c0_62 = arith.constant 0 : index
    %c0_63 = arith.constant 0 : index
    %c0_64 = arith.constant 0 : index
    %142 = vector.load %arg13[%c0_62, %c0_63, %c0_64] : memref<1x1x256xf32, #tpu.memory_space<vmem>>, vector<1x1x256xf32>
    %143 = vector.shape_cast %142 : vector<1x1x256xf32> to vector<1x256xf32>
    %c0_65 = arith.constant 0 : index
    %c0_66 = arith.constant 0 : index
    %c0_67 = arith.constant 0 : index
    %144 = vector.load %arg14[%c0_65, %c0_66, %c0_67] : memref<1x256x256xbf16, #tpu.memory_space<vmem>>, vector<1x256x256xbf16>
    %145 = vector.shape_cast %144 : vector<1x256x256xbf16> to vector<256x256xbf16>
    %c0_68 = arith.constant 0 : index
    %c0_69 = arith.constant 0 : index
    %c0_70 = arith.constant 0 : index
    %146 = vector.load %arg15[%c0_68, %c0_69, %c0_70] : memref<1x1x256xf32, #tpu.memory_space<vmem>>, vector<1x1x256xf32>
    %147 = vector.shape_cast %146 : vector<1x1x256xf32> to vector<1x256xf32>
    %c0_71 = arith.constant 0 : index
    %c0_72 = arith.constant 0 : index
    %c0_73 = arith.constant 0 : index
    %148 = vector.load %arg16[%c0_71, %c0_72, %c0_73] : memref<1x256x256xbf16, #tpu.memory_space<vmem>>, vector<1x256x256xbf16>
    %149 = vector.shape_cast %148 : vector<1x256x256xbf16> to vector<256x256xbf16>
    %c0_74 = arith.constant 0 : index
    %c0_75 = arith.constant 0 : index
    %c0_76 = arith.constant 0 : index
    %150 = vector.load %arg17[%c0_74, %c0_75, %c0_76] : memref<1x1x256xf32, #tpu.memory_space<vmem>>, vector<1x1x256xf32>
    %151 = vector.shape_cast %150 : vector<1x1x256xf32> to vector<1x256xf32>
    %c0_77 = arith.constant 0 : index
    %c0_78 = arith.constant 0 : index
    %c0_79 = arith.constant 0 : index
    %152 = vector.load %arg18[%c0_77, %c0_78, %c0_79] : memref<1x256x256xbf16, #tpu.memory_space<vmem>>, vector<1x256x256xbf16>
    %153 = vector.shape_cast %152 : vector<1x256x256xbf16> to vector<256x256xbf16>
    %c0_80 = arith.constant 0 : index
    %c0_81 = arith.constant 0 : index
    %c0_82 = arith.constant 0 : index
    %154 = vector.load %arg19[%c0_80, %c0_81, %c0_82] : memref<1x1x256xf32, #tpu.memory_space<vmem>>, vector<1x1x256xf32>
    %155 = vector.shape_cast %154 : vector<1x1x256xf32> to vector<1x256xf32>
    %cst_83 = arith.constant dense<0.000000e+00> : vector<8x256xf32>
    %156 = tpu.matmul %139, %141, %cst_83 {dimension_numbers = #tpu.dot_dimension_numbers<[1], [0], [0], [1], [0, 0, 1, 1], [], []>} : vector<8x256xbf16>, vector<256x256xbf16>, vector<8x256xf32> -> vector<8x256xf32>
    %157 = vector.broadcast %143 : vector<1x256xf32> to vector<8x256xf32>
    %158 = arith.addf %156, %157 : vector<8x256xf32>
    %cst_84 = arith.constant dense<0.000000e+00> : vector<256x256xf32>
    %159 = tpu.matmul %8, %145, %cst_84 {dimension_numbers = #tpu.dot_dimension_numbers<[1], [0], [0], [1], [0, 0, 1, 1], [], []>} : vector<256x256xbf16>, vector<256x256xbf16>, vector<256x256xf32> -> vector<256x256xf32>
    %160 = vector.broadcast %147 : vector<1x256xf32> to vector<256x256xf32>
    %161 = arith.addf %159, %160 : vector<256x256xf32>
    %cst_85 = arith.constant dense<0.000000e+00> : vector<256x256xf32>
    %162 = tpu.matmul %8, %149, %cst_85 {dimension_numbers = #tpu.dot_dimension_numbers<[1], [0], [0], [1], [0, 0, 1, 1], [], []>} : vector<256x256xbf16>, vector<256x256xbf16>, vector<256x256xf32> -> vector<256x256xf32>
    %163 = vector.broadcast %151 : vector<1x256xf32> to vector<256x256xf32>
    %164 = arith.addf %162, %163 : vector<256x256xf32>
    %cst_86 = arith.constant 1.250000e-01 : f32
    %165 = vector.broadcast %cst_86 : f32 to vector<8x256xf32>
    %166 = arith.mulf %158, %165 : vector<8x256xf32>
    %167 = vector.extract_strided_slice %166 {offsets = [0, 0], sizes = [8, 64], strides = [1, 1]} : vector<8x256xf32> to vector<8x64xf32>
    %168 = arith.truncf %167 : vector<8x64xf32> to vector<8x64xbf16>
    %169 = vector.extract_strided_slice %161 {offsets = [0, 0], sizes = [256, 64], strides = [1, 1]} : vector<256x256xf32> to vector<256x64xf32>
    %170 = arith.truncf %169 : vector<256x64xf32> to vector<256x64xbf16>
    %171 = vector.extract_strided_slice %164 {offsets = [0, 0], sizes = [256, 64], strides = [1, 1]} : vector<256x256xf32> to vector<256x64xf32>
    %172 = arith.truncf %171 : vector<256x64xf32> to vector<256x64xbf16>
    %cst_87 = arith.constant dense<0.000000e+00> : vector<8x256xf32>
    %173 = tpu.matmul %168, %170, %cst_87 {dimension_numbers = #tpu.dot_dimension_numbers<[1], [1], [0], [0], [0, 0, 1, 0], [], []>} : vector<8x64xbf16>, vector<256x64xbf16>, vector<8x256xf32> -> vector<8x256xf32>
    %cst_88 = arith.constant dense<0xFF800000> : vector<8xf32>
    %174 = vector.multi_reduction <maximumf>, %173, %cst_88 [1] : vector<8x256xf32> to vector<8xf32>
    %175 = vector.shape_cast %174 : vector<8xf32> to vector<8x1xf32>
    %176 = vector.broadcast %175 : vector<8x1xf32> to vector<8x256xf32>
    %177 = arith.subf %173, %176 : vector<8x256xf32>
    %178 = math.exp %177 : vector<8x256xf32>
    %cst_89 = arith.constant dense<0.000000e+00> : vector<8xf32>
    %179 = vector.multi_reduction <add>, %178, %cst_89 [1] : vector<8x256xf32> to vector<8xf32>
    %180 = vector.shape_cast %179 : vector<8xf32> to vector<8x1xf32>
    %181 = vector.broadcast %180 : vector<8x1xf32> to vector<8x256xf32>
    %182 = arith.divf %178, %181 : vector<8x256xf32>
    %183 = arith.truncf %182 : vector<8x256xf32> to vector<8x256xbf16>
    %cst_90 = arith.constant dense<0.000000e+00> : vector<8x64xf32>
    %184 = tpu.matmul %183, %172, %cst_90 {dimension_numbers = #tpu.dot_dimension_numbers<[1], [0], [0], [1], [0, 0, 1, 1], [], []>} : vector<8x256xbf16>, vector<256x64xbf16>, vector<8x64xf32> -> vector<8x64xf32>
    %185 = vector.extract_strided_slice %166 {offsets = [0, 64], sizes = [8, 64], strides = [1, 1]} : vector<8x256xf32> to vector<8x64xf32>
    %186 = arith.truncf %185 : vector<8x64xf32> to vector<8x64xbf16>
    %187 = vector.extract_strided_slice %161 {offsets = [0, 64], sizes = [256, 64], strides = [1, 1]} : vector<256x256xf32> to vector<256x64xf32>
    %188 = arith.truncf %187 : vector<256x64xf32> to vector<256x64xbf16>
    %189 = vector.extract_strided_slice %164 {offsets = [0, 64], sizes = [256, 64], strides = [1, 1]} : vector<256x256xf32> to vector<256x64xf32>
    %190 = arith.truncf %189 : vector<256x64xf32> to vector<256x64xbf16>
    %cst_91 = arith.constant dense<0.000000e+00> : vector<8x256xf32>
    %191 = tpu.matmul %186, %188, %cst_91 {dimension_numbers = #tpu.dot_dimension_numbers<[1], [1], [0], [0], [0, 0, 1, 0], [], []>} : vector<8x64xbf16>, vector<256x64xbf16>, vector<8x256xf32> -> vector<8x256xf32>
    %cst_92 = arith.constant dense<0xFF800000> : vector<8xf32>
    %192 = vector.multi_reduction <maximumf>, %191, %cst_92 [1] : vector<8x256xf32> to vector<8xf32>
    %193 = vector.shape_cast %192 : vector<8xf32> to vector<8x1xf32>
    %194 = vector.broadcast %193 : vector<8x1xf32> to vector<8x256xf32>
    %195 = arith.subf %191, %194 : vector<8x256xf32>
    %196 = math.exp %195 : vector<8x256xf32>
    %cst_93 = arith.constant dense<0.000000e+00> : vector<8xf32>
    %197 = vector.multi_reduction <add>, %196, %cst_93 [1] : vector<8x256xf32> to vector<8xf32>
    %198 = vector.shape_cast %197 : vector<8xf32> to vector<8x1xf32>
    %199 = vector.broadcast %198 : vector<8x1xf32> to vector<8x256xf32>
    %200 = arith.divf %196, %199 : vector<8x256xf32>
    %201 = arith.truncf %200 : vector<8x256xf32> to vector<8x256xbf16>
    %cst_94 = arith.constant dense<0.000000e+00> : vector<8x64xf32>
    %202 = tpu.matmul %201, %190, %cst_94 {dimension_numbers = #tpu.dot_dimension_numbers<[1], [0], [0], [1], [0, 0, 1, 1], [], []>} : vector<8x256xbf16>, vector<256x64xbf16>, vector<8x64xf32> -> vector<8x64xf32>
    %203 = vector.extract_strided_slice %166 {offsets = [0, 128], sizes = [8, 64], strides = [1, 1]} : vector<8x256xf32> to vector<8x64xf32>
    %204 = arith.truncf %203 : vector<8x64xf32> to vector<8x64xbf16>
    %205 = vector.extract_strided_slice %161 {offsets = [0, 128], sizes = [256, 64], strides = [1, 1]} : vector<256x256xf32> to vector<256x64xf32>
    %206 = arith.truncf %205 : vector<256x64xf32> to vector<256x64xbf16>
    %207 = vector.extract_strided_slice %164 {offsets = [0, 128], sizes = [256, 64], strides = [1, 1]} : vector<256x256xf32> to vector<256x64xf32>
    %208 = arith.truncf %207 : vector<256x64xf32> to vector<256x64xbf16>
    %cst_95 = arith.constant dense<0.000000e+00> : vector<8x256xf32>
    %209 = tpu.matmul %204, %206, %cst_95 {dimension_numbers = #tpu.dot_dimension_numbers<[1], [1], [0], [0], [0, 0, 1, 0], [], []>} : vector<8x64xbf16>, vector<256x64xbf16>, vector<8x256xf32> -> vector<8x256xf32>
    %cst_96 = arith.constant dense<0xFF800000> : vector<8xf32>
    %210 = vector.multi_reduction <maximumf>, %209, %cst_96 [1] : vector<8x256xf32> to vector<8xf32>
    %211 = vector.shape_cast %210 : vector<8xf32> to vector<8x1xf32>
    %212 = vector.broadcast %211 : vector<8x1xf32> to vector<8x256xf32>
    %213 = arith.subf %209, %212 : vector<8x256xf32>
    %214 = math.exp %213 : vector<8x256xf32>
    %cst_97 = arith.constant dense<0.000000e+00> : vector<8xf32>
    %215 = vector.multi_reduction <add>, %214, %cst_97 [1] : vector<8x256xf32> to vector<8xf32>
    %216 = vector.shape_cast %215 : vector<8xf32> to vector<8x1xf32>
    %217 = vector.broadcast %216 : vector<8x1xf32> to vector<8x256xf32>
    %218 = arith.divf %214, %217 : vector<8x256xf32>
    %219 = arith.truncf %218 : vector<8x256xf32> to vector<8x256xbf16>
    %cst_98 = arith.constant dense<0.000000e+00> : vector<8x64xf32>
    %220 = tpu.matmul %219, %208, %cst_98 {dimension_numbers = #tpu.dot_dimension_numbers<[1], [0], [0], [1], [0, 0, 1, 1], [], []>} : vector<8x256xbf16>, vector<256x64xbf16>, vector<8x64xf32> -> vector<8x64xf32>
    %221 = vector.extract_strided_slice %166 {offsets = [0, 192], sizes = [8, 64], strides = [1, 1]} : vector<8x256xf32> to vector<8x64xf32>
    %222 = arith.truncf %221 : vector<8x64xf32> to vector<8x64xbf16>
    %223 = vector.extract_strided_slice %161 {offsets = [0, 192], sizes = [256, 64], strides = [1, 1]} : vector<256x256xf32> to vector<256x64xf32>
    %224 = arith.truncf %223 : vector<256x64xf32> to vector<256x64xbf16>
    %225 = vector.extract_strided_slice %164 {offsets = [0, 192], sizes = [256, 64], strides = [1, 1]} : vector<256x256xf32> to vector<256x64xf32>
    %226 = arith.truncf %225 : vector<256x64xf32> to vector<256x64xbf16>
    %cst_99 = arith.constant dense<0.000000e+00> : vector<8x256xf32>
    %227 = tpu.matmul %222, %224, %cst_99 {dimension_numbers = #tpu.dot_dimension_numbers<[1], [1], [0], [0], [0, 0, 1, 0], [], []>} : vector<8x64xbf16>, vector<256x64xbf16>, vector<8x256xf32> -> vector<8x256xf32>
    %cst_100 = arith.constant dense<0xFF800000> : vector<8xf32>
    %228 = vector.multi_reduction <maximumf>, %227, %cst_100 [1] : vector<8x256xf32> to vector<8xf32>
    %229 = vector.shape_cast %228 : vector<8xf32> to vector<8x1xf32>
    %230 = vector.broadcast %229 : vector<8x1xf32> to vector<8x256xf32>
    %231 = arith.subf %227, %230 : vector<8x256xf32>
    %232 = math.exp %231 : vector<8x256xf32>
    %cst_101 = arith.constant dense<0.000000e+00> : vector<8xf32>
    %233 = vector.multi_reduction <add>, %232, %cst_101 [1] : vector<8x256xf32> to vector<8xf32>
    %234 = vector.shape_cast %233 : vector<8xf32> to vector<8x1xf32>
    %235 = vector.broadcast %234 : vector<8x1xf32> to vector<8x256xf32>
    %236 = arith.divf %232, %235 : vector<8x256xf32>
    %237 = arith.truncf %236 : vector<8x256xf32> to vector<8x256xbf16>
    %cst_102 = arith.constant dense<0.000000e+00> : vector<8x64xf32>
    %238 = tpu.matmul %237, %226, %cst_102 {dimension_numbers = #tpu.dot_dimension_numbers<[1], [0], [0], [1], [0, 0, 1, 1], [], []>} : vector<8x256xbf16>, vector<256x64xbf16>, vector<8x64xf32> -> vector<8x64xf32>
    %239 = tpu.concatenate %184, %202, %220, %238 in 1 : vector<8x64xf32>, vector<8x64xf32>, vector<8x64xf32>, vector<8x64xf32> -> vector<8x256xf32>
    %240 = arith.truncf %239 : vector<8x256xf32> to vector<8x256xbf16>
    %cst_103 = arith.constant dense<0.000000e+00> : vector<8x256xf32>
    %241 = tpu.matmul %240, %153, %cst_103 {dimension_numbers = #tpu.dot_dimension_numbers<[1], [0], [0], [1], [0, 0, 1, 1], [], []>} : vector<8x256xbf16>, vector<256x256xbf16>, vector<8x256xf32> -> vector<8x256xf32>
    %242 = vector.broadcast %155 : vector<1x256xf32> to vector<8x256xf32>
    %243 = arith.addf %241, %242 : vector<8x256xf32>
    %244 = arith.addf %138, %243 : vector<8x256xf32>
    %c0_104 = arith.constant 0 : index
    %c0_105 = arith.constant 0 : index
    %c0_106 = arith.constant 0 : index
    %245 = vector.load %arg22[%c0_104, %c0_105, %c0_106] : memref<1x1x256xf32, #tpu.memory_space<vmem>>, vector<1x1x256xf32>
    %246 = vector.shape_cast %245 : vector<1x1x256xf32> to vector<1x256xf32>
    %c0_107 = arith.constant 0 : index
    %c0_108 = arith.constant 0 : index
    %c0_109 = arith.constant 0 : index
    %247 = vector.load %arg23[%c0_107, %c0_108, %c0_109] : memref<1x1x256xf32, #tpu.memory_space<vmem>>, vector<1x1x256xf32>
    %248 = vector.shape_cast %247 : vector<1x1x256xf32> to vector<1x256xf32>
    %cst_110 = arith.constant dense<0.000000e+00> : vector<8xf32>
    %249 = vector.multi_reduction <add>, %244, %cst_110 [1] : vector<8x256xf32> to vector<8xf32>
    %250 = vector.shape_cast %249 : vector<8xf32> to vector<8x1xf32>
    %cst_111 = arith.constant 2.560000e+02 : f32
    %251 = vector.broadcast %cst_111 : f32 to vector<8x1xf32>
    %252 = arith.divf %250, %251 : vector<8x1xf32>
    %253 = vector.broadcast %252 : vector<8x1xf32> to vector<8x256xf32>
    %254 = arith.subf %244, %253 : vector<8x256xf32>
    %255 = arith.mulf %254, %254 : vector<8x256xf32>
    %cst_112 = arith.constant dense<0.000000e+00> : vector<8xf32>
    %256 = vector.multi_reduction <add>, %255, %cst_112 [1] : vector<8x256xf32> to vector<8xf32>
    %257 = vector.shape_cast %256 : vector<8xf32> to vector<8x1xf32>
    %cst_113 = arith.constant 2.560000e+02 : f32
    %258 = vector.broadcast %cst_113 : f32 to vector<8x1xf32>
    %259 = arith.divf %257, %258 : vector<8x1xf32>
    %cst_114 = arith.constant 9.99999974E-6 : f32
    %260 = vector.broadcast %cst_114 : f32 to vector<8x1xf32>
    %261 = arith.addf %259, %260 : vector<8x1xf32>
    %262 = math.rsqrt %261 : vector<8x1xf32>
    %263 = vector.broadcast %262 : vector<8x1xf32> to vector<8x256xf32>
    %264 = arith.mulf %254, %263 : vector<8x256xf32>
    %265 = vector.broadcast %246 : vector<1x256xf32> to vector<8x256xf32>
    %266 = arith.mulf %264, %265 : vector<8x256xf32>
    %267 = vector.broadcast %248 : vector<1x256xf32> to vector<8x256xf32>
    %268 = arith.addf %266, %267 : vector<8x256xf32>
    %269 = arith.truncf %268 : vector<8x256xf32> to vector<8x256xbf16>
    %c0_115 = arith.constant 0 : index
    %c0_116 = arith.constant 0 : index
    %c0_117 = arith.constant 0 : index
    %270 = vector.load %arg26[%c0_115, %c0_116, %c0_117] : memref<1x256x2048xbf16, #tpu.memory_space<vmem>>, vector<1x256x2048xbf16>
    %271 = vector.shape_cast %270 : vector<1x256x2048xbf16> to vector<256x2048xbf16>
    %cst_118 = arith.constant dense<0.000000e+00> : vector<8x2048xf32>
    %272 = tpu.matmul %269, %271, %cst_118 {dimension_numbers = #tpu.dot_dimension_numbers<[1], [0], [0], [1], [0, 0, 1, 1], [], []>} : vector<8x256xbf16>, vector<256x2048xbf16>, vector<8x2048xf32> -> vector<8x2048xf32>
    %c0_119 = arith.constant 0 : index
    %c0_120 = arith.constant 0 : index
    %c0_121 = arith.constant 0 : index
    %273 = vector.load %arg27[%c0_119, %c0_120, %c0_121] : memref<1x1x2048xf32, #tpu.memory_space<vmem>>, vector<1x1x2048xf32>
    %274 = vector.shape_cast %273 : vector<1x1x2048xf32> to vector<1x2048xf32>
    %275 = vector.broadcast %274 : vector<1x2048xf32> to vector<8x2048xf32>
    %276 = arith.addf %272, %275 : vector<8x2048xf32>
    %cst_122 = arith.constant 0.000000e+00 : f32
    %277 = vector.broadcast %cst_122 : f32 to vector<8x2048xf32>
    %278 = arith.maximumf %276, %277 : vector<8x2048xf32>
    %279 = arith.truncf %278 : vector<8x2048xf32> to vector<8x2048xbf16>
    %c0_123 = arith.constant 0 : index
    %c0_124 = arith.constant 0 : index
    %c0_125 = arith.constant 0 : index
    %280 = vector.load %arg28[%c0_123, %c0_124, %c0_125] : memref<1x2048x256xbf16, #tpu.memory_space<vmem>>, vector<1x2048x256xbf16>
    %281 = vector.shape_cast %280 : vector<1x2048x256xbf16> to vector<2048x256xbf16>
    %cst_126 = arith.constant dense<0.000000e+00> : vector<8x256xf32>
    %282 = tpu.matmul %279, %281, %cst_126 {dimension_numbers = #tpu.dot_dimension_numbers<[1], [0], [0], [1], [0, 0, 1, 1], [], []>} : vector<8x2048xbf16>, vector<2048x256xbf16>, vector<8x256xf32> -> vector<8x256xf32>
    %c0_127 = arith.constant 0 : index
    %c0_128 = arith.constant 0 : index
    %c0_129 = arith.constant 0 : index
    %283 = vector.load %arg29[%c0_127, %c0_128, %c0_129] : memref<1x1x256xf32, #tpu.memory_space<vmem>>, vector<1x1x256xf32>
    %284 = vector.shape_cast %283 : vector<1x1x256xf32> to vector<1x256xf32>
    %285 = vector.broadcast %284 : vector<1x256xf32> to vector<8x256xf32>
    %286 = arith.addf %282, %285 : vector<8x256xf32>
    %287 = arith.addf %268, %286 : vector<8x256xf32>
    %c0_130 = arith.constant 0 : index
    %c0_131 = arith.constant 0 : index
    %c0_132 = arith.constant 0 : index
    %288 = vector.load %arg24[%c0_130, %c0_131, %c0_132] : memref<1x1x256xf32, #tpu.memory_space<vmem>>, vector<1x1x256xf32>
    %289 = vector.shape_cast %288 : vector<1x1x256xf32> to vector<1x256xf32>
    %c0_133 = arith.constant 0 : index
    %c0_134 = arith.constant 0 : index
    %c0_135 = arith.constant 0 : index
    %290 = vector.load %arg25[%c0_133, %c0_134, %c0_135] : memref<1x1x256xf32, #tpu.memory_space<vmem>>, vector<1x1x256xf32>
    %291 = vector.shape_cast %290 : vector<1x1x256xf32> to vector<1x256xf32>
    %cst_136 = arith.constant dense<0.000000e+00> : vector<8xf32>
    %292 = vector.multi_reduction <add>, %287, %cst_136 [1] : vector<8x256xf32> to vector<8xf32>
    %293 = vector.shape_cast %292 : vector<8xf32> to vector<8x1xf32>
    %cst_137 = arith.constant 2.560000e+02 : f32
    %294 = vector.broadcast %cst_137 : f32 to vector<8x1xf32>
    %295 = arith.divf %293, %294 : vector<8x1xf32>
    %296 = vector.broadcast %295 : vector<8x1xf32> to vector<8x256xf32>
    %297 = arith.subf %287, %296 : vector<8x256xf32>
    %298 = arith.mulf %297, %297 : vector<8x256xf32>
    %cst_138 = arith.constant dense<0.000000e+00> : vector<8xf32>
    %299 = vector.multi_reduction <add>, %298, %cst_138 [1] : vector<8x256xf32> to vector<8xf32>
    %300 = vector.shape_cast %299 : vector<8xf32> to vector<8x1xf32>
    %cst_139 = arith.constant 2.560000e+02 : f32
    %301 = vector.broadcast %cst_139 : f32 to vector<8x1xf32>
    %302 = arith.divf %300, %301 : vector<8x1xf32>
    %cst_140 = arith.constant 9.99999974E-6 : f32
    %303 = vector.broadcast %cst_140 : f32 to vector<8x1xf32>
    %304 = arith.addf %302, %303 : vector<8x1xf32>
    %305 = math.rsqrt %304 : vector<8x1xf32>
    %306 = vector.broadcast %305 : vector<8x1xf32> to vector<8x256xf32>
    %307 = arith.mulf %297, %306 : vector<8x256xf32>
    %308 = vector.broadcast %289 : vector<1x256xf32> to vector<8x256xf32>
    %309 = arith.mulf %307, %308 : vector<8x256xf32>
    %310 = vector.broadcast %291 : vector<1x256xf32> to vector<8x256xf32>
    %311 = arith.addf %309, %310 : vector<8x256xf32>
    %312 = arith.index_cast %arg1 : i32 to index
    %c0_141 = arith.constant 0 : index
    %c0_142 = arith.constant 0 : index
    %313 = vector.load %arg33[%312, %c0_141, %c0_142] : memref<2x8x256xf32, #tpu.memory_space<vmem>>, vector<1x8x256xf32>
    %314 = vector.shape_cast %313 : vector<1x8x256xf32> to vector<8x256xf32>
    %315 = vector.shape_cast %311 : vector<8x256xf32> to vector<1x8x256xf32>
    tpu.vector_store %arg33[%312, %c0_141, %c0_142], %315 {strides = array<i32>} : memref<2x8x256xf32, #tpu.memory_space<vmem>>, vector<1x8x256xf32>,
    %c5_i32 = arith.constant 5 : i32
    %316 = arith.cmpi eq, %arg0, %c5_i32 : i32
    %317 = arith.extui %316 : i1 to i32
    %c0_i32_143 = arith.constant 0 : i32
    %318 = arith.cmpi ne, %317, %c0_i32_143 : i32
    scf.if %318 {
      %319 = vector.extract_strided_slice %311 {offsets = [0, 0], sizes = [1, 256], strides = [1, 1]} : vector<8x256xf32> to vector<1x256xf32>
      %320 = arith.truncf %319 : vector<1x256xf32> to vector<1x256xbf16>
      %c0_144 = arith.constant 0 : index
      %c0_145 = arith.constant 0 : index
      %321 = vector.load %arg30[%c0_144, %c0_145] : memref<256x128xbf16, #tpu.memory_space<vmem>>, vector<256x128xbf16>
      %cst_146 = arith.constant dense<0.000000e+00> : vector<1x128xf32>
      %322 = tpu.matmul %320, %321, %cst_146 {dimension_numbers = #tpu.dot_dimension_numbers<[1], [0], [0], [1], [0, 0, 1, 1], [], []>} : vector<1x256xbf16>, vector<256x128xbf16>, vector<1x128xf32> -> vector<1x128xf32>
      %c0_147 = arith.constant 0 : index
      %c0_148 = arith.constant 0 : index
      %323 = vector.load %arg31[%c0_147, %c0_148] : memref<1x128xf32, #tpu.memory_space<vmem>>, vector<1x128xf32>
      %324 = arith.addf %322, %323 : vector<1x128xf32>
      %cst_149 = arith.constant 0.000000e+00 : f32
      %325 = vector.broadcast %cst_149 : f32 to vector<1x128xf32>
      %326 = arith.maximumf %324, %325 : vector<1x128xf32>
      %327 = arith.index_cast %arg1 : i32 to index
      %c0_150 = arith.constant 0 : index
      %328 = vector.load %arg32[%327, %c0_150] : memref<2x128xf32, #tpu.memory_space<vmem>>, vector<1x128xf32>
      tpu.vector_store %arg32[%327, %c0_150], %326 {strides = array<i32>} : memref<2x128xf32, #tpu.memory_space<vmem>>, vector<1x128xf32>,
    } else {
    }
    return
  }
  func.func @transform_0(%arg0: i32, %arg1: i32) -> (i32, i32, i32) {
    %c0_i32 = arith.constant 0 : i32
    %c0_i32_0 = arith.constant 0 : i32
    %c0_i32_1 = arith.constant 0 : i32
    %c0_i32_2 = arith.constant 0 : i32
    return %c0_i32, %c0_i32_0, %c0_i32_1 : i32, i32, i32
  }
  func.func @transform_1(%arg0: i32, %arg1: i32) -> (i32, i32) {
    %c0_i32 = arith.constant 0 : i32
    %c0_i32_0 = arith.constant 0 : i32
    %c0_i32_1 = arith.constant 0 : i32
    return %c0_i32, %c0_i32_0 : i32, i32
  }
  func.func @transform_2(%arg0: i32, %arg1: i32) -> (i32, i32, i32) {
    %c0_i32 = arith.constant 0 : i32
    %c0_i32_0 = arith.constant 0 : i32
    %c0_i32_1 = arith.constant 0 : i32
    return %arg0, %c0_i32, %c0_i32_0 : i32, i32, i32
  }
  func.func @transform_3(%arg0: i32, %arg1: i32) -> (i32, i32, i32) {
    %c0_i32 = arith.constant 0 : i32
    %c0_i32_0 = arith.constant 0 : i32
    %c0_i32_1 = arith.constant 0 : i32
    return %arg0, %c0_i32, %c0_i32_0 : i32, i32, i32
  }
  func.func @transform_4(%arg0: i32, %arg1: i32) -> (i32, i32, i32) {
    %c0_i32 = arith.constant 0 : i32
    %c0_i32_0 = arith.constant 0 : i32
    %c0_i32_1 = arith.constant 0 : i32
    return %arg0, %c0_i32, %c0_i32_0 : i32, i32, i32
  }
  func.func @transform_5(%arg0: i32, %arg1: i32) -> (i32, i32, i32) {
    %c0_i32 = arith.constant 0 : i32
    %c0_i32_0 = arith.constant 0 : i32
    %c0_i32_1 = arith.constant 0 : i32
    return %arg0, %c0_i32, %c0_i32_0 : i32, i32, i32
  }
  func.func @transform_6(%arg0: i32, %arg1: i32) -> (i32, i32, i32) {
    %c0_i32 = arith.constant 0 : i32
    %c0_i32_0 = arith.constant 0 : i32
    %c0_i32_1 = arith.constant 0 : i32
    return %arg0, %c0_i32, %c0_i32_0 : i32, i32, i32
  }
  func.func @transform_7(%arg0: i32, %arg1: i32) -> (i32, i32, i32) {
    %c0_i32 = arith.constant 0 : i32
    %c0_i32_0 = arith.constant 0 : i32
    %c0_i32_1 = arith.constant 0 : i32
    return %arg0, %c0_i32, %c0_i32_0 : i32, i32, i32
  }
  func.func @transform_8(%arg0: i32, %arg1: i32) -> (i32, i32, i32) {
    %c0_i32 = arith.constant 0 : i32
    %c0_i32_0 = arith.constant 0 : i32
    %c0_i32_1 = arith.constant 0 : i32
    return %arg0, %c0_i32, %c0_i32_0 : i32, i32, i32
  }
  func.func @transform_9(%arg0: i32, %arg1: i32) -> (i32, i32, i32) {
    %c0_i32 = arith.constant 0 : i32
    %c0_i32_0 = arith.constant 0 : i32
    %c0_i32_1 = arith.constant 0 : i32
    return %arg0, %c0_i32, %c0_i32_0 : i32, i32, i32
  }
  func.func @transform_10(%arg0: i32, %arg1: i32) -> (i32, i32, i32) {
    %c0_i32 = arith.constant 0 : i32
    %c0_i32_0 = arith.constant 0 : i32
    %c0_i32_1 = arith.constant 0 : i32
    return %arg0, %c0_i32, %c0_i32_0 : i32, i32, i32
  }
  func.func @transform_11(%arg0: i32, %arg1: i32) -> (i32, i32, i32) {
    %c0_i32 = arith.constant 0 : i32
    %c0_i32_0 = arith.constant 0 : i32
    %c0_i32_1 = arith.constant 0 : i32
    return %arg0, %c0_i32, %c0_i32_0 : i32, i32, i32
  }
  func.func @transform_12(%arg0: i32, %arg1: i32) -> (i32, i32, i32) {
    %c0_i32 = arith.constant 0 : i32
    %c0_i32_0 = arith.constant 0 : i32
    %c0_i32_1 = arith.constant 0 : i32
    return %arg0, %c0_i32, %c0_i32_0 : i32, i32, i32
  }
  func.func @transform_13(%arg0: i32, %arg1: i32) -> (i32, i32, i32) {
    %c0_i32 = arith.constant 0 : i32
    %c0_i32_0 = arith.constant 0 : i32
    %c0_i32_1 = arith.constant 0 : i32
    return %arg0, %c0_i32, %c0_i32_0 : i32, i32, i32
  }
  func.func @transform_14(%arg0: i32, %arg1: i32) -> (i32, i32, i32) {
    %c0_i32 = arith.constant 0 : i32
    %c0_i32_0 = arith.constant 0 : i32
    %c0_i32_1 = arith.constant 0 : i32
    return %arg0, %c0_i32, %c0_i32_0 : i32, i32, i32
  }
  func.func @transform_15(%arg0: i32, %arg1: i32) -> (i32, i32, i32) {
    %c0_i32 = arith.constant 0 : i32
    %c0_i32_0 = arith.constant 0 : i32
    %c0_i32_1 = arith.constant 0 : i32
    return %arg0, %c0_i32, %c0_i32_0 : i32, i32, i32
  }
  func.func @transform_16(%arg0: i32, %arg1: i32) -> (i32, i32, i32) {
    %c0_i32 = arith.constant 0 : i32
    %c0_i32_0 = arith.constant 0 : i32
    %c0_i32_1 = arith.constant 0 : i32
    return %arg0, %c0_i32, %c0_i32_0 : i32, i32, i32
  }
  func.func @transform_17(%arg0: i32, %arg1: i32) -> (i32, i32, i32) {
    %c0_i32 = arith.constant 0 : i32
    %c0_i32_0 = arith.constant 0 : i32
    %c0_i32_1 = arith.constant 0 : i32
    return %arg0, %c0_i32, %c0_i32_0 : i32, i32, i32
  }
  func.func @transform_18(%arg0: i32, %arg1: i32) -> (i32, i32, i32) {
    %c0_i32 = arith.constant 0 : i32
    %c0_i32_0 = arith.constant 0 : i32
    %c0_i32_1 = arith.constant 0 : i32
    return %arg0, %c0_i32, %c0_i32_0 : i32, i32, i32
  }
  func.func @transform_19(%arg0: i32, %arg1: i32) -> (i32, i32, i32) {
    %c0_i32 = arith.constant 0 : i32
    %c0_i32_0 = arith.constant 0 : i32
    %c0_i32_1 = arith.constant 0 : i32
    return %arg0, %c0_i32, %c0_i32_0 : i32, i32, i32
  }
  func.func @transform_20(%arg0: i32, %arg1: i32) -> (i32, i32, i32) {
    %c0_i32 = arith.constant 0 : i32
    %c0_i32_0 = arith.constant 0 : i32
    %c0_i32_1 = arith.constant 0 : i32
    return %arg0, %c0_i32, %c0_i32_0 : i32, i32, i32
  }
  func.func @transform_21(%arg0: i32, %arg1: i32) -> (i32, i32, i32) {
    %c0_i32 = arith.constant 0 : i32
    %c0_i32_0 = arith.constant 0 : i32
    %c0_i32_1 = arith.constant 0 : i32
    return %arg0, %c0_i32, %c0_i32_0 : i32, i32, i32
  }
  func.func @transform_22(%arg0: i32, %arg1: i32) -> (i32, i32, i32) {
    %c0_i32 = arith.constant 0 : i32
    %c0_i32_0 = arith.constant 0 : i32
    %c0_i32_1 = arith.constant 0 : i32
    return %arg0, %c0_i32, %c0_i32_0 : i32, i32, i32
  }
  func.func @transform_23(%arg0: i32, %arg1: i32) -> (i32, i32, i32) {
    %c0_i32 = arith.constant 0 : i32
    %c0_i32_0 = arith.constant 0 : i32
    %c0_i32_1 = arith.constant 0 : i32
    return %arg0, %c0_i32, %c0_i32_0 : i32, i32, i32
  }
  func.func @transform_24(%arg0: i32, %arg1: i32) -> (i32, i32, i32) {
    %c0_i32 = arith.constant 0 : i32
    %c0_i32_0 = arith.constant 0 : i32
    %c0_i32_1 = arith.constant 0 : i32
    return %arg0, %c0_i32, %c0_i32_0 : i32, i32, i32
  }
  func.func @transform_25(%arg0: i32, %arg1: i32) -> (i32, i32, i32) {
    %c0_i32 = arith.constant 0 : i32
    %c0_i32_0 = arith.constant 0 : i32
    %c0_i32_1 = arith.constant 0 : i32
    return %arg0, %c0_i32, %c0_i32_0 : i32, i32, i32
  }
  func.func @transform_26(%arg0: i32, %arg1: i32) -> (i32, i32, i32) {
    %c0_i32 = arith.constant 0 : i32
    %c0_i32_0 = arith.constant 0 : i32
    %c0_i32_1 = arith.constant 0 : i32
    return %arg0, %c0_i32, %c0_i32_0 : i32, i32, i32
  }
  func.func @transform_27(%arg0: i32, %arg1: i32) -> (i32, i32, i32) {
    %c0_i32 = arith.constant 0 : i32
    %c0_i32_0 = arith.constant 0 : i32
    %c0_i32_1 = arith.constant 0 : i32
    return %arg0, %c0_i32, %c0_i32_0 : i32, i32, i32
  }
  func.func @transform_28(%arg0: i32, %arg1: i32) -> (i32, i32) {
    %c0_i32 = arith.constant 0 : i32
    %c0_i32_0 = arith.constant 0 : i32
    %c0_i32_1 = arith.constant 0 : i32
    return %c0_i32, %c0_i32_0 : i32, i32
  }
  func.func @transform_29(%arg0: i32, %arg1: i32) -> (i32, i32) {
    %c0_i32 = arith.constant 0 : i32
    %c0_i32_0 = arith.constant 0 : i32
    %c0_i32_1 = arith.constant 0 : i32
    return %c0_i32, %c0_i32_0 : i32, i32
  }
  func.func @transform_30(%arg0: i32, %arg1: i32) -> (i32, i32) {
    %c0_i32 = arith.constant 0 : i32
    %c0_i32_0 = arith.constant 0 : i32
    %c0_i32_1 = arith.constant 0 : i32
    return %c0_i32, %c0_i32_0 : i32, i32
  }
}

</mosaic_0001>

<llo_original>
// kernel: basic_detr_forward.1
$region0: #{basic_detr_forward.1}
  #allocation0 [shape = 'u32[]', space=smem, size = 0x4, offset = 0x4, fixed_abs, tag = 'smem constant byte address 0x4 - core index']
  #allocation1 [shape = 'u32[144,128]{1,0:T(1,128)}', space=vmem, size = 0x12000, scoped, tag = 'internal scratch']
  #allocation2 [shape = 'f32[2,8,256]{2,1,0:T(8,128)}', space=vmem, size = 0x4000, scoped, tag = 'scratch operand']
  %s0 = inlined_call_operand.smem [shape: u32[31], index: -1, kind: input, shape index: {}]
  %s1 = sld [smem:[%s0]]
  %s2 = scalar_lea.smem %s0, 1
  %s3 = sld [smem:[%s2]]
  %s4 = scalar_lea.smem %s0, 2
  %s5 = sld [smem:[%s4]]
  %s6 = scalar_lea.smem %s0, 3
  %s7 = sld [smem:[%s6]]
  %s8 = scalar_lea.smem %s0, 4
  %s9 = sld [smem:[%s8]]
  %s10 = scalar_lea.smem %s0, 5
  %s11 = sld [smem:[%s10]]
  %s12 = scalar_lea.smem %s0, 6
  %s13 = sld [smem:[%s12]]
  %s14 = scalar_lea.smem %s0, 7
  %s15 = sld [smem:[%s14]]
  %s16 = scalar_lea.smem %s0, 8
  %s17 = sld [smem:[%s16]]
  %s18 = scalar_lea.smem %s0, 9
  %s19 = sld [smem:[%s18]]
  %s20 = scalar_lea.smem %s0, 10
  %s21 = sld [smem:[%s20]]
  %s22 = scalar_lea.smem %s0, 11
  %s23 = sld [smem:[%s22]]
  %s24 = scalar_lea.smem %s0, 12
  %s25 = sld [smem:[%s24]]
  %s26 = scalar_lea.smem %s0, 13
  %s27 = sld [smem:[%s26]]
  %s28 = scalar_lea.smem %s0, 14
  %s29 = sld [smem:[%s28]]
  %s30 = scalar_lea.smem %s0, 15
  %s31 = sld [smem:[%s30]]
  %s32 = scalar_lea.smem %s0, 16
  %s33 = sld [smem:[%s32]]
  %s34 = scalar_lea.smem %s0, 17
  %s35 = sld [smem:[%s34]]
  %s36 = scalar_lea.smem %s0, 18
  %s37 = sld [smem:[%s36]]
  %s38 = scalar_lea.smem %s0, 19
  %s39 = sld [smem:[%s38]]
  %s40 = scalar_lea.smem %s0, 20
  %s41 = sld [smem:[%s40]]
  %s42 = scalar_lea.smem %s0, 21
  %s43 = sld [smem:[%s42]]
  %s44 = scalar_lea.smem %s0, 22
  %s45 = sld [smem:[%s44]]
  %s46 = scalar_lea.smem %s0, 23
  %s47 = sld [smem:[%s46]]
  %s48 = scalar_lea.smem %s0, 24
  %s49 = sld [smem:[%s48]]
  %s50 = scalar_lea.smem %s0, 25
  %s51 = sld [smem:[%s50]]
  %s52 = scalar_lea.smem %s0, 26
  %s53 = sld [smem:[%s52]]
  %s54 = scalar_lea.smem %s0, 27
  %s55 = sld [smem:[%s54]]
  %s56 = scalar_lea.smem %s0, 28
  %s57 = sld [smem:[%s56]]
  %s58 = scalar_lea.smem %s0, 29
  %s59 = sld [smem:[%s58]]
  %s60 = scalar_lea.smem %s0, 30
  %s61 = sld [smem:[%s60]]
  %s62 = sld [smem:[#allocation0]]
  $region277: #{basic_detr_forward.1} parent=0
    _
  %s64 = ssub.s32 1, %s62
  %s65 = scalar_select 0, %s64, %s62
  $region1: #{basic_detr_forward.1} parent=0
    #allocation3 [shape = 'u8[8192]{0}', space=vmem, size = 0x2000, scoped, tag = 'input window, operand 1, single buffered']
    #allocation4 [shape = 's32[2]{0}', space=sflag, size = 0x8, scoped, tag = 'scoped memory for basic_detr_forward.1']
    #allocation5 [shape = 's32[2]{0}', space=sflag, size = 0x8, scoped, tag = 'scoped memory for basic_detr_forward.1']
    #allocation6 [shape = 'u8[262144]{0}', space=vmem, size = 0x40000, scoped, tag = 'input window, operand 2']
    #allocation7 [shape = 's32[2]{0}', space=sflag, size = 0x8, scoped, tag = 'scoped memory for basic_detr_forward.1']
    #allocation8 [shape = 'u8[2048]{0}', space=vmem, size = 0x800, scoped, tag = 'input window, operand 3']
    #allocation9 [shape = 'u8[262144]{0}', space=vmem, size = 0x40000, scoped, tag = 'input window, operand 4']
    #allocation10 [shape = 's32[2]{0}', space=sflag, size = 0x8, scoped, tag = 'scoped memory for basic_detr_forward.1']
    #allocation11 [shape = 'u8[2048]{0}', space=vmem, size = 0x800, scoped, tag = 'input window, operand 5']
    #allocation12 [shape = 'u8[262144]{0}', space=vmem, size = 0x40000, scoped, tag = 'input window, operand 6']
    #allocation13 [shape = 's32[2]{0}', space=sflag, size = 0x8, scoped, tag = 'scoped memory for basic_detr_forward.1']
    #allocation14 [shape = 'u8[2048]{0}', space=vmem, size = 0x800, scoped, tag = 'input window, operand 7']
    #allocation15 [shape = 'u8[262144]{0}', space=vmem, size = 0x40000, scoped, tag = 'input window, operand 8']
    #allocation16 [shape = 's32[2]{0}', space=sflag, size = 0x8, scoped, tag = 'scoped memory for basic_detr_forward.1']
    #allocation17 [shape = 'u8[2048]{0}', space=vmem, size = 0x800, scoped, tag = 'input window, operand 9']
    #allocation18 [shape = 'u8[262144]{0}', space=vmem, size = 0x40000, scoped, tag = 'input window, operand 10']
    #allocation19 [shape = 's32[2]{0}', space=sflag, size = 0x8, scoped, tag = 'scoped memory for basic_detr_forward.1']
    #allocation20 [shape = 'u8[2048]{0}', space=vmem, size = 0x800, scoped, tag = 'input window, operand 11']
    #allocation21 [shape = 'u8[262144]{0}', space=vmem, size = 0x40000, scoped, tag = 'input window, operand 12']
    #allocation22 [shape = 's32[2]{0}', space=sflag, size = 0x8, scoped, tag = 'scoped memory for basic_detr_forward.1']
    #allocation23 [shape = 'u8[2048]{0}', space=vmem, size = 0x800, scoped, tag = 'input window, operand 13']
    #allocation24 [shape = 'u8[262144]{0}', space=vmem, size = 0x40000, scoped, tag = 'input window, operand 14']
    #allocation25 [shape = 's32[2]{0}', space=sflag, size = 0x8, scoped, tag = 'scoped memory for basic_detr_forward.1']
    #allocation26 [shape = 'u8[2048]{0}', space=vmem, size = 0x800, scoped, tag = 'input window, operand 15']
    #allocation27 [shape = 'u8[262144]{0}', space=vmem, size = 0x40000, scoped, tag = 'input window, operand 16']
    #allocation28 [shape = 's32[2]{0}', space=sflag, size = 0x8, scoped, tag = 'scoped memory for basic_detr_forward.1']
    #allocation29 [shape = 'u8[2048]{0}', space=vmem, size = 0x800, scoped, tag = 'input window, operand 17']
    #allocation30 [shape = 'u8[2048]{0}', space=vmem, size = 0x800, scoped, tag = 'input window, operand 18']
    #allocation31 [shape = 's32[2]{0}', space=sflag, size = 0x8, scoped, tag = 'scoped memory for basic_detr_forward.1']
    #allocation32 [shape = 'u8[2048]{0}', space=vmem, size = 0x800, scoped, tag = 'input window, operand 19']
    #allocation33 [shape = 'u8[2048]{0}', space=vmem, size = 0x800, scoped, tag = 'input window, operand 20']
    #allocation34 [shape = 's32[2]{0}', space=sflag, size = 0x8, scoped, tag = 'scoped memory for basic_detr_forward.1']
    #allocation35 [shape = 'u8[2048]{0}', space=vmem, size = 0x800, scoped, tag = 'input window, operand 21']
    #allocation36 [shape = 'u8[2048]{0}', space=vmem, size = 0x800, scoped, tag = 'input window, operand 22']
    #allocation37 [shape = 's32[2]{0}', space=sflag, size = 0x8, scoped, tag = 'scoped memory for basic_detr_forward.1']
    #allocation38 [shape = 'u8[2048]{0}', space=vmem, size = 0x800, scoped, tag = 'input window, operand 23']
    #allocation39 [shape = 'u8[2097152]{0}', space=vmem, size = 0x200000, scoped, tag = 'input window, operand 24']
    #allocation40 [shape = 's32[2]{0}', space=sflag, size = 0x8, scoped, tag = 'scoped memory for basic_detr_forward.1']
    #allocation41 [shape = 'u8[16384]{0}', space=vmem, size = 0x4000, scoped, tag = 'input window, operand 25']
    #allocation42 [shape = 'u8[2097152]{0}', space=vmem, size = 0x200000, scoped, tag = 'input window, operand 26']
    #allocation43 [shape = 's32[2]{0}', space=sflag, size = 0x8, scoped, tag = 'scoped memory for basic_detr_forward.1']
    #allocation44 [shape = 'u8[2048]{0}', space=vmem, size = 0x800, scoped, tag = 'input window, operand 27']
    #allocation45 [shape = 'u8[65536]{0}', space=vmem, size = 0x10000, scoped, tag = 'input window, operand 28, single buffered']
    #allocation46 [shape = 's32[1]{0}', space=sflag, size = 0x4, scoped, tag = 'scoped memory for basic_detr_forward.1']
    #allocation47 [shape = 'u8[512]{0}', space=vmem, size = 0x400, scoped, tag = 'input window, operand 29, single buffered']
    #allocation48 [shape = 'u8[1024]{0}', space=vmem, size = 0x400, scoped, tag = 'output window, operand 0, single buffered']
    %66 = vsyncpa [#allocation4], 0
    %67 = vsyncpa [#allocation7], 0
    %s68 = scalar_lea.sflag [#allocation7], 1
    %69 = vsyncpa %s68, 0
    %70 = vsyncpa [#allocation10], 0
    %s71 = scalar_lea.sflag [#allocation10], 1
    %72 = vsyncpa %s71, 0
    %73 = vsyncpa [#allocation13], 0
    %s74 = scalar_lea.sflag [#allocation13], 1
    %75 = vsyncpa %s74, 0
    %76 = vsyncpa [#allocation16], 0
    %s77 = scalar_lea.sflag [#allocation16], 1
    %78 = vsyncpa %s77, 0
    %79 = vsyncpa [#allocation19], 0
    %s80 = scalar_lea.sflag [#allocation19], 1
    %81 = vsyncpa %s80, 0
    %82 = vsyncpa [#allocation22], 0
    %s83 = scalar_lea.sflag [#allocation22], 1
    %84 = vsyncpa %s83, 0
    %85 = vsyncpa [#allocation25], 0
    %s86 = scalar_lea.sflag [#allocation25], 1
    %87 = vsyncpa %s86, 0
    %88 = vsyncpa [#allocation28], 0
    %s89 = scalar_lea.sflag [#allocation28], 1
    %90 = vsyncpa %s89, 0
    %91 = vsyncpa [#allocation31], 0
    %s92 = scalar_lea.sflag [#allocation31], 1
    %93 = vsyncpa %s92, 0
    %94 = vsyncpa [#allocation34], 0
    %s95 = scalar_lea.sflag [#allocation34], 1
    %96 = vsyncpa %s95, 0
    %97 = vsyncpa [#allocation37], 0
    %s98 = scalar_lea.sflag [#allocation37], 1
    %99 = vsyncpa %s98, 0
    %100 = vsyncpa [#allocation40], 0
    %s101 = scalar_lea.sflag [#allocation40], 1
    %102 = vsyncpa %s101, 0
    %103 = vsyncpa [#allocation43], 0
    %s104 = scalar_lea.sflag [#allocation43], 1
    %105 = vsyncpa %s104, 0
    %106 = vsyncpa [#allocation46], 0
    %107 = vsyncpa [#allocation5], 0
    loop: start=0, step=1, limit=14
    $region2: #{basic_detr_forward.1} parent=1 // loop_pre_header
      _
    $region3: #{basic_detr_forward.1} parent=1 // loop_header
      %s109 = sphi 0, %s113
      %p110 = scmp.ge.s32.totalorder %s109, 14
      %s116 = sphi 0, %s128
      %s117 = sphi 0, %s124
      %s118 = sphi 0, %s116
      %s119 = sphi 0, %s117
      %s120 = sphi 0, %s118
      %s121 = sphi 0, %s119
      %s129 = sphi 0, %s129
      %s131 = sphi 0, %s129
      %s132 = sphi 0, %s131
      %s146 = sphi 0, %s132
      %s150 = sphi 0, %s150
      %s152 = sphi 0, %s150
      %s153 = sphi 0, %s152
      %s167 = sphi 0, %s153
      %s173 = sphi 0, %s175
      %s176 = sphi 0, %s173
      %s177 = sphi 0, %s176
      %s193 = sphi 0, %s177
      %s199 = sphi 0, %s201
      %s202 = sphi 0, %s199
      %s203 = sphi 0, %s202
      %s219 = sphi 0, %s203
      %s225 = sphi 0, %s227
      %s228 = sphi 0, %s225
      %s229 = sphi 0, %s228
      %s245 = sphi 0, %s229
      %s251 = sphi 0, %s253
      %s254 = sphi 0, %s251
      %s255 = sphi 0, %s254
      %s271 = sphi 0, %s255
      %s277 = sphi 0, %s279
      %s280 = sphi 0, %s277
      %s281 = sphi 0, %s280
      %s297 = sphi 0, %s281
      %s303 = sphi 0, %s305
      %s306 = sphi 0, %s303
      %s307 = sphi 0, %s306
      %s323 = sphi 0, %s307
      %s329 = sphi 0, %s331
      %s332 = sphi 0, %s329
      %s333 = sphi 0, %s332
      %s349 = sphi 0, %s333
      %s355 = sphi 0, %s357
      %s358 = sphi 0, %s355
      %s359 = sphi 0, %s358
      %s375 = sphi 0, %s359
      %s381 = sphi 0, %s383
      %s384 = sphi 0, %s381
      %s385 = sphi 0, %s384
      %s401 = sphi 0, %s385
      %s407 = sphi 0, %s409
      %s410 = sphi 0, %s407
      %s411 = sphi 0, %s410
      %s427 = sphi 0, %s411
      %s433 = sphi 0, %s435
      %s436 = sphi 0, %s433
      %s437 = sphi 0, %s436
      %s453 = sphi 0, %s437
      %s459 = sphi 0, %s461
      %s462 = sphi 0, %s459
      %s463 = sphi 0, %s462
      %s479 = sphi 0, %s463
      %s485 = sphi 0, %s487
      %s488 = sphi 0, %s485
      %s489 = sphi 0, %s488
      %s505 = sphi 0, %s489
      %s511 = sphi 0, %s513
      %s514 = sphi 0, %s511
      %s515 = sphi 0, %s514
      %s531 = sphi 0, %s515
      %s537 = sphi 0, %s539
      %s540 = sphi 0, %s537
      %s541 = sphi 0, %s540
      %s557 = sphi 0, %s541
      %s563 = sphi 0, %s565
      %s566 = sphi 0, %s563
      %s567 = sphi 0, %s566
      %s583 = sphi 0, %s567
      %s589 = sphi 0, %s591
      %s592 = sphi 0, %s589
      %s593 = sphi 0, %s592
      %s609 = sphi 0, %s593
      %s615 = sphi 0, %s617
      %s618 = sphi 0, %s615
      %s619 = sphi 0, %s618
      %s635 = sphi 0, %s619
      %s641 = sphi 0, %s643
      %s644 = sphi 0, %s641
      %s645 = sphi 0, %s644
      %s661 = sphi 0, %s645
      %s667 = sphi 0, %s669
      %s670 = sphi 0, %s667
      %s671 = sphi 0, %s670
      %s687 = sphi 0, %s671
      %s693 = sphi 0, %s695
      %s696 = sphi 0, %s693
      %s697 = sphi 0, %s696
      %s713 = sphi 0, %s697
      %s719 = sphi 0, %s721
      %s722 = sphi 0, %s719
      %s723 = sphi 0, %s722
      %s739 = sphi 0, %s723
      %s745 = sphi 0, %s747
      %s748 = sphi 0, %s745
      %s749 = sphi 0, %s748
      %s765 = sphi 0, %s749
      %s771 = sphi 0, %s773
      %s774 = sphi 0, %s771
      %s775 = sphi 0, %s774
      %s791 = sphi 0, %s775
      %s797 = sphi 0, %s799
      %s800 = sphi 0, %s797
      %s801 = sphi 0, %s800
      %s817 = sphi 0, %s801
      %s823 = sphi 0, %s825
      %s826 = sphi 0, %s823
      %s827 = sphi 0, %s826
      %s843 = sphi 0, %s827
      %s847 = sphi 0, %s847
      %s849 = sphi 0, %s847
      %s850 = sphi 0, %s849
      %s864 = sphi 0, %s850
      %s868 = sphi 0, %s868
      %s870 = sphi 0, %s868
      %s871 = sphi 0, %s870
      %s885 = sphi 0, %s871
      %s889 = sphi 0, %s889
      %s891 = sphi 0, %s889
      %s892 = sphi 0, %s891
      %s906 = sphi 0, %s892
    $region4: #{basic_detr_forward.1} parent=1 // loop_header_branch
      %112 = sbr.rel (%p110) target = $region8
    $region5: #{basic_detr_forward.1} parent=1 // loop_body
      %s114 = ssub.s32 %s109, 1
      %s115 = ssub.s32 %s109, 2
      %s122 = sadd.s32 1, %s117
      %p123 = scmp.ge.s32.totalorder %s122, 2
      %s124 = scalar_select %p123, 0, %s122
      %s125 = sadd.s32 1, %s116
      %s126 = scalar_select %p123, %s125, %s116
      %p127 = scmp.ge.s32.totalorder %s126, 6
      %s128 = scalar_select %p127, 0, %s126
      %s130 = sadd.s32 %s129, 1
      %p133 = scmp.eq.s32.totalorder %s109, 11
      %p134 = scmp.ne.s32.totalorder %s129, %s131
      %p135 = scmp.eq.s32.totalorder %s109, 0
      %p136 = por %p134, %p135
      %p137 = scmp.ne.s32.totalorder %s129, %s131
      %p138 = scmp.eq.s32.totalorder %s114, 11
      %p139 = por %p137, %p138
      %p140 = scmp.ne.s32.totalorder %s131, %s132
      %p141 = scmp.eq.s32.totalorder %s114, 0
      %p142 = por %p140, %p141
      %p143 = scmp.ne.s32.totalorder %s131, %s132
      %p144 = scmp.eq.s32.totalorder %s115, 11
      %p145 = por %p143, %p144
      %p147 = scmp.ne.s32.totalorder %s132, %s146
      %p148 = scmp.eq.s32.totalorder %s115, 0
      %p149 = por %p147, %p148
      %s151 = sadd.s32 %s150, 1
      %p154 = scmp.eq.s32.totalorder %s109, 11
      %p155 = scmp.ne.s32.totalorder %s150, %s152
      %p156 = scmp.eq.s32.totalorder %s109, 0
      %p157 = por %p155, %p156
      %p158 = scmp.ne.s32.totalorder %s150, %s152
      %p159 = scmp.eq.s32.totalorder %s114, 11
      %p160 = por %p158, %p159
      %p161 = scmp.ne.s32.totalorder %s152, %s153
      %p162 = scmp.eq.s32.totalorder %s114, 0
      %p163 = por %p161, %p162
      %p164 = scmp.ne.s32.totalorder %s152, %s153
      %p165 = scmp.eq.s32.totalorder %s115, 11
      %p166 = por %p164, %p165
      %p168 = scmp.ne.s32.totalorder %s153, %s167
      %p169 = scmp.eq.s32.totalorder %s115, 0
      %p170 = por %p168, %p169
      %s171 = ssub.s32 %s116, %s128
      %p172 = scmp.eq.s32.totalorder %s171, 0
      %s174 = sadd.s32 %s173, 1
      %s175 = scalar_select %p172, %s173, %s174
      %p178 = pneg %p172
      %p179 = scmp.eq.s32.totalorder %s109, 11
      %p180 = por %p178, %p179
      %p181 = scmp.ne.s32.totalorder %s173, %s176
      %p182 = scmp.eq.s32.totalorder %s109, 0
      %p183 = por %p181, %p182
      %p184 = scmp.ne.s32.totalorder %s173, %s176
      %p185 = scmp.eq.s32.totalorder %s114, 11
      %p186 = por %p184, %p185
      %p187 = scmp.ne.s32.totalorder %s176, %s177
      %p188 = scmp.eq.s32.totalorder %s114, 0
      %p189 = por %p187, %p188
      %p190 = scmp.ne.s32.totalorder %s176, %s177
      %p191 = scmp.eq.s32.totalorder %s115, 11
      %p192 = por %p190, %p191
      %p194 = scmp.ne.s32.totalorder %s177, %s193
      %p195 = scmp.eq.s32.totalorder %s115, 0
      %p196 = por %p194, %p195
      %s197 = ssub.s32 %s116, %s128
      %p198 = scmp.eq.s32.totalorder %s197, 0
      %s200 = sadd.s32 %s199, 1
      %s201 = scalar_select %p198, %s199, %s200
      %p204 = pneg %p198
      %p205 = scmp.eq.s32.totalorder %s109, 11
      %p206 = por %p204, %p205
      %p207 = scmp.ne.s32.totalorder %s199, %s202
      %p208 = scmp.eq.s32.totalorder %s109, 0
      %p209 = por %p207, %p208
      %p210 = scmp.ne.s32.totalorder %s199, %s202
      %p211 = scmp.eq.s32.totalorder %s114, 11
      %p212 = por %p210, %p211
      %p213 = scmp.ne.s32.totalorder %s202, %s203
      %p214 = scmp.eq.s32.totalorder %s114, 0
      %p215 = por %p213, %p214
      %p216 = scmp.ne.s32.totalorder %s202, %s203
      %p217 = scmp.eq.s32.totalorder %s115, 11
      %p218 = por %p216, %p217
      %p220 = scmp.ne.s32.totalorder %s203, %s219
      %p221 = scmp.eq.s32.totalorder %s115, 0
      %p222 = por %p220, %p221
      %s223 = ssub.s32 %s116, %s128
      %p224 = scmp.eq.s32.totalorder %s223, 0
      %s226 = sadd.s32 %s225, 1
      %s227 = scalar_select %p224, %s225, %s226
      %p230 = pneg %p224
      %p231 = scmp.eq.s32.totalorder %s109, 11
      %p232 = por %p230, %p231
      %p233 = scmp.ne.s32.totalorder %s225, %s228
      %p234 = scmp.eq.s32.totalorder %s109, 0
      %p235 = por %p233, %p234
      %p236 = scmp.ne.s32.totalorder %s225, %s228
      %p237 = scmp.eq.s32.totalorder %s114, 11
      %p238 = por %p236, %p237
      %p239 = scmp.ne.s32.totalorder %s228, %s229
      %p240 = scmp.eq.s32.totalorder %s114, 0
      %p241 = por %p239, %p240
      %p242 = scmp.ne.s32.totalorder %s228, %s229
      %p243 = scmp.eq.s32.totalorder %s115, 11
      %p244 = por %p242, %p243
      %p246 = scmp.ne.s32.totalorder %s229, %s245
      %p247 = scmp.eq.s32.totalorder %s115, 0
      %p248 = por %p246, %p247
      %s249 = ssub.s32 %s116, %s128
      %p250 = scmp.eq.s32.totalorder %s249, 0
      %s252 = sadd.s32 %s251, 1
      %s253 = scalar_select %p250, %s251, %s252
      %p256 = pneg %p250
      %p257 = scmp.eq.s32.totalorder %s109, 11
      %p258 = por %p256, %p257
      %p259 = scmp.ne.s32.totalorder %s251, %s254
      %p260 = scmp.eq.s32.totalorder %s109, 0
      %p261 = por %p259, %p260
      %p262 = scmp.ne.s32.totalorder %s251, %s254
      %p263 = scmp.eq.s32.totalorder %s114, 11
      %p264 = por %p262, %p263
      %p265 = scmp.ne.s32.totalorder %s254, %s255
      %p266 = scmp.eq.s32.totalorder %s114, 0
      %p267 = por %p265, %p266
      %p268 = scmp.ne.s32.totalorder %s254, %s255
      %p269 = scmp.eq.s32.totalorder %s115, 11
      %p270 = por %p268, %p269
      %p272 = scmp.ne.s32.totalorder %s255, %s271
      %p273 = scmp.eq.s32.totalorder %s115, 0
      %p274 = por %p272, %p273
      %s275 = ssub.s32 %s116, %s128
      %p276 = scmp.eq.s32.totalorder %s275, 0
      %s278 = sadd.s32 %s277, 1
      %s279 = scalar_select %p276, %s277, %s278
      %p282 = pneg %p276
      %p283 = scmp.eq.s32.totalorder %s109, 11
      %p284 = por %p282, %p283
      %p285 = scmp.ne.s32.totalorder %s277, %s280
      %p286 = scmp.eq.s32.totalorder %s109, 0
      %p287 = por %p285, %p286
      %p288 = scmp.ne.s32.totalorder %s277, %s280
      %p289 = scmp.eq.s32.totalorder %s114, 11
      %p290 = por %p288, %p289
      %p291 = scmp.ne.s32.totalorder %s280, %s281
      %p292 = scmp.eq.s32.totalorder %s114, 0
      %p293 = por %p291, %p292
      %p294 = scmp.ne.s32.totalorder %s280, %s281
      %p295 = scmp.eq.s32.totalorder %s115, 11
      %p296 = por %p294, %p295
      %p298 = scmp.ne.s32.totalorder %s281, %s297
      %p299 = scmp.eq.s32.totalorder %s115, 0
      %p300 = por %p298, %p299
      %s301 = ssub.s32 %s116, %s128
      %p302 = scmp.eq.s32.totalorder %s301, 0
      %s304 = sadd.s32 %s303, 1
      %s305 = scalar_select %p302, %s303, %s304
      %p308 = pneg %p302
      %p309 = scmp.eq.s32.totalorder %s109, 11
      %p310 = por %p308, %p309
      %p311 = scmp.ne.s32.totalorder %s303, %s306
      %p312 = scmp.eq.s32.totalorder %s109, 0
      %p313 = por %p311, %p312
      %p314 = scmp.ne.s32.totalorder %s303, %s306
      %p315 = scmp.eq.s32.totalorder %s114, 11
      %p316 = por %p314, %p315
      %p317 = scmp.ne.s32.totalorder %s306, %s307
      %p318 = scmp.eq.s32.totalorder %s114, 0
      %p319 = por %p317, %p318
      %p320 = scmp.ne.s32.totalorder %s306, %s307
      %p321 = scmp.eq.s32.totalorder %s115, 11
      %p322 = por %p320, %p321
      %p324 = scmp.ne.s32.totalorder %s307, %s323
      %p325 = scmp.eq.s32.totalorder %s115, 0
      %p326 = por %p324, %p325
      %s327 = ssub.s32 %s116, %s128
      %p328 = scmp.eq.s32.totalorder %s327, 0
      %s330 = sadd.s32 %s329, 1
      %s331 = scalar_select %p328, %s329, %s330
      %p334 = pneg %p328
      %p335 = scmp.eq.s32.totalorder %s109, 11
      %p336 = por %p334, %p335
      %p337 = scmp.ne.s32.totalorder %s329, %s332
      %p338 = scmp.eq.s32.totalorder %s109, 0
      %p339 = por %p337, %p338
      %p340 = scmp.ne.s32.totalorder %s329, %s332
      %p341 = scmp.eq.s32.totalorder %s114, 11
      %p342 = por %p340, %p341
      %p343 = scmp.ne.s32.totalorder %s332, %s333
      %p344 = scmp.eq.s32.totalorder %s114, 0
      %p345 = por %p343, %p344
      %p346 = scmp.ne.s32.totalorder %s332, %s333
      %p347 = scmp.eq.s32.totalorder %s115, 11
      %p348 = por %p346, %p347
      %p350 = scmp.ne.s32.totalorder %s333, %s349
      %p351 = scmp.eq.s32.totalorder %s115, 0
      %p352 = por %p350, %p351
      %s353 = ssub.s32 %s116, %s128
      %p354 = scmp.eq.s32.totalorder %s353, 0
      %s356 = sadd.s32 %s355, 1
      %s357 = scalar_select %p354, %s355, %s356
      %p360 = pneg %p354
      %p361 = scmp.eq.s32.totalorder %s109, 11
      %p362 = por %p360, %p361
      %p363 = scmp.ne.s32.totalorder %s355, %s358
      %p364 = scmp.eq.s32.totalorder %s109, 0
      %p365 = por %p363, %p364
      %p366 = scmp.ne.s32.totalorder %s355, %s358
      %p367 = scmp.eq.s32.totalorder %s114, 11
      %p368 = por %p366, %p367
      %p369 = scmp.ne.s32.totalorder %s358, %s359
      %p370 = scmp.eq.s32.totalorder %s114, 0
      %p371 = por %p369, %p370
      %p372 = scmp.ne.s32.totalorder %s358, %s359
      %p373 = scmp.eq.s32.totalorder %s115, 11
      %p374 = por %p372, %p373
      %p376 = scmp.ne.s32.totalorder %s359, %s375
      %p377 = scmp.eq.s32.totalorder %s115, 0
      %p378 = por %p376, %p377
      %s379 = ssub.s32 %s116, %s128
      %p380 = scmp.eq.s32.totalorder %s379, 0
      %s382 = sadd.s32 %s381, 1
      %s383 = scalar_select %p380, %s381, %s382
      %p386 = pneg %p380
      %p387 = scmp.eq.s32.totalorder %s109, 11
      %p388 = por %p386, %p387
      %p389 = scmp.ne.s32.totalorder %s381, %s384
      %p390 = scmp.eq.s32.totalorder %s109, 0
      %p391 = por %p389, %p390
      %p392 = scmp.ne.s32.totalorder %s381, %s384
      %p393 = scmp.eq.s32.totalorder %s114, 11
      %p394 = por %p392, %p393
      %p395 = scmp.ne.s32.totalorder %s384, %s385
      %p396 = scmp.eq.s32.totalorder %s114, 0
      %p397 = por %p395, %p396
      %p398 = scmp.ne.s32.totalorder %s384, %s385
      %p399 = scmp.eq.s32.totalorder %s115, 11
      %p400 = por %p398, %p399
      %p402 = scmp.ne.s32.totalorder %s385, %s401
      %p403 = scmp.eq.s32.totalorder %s115, 0
      %p404 = por %p402, %p403
      %s405 = ssub.s32 %s116, %s128
      %p406 = scmp.eq.s32.totalorder %s405, 0
      %s408 = sadd.s32 %s407, 1
      %s409 = scalar_select %p406, %s407, %s408
      %p412 = pneg %p406
      %p413 = scmp.eq.s32.totalorder %s109, 11
      %p414 = por %p412, %p413
      %p415 = scmp.ne.s32.totalorder %s407, %s410
      %p416 = scmp.eq.s32.totalorder %s109, 0
      %p417 = por %p415, %p416
      %p418 = scmp.ne.s32.totalorder %s407, %s410
      %p419 = scmp.eq.s32.totalorder %s114, 11
      %p420 = por %p418, %p419
      %p421 = scmp.ne.s32.totalorder %s410, %s411
      %p422 = scmp.eq.s32.totalorder %s114, 0
      %p423 = por %p421, %p422
      %p424 = scmp.ne.s32.totalorder %s410, %s411
      %p425 = scmp.eq.s32.totalorder %s115, 11
      %p426 = por %p424, %p425
      %p428 = scmp.ne.s32.totalorder %s411, %s427
      %p429 = scmp.eq.s32.totalorder %s115, 0
      %p430 = por %p428, %p429
      %s431 = ssub.s32 %s116, %s128
      %p432 = scmp.eq.s32.totalorder %s431, 0
      %s434 = sadd.s32 %s433, 1
      %s435 = scalar_select %p432, %s433, %s434
      %p438 = pneg %p432
      %p439 = scmp.eq.s32.totalorder %s109, 11
      %p440 = por %p438, %p439
      %p441 = scmp.ne.s32.totalorder %s433, %s436
      %p442 = scmp.eq.s32.totalorder %s109, 0
      %p443 = por %p441, %p442
      %p444 = scmp.ne.s32.totalorder %s433, %s436
      %p445 = scmp.eq.s32.totalorder %s114, 11
      %p446 = por %p444, %p445
      %p447 = scmp.ne.s32.totalorder %s436, %s437
      %p448 = scmp.eq.s32.totalorder %s114, 0
      %p449 = por %p447, %p448
      %p450 = scmp.ne.s32.totalorder %s436, %s437
      %p451 = scmp.eq.s32.totalorder %s115, 11
      %p452 = por %p450, %p451
      %p454 = scmp.ne.s32.totalorder %s437, %s453
      %p455 = scmp.eq.s32.totalorder %s115, 0
      %p456 = por %p454, %p455
      %s457 = ssub.s32 %s116, %s128
      %p458 = scmp.eq.s32.totalorder %s457, 0
      %s460 = sadd.s32 %s459, 1
      %s461 = scalar_select %p458, %s459, %s460
      %p464 = pneg %p458
      %p465 = scmp.eq.s32.totalorder %s109, 11
      %p466 = por %p464, %p465
      %p467 = scmp.ne.s32.totalorder %s459, %s462
      %p468 = scmp.eq.s32.totalorder %s109, 0
      %p469 = por %p467, %p468
      %p470 = scmp.ne.s32.totalorder %s459, %s462
      %p471 = scmp.eq.s32.totalorder %s114, 11
      %p472 = por %p470, %p471
      %p473 = scmp.ne.s32.totalorder %s462, %s463
      %p474 = scmp.eq.s32.totalorder %s114, 0
      %p475 = por %p473, %p474
      %p476 = scmp.ne.s32.totalorder %s462, %s463
      %p477 = scmp.eq.s32.totalorder %s115, 11
      %p478 = por %p476, %p477
      %p480 = scmp.ne.s32.totalorder %s463, %s479
      %p481 = scmp.eq.s32.totalorder %s115, 0
      %p482 = por %p480, %p481
      %s483 = ssub.s32 %s116, %s128
      %p484 = scmp.eq.s32.totalorder %s483, 0
      %s486 = sadd.s32 %s485, 1
      %s487 = scalar_select %p484, %s485, %s486
      %p490 = pneg %p484
      %p491 = scmp.eq.s32.totalorder %s109, 11
      %p492 = por %p490, %p491
      %p493 = scmp.ne.s32.totalorder %s485, %s488
      %p494 = scmp.eq.s32.totalorder %s109, 0
      %p495 = por %p493, %p494
      %p496 = scmp.ne.s32.totalorder %s485, %s488
      %p497 = scmp.eq.s32.totalorder %s114, 11
      %p498 = por %p496, %p497
      %p499 = scmp.ne.s32.totalorder %s488, %s489
      %p500 = scmp.eq.s32.totalorder %s114, 0
      %p501 = por %p499, %p500
      %p502 = scmp.ne.s32.totalorder %s488, %s489
      %p503 = scmp.eq.s32.totalorder %s115, 11
      %p504 = por %p502, %p503
      %p506 = scmp.ne.s32.totalorder %s489, %s505
      %p507 = scmp.eq.s32.totalorder %s115, 0
      %p508 = por %p506, %p507
      %s509 = ssub.s32 %s116, %s128
      %p510 = scmp.eq.s32.totalorder %s509, 0
      %s512 = sadd.s32 %s511, 1
      %s513 = scalar_select %p510, %s511, %s512
      %p516 = pneg %p510
      %p517 = scmp.eq.s32.totalorder %s109, 11
      %p518 = por %p516, %p517
      %p519 = scmp.ne.s32.totalorder %s511, %s514
      %p520 = scmp.eq.s32.totalorder %s109, 0
      %p521 = por %p519, %p520
      %p522 = scmp.ne.s32.totalorder %s511, %s514
      %p523 = scmp.eq.s32.totalorder %s114, 11
      %p524 = por %p522, %p523
      %p525 = scmp.ne.s32.totalorder %s514, %s515
      %p526 = scmp.eq.s32.totalorder %s114, 0
      %p527 = por %p525, %p526
      %p528 = scmp.ne.s32.totalorder %s514, %s515
      %p529 = scmp.eq.s32.totalorder %s115, 11
      %p530 = por %p528, %p529
      %p532 = scmp.ne.s32.totalorder %s515, %s531
      %p533 = scmp.eq.s32.totalorder %s115, 0
      %p534 = por %p532, %p533
      %s535 = ssub.s32 %s116, %s128
      %p536 = scmp.eq.s32.totalorder %s535, 0
      %s538 = sadd.s32 %s537, 1
      %s539 = scalar_select %p536, %s537, %s538
      %p542 = pneg %p536
      %p543 = scmp.eq.s32.totalorder %s109, 11
      %p544 = por %p542, %p543
      %p545 = scmp.ne.s32.totalorder %s537, %s540
      %p546 = scmp.eq.s32.totalorder %s109, 0
      %p547 = por %p545, %p546
      %p548 = scmp.ne.s32.totalorder %s537, %s540
      %p549 = scmp.eq.s32.totalorder %s114, 11
      %p550 = por %p548, %p549
      %p551 = scmp.ne.s32.totalorder %s540, %s541
      %p552 = scmp.eq.s32.totalorder %s114, 0
      %p553 = por %p551, %p552
      %p554 = scmp.ne.s32.totalorder %s540, %s541
      %p555 = scmp.eq.s32.totalorder %s115, 11
      %p556 = por %p554, %p555
      %p558 = scmp.ne.s32.totalorder %s541, %s557
      %p559 = scmp.eq.s32.totalorder %s115, 0
      %p560 = por %p558, %p559
      %s561 = ssub.s32 %s116, %s128
      %p562 = scmp.eq.s32.totalorder %s561, 0
      %s564 = sadd.s32 %s563, 1
      %s565 = scalar_select %p562, %s563, %s564
      %p568 = pneg %p562
      %p569 = scmp.eq.s32.totalorder %s109, 11
      %p570 = por %p568, %p569
      %p571 = scmp.ne.s32.totalorder %s563, %s566
      %p572 = scmp.eq.s32.totalorder %s109, 0
      %p573 = por %p571, %p572
      %p574 = scmp.ne.s32.totalorder %s563, %s566
      %p575 = scmp.eq.s32.totalorder %s114, 11
      %p576 = por %p574, %p575
      %p577 = scmp.ne.s32.totalorder %s566, %s567
      %p578 = scmp.eq.s32.totalorder %s114, 0
      %p579 = por %p577, %p578
      %p580 = scmp.ne.s32.totalorder %s566, %s567
      %p581 = scmp.eq.s32.totalorder %s115, 11
      %p582 = por %p580, %p581
      %p584 = scmp.ne.s32.totalorder %s567, %s583
      %p585 = scmp.eq.s32.totalorder %s115, 0
      %p586 = por %p584, %p585
      %s587 = ssub.s32 %s116, %s128
      %p588 = scmp.eq.s32.totalorder %s587, 0
      %s590 = sadd.s32 %s589, 1
      %s591 = scalar_select %p588, %s589, %s590
      %p594 = pneg %p588
      %p595 = scmp.eq.s32.totalorder %s109, 11
      %p596 = por %p594, %p595
      %p597 = scmp.ne.s32.totalorder %s589, %s592
      %p598 = scmp.eq.s32.totalorder %s109, 0
      %p599 = por %p597, %p598
      %p600 = scmp.ne.s32.totalorder %s589, %s592
      %p601 = scmp.eq.s32.totalorder %s114, 11
      %p602 = por %p600, %p601
      %p603 = scmp.ne.s32.totalorder %s592, %s593
      %p604 = scmp.eq.s32.totalorder %s114, 0
      %p605 = por %p603, %p604
      %p606 = scmp.ne.s32.totalorder %s592, %s593
      %p607 = scmp.eq.s32.totalorder %s115, 11
      %p608 = por %p606, %p607
      %p610 = scmp.ne.s32.totalorder %s593, %s609
      %p611 = scmp.eq.s32.totalorder %s115, 0
      %p612 = por %p610, %p611
      %s613 = ssub.s32 %s116, %s128
      %p614 = scmp.eq.s32.totalorder %s613, 0
      %s616 = sadd.s32 %s615, 1
      %s617 = scalar_select %p614, %s615, %s616
      %p620 = pneg %p614
      %p621 = scmp.eq.s32.totalorder %s109, 11
      %p622 = por %p620, %p621
      %p623 = scmp.ne.s32.totalorder %s615, %s618
      %p624 = scmp.eq.s32.totalorder %s109, 0
      %p625 = por %p623, %p624
      %p626 = scmp.ne.s32.totalorder %s615, %s618
      %p627 = scmp.eq.s32.totalorder %s114, 11
      %p628 = por %p626, %p627
      %p629 = scmp.ne.s32.totalorder %s618, %s619
      %p630 = scmp.eq.s32.totalorder %s114, 0
      %p631 = por %p629, %p630
      %p632 = scmp.ne.s32.totalorder %s618, %s619
      %p633 = scmp.eq.s32.totalorder %s115, 11
      %p634 = por %p632, %p633
      %p636 = scmp.ne.s32.totalorder %s619, %s635
      %p637 = scmp.eq.s32.totalorder %s115, 0
      %p638 = por %p636, %p637
      %s639 = ssub.s32 %s116, %s128
      %p640 = scmp.eq.s32.totalorder %s639, 0
      %s642 = sadd.s32 %s641, 1
      %s643 = scalar_select %p640, %s641, %s642
      %p646 = pneg %p640
      %p647 = scmp.eq.s32.totalorder %s109, 11
      %p648 = por %p646, %p647
      %p649 = scmp.ne.s32.totalorder %s641, %s644
      %p650 = scmp.eq.s32.totalorder %s109, 0
      %p651 = por %p649, %p650
      %p652 = scmp.ne.s32.totalorder %s641, %s644
      %p653 = scmp.eq.s32.totalorder %s114, 11
      %p654 = por %p652, %p653
      %p655 = scmp.ne.s32.totalorder %s644, %s645
      %p656 = scmp.eq.s32.totalorder %s114, 0
      %p657 = por %p655, %p656
      %p658 = scmp.ne.s32.totalorder %s644, %s645
      %p659 = scmp.eq.s32.totalorder %s115, 11
      %p660 = por %p658, %p659
      %p662 = scmp.ne.s32.totalorder %s645, %s661
      %p663 = scmp.eq.s32.totalorder %s115, 0
      %p664 = por %p662, %p663
      %s665 = ssub.s32 %s116, %s128
      %p666 = scmp.eq.s32.totalorder %s665, 0
      %s668 = sadd.s32 %s667, 1
      %s669 = scalar_select %p666, %s667, %s668
      %p672 = pneg %p666
      %p673 = scmp.eq.s32.totalorder %s109, 11
      %p674 = por %p672, %p673
      %p675 = scmp.ne.s32.totalorder %s667, %s670
      %p676 = scmp.eq.s32.totalorder %s109, 0
      %p677 = por %p675, %p676
      %p678 = scmp.ne.s32.totalorder %s667, %s670
      %p679 = scmp.eq.s32.totalorder %s114, 11
      %p680 = por %p678, %p679
      %p681 = scmp.ne.s32.totalorder %s670, %s671
      %p682 = scmp.eq.s32.totalorder %s114, 0
      %p683 = por %p681, %p682
      %p684 = scmp.ne.s32.totalorder %s670, %s671
      %p685 = scmp.eq.s32.totalorder %s115, 11
      %p686 = por %p684, %p685
      %p688 = scmp.ne.s32.totalorder %s671, %s687
      %p689 = scmp.eq.s32.totalorder %s115, 0
      %p690 = por %p688, %p689
      %s691 = ssub.s32 %s116, %s128
      %p692 = scmp.eq.s32.totalorder %s691, 0
      %s694 = sadd.s32 %s693, 1
      %s695 = scalar_select %p692, %s693, %s694
      %p698 = pneg %p692
      %p699 = scmp.eq.s32.totalorder %s109, 11
      %p700 = por %p698, %p699
      %p701 = scmp.ne.s32.totalorder %s693, %s696
      %p702 = scmp.eq.s32.totalorder %s109, 0
      %p703 = por %p701, %p702
      %p704 = scmp.ne.s32.totalorder %s693, %s696
      %p705 = scmp.eq.s32.totalorder %s114, 11
      %p706 = por %p704, %p705
      %p707 = scmp.ne.s32.totalorder %s696, %s697
      %p708 = scmp.eq.s32.totalorder %s114, 0
      %p709 = por %p707, %p708
      %p710 = scmp.ne.s32.totalorder %s696, %s697
      %p711 = scmp.eq.s32.totalorder %s115, 11
      %p712 = por %p710, %p711
      %p714 = scmp.ne.s32.totalorder %s697, %s713
      %p715 = scmp.eq.s32.totalorder %s115, 0
      %p716 = por %p714, %p715
      %s717 = ssub.s32 %s116, %s128
      %p718 = scmp.eq.s32.totalorder %s717, 0
      %s720 = sadd.s32 %s719, 1
      %s721 = scalar_select %p718, %s719, %s720
      %p724 = pneg %p718
      %p725 = scmp.eq.s32.totalorder %s109, 11
      %p726 = por %p724, %p725
      %p727 = scmp.ne.s32.totalorder %s719, %s722
      %p728 = scmp.eq.s32.totalorder %s109, 0
      %p729 = por %p727, %p728
      %p730 = scmp.ne.s32.totalorder %s719, %s722
      %p731 = scmp.eq.s32.totalorder %s114, 11
      %p732 = por %p730, %p731
      %p733 = scmp.ne.s32.totalorder %s722, %s723
      %p734 = scmp.eq.s32.totalorder %s114, 0
      %p735 = por %p733, %p734
      %p736 = scmp.ne.s32.totalorder %s722, %s723
      %p737 = scmp.eq.s32.totalorder %s115, 11
      %p738 = por %p736, %p737
      %p740 = scmp.ne.s32.totalorder %s723, %s739
      %p741 = scmp.eq.s32.totalorder %s115, 0
      %p742 = por %p740, %p741
      %s743 = ssub.s32 %s116, %s128
      %p744 = scmp.eq.s32.totalorder %s743, 0
      %s746 = sadd.s32 %s745, 1
      %s747 = scalar_select %p744, %s745, %s746
      %p750 = pneg %p744
      %p751 = scmp.eq.s32.totalorder %s109, 11
      %p752 = por %p750, %p751
      %p753 = scmp.ne.s32.totalorder %s745, %s748
      %p754 = scmp.eq.s32.totalorder %s109, 0
      %p755 = por %p753, %p754
      %p756 = scmp.ne.s32.totalorder %s745, %s748
      %p757 = scmp.eq.s32.totalorder %s114, 11
      %p758 = por %p756, %p757
      %p759 = scmp.ne.s32.totalorder %s748, %s749
      %p760 = scmp.eq.s32.totalorder %s114, 0
      %p761 = por %p759, %p760
      %p762 = scmp.ne.s32.totalorder %s748, %s749
      %p763 = scmp.eq.s32.totalorder %s115, 11
      %p764 = por %p762, %p763
      %p766 = scmp.ne.s32.totalorder %s749, %s765
      %p767 = scmp.eq.s32.totalorder %s115, 0
      %p768 = por %p766, %p767
      %s769 = ssub.s32 %s116, %s128
      %p770 = scmp.eq.s32.totalorder %s769, 0
      %s772 = sadd.s32 %s771, 1
      %s773 = scalar_select %p770, %s771, %s772
      %p776 = pneg %p770
      %p777 = scmp.eq.s32.totalorder %s109, 11
      %p778 = por %p776, %p777
      %p779 = scmp.ne.s32.totalorder %s771, %s774
      %p780 = scmp.eq.s32.totalorder %s109, 0
      %p781 = por %p779, %p780
      %p782 = scmp.ne.s32.totalorder %s771, %s774
      %p783 = scmp.eq.s32.totalorder %s114, 11
      %p784 = por %p782, %p783
      %p785 = scmp.ne.s32.totalorder %s774, %s775
      %p786 = scmp.eq.s32.totalorder %s114, 0
      %p787 = por %p785, %p786
      %p788 = scmp.ne.s32.totalorder %s774, %s775
      %p789 = scmp.eq.s32.totalorder %s115, 11
      %p790 = por %p788, %p789
      %p792 = scmp.ne.s32.totalorder %s775, %s791
      %p793 = scmp.eq.s32.totalorder %s115, 0
      %p794 = por %p792, %p793
      %s795 = ssub.s32 %s116, %s128
      %p796 = scmp.eq.s32.totalorder %s795, 0
      %s798 = sadd.s32 %s797, 1
      %s799 = scalar_select %p796, %s797, %s798
      %p802 = pneg %p796
      %p803 = scmp.eq.s32.totalorder %s109, 11
      %p804 = por %p802, %p803
      %p805 = scmp.ne.s32.totalorder %s797, %s800
      %p806 = scmp.eq.s32.totalorder %s109, 0
      %p807 = por %p805, %p806
      %p808 = scmp.ne.s32.totalorder %s797, %s800
      %p809 = scmp.eq.s32.totalorder %s114, 11
      %p810 = por %p808, %p809
      %p811 = scmp.ne.s32.totalorder %s800, %s801
      %p812 = scmp.eq.s32.totalorder %s114, 0
      %p813 = por %p811, %p812
      %p814 = scmp.ne.s32.totalorder %s800, %s801
      %p815 = scmp.eq.s32.totalorder %s115, 11
      %p816 = por %p814, %p815
      %p818 = scmp.ne.s32.totalorder %s801, %s817
      %p819 = scmp.eq.s32.totalorder %s115, 0
      %p820 = por %p818, %p819
      %s821 = ssub.s32 %s116, %s128
      %p822 = scmp.eq.s32.totalorder %s821, 0
      %s824 = sadd.s32 %s823, 1
      %s825 = scalar_select %p822, %s823, %s824
      %p828 = pneg %p822
      %p829 = scmp.eq.s32.totalorder %s109, 11
      %p830 = por %p828, %p829
      %p831 = scmp.ne.s32.totalorder %s823, %s826
      %p832 = scmp.eq.s32.totalorder %s109, 0
      %p833 = por %p831, %p832
      %p834 = scmp.ne.s32.totalorder %s823, %s826
      %p835 = scmp.eq.s32.totalorder %s114, 11
      %p836 = por %p834, %p835
      %p837 = scmp.ne.s32.totalorder %s826, %s827
      %p838 = scmp.eq.s32.totalorder %s114, 0
      %p839 = por %p837, %p838
      %p840 = scmp.ne.s32.totalorder %s826, %s827
      %p841 = scmp.eq.s32.totalorder %s115, 11
      %p842 = por %p840, %p841
      %p844 = scmp.ne.s32.totalorder %s827, %s843
      %p845 = scmp.eq.s32.totalorder %s115, 0
      %p846 = por %p844, %p845
      %s848 = sadd.s32 %s847, 1
      %p851 = scmp.eq.s32.totalorder %s109, 11
      %p852 = scmp.ne.s32.totalorder %s847, %s849
      %p853 = scmp.eq.s32.totalorder %s109, 0
      %p854 = por %p852, %p853
      %p855 = scmp.ne.s32.totalorder %s847, %s849
      %p856 = scmp.eq.s32.totalorder %s114, 11
      %p857 = por %p855, %p856
      %p858 = scmp.ne.s32.totalorder %s849, %s850
      %p859 = scmp.eq.s32.totalorder %s114, 0
      %p860 = por %p858, %p859
      %p861 = scmp.ne.s32.totalorder %s849, %s850
      %p862 = scmp.eq.s32.totalorder %s115, 11
      %p863 = por %p861, %p862
      %p865 = scmp.ne.s32.totalorder %s850, %s864
      %p866 = scmp.eq.s32.totalorder %s115, 0
      %p867 = por %p865, %p866
      %s869 = sadd.s32 %s868, 1
      %p872 = scmp.eq.s32.totalorder %s109, 11
      %p873 = scmp.ne.s32.totalorder %s868, %s870
      %p874 = scmp.eq.s32.totalorder %s109, 0
      %p875 = por %p873, %p874
      %p876 = scmp.ne.s32.totalorder %s868, %s870
      %p877 = scmp.eq.s32.totalorder %s114, 11
      %p878 = por %p876, %p877
      %p879 = scmp.ne.s32.totalorder %s870, %s871
      %p880 = scmp.eq.s32.totalorder %s114, 0
      %p881 = por %p879, %p880
      %p882 = scmp.ne.s32.totalorder %s870, %s871
      %p883 = scmp.eq.s32.totalorder %s115, 11
      %p884 = por %p882, %p883
      %p886 = scmp.ne.s32.totalorder %s871, %s885
      %p887 = scmp.eq.s32.totalorder %s115, 0
      %p888 = por %p886, %p887
      %s890 = sadd.s32 %s889, 1
      %p893 = scmp.eq.s32.totalorder %s109, 11
      %p894 = scmp.ne.s32.totalorder %s889, %s891
      %p895 = scmp.eq.s32.totalorder %s109, 0
      %p896 = por %p894, %p895
      %p897 = scmp.ne.s32.totalorder %s889, %s891
      %p898 = scmp.eq.s32.totalorder %s114, 11
      %p899 = por %p897, %p898
      %p900 = scmp.ne.s32.totalorder %s891, %s892
      %p901 = scmp.eq.s32.totalorder %s114, 0
      %p902 = por %p900, %p901
      %p903 = scmp.ne.s32.totalorder %s891, %s892
      %p904 = scmp.eq.s32.totalorder %s115, 11
      %p905 = por %p903, %p904
      %p907 = scmp.ne.s32.totalorder %s892, %s906
      %p908 = scmp.eq.s32.totalorder %s115, 0
      %p909 = por %p907, %p908
      %p910 = scmp.le.s32.totalorder 1, %s109
      %p911 = scmp.lt.s32.totalorder %s109, 13
      %p912 = pnand %p910, %p911
      %p913 = pneg %p912
      // Predicated region
      $region9: #{basic_detr_forward.1} parent=5 // pred_check
        _
      $region10: #{basic_detr_forward.1} parent=5 // pred_check_branch
        %915 = sbr.rel (%p912) target = $region12
      $region11: #{basic_detr_forward.1} parent=5 // pred_region
        %s916 = ssub.s32 %s109, 1
        // Predicated region
        $region13: #{basic_detr_forward.1} parent=11 // pred_check
          %p917 = pneg %p142
        $region14: #{basic_detr_forward.1} parent=11 // pred_check_branch
          %919 = sbr.rel (%p917) target = $region16
        $region15: #{basic_detr_forward.1} parent=11 // pred_region
          _
        $region16: #{basic_detr_forward.1} parent=11 // pred_fallthru
          _
        // Predicated region
        $region17: #{basic_detr_forward.1} parent=11 // pred_check
          %p920 = pneg %p163
        $region18: #{basic_detr_forward.1} parent=11 // pred_check_branch
          %922 = sbr.rel (%p920) target = $region20
        $region19: #{basic_detr_forward.1} parent=11 // pred_region
          %s924 = ssub.s32 256, 256
          %925 = vsyncadd [#allocation4], %s924
          %s927 = sshll.u32 [#allocation3], 4
          %s928 = int_to_ptr.vmem [resolvable:$true] %s927
          %930 = dma.hbm_to_vmem [thread:$0]  %s3, 256, %s928, [#allocation4]
        $region20: #{basic_detr_forward.1} parent=11 // pred_fallthru
          _
        // Predicated region
        $region21: #{basic_detr_forward.1} parent=11 // pred_check
          %p931 = pneg %p860
        $region22: #{basic_detr_forward.1} parent=11 // pred_check_branch
          %933 = sbr.rel (%p931) target = $region24
        $region23: #{basic_detr_forward.1} parent=11 // pred_region
          %s935 = ssub.s32 2048, 2048
          %936 = vsyncadd [#allocation46], %s935
          %s937 = sshll.u32 [#allocation45], 4
          %s938 = int_to_ptr.vmem [resolvable:$true] %s937
          %943 = dma.hbm_to_vmem [thread:$0]  %s57, 2048, %s938, [#allocation46], 64, 64, 4
        $region24: #{basic_detr_forward.1} parent=11 // pred_fallthru
          _
        // Predicated region
        $region25: #{basic_detr_forward.1} parent=11 // pred_check
          %p944 = pneg %p881
        $region26: #{basic_detr_forward.1} parent=11 // pred_check_branch
          %946 = sbr.rel (%p944) target = $region28
        $region27: #{basic_detr_forward.1} parent=11 // pred_region
          %s948 = ssub.s32 16, 16
          %949 = vsyncadd [#allocation46], %s948
          %s951 = sshll.u32 [#allocation47], 4
          %s952 = int_to_ptr.vmem [resolvable:$true] %s951
          %954 = dma.hbm_to_vmem [thread:$0]  %s59, 16, %s952, [#allocation46]
        $region28: #{basic_detr_forward.1} parent=11 // pred_fallthru
          _
      $region12: #{basic_detr_forward.1} parent=5 // pred_fallthru
        _
      %p955 = scmp.lt.s32.totalorder %s109, 12
      // Predicated region
      $region29: #{basic_detr_forward.1} parent=5 // pred_check
        %p956 = pneg %p955
      $region30: #{basic_detr_forward.1} parent=5 // pred_check_branch
        %958 = sbr.rel (%p956) target = $region32
      $region31: #{basic_detr_forward.1} parent=5 // pred_region
        // Predicated region
        $region33: #{basic_detr_forward.1} parent=31 // pred_check
          %p959 = pneg %p183
        $region34: #{basic_detr_forward.1} parent=31 // pred_check_branch
          %961 = sbr.rel (%p959) target = $region36
        $region35: #{basic_detr_forward.1} parent=31 // pred_region
          %s962 = sand.u32 %s109, 1
          %s963 = scalar_lea.sflag [#allocation7], %s962
          %s964 = sand.u32 %s173, 1
          %s965 = smul.addr %s964, 256
          %s966 = scalar_lea.vmem [#allocation6], %s965
          %s968 = ssub.s32 4096, 4096
          %969 = vsyncadd %s963, %s968
          %s970 = smul.addr %s116, 64
          %s971 = smul.addr %s970, 64
          %s972 = scalar_lea.hbm %s5, %s971
          %s973 = sshll.u32 %s966, 4
          %s974 = int_to_ptr.vmem [resolvable:$true] %s973
          %979 = dma.hbm_to_vmem [thread:$0]  %s972, 4096, %s974, %s963, 128, 128, 8
        $region36: #{basic_detr_forward.1} parent=31 // pred_fallthru
          _
        // Predicated region
        $region37: #{basic_detr_forward.1} parent=31 // pred_check
          %p980 = pneg %p209
        $region38: #{basic_detr_forward.1} parent=31 // pred_check_branch
          %982 = sbr.rel (%p980) target = $region40
        $region39: #{basic_detr_forward.1} parent=31 // pred_region
          %s983 = sand.u32 %s109, 1
          %s984 = scalar_lea.sflag [#allocation7], %s983
          %s985 = sand.u32 %s199, 1
          %s986 = smul.addr %s985, 2
          %s987 = scalar_lea.vmem [#allocation8], %s986
          %s989 = ssub.s32 32, 32
          %990 = vsyncadd %s984, %s989
          %s991 = smul.addr %s116, 2
          %s992 = smul.addr %s991, 16
          %s993 = scalar_lea.hbm %s7, %s992
          %s995 = sshll.u32 %s987, 4
          %s996 = int_to_ptr.vmem [resolvable:$true] %s995
          %998 = dma.hbm_to_vmem [thread:$0]  %s993, 32, %s996, %s984
        $region40: #{basic_detr_forward.1} parent=31 // pred_fallthru
          _
        // Predicated region
        $region41: #{basic_detr_forward.1} parent=31 // pred_check
          %p999 = pneg %p235
        $region42: #{basic_detr_forward.1} parent=31 // pred_check_branch
          %1001 = sbr.rel (%p999) target = $region44
        $region43: #{basic_detr_forward.1} parent=31 // pred_region
          %s1002 = sand.u32 %s109, 1
          %s1003 = scalar_lea.sflag [#allocation10], %s1002
          %s1004 = sand.u32 %s225, 1
          %s1005 = smul.addr %s1004, 256
          %s1006 = scalar_lea.vmem [#allocation9], %s1005
          %s1008 = ssub.s32 4096, 4096
          %1009 = vsyncadd %s1003, %s1008
          %s1010 = smul.addr %s116, 64
          %s1011 = smul.addr %s1010, 64
          %s1012 = scalar_lea.hbm %s9, %s1011
          %s1013 = sshll.u32 %s1006, 4
          %s1014 = int_to_ptr.vmem [resolvable:$true] %s1013
          %1019 = dma.hbm_to_vmem [thread:$0]  %s1012, 4096, %s1014, %s1003, 128, 128, 8
        $region44: #{basic_detr_forward.1} parent=31 // pred_fallthru
          _
        // Predicated region
        $region45: #{basic_detr_forward.1} parent=31 // pred_check
          %p1020 = pneg %p261
        $region46: #{basic_detr_forward.1} parent=31 // pred_check_branch
          %1022 = sbr.rel (%p1020) target = $region48
        $region47: #{basic_detr_forward.1} parent=31 // pred_region
          %s1023 = sand.u32 %s109, 1
          %s1024 = scalar_lea.sflag [#allocation10], %s1023
          %s1025 = sand.u32 %s251, 1
          %s1026 = smul.addr %s1025, 2
          %s1027 = scalar_lea.vmem [#allocation11], %s1026
          %s1029 = ssub.s32 32, 32
          %1030 = vsyncadd %s1024, %s1029
          %s1031 = smul.addr %s116, 2
          %s1032 = smul.addr %s1031, 16
          %s1033 = scalar_lea.hbm %s11, %s1032
          %s1035 = sshll.u32 %s1027, 4
          %s1036 = int_to_ptr.vmem [resolvable:$true] %s1035
          %1038 = dma.hbm_to_vmem [thread:$0]  %s1033, 32, %s1036, %s1024
        $region48: #{basic_detr_forward.1} parent=31 // pred_fallthru
          _
        // Predicated region
        $region49: #{basic_detr_forward.1} parent=31 // pred_check
          %p1039 = pneg %p287
        $region50: #{basic_detr_forward.1} parent=31 // pred_check_branch
          %1041 = sbr.rel (%p1039) target = $region52
        $region51: #{basic_detr_forward.1} parent=31 // pred_region
          %s1042 = sand.u32 %s109, 1
          %s1043 = scalar_lea.sflag [#allocation13], %s1042
          %s1044 = sand.u32 %s277, 1
          %s1045 = smul.addr %s1044, 256
          %s1046 = scalar_lea.vmem [#allocation12], %s1045
          %s1048 = ssub.s32 4096, 4096
          %1049 = vsyncadd %s1043, %s1048
          %s1050 = smul.addr %s116, 64
          %s1051 = smul.addr %s1050, 64
          %s1052 = scalar_lea.hbm %s13, %s1051
          %s1053 = sshll.u32 %s1046, 4
          %s1054 = int_to_ptr.vmem [resolvable:$true] %s1053
          %1059 = dma.hbm_to_vmem [thread:$0]  %s1052, 4096, %s1054, %s1043, 128, 128, 8
        $region52: #{basic_detr_forward.1} parent=31 // pred_fallthru
          _
        // Predicated region
        $region53: #{basic_detr_forward.1} parent=31 // pred_check
          %p1060 = pneg %p313
        $region54: #{basic_detr_forward.1} parent=31 // pred_check_branch
          %1062 = sbr.rel (%p1060) target = $region56
        $region55: #{basic_detr_forward.1} parent=31 // pred_region
          %s1063 = sand.u32 %s109, 1
          %s1064 = scalar_lea.sflag [#allocation13], %s1063
          %s1065 = sand.u32 %s303, 1
          %s1066 = smul.addr %s1065, 2
          %s1067 = scalar_lea.vmem [#allocation14], %s1066
          %s1069 = ssub.s32 32, 32
          %1070 = vsyncadd %s1064, %s1069
          %s1071 = smul.addr %s116, 2
          %s1072 = smul.addr %s1071, 16
          %s1073 = scalar_lea.hbm %s15, %s1072
          %s1075 = sshll.u32 %s1067, 4
          %s1076 = int_to_ptr.vmem [resolvable:$true] %s1075
          %1078 = dma.hbm_to_vmem [thread:$0]  %s1073, 32, %s1076, %s1064
        $region56: #{basic_detr_forward.1} parent=31 // pred_fallthru
          _
        // Predicated region
        $region57: #{basic_detr_forward.1} parent=31 // pred_check
          %p1079 = pneg %p339
        $region58: #{basic_detr_forward.1} parent=31 // pred_check_branch
          %1081 = sbr.rel (%p1079) target = $region60
        $region59: #{basic_detr_forward.1} parent=31 // pred_region
          %s1082 = sand.u32 %s109, 1
          %s1083 = scalar_lea.sflag [#allocation16], %s1082
          %s1084 = sand.u32 %s329, 1
          %s1085 = smul.addr %s1084, 256
          %s1086 = scalar_lea.vmem [#allocation15], %s1085
          %s1088 = ssub.s32 4096, 4096
          %1089 = vsyncadd %s1083, %s1088
          %s1090 = smul.addr %s116, 64
          %s1091 = smul.addr %s1090, 64
          %s1092 = scalar_lea.hbm %s17, %s1091
          %s1093 = sshll.u32 %s1086, 4
          %s1094 = int_to_ptr.vmem [resolvable:$true] %s1093
          %1099 = dma.hbm_to_vmem [thread:$0]  %s1092, 4096, %s1094, %s1083, 128, 128, 8
        $region60: #{basic_detr_forward.1} parent=31 // pred_fallthru
          _
        // Predicated region
        $region61: #{basic_detr_forward.1} parent=31 // pred_check
          %p1100 = pneg %p365
        $region62: #{basic_detr_forward.1} parent=31 // pred_check_branch
          %1102 = sbr.rel (%p1100) target = $region64
        $region63: #{basic_detr_forward.1} parent=31 // pred_region
          %s1103 = sand.u32 %s109, 1
          %s1104 = scalar_lea.sflag [#allocation16], %s1103
          %s1105 = sand.u32 %s355, 1
          %s1106 = smul.addr %s1105, 2
          %s1107 = scalar_lea.vmem [#allocation17], %s1106
          %s1109 = ssub.s32 32, 32
          %1110 = vsyncadd %s1104, %s1109
          %s1111 = smul.addr %s116, 2
          %s1112 = smul.addr %s1111, 16
          %s1113 = scalar_lea.hbm %s19, %s1112
          %s1115 = sshll.u32 %s1107, 4
          %s1116 = int_to_ptr.vmem [resolvable:$true] %s1115
          %1118 = dma.hbm_to_vmem [thread:$0]  %s1113, 32, %s1116, %s1104
        $region64: #{basic_detr_forward.1} parent=31 // pred_fallthru
          _
        // Predicated region
        $region65: #{basic_detr_forward.1} parent=31 // pred_check
          %p1119 = pneg %p391
        $region66: #{basic_detr_forward.1} parent=31 // pred_check_branch
          %1121 = sbr.rel (%p1119) target = $region68
        $region67: #{basic_detr_forward.1} parent=31 // pred_region
          %s1122 = sand.u32 %s109, 1
          %s1123 = scalar_lea.sflag [#allocation19], %s1122
          %s1124 = sand.u32 %s381, 1
          %s1125 = smul.addr %s1124, 256
          %s1126 = scalar_lea.vmem [#allocation18], %s1125
          %s1128 = ssub.s32 4096, 4096
          %1129 = vsyncadd %s1123, %s1128
          %s1130 = smul.addr %s116, 64
          %s1131 = smul.addr %s1130, 64
          %s1132 = scalar_lea.hbm %s21, %s1131
          %s1133 = sshll.u32 %s1126, 4
          %s1134 = int_to_ptr.vmem [resolvable:$true] %s1133
          %1139 = dma.hbm_to_vmem [thread:$0]  %s1132, 4096, %s1134, %s1123, 128, 128, 8
        $region68: #{basic_detr_forward.1} parent=31 // pred_fallthru
          _
        // Predicated region
        $region69: #{basic_detr_forward.1} parent=31 // pred_check
          %p1140 = pneg %p417
        $region70: #{basic_detr_forward.1} parent=31 // pred_check_branch
          %1142 = sbr.rel (%p1140) target = $region72
        $region71: #{basic_detr_forward.1} parent=31 // pred_region
          %s1143 = sand.u32 %s109, 1
          %s1144 = scalar_lea.sflag [#allocation19], %s1143
          %s1145 = sand.u32 %s407, 1
          %s1146 = smul.addr %s1145, 2
          %s1147 = scalar_lea.vmem [#allocation20], %s1146
          %s1149 = ssub.s32 32, 32
          %1150 = vsyncadd %s1144, %s1149
          %s1151 = smul.addr %s116, 2
          %s1152 = smul.addr %s1151, 16
          %s1153 = scalar_lea.hbm %s23, %s1152
          %s1155 = sshll.u32 %s1147, 4
          %s1156 = int_to_ptr.vmem [resolvable:$true] %s1155
          %1158 = dma.hbm_to_vmem [thread:$0]  %s1153, 32, %s1156, %s1144
        $region72: #{basic_detr_forward.1} parent=31 // pred_fallthru
          _
        // Predicated region
        $region73: #{basic_detr_forward.1} parent=31 // pred_check
          %p1159 = pneg %p443
        $region74: #{basic_detr_forward.1} parent=31 // pred_check_branch
          %1161 = sbr.rel (%p1159) target = $region76
        $region75: #{basic_detr_forward.1} parent=31 // pred_region
          %s1162 = sand.u32 %s109, 1
          %s1163 = scalar_lea.sflag [#allocation22], %s1162
          %s1164 = sand.u32 %s433, 1
          %s1165 = smul.addr %s1164, 256
          %s1166 = scalar_lea.vmem [#allocation21], %s1165
          %s1168 = ssub.s32 4096, 4096
          %1169 = vsyncadd %s1163, %s1168
          %s1170 = smul.addr %s116, 64
          %s1171 = smul.addr %s1170, 64
          %s1172 = scalar_lea.hbm %s25, %s1171
          %s1173 = sshll.u32 %s1166, 4
          %s1174 = int_to_ptr.vmem [resolvable:$true] %s1173
          %1179 = dma.hbm_to_vmem [thread:$0]  %s1172, 4096, %s1174, %s1163, 128, 128, 8
        $region76: #{basic_detr_forward.1} parent=31 // pred_fallthru
          _
        // Predicated region
        $region77: #{basic_detr_forward.1} parent=31 // pred_check
          %p1180 = pneg %p469
        $region78: #{basic_detr_forward.1} parent=31 // pred_check_branch
          %1182 = sbr.rel (%p1180) target = $region80
        $region79: #{basic_detr_forward.1} parent=31 // pred_region
          %s1183 = sand.u32 %s109, 1
          %s1184 = scalar_lea.sflag [#allocation22], %s1183
          %s1185 = sand.u32 %s459, 1
          %s1186 = smul.addr %s1185, 2
          %s1187 = scalar_lea.vmem [#allocation23], %s1186
          %s1189 = ssub.s32 32, 32
          %1190 = vsyncadd %s1184, %s1189
          %s1191 = smul.addr %s116, 2
          %s1192 = smul.addr %s1191, 16
          %s1193 = scalar_lea.hbm %s27, %s1192
          %s1195 = sshll.u32 %s1187, 4
          %s1196 = int_to_ptr.vmem [resolvable:$true] %s1195
          %1198 = dma.hbm_to_vmem [thread:$0]  %s1193, 32, %s1196, %s1184
        $region80: #{basic_detr_forward.1} parent=31 // pred_fallthru
          _
        // Predicated region
        $region81: #{basic_detr_forward.1} parent=31 // pred_check
          %p1199 = pneg %p495
        $region82: #{basic_detr_forward.1} parent=31 // pred_check_branch
          %1201 = sbr.rel (%p1199) target = $region84
        $region83: #{basic_detr_forward.1} parent=31 // pred_region
          %s1202 = sand.u32 %s109, 1
          %s1203 = scalar_lea.sflag [#allocation25], %s1202
          %s1204 = sand.u32 %s485, 1
          %s1205 = smul.addr %s1204, 256
          %s1206 = scalar_lea.vmem [#allocation24], %s1205
          %s1208 = ssub.s32 4096, 4096
          %1209 = vsyncadd %s1203, %s1208
          %s1210 = smul.addr %s116, 64
          %s1211 = smul.addr %s1210, 64
          %s1212 = scalar_lea.hbm %s29, %s1211
          %s1213 = sshll.u32 %s1206, 4
          %s1214 = int_to_ptr.vmem [resolvable:$true] %s1213
          %1219 = dma.hbm_to_vmem [thread:$0]  %s1212, 4096, %s1214, %s1203, 128, 128, 8
        $region84: #{basic_detr_forward.1} parent=31 // pred_fallthru
          _
        // Predicated region
        $region85: #{basic_detr_forward.1} parent=31 // pred_check
          %p1220 = pneg %p521
        $region86: #{basic_detr_forward.1} parent=31 // pred_check_branch
          %1222 = sbr.rel (%p1220) target = $region88
        $region87: #{basic_detr_forward.1} parent=31 // pred_region
          %s1223 = sand.u32 %s109, 1
          %s1224 = scalar_lea.sflag [#allocation25], %s1223
          %s1225 = sand.u32 %s511, 1
          %s1226 = smul.addr %s1225, 2
          %s1227 = scalar_lea.vmem [#allocation26], %s1226
          %s1229 = ssub.s32 32, 32
          %1230 = vsyncadd %s1224, %s1229
          %s1231 = smul.addr %s116, 2
          %s1232 = smul.addr %s1231, 16
          %s1233 = scalar_lea.hbm %s31, %s1232
          %s1235 = sshll.u32 %s1227, 4
          %s1236 = int_to_ptr.vmem [resolvable:$true] %s1235
          %1238 = dma.hbm_to_vmem [thread:$0]  %s1233, 32, %s1236, %s1224
        $region88: #{basic_detr_forward.1} parent=31 // pred_fallthru
          _
        // Predicated region
        $region89: #{basic_detr_forward.1} parent=31 // pred_check
          %p1239 = pneg %p547
        $region90: #{basic_detr_forward.1} parent=31 // pred_check_branch
          %1241 = sbr.rel (%p1239) target = $region92
        $region91: #{basic_detr_forward.1} parent=31 // pred_region
          %s1242 = sand.u32 %s109, 1
          %s1243 = scalar_lea.sflag [#allocation28], %s1242
          %s1244 = sand.u32 %s537, 1
          %s1245 = smul.addr %s1244, 256
          %s1246 = scalar_lea.vmem [#allocation27], %s1245
          %s1248 = ssub.s32 4096, 4096
          %1249 = vsyncadd %s1243, %s1248
          %s1250 = smul.addr %s116, 64
          %s1251 = smul.addr %s1250, 64
          %s1252 = scalar_lea.hbm %s33, %s1251
          %s1253 = sshll.u32 %s1246, 4
          %s1254 = int_to_ptr.vmem [resolvable:$true] %s1253
          %1259 = dma.hbm_to_vmem [thread:$0]  %s1252, 4096, %s1254, %s1243, 128, 128, 8
        $region92: #{basic_detr_forward.1} parent=31 // pred_fallthru
          _
        // Predicated region
        $region93: #{basic_detr_forward.1} parent=31 // pred_check
          %p1260 = pneg %p573
        $region94: #{basic_detr_forward.1} parent=31 // pred_check_branch
          %1262 = sbr.rel (%p1260) target = $region96
        $region95: #{basic_detr_forward.1} parent=31 // pred_region
          %s1263 = sand.u32 %s109, 1
          %s1264 = scalar_lea.sflag [#allocation28], %s1263
          %s1265 = sand.u32 %s563, 1
          %s1266 = smul.addr %s1265, 2
          %s1267 = scalar_lea.vmem [#allocation29], %s1266
          %s1269 = ssub.s32 32, 32
          %1270 = vsyncadd %s1264, %s1269
          %s1271 = smul.addr %s116, 2
          %s1272 = smul.addr %s1271, 16
          %s1273 = scalar_lea.hbm %s35, %s1272
          %s1275 = sshll.u32 %s1267, 4
          %s1276 = int_to_ptr.vmem [resolvable:$true] %s1275
          %1278 = dma.hbm_to_vmem [thread:$0]  %s1273, 32, %s1276, %s1264
        $region96: #{basic_detr_forward.1} parent=31 // pred_fallthru
          _
        // Predicated region
        $region97: #{basic_detr_forward.1} parent=31 // pred_check
          %p1279 = pneg %p599
        $region98: #{basic_detr_forward.1} parent=31 // pred_check_branch
          %1281 = sbr.rel (%p1279) target = $region100
        $region99: #{basic_detr_forward.1} parent=31 // pred_region
          %s1282 = sand.u32 %s109, 1
          %s1283 = scalar_lea.sflag [#allocation31], %s1282
          %s1284 = sand.u32 %s589, 1
          %s1285 = smul.addr %s1284, 2
          %s1286 = scalar_lea.vmem [#allocation30], %s1285
          %s1288 = ssub.s32 32, 32
          %1289 = vsyncadd %s1283, %s1288
          %s1290 = smul.addr %s116, 2
          %s1291 = smul.addr %s1290, 16
          %s1292 = scalar_lea.hbm %s37, %s1291
          %s1294 = sshll.u32 %s1286, 4
          %s1295 = int_to_ptr.vmem [resolvable:$true] %s1294
          %1297 = dma.hbm_to_vmem [thread:$0]  %s1292, 32, %s1295, %s1283
        $region100: #{basic_detr_forward.1} parent=31 // pred_fallthru
          _
        // Predicated region
        $region101: #{basic_detr_forward.1} parent=31 // pred_check
          %p1298 = pneg %p625
        $region102: #{basic_detr_forward.1} parent=31 // pred_check_branch
          %1300 = sbr.rel (%p1298) target = $region104
        $region103: #{basic_detr_forward.1} parent=31 // pred_region
          %s1301 = sand.u32 %s109, 1
          %s1302 = scalar_lea.sflag [#allocation31], %s1301
          %s1303 = sand.u32 %s615, 1
          %s1304 = smul.addr %s1303, 2
          %s1305 = scalar_lea.vmem [#allocation32], %s1304
          %s1307 = ssub.s32 32, 32
          %1308 = vsyncadd %s1302, %s1307
          %s1309 = smul.addr %s116, 2
          %s1310 = smul.addr %s1309, 16
          %s1311 = scalar_lea.hbm %s39, %s1310
          %s1313 = sshll.u32 %s1305, 4
          %s1314 = int_to_ptr.vmem [resolvable:$true] %s1313
          %1316 = dma.hbm_to_vmem [thread:$0]  %s1311, 32, %s1314, %s1302
        $region104: #{basic_detr_forward.1} parent=31 // pred_fallthru
          _
        // Predicated region
        $region105: #{basic_detr_forward.1} parent=31 // pred_check
          %p1317 = pneg %p651
        $region106: #{basic_detr_forward.1} parent=31 // pred_check_branch
          %1319 = sbr.rel (%p1317) target = $region108
        $region107: #{basic_detr_forward.1} parent=31 // pred_region
          %s1320 = sand.u32 %s109, 1
          %s1321 = scalar_lea.sflag [#allocation34], %s1320
          %s1322 = sand.u32 %s641, 1
          %s1323 = smul.addr %s1322, 2
          %s1324 = scalar_lea.vmem [#allocation33], %s1323
          %s1326 = ssub.s32 32, 32
          %1327 = vsyncadd %s1321, %s1326
          %s1328 = smul.addr %s116, 2
          %s1329 = smul.addr %s1328, 16
          %s1330 = scalar_lea.hbm %s41, %s1329
          %s1332 = sshll.u32 %s1324, 4
          %s1333 = int_to_ptr.vmem [resolvable:$true] %s1332
          %1335 = dma.hbm_to_vmem [thread:$0]  %s1330, 32, %s1333, %s1321
        $region108: #{basic_detr_forward.1} parent=31 // pred_fallthru
          _
        // Predicated region
        $region109: #{basic_detr_forward.1} parent=31 // pred_check
          %p1336 = pneg %p677
        $region110: #{basic_detr_forward.1} parent=31 // pred_check_branch
          %1338 = sbr.rel (%p1336) target = $region112
        $region111: #{basic_detr_forward.1} parent=31 // pred_region
          %s1339 = sand.u32 %s109, 1
          %s1340 = scalar_lea.sflag [#allocation34], %s1339
          %s1341 = sand.u32 %s667, 1
          %s1342 = smul.addr %s1341, 2
          %s1343 = scalar_lea.vmem [#allocation35], %s1342
          %s1345 = ssub.s32 32, 32
          %1346 = vsyncadd %s1340, %s1345
          %s1347 = smul.addr %s116, 2
          %s1348 = smul.addr %s1347, 16
          %s1349 = scalar_lea.hbm %s43, %s1348
          %s1351 = sshll.u32 %s1343, 4
          %s1352 = int_to_ptr.vmem [resolvable:$true] %s1351
          %1354 = dma.hbm_to_vmem [thread:$0]  %s1349, 32, %s1352, %s1340
        $region112: #{basic_detr_forward.1} parent=31 // pred_fallthru
          _
        // Predicated region
        $region113: #{basic_detr_forward.1} parent=31 // pred_check
          %p1355 = pneg %p703
        $region114: #{basic_detr_forward.1} parent=31 // pred_check_branch
          %1357 = sbr.rel (%p1355) target = $region116
        $region115: #{basic_detr_forward.1} parent=31 // pred_region
          %s1358 = sand.u32 %s109, 1
          %s1359 = scalar_lea.sflag [#allocation37], %s1358
          %s1360 = sand.u32 %s693, 1
          %s1361 = smul.addr %s1360, 2
          %s1362 = scalar_lea.vmem [#allocation36], %s1361
          %s1364 = ssub.s32 32, 32
          %1365 = vsyncadd %s1359, %s1364
          %s1366 = smul.addr %s116, 2
          %s1367 = smul.addr %s1366, 16
          %s1368 = scalar_lea.hbm %s45, %s1367
          %s1370 = sshll.u32 %s1362, 4
          %s1371 = int_to_ptr.vmem [resolvable:$true] %s1370
          %1373 = dma.hbm_to_vmem [thread:$0]  %s1368, 32, %s1371, %s1359
        $region116: #{basic_detr_forward.1} parent=31 // pred_fallthru
          _
        // Predicated region
        $region117: #{basic_detr_forward.1} parent=31 // pred_check
          %p1374 = pneg %p729
        $region118: #{basic_detr_forward.1} parent=31 // pred_check_branch
          %1376 = sbr.rel (%p1374) target = $region120
        $region119: #{basic_detr_forward.1} parent=31 // pred_region
          %s1377 = sand.u32 %s109, 1
          %s1378 = scalar_lea.sflag [#allocation37], %s1377
          %s1379 = sand.u32 %s719, 1
          %s1380 = smul.addr %s1379, 2
          %s1381 = scalar_lea.vmem [#allocation38], %s1380
          %s1383 = ssub.s32 32, 32
          %1384 = vsyncadd %s1378, %s1383
          %s1385 = smul.addr %s116, 2
          %s1386 = smul.addr %s1385, 16
          %s1387 = scalar_lea.hbm %s47, %s1386
          %s1389 = sshll.u32 %s1381, 4
          %s1390 = int_to_ptr.vmem [resolvable:$true] %s1389
          %1392 = dma.hbm_to_vmem [thread:$0]  %s1387, 32, %s1390, %s1378
        $region120: #{basic_detr_forward.1} parent=31 // pred_fallthru
          _
        // Predicated region
        $region121: #{basic_detr_forward.1} parent=31 // pred_check
          %p1393 = pneg %p755
        $region122: #{basic_detr_forward.1} parent=31 // pred_check_branch
          %1395 = sbr.rel (%p1393) target = $region124
        $region123: #{basic_detr_forward.1} parent=31 // pred_region
          %s1396 = sand.u32 %s109, 1
          %s1397 = scalar_lea.sflag [#allocation40], %s1396
          %s1398 = sand.u32 %s745, 1
          %s1399 = smul.addr %s1398, 2048
          %s1400 = scalar_lea.vmem [#allocation39], %s1399
          %s1402 = ssub.s32 32768, 32768
          %1403 = vsyncadd %s1397, %s1402
          %s1404 = smul.addr %s116, 512
          %s1405 = smul.addr %s1404, 64
          %s1406 = scalar_lea.hbm %s49, %s1405
          %s1407 = sshll.u32 %s1400, 4
          %s1408 = int_to_ptr.vmem [resolvable:$true] %s1407
          %1413 = dma.hbm_to_vmem [thread:$0]  %s1406, 32768, %s1408, %s1397, 1024, 1024, 64
        $region124: #{basic_detr_forward.1} parent=31 // pred_fallthru
          _
        // Predicated region
        $region125: #{basic_detr_forward.1} parent=31 // pred_check
          %p1414 = pneg %p781
        $region126: #{basic_detr_forward.1} parent=31 // pred_check_branch
          %1416 = sbr.rel (%p1414) target = $region128
        $region127: #{basic_detr_forward.1} parent=31 // pred_region
          %s1417 = sand.u32 %s109, 1
          %s1418 = scalar_lea.sflag [#allocation40], %s1417
          %s1419 = sand.u32 %s771, 1
          %s1420 = smul.addr %s1419, 16
          %s1421 = scalar_lea.vmem [#allocation41], %s1420
          %s1423 = ssub.s32 256, 256
          %1424 = vsyncadd %s1418, %s1423
          %s1425 = smul.addr %s116, 16
          %s1426 = smul.addr %s1425, 16
          %s1427 = scalar_lea.hbm %s51, %s1426
          %s1429 = sshll.u32 %s1421, 4
          %s1430 = int_to_ptr.vmem [resolvable:$true] %s1429
          %1432 = dma.hbm_to_vmem [thread:$0]  %s1427, 256, %s1430, %s1418
        $region128: #{basic_detr_forward.1} parent=31 // pred_fallthru
          _
        // Predicated region
        $region129: #{basic_detr_forward.1} parent=31 // pred_check
          %p1433 = pneg %p807
        $region130: #{basic_detr_forward.1} parent=31 // pred_check_branch
          %1435 = sbr.rel (%p1433) target = $region132
        $region131: #{basic_detr_forward.1} parent=31 // pred_region
          %s1436 = sand.u32 %s109, 1
          %s1437 = scalar_lea.sflag [#allocation43], %s1436
          %s1438 = sand.u32 %s797, 1
          %s1439 = smul.addr %s1438, 2048
          %s1440 = scalar_lea.vmem [#allocation42], %s1439
          %s1442 = ssub.s32 32768, 32768
          %1443 = vsyncadd %s1437, %s1442
          %s1444 = smul.addr %s116, 512
          %s1445 = smul.addr %s1444, 64
          %s1446 = scalar_lea.hbm %s53, %s1445
          %s1447 = sshll.u32 %s1440, 4
          %s1448 = int_to_ptr.vmem [resolvable:$true] %s1447
          %1453 = dma.hbm_to_vmem [thread:$0]  %s1446, 32768, %s1448, %s1437, 128, 128, 8
        $region132: #{basic_detr_forward.1} parent=31 // pred_fallthru
          _
        // Predicated region
        $region133: #{basic_detr_forward.1} parent=31 // pred_check
          %p1454 = pneg %p833
        $region134: #{basic_detr_forward.1} parent=31 // pred_check_branch
          %1456 = sbr.rel (%p1454) target = $region136
        $region135: #{basic_detr_forward.1} parent=31 // pred_region
          %s1457 = sand.u32 %s109, 1
          %s1458 = scalar_lea.sflag [#allocation43], %s1457
          %s1459 = sand.u32 %s823, 1
          %s1460 = smul.addr %s1459, 2
          %s1461 = scalar_lea.vmem [#allocation44], %s1460
          %s1463 = ssub.s32 32, 32
          %1464 = vsyncadd %s1458, %s1463
          %s1465 = smul.addr %s116, 2
          %s1466 = smul.addr %s1465, 16
          %s1467 = scalar_lea.hbm %s55, %s1466
          %s1469 = sshll.u32 %s1461, 4
          %s1470 = int_to_ptr.vmem [resolvable:$true] %s1469
          %1472 = dma.hbm_to_vmem [thread:$0]  %s1467, 32, %s1470, %s1458
        $region136: #{basic_detr_forward.1} parent=31 // pred_fallthru
          _
      $region32: #{basic_detr_forward.1} parent=5 // pred_fallthru
        _
      %p1473 = scmp.le.s32.totalorder 1, %s109
      %p1474 = scmp.lt.s32.totalorder %s109, 13
      %p1475 = pnand %p1473, %p1474
      %p1476 = pneg %p1475
      // Predicated region
      $region137: #{basic_detr_forward.1} parent=5 // pred_check
        _
      $region138: #{basic_detr_forward.1} parent=5 // pred_check_branch
        %1478 = sbr.rel (%p1475) target = $region140
      $region139: #{basic_detr_forward.1} parent=5 // pred_region
        %s1479 = ssub.s32 %s109, 1
        // Predicated region
        $region141: #{basic_detr_forward.1} parent=139 // pred_check
          %p1480 = pneg %p163
        $region142: #{basic_detr_forward.1} parent=139 // pred_check_branch
          %1482 = sbr.rel (%p1480) target = $region144
        $region143: #{basic_detr_forward.1} parent=139 // pred_region
          %1483 = dma.done [#allocation4], 256
        $region144: #{basic_detr_forward.1} parent=139 // pred_fallthru
          _
        %s1484 = sand.u32 %s114, 1
        %s1485 = scalar_lea.sflag [#allocation7], %s1484
        %s1486 = sand.u32 %s176, 1
        %s1487 = smul.addr %s1486, 256
        %s1488 = scalar_lea.vmem [#allocation6], %s1487
        // Predicated region
        $region145: #{basic_detr_forward.1} parent=139 // pred_check
          %p1489 = pneg %p189
        $region146: #{basic_detr_forward.1} parent=139 // pred_check_branch
          %1491 = sbr.rel (%p1489) target = $region148
        $region147: #{basic_detr_forward.1} parent=139 // pred_region
          %1492 = dma.done %s1485, 4096
        $region148: #{basic_detr_forward.1} parent=139 // pred_fallthru
          _
        %s1493 = sand.u32 %s114, 1
        %s1494 = scalar_lea.sflag [#allocation7], %s1493
        %s1495 = sand.u32 %s202, 1
        %s1496 = smul.addr %s1495, 2
        %s1497 = scalar_lea.vmem [#allocation8], %s1496
        // Predicated region
        $region149: #{basic_detr_forward.1} parent=139 // pred_check
          %p1498 = pneg %p215
        $region150: #{basic_detr_forward.1} parent=139 // pred_check_branch
          %1500 = sbr.rel (%p1498) target = $region152
        $region151: #{basic_detr_forward.1} parent=139 // pred_region
          %1501 = dma.done %s1494, 32
        $region152: #{basic_detr_forward.1} parent=139 // pred_fallthru
          _
        %s1502 = sand.u32 %s114, 1
        %s1503 = scalar_lea.sflag [#allocation10], %s1502
        %s1504 = sand.u32 %s228, 1
        %s1505 = smul.addr %s1504, 256
        %s1506 = scalar_lea.vmem [#allocation9], %s1505
        // Predicated region
        $region153: #{basic_detr_forward.1} parent=139 // pred_check
          %p1507 = pneg %p241
        $region154: #{basic_detr_forward.1} parent=139 // pred_check_branch
          %1509 = sbr.rel (%p1507) target = $region156
        $region155: #{basic_detr_forward.1} parent=139 // pred_region
          %1510 = dma.done %s1503, 4096
        $region156: #{basic_detr_forward.1} parent=139 // pred_fallthru
          _
        %s1511 = sand.u32 %s114, 1
        %s1512 = scalar_lea.sflag [#allocation10], %s1511
        %s1513 = sand.u32 %s254, 1
        %s1514 = smul.addr %s1513, 2
        %s1515 = scalar_lea.vmem [#allocation11], %s1514
        // Predicated region
        $region157: #{basic_detr_forward.1} parent=139 // pred_check
          %p1516 = pneg %p267
        $region158: #{basic_detr_forward.1} parent=139 // pred_check_branch
          %1518 = sbr.rel (%p1516) target = $region160
        $region159: #{basic_detr_forward.1} parent=139 // pred_region
          %1519 = dma.done %s1512, 32
        $region160: #{basic_detr_forward.1} parent=139 // pred_fallthru
          _
        %s1520 = sand.u32 %s114, 1
        %s1521 = scalar_lea.sflag [#allocation13], %s1520
        %s1522 = sand.u32 %s280, 1
        %s1523 = smul.addr %s1522, 256
        %s1524 = scalar_lea.vmem [#allocation12], %s1523
        // Predicated region
        $region161: #{basic_detr_forward.1} parent=139 // pred_check
          %p1525 = pneg %p293
        $region162: #{basic_detr_forward.1} parent=139 // pred_check_branch
          %1527 = sbr.rel (%p1525) target = $region164
        $region163: #{basic_detr_forward.1} parent=139 // pred_region
          %1528 = dma.done %s1521, 4096
        $region164: #{basic_detr_forward.1} parent=139 // pred_fallthru
          _
        %s1529 = sand.u32 %s114, 1
        %s1530 = scalar_lea.sflag [#allocation13], %s1529
        %s1531 = sand.u32 %s306, 1
        %s1532 = smul.addr %s1531, 2
        %s1533 = scalar_lea.vmem [#allocation14], %s1532
        // Predicated region
        $region165: #{basic_detr_forward.1} parent=139 // pred_check
          %p1534 = pneg %p319
        $region166: #{basic_detr_forward.1} parent=139 // pred_check_branch
          %1536 = sbr.rel (%p1534) target = $region168
        $region167: #{basic_detr_forward.1} parent=139 // pred_region
          %1537 = dma.done %s1530, 32
        $region168: #{basic_detr_forward.1} parent=139 // pred_fallthru
          _
        %s1538 = sand.u32 %s114, 1
        %s1539 = scalar_lea.sflag [#allocation16], %s1538
        %s1540 = sand.u32 %s332, 1
        %s1541 = smul.addr %s1540, 256
        %s1542 = scalar_lea.vmem [#allocation15], %s1541
        // Predicated region
        $region169: #{basic_detr_forward.1} parent=139 // pred_check
          %p1543 = pneg %p345
        $region170: #{basic_detr_forward.1} parent=139 // pred_check_branch
          %1545 = sbr.rel (%p1543) target = $region172
        $region171: #{basic_detr_forward.1} parent=139 // pred_region
          %1546 = dma.done %s1539, 4096
        $region172: #{basic_detr_forward.1} parent=139 // pred_fallthru
          _
        %s1547 = sand.u32 %s114, 1
        %s1548 = scalar_lea.sflag [#allocation16], %s1547
        %s1549 = sand.u32 %s358, 1
        %s1550 = smul.addr %s1549, 2
        %s1551 = scalar_lea.vmem [#allocation17], %s1550
        // Predicated region
        $region173: #{basic_detr_forward.1} parent=139 // pred_check
          %p1552 = pneg %p371
        $region174: #{basic_detr_forward.1} parent=139 // pred_check_branch
          %1554 = sbr.rel (%p1552) target = $region176
        $region175: #{basic_detr_forward.1} parent=139 // pred_region
          %1555 = dma.done %s1548, 32
        $region176: #{basic_detr_forward.1} parent=139 // pred_fallthru
          _
        %s1556 = sand.u32 %s114, 1
        %s1557 = scalar_lea.sflag [#allocation19], %s1556
        %s1558 = sand.u32 %s384, 1
        %s1559 = smul.addr %s1558, 256
        %s1560 = scalar_lea.vmem [#allocation18], %s1559
        // Predicated region
        $region177: #{basic_detr_forward.1} parent=139 // pred_check
          %p1561 = pneg %p397
        $region178: #{basic_detr_forward.1} parent=139 // pred_check_branch
          %1563 = sbr.rel (%p1561) target = $region180
        $region179: #{basic_detr_forward.1} parent=139 // pred_region
          %1564 = dma.done %s1557, 4096
        $region180: #{basic_detr_forward.1} parent=139 // pred_fallthru
          _
        %s1565 = sand.u32 %s114, 1
        %s1566 = scalar_lea.sflag [#allocation19], %s1565
        %s1567 = sand.u32 %s410, 1
        %s1568 = smul.addr %s1567, 2
        %s1569 = scalar_lea.vmem [#allocation20], %s1568
        // Predicated region
        $region181: #{basic_detr_forward.1} parent=139 // pred_check
          %p1570 = pneg %p423
        $region182: #{basic_detr_forward.1} parent=139 // pred_check_branch
          %1572 = sbr.rel (%p1570) target = $region184
        $region183: #{basic_detr_forward.1} parent=139 // pred_region
          %1573 = dma.done %s1566, 32
        $region184: #{basic_detr_forward.1} parent=139 // pred_fallthru
          _
        %s1574 = sand.u32 %s114, 1
        %s1575 = scalar_lea.sflag [#allocation22], %s1574
        %s1576 = sand.u32 %s436, 1
        %s1577 = smul.addr %s1576, 256
        %s1578 = scalar_lea.vmem [#allocation21], %s1577
        // Predicated region
        $region185: #{basic_detr_forward.1} parent=139 // pred_check
          %p1579 = pneg %p449
        $region186: #{basic_detr_forward.1} parent=139 // pred_check_branch
          %1581 = sbr.rel (%p1579) target = $region188
        $region187: #{basic_detr_forward.1} parent=139 // pred_region
          %1582 = dma.done %s1575, 4096
        $region188: #{basic_detr_forward.1} parent=139 // pred_fallthru
          _
        %s1583 = sand.u32 %s114, 1
        %s1584 = scalar_lea.sflag [#allocation22], %s1583
        %s1585 = sand.u32 %s462, 1
        %s1586 = smul.addr %s1585, 2
        %s1587 = scalar_lea.vmem [#allocation23], %s1586
        // Predicated region
        $region189: #{basic_detr_forward.1} parent=139 // pred_check
          %p1588 = pneg %p475
        $region190: #{basic_detr_forward.1} parent=139 // pred_check_branch
          %1590 = sbr.rel (%p1588) target = $region192
        $region191: #{basic_detr_forward.1} parent=139 // pred_region
          %1591 = dma.done %s1584, 32
        $region192: #{basic_detr_forward.1} parent=139 // pred_fallthru
          _
        %s1592 = sand.u32 %s114, 1
        %s1593 = scalar_lea.sflag [#allocation25], %s1592
        %s1594 = sand.u32 %s488, 1
        %s1595 = smul.addr %s1594, 256
        %s1596 = scalar_lea.vmem [#allocation24], %s1595
        // Predicated region
        $region193: #{basic_detr_forward.1} parent=139 // pred_check
          %p1597 = pneg %p501
        $region194: #{basic_detr_forward.1} parent=139 // pred_check_branch
          %1599 = sbr.rel (%p1597) target = $region196
        $region195: #{basic_detr_forward.1} parent=139 // pred_region
          %1600 = dma.done %s1593, 4096
        $region196: #{basic_detr_forward.1} parent=139 // pred_fallthru
          _
        %s1601 = sand.u32 %s114, 1
        %s1602 = scalar_lea.sflag [#allocation25], %s1601
        %s1603 = sand.u32 %s514, 1
        %s1604 = smul.addr %s1603, 2
        %s1605 = scalar_lea.vmem [#allocation26], %s1604
        // Predicated region
        $region197: #{basic_detr_forward.1} parent=139 // pred_check
          %p1606 = pneg %p527
        $region198: #{basic_detr_forward.1} parent=139 // pred_check_branch
          %1608 = sbr.rel (%p1606) target = $region200
        $region199: #{basic_detr_forward.1} parent=139 // pred_region
          %1609 = dma.done %s1602, 32
        $region200: #{basic_detr_forward.1} parent=139 // pred_fallthru
          _
        %s1610 = sand.u32 %s114, 1
        %s1611 = scalar_lea.sflag [#allocation28], %s1610
        %s1612 = sand.u32 %s540, 1
        %s1613 = smul.addr %s1612, 256
        %s1614 = scalar_lea.vmem [#allocation27], %s1613
        // Predicated region
        $region201: #{basic_detr_forward.1} parent=139 // pred_check
          %p1615 = pneg %p553
        $region202: #{basic_detr_forward.1} parent=139 // pred_check_branch
          %1617 = sbr.rel (%p1615) target = $region204
        $region203: #{basic_detr_forward.1} parent=139 // pred_region
          %1618 = dma.done %s1611, 4096
        $region204: #{basic_detr_forward.1} parent=139 // pred_fallthru
          _
        %s1619 = sand.u32 %s114, 1
        %s1620 = scalar_lea.sflag [#allocation28], %s1619
        %s1621 = sand.u32 %s566, 1
        %s1622 = smul.addr %s1621, 2
        %s1623 = scalar_lea.vmem [#allocation29], %s1622
        // Predicated region
        $region205: #{basic_detr_forward.1} parent=139 // pred_check
          %p1624 = pneg %p579
        $region206: #{basic_detr_forward.1} parent=139 // pred_check_branch
          %1626 = sbr.rel (%p1624) target = $region208
        $region207: #{basic_detr_forward.1} parent=139 // pred_region
          %1627 = dma.done %s1620, 32
        $region208: #{basic_detr_forward.1} parent=139 // pred_fallthru
          _
        %s1628 = sand.u32 %s114, 1
        %s1629 = scalar_lea.sflag [#allocation31], %s1628
        %s1630 = sand.u32 %s592, 1
        %s1631 = smul.addr %s1630, 2
        %s1632 = scalar_lea.vmem [#allocation30], %s1631
        // Predicated region
        $region209: #{basic_detr_forward.1} parent=139 // pred_check
          %p1633 = pneg %p605
        $region210: #{basic_detr_forward.1} parent=139 // pred_check_branch
          %1635 = sbr.rel (%p1633) target = $region212
        $region211: #{basic_detr_forward.1} parent=139 // pred_region
          %1636 = dma.done %s1629, 32
        $region212: #{basic_detr_forward.1} parent=139 // pred_fallthru
          _
        %s1637 = sand.u32 %s114, 1
        %s1638 = scalar_lea.sflag [#allocation31], %s1637
        %s1639 = sand.u32 %s618, 1
        %s1640 = smul.addr %s1639, 2
        %s1641 = scalar_lea.vmem [#allocation32], %s1640
        // Predicated region
        $region213: #{basic_detr_forward.1} parent=139 // pred_check
          %p1642 = pneg %p631
        $region214: #{basic_detr_forward.1} parent=139 // pred_check_branch
          %1644 = sbr.rel (%p1642) target = $region216
        $region215: #{basic_detr_forward.1} parent=139 // pred_region
          %1645 = dma.done %s1638, 32
        $region216: #{basic_detr_forward.1} parent=139 // pred_fallthru
          _
        %s1646 = sand.u32 %s114, 1
        %s1647 = scalar_lea.sflag [#allocation34], %s1646
        %s1648 = sand.u32 %s644, 1
        %s1649 = smul.addr %s1648, 2
        %s1650 = scalar_lea.vmem [#allocation33], %s1649
        // Predicated region
        $region217: #{basic_detr_forward.1} parent=139 // pred_check
          %p1651 = pneg %p657
        $region218: #{basic_detr_forward.1} parent=139 // pred_check_branch
          %1653 = sbr.rel (%p1651) target = $region220
        $region219: #{basic_detr_forward.1} parent=139 // pred_region
          %1654 = dma.done %s1647, 32
        $region220: #{basic_detr_forward.1} parent=139 // pred_fallthru
          _
        %s1655 = sand.u32 %s114, 1
        %s1656 = scalar_lea.sflag [#allocation34], %s1655
        %s1657 = sand.u32 %s670, 1
        %s1658 = smul.addr %s1657, 2
        %s1659 = scalar_lea.vmem [#allocation35], %s1658
        // Predicated region
        $region221: #{basic_detr_forward.1} parent=139 // pred_check
          %p1660 = pneg %p683
        $region222: #{basic_detr_forward.1} parent=139 // pred_check_branch
          %1662 = sbr.rel (%p1660) target = $region224
        $region223: #{basic_detr_forward.1} parent=139 // pred_region
          %1663 = dma.done %s1656, 32
        $region224: #{basic_detr_forward.1} parent=139 // pred_fallthru
          _
        %s1664 = sand.u32 %s114, 1
        %s1665 = scalar_lea.sflag [#allocation37], %s1664
        %s1666 = sand.u32 %s696, 1
        %s1667 = smul.addr %s1666, 2
        %s1668 = scalar_lea.vmem [#allocation36], %s1667
        // Predicated region
        $region225: #{basic_detr_forward.1} parent=139 // pred_check
          %p1669 = pneg %p709
        $region226: #{basic_detr_forward.1} parent=139 // pred_check_branch
          %1671 = sbr.rel (%p1669) target = $region228
        $region227: #{basic_detr_forward.1} parent=139 // pred_region
          %1672 = dma.done %s1665, 32
        $region228: #{basic_detr_forward.1} parent=139 // pred_fallthru
          _
        %s1673 = sand.u32 %s114, 1
        %s1674 = scalar_lea.sflag [#allocation37], %s1673
        %s1675 = sand.u32 %s722, 1
        %s1676 = smul.addr %s1675, 2
        %s1677 = scalar_lea.vmem [#allocation38], %s1676
        // Predicated region
        $region229: #{basic_detr_forward.1} parent=139 // pred_check
          %p1678 = pneg %p735
        $region230: #{basic_detr_forward.1} parent=139 // pred_check_branch
          %1680 = sbr.rel (%p1678) target = $region232
        $region231: #{basic_detr_forward.1} parent=139 // pred_region
          %1681 = dma.done %s1674, 32
        $region232: #{basic_detr_forward.1} parent=139 // pred_fallthru
          _
        %s1682 = sand.u32 %s114, 1
        %s1683 = scalar_lea.sflag [#allocation40], %s1682
        %s1684 = sand.u32 %s748, 1
        %s1685 = smul.addr %s1684, 2048
        %s1686 = scalar_lea.vmem [#allocation39], %s1685
        // Predicated region
        $region233: #{basic_detr_forward.1} parent=139 // pred_check
          %p1687 = pneg %p761
        $region234: #{basic_detr_forward.1} parent=139 // pred_check_branch
          %1689 = sbr.rel (%p1687) target = $region236
        $region235: #{basic_detr_forward.1} parent=139 // pred_region
          %1690 = dma.done %s1683, 32768
        $region236: #{basic_detr_forward.1} parent=139 // pred_fallthru
          _
        %s1691 = sand.u32 %s114, 1
        %s1692 = scalar_lea.sflag [#allocation40], %s1691
        %s1693 = sand.u32 %s774, 1
        %s1694 = smul.addr %s1693, 16
        %s1695 = scalar_lea.vmem [#allocation41], %s1694
        // Predicated region
        $region237: #{basic_detr_forward.1} parent=139 // pred_check
          %p1696 = pneg %p787
        $region238: #{basic_detr_forward.1} parent=139 // pred_check_branch
          %1698 = sbr.rel (%p1696) target = $region240
        $region239: #{basic_detr_forward.1} parent=139 // pred_region
          %1699 = dma.done %s1692, 256
        $region240: #{basic_detr_forward.1} parent=139 // pred_fallthru
          _
        %s1700 = sand.u32 %s114, 1
        %s1701 = scalar_lea.sflag [#allocation43], %s1700
        %s1702 = sand.u32 %s800, 1
        %s1703 = smul.addr %s1702, 2048
        %s1704 = scalar_lea.vmem [#allocation42], %s1703
        // Predicated region
        $region241: #{basic_detr_forward.1} parent=139 // pred_check
          %p1705 = pneg %p813
        $region242: #{basic_detr_forward.1} parent=139 // pred_check_branch
          %1707 = sbr.rel (%p1705) target = $region244
        $region243: #{basic_detr_forward.1} parent=139 // pred_region
          %1708 = dma.done %s1701, 32768
        $region244: #{basic_detr_forward.1} parent=139 // pred_fallthru
          _
        %s1709 = sand.u32 %s114, 1
        %s1710 = scalar_lea.sflag [#allocation43], %s1709
        %s1711 = sand.u32 %s826, 1
        %s1712 = smul.addr %s1711, 2
        %s1713 = scalar_lea.vmem [#allocation44], %s1712
        // Predicated region
        $region245: #{basic_detr_forward.1} parent=139 // pred_check
          %p1714 = pneg %p839
        $region246: #{basic_detr_forward.1} parent=139 // pred_check_branch
          %1716 = sbr.rel (%p1714) target = $region248
        $region247: #{basic_detr_forward.1} parent=139 // pred_region
          %1717 = dma.done %s1710, 32
        $region248: #{basic_detr_forward.1} parent=139 // pred_fallthru
          _
        // Predicated region
        $region249: #{basic_detr_forward.1} parent=139 // pred_check
          %p1718 = pneg %p860
        $region250: #{basic_detr_forward.1} parent=139 // pred_check_branch
          %1720 = sbr.rel (%p1718) target = $region252
        $region251: #{basic_detr_forward.1} parent=139 // pred_region
          %1721 = dma.done [#allocation46], 2048
        $region252: #{basic_detr_forward.1} parent=139 // pred_fallthru
          _
        // Predicated region
        $region253: #{basic_detr_forward.1} parent=139 // pred_check
          %p1722 = pneg %p881
        $region254: #{basic_detr_forward.1} parent=139 // pred_check_branch
          %1724 = sbr.rel (%p1722) target = $region256
        $region255: #{basic_detr_forward.1} parent=139 // pred_region
          %1725 = dma.done [#allocation46], 16
        $region256: #{basic_detr_forward.1} parent=139 // pred_fallthru
          _
        %p1726 = pneg %p142
        %p1727 = pneg %p139
        %p1728 = pneg %p163
        %p1729 = pneg %p160
        %s1730 = sand.u32 %s114, 1
        %s1731 = scalar_lea.sflag [#allocation7], %s1730
        %s1732 = sand.u32 %s176, 1
        %s1733 = smul.addr %s1732, 256
        %s1734 = scalar_lea.vmem [#allocation6], %s1733
        %p1735 = pneg %p189
        %p1736 = pneg %p186
        %s1737 = sand.u32 %s114, 1
        %s1738 = scalar_lea.sflag [#allocation7], %s1737
        %s1739 = sand.u32 %s202, 1
        %s1740 = smul.addr %s1739, 2
        %s1741 = scalar_lea.vmem [#allocation8], %s1740
        %p1742 = pneg %p215
        %p1743 = pneg %p212
        %s1744 = sand.u32 %s114, 1
        %s1745 = scalar_lea.sflag [#allocation10], %s1744
        %s1746 = sand.u32 %s228, 1
        %s1747 = smul.addr %s1746, 256
        %s1748 = scalar_lea.vmem [#allocation9], %s1747
        %p1749 = pneg %p241
        %p1750 = pneg %p238
        %s1751 = sand.u32 %s114, 1
        %s1752 = scalar_lea.sflag [#allocation10], %s1751
        %s1753 = sand.u32 %s254, 1
        %s1754 = smul.addr %s1753, 2
        %s1755 = scalar_lea.vmem [#allocation11], %s1754
        %p1756 = pneg %p267
        %p1757 = pneg %p264
        %s1758 = sand.u32 %s114, 1
        %s1759 = scalar_lea.sflag [#allocation13], %s1758
        %s1760 = sand.u32 %s280, 1
        %s1761 = smul.addr %s1760, 256
        %s1762 = scalar_lea.vmem [#allocation12], %s1761
        %p1763 = pneg %p293
        %p1764 = pneg %p290
        %s1765 = sand.u32 %s114, 1
        %s1766 = scalar_lea.sflag [#allocation13], %s1765
        %s1767 = sand.u32 %s306, 1
        %s1768 = smul.addr %s1767, 2
        %s1769 = scalar_lea.vmem [#allocation14], %s1768
        %p1770 = pneg %p319
        %p1771 = pneg %p316
        %s1772 = sand.u32 %s114, 1
        %s1773 = scalar_lea.sflag [#allocation16], %s1772
        %s1774 = sand.u32 %s332, 1
        %s1775 = smul.addr %s1774, 256
        %s1776 = scalar_lea.vmem [#allocation15], %s1775
        %p1777 = pneg %p345
        %p1778 = pneg %p342
        %s1779 = sand.u32 %s114, 1
        %s1780 = scalar_lea.sflag [#allocation16], %s1779
        %s1781 = sand.u32 %s358, 1
        %s1782 = smul.addr %s1781, 2
        %s1783 = scalar_lea.vmem [#allocation17], %s1782
        %p1784 = pneg %p371
        %p1785 = pneg %p368
        %s1786 = sand.u32 %s114, 1
        %s1787 = scalar_lea.sflag [#allocation19], %s1786
        %s1788 = sand.u32 %s384, 1
        %s1789 = smul.addr %s1788, 256
        %s1790 = scalar_lea.vmem [#allocation18], %s1789
        %p1791 = pneg %p397
        %p1792 = pneg %p394
        %s1793 = sand.u32 %s114, 1
        %s1794 = scalar_lea.sflag [#allocation19], %s1793
        %s1795 = sand.u32 %s410, 1
        %s1796 = smul.addr %s1795, 2
        %s1797 = scalar_lea.vmem [#allocation20], %s1796
        %p1798 = pneg %p423
        %p1799 = pneg %p420
        %s1800 = sand.u32 %s114, 1
        %s1801 = scalar_lea.sflag [#allocation22], %s1800
        %s1802 = sand.u32 %s436, 1
        %s1803 = smul.addr %s1802, 256
        %s1804 = scalar_lea.vmem [#allocation21], %s1803
        %p1805 = pneg %p449
        %p1806 = pneg %p446
        %s1807 = sand.u32 %s114, 1
        %s1808 = scalar_lea.sflag [#allocation22], %s1807
        %s1809 = sand.u32 %s462, 1
        %s1810 = smul.addr %s1809, 2
        %s1811 = scalar_lea.vmem [#allocation23], %s1810
        %p1812 = pneg %p475
        %p1813 = pneg %p472
        %s1814 = sand.u32 %s114, 1
        %s1815 = scalar_lea.sflag [#allocation25], %s1814
        %s1816 = sand.u32 %s488, 1
        %s1817 = smul.addr %s1816, 256
        %s1818 = scalar_lea.vmem [#allocation24], %s1817
        %p1819 = pneg %p501
        %p1820 = pneg %p498
        %s1821 = sand.u32 %s114, 1
        %s1822 = scalar_lea.sflag [#allocation25], %s1821
        %s1823 = sand.u32 %s514, 1
        %s1824 = smul.addr %s1823, 2
        %s1825 = scalar_lea.vmem [#allocation26], %s1824
        %p1826 = pneg %p527
        %p1827 = pneg %p524
        %s1828 = sand.u32 %s114, 1
        %s1829 = scalar_lea.sflag [#allocation28], %s1828
        %s1830 = sand.u32 %s540, 1
        %s1831 = smul.addr %s1830, 256
        %s1832 = scalar_lea.vmem [#allocation27], %s1831
        %p1833 = pneg %p553
        %p1834 = pneg %p550
        %s1835 = sand.u32 %s114, 1
        %s1836 = scalar_lea.sflag [#allocation28], %s1835
        %s1837 = sand.u32 %s566, 1
        %s1838 = smul.addr %s1837, 2
        %s1839 = scalar_lea.vmem [#allocation29], %s1838
        %p1840 = pneg %p579
        %p1841 = pneg %p576
        %s1842 = sand.u32 %s114, 1
        %s1843 = scalar_lea.sflag [#allocation31], %s1842
        %s1844 = sand.u32 %s592, 1
        %s1845 = smul.addr %s1844, 2
        %s1846 = scalar_lea.vmem [#allocation30], %s1845
        %p1847 = pneg %p605
        %p1848 = pneg %p602
        %s1849 = sand.u32 %s114, 1
        %s1850 = scalar_lea.sflag [#allocation31], %s1849
        %s1851 = sand.u32 %s618, 1
        %s1852 = smul.addr %s1851, 2
        %s1853 = scalar_lea.vmem [#allocation32], %s1852
        %p1854 = pneg %p631
        %p1855 = pneg %p628
        %s1856 = sand.u32 %s114, 1
        %s1857 = scalar_lea.sflag [#allocation34], %s1856
        %s1858 = sand.u32 %s644, 1
        %s1859 = smul.addr %s1858, 2
        %s1860 = scalar_lea.vmem [#allocation33], %s1859
        %p1861 = pneg %p657
        %p1862 = pneg %p654
        %s1863 = sand.u32 %s114, 1
        %s1864 = scalar_lea.sflag [#allocation34], %s1863
        %s1865 = sand.u32 %s670, 1
        %s1866 = smul.addr %s1865, 2
        %s1867 = scalar_lea.vmem [#allocation35], %s1866
        %p1868 = pneg %p683
        %p1869 = pneg %p680
        %s1870 = sand.u32 %s114, 1
        %s1871 = scalar_lea.sflag [#allocation37], %s1870
        %s1872 = sand.u32 %s696, 1
        %s1873 = smul.addr %s1872, 2
        %s1874 = scalar_lea.vmem [#allocation36], %s1873
        %p1875 = pneg %p709
        %p1876 = pneg %p706
        %s1877 = sand.u32 %s114, 1
        %s1878 = scalar_lea.sflag [#allocation37], %s1877
        %s1879 = sand.u32 %s722, 1
        %s1880 = smul.addr %s1879, 2
        %s1881 = scalar_lea.vmem [#allocation38], %s1880
        %p1882 = pneg %p735
        %p1883 = pneg %p732
        %s1884 = sand.u32 %s114, 1
        %s1885 = scalar_lea.sflag [#allocation40], %s1884
        %s1886 = sand.u32 %s748, 1
        %s1887 = smul.addr %s1886, 2048
        %s1888 = scalar_lea.vmem [#allocation39], %s1887
        %p1889 = pneg %p761
        %p1890 = pneg %p758
        %s1891 = sand.u32 %s114, 1
        %s1892 = scalar_lea.sflag [#allocation40], %s1891
        %s1893 = sand.u32 %s774, 1
        %s1894 = smul.addr %s1893, 16
        %s1895 = scalar_lea.vmem [#allocation41], %s1894
        %p1896 = pneg %p787
        %p1897 = pneg %p784
        %s1898 = sand.u32 %s114, 1
        %s1899 = scalar_lea.sflag [#allocation43], %s1898
        %s1900 = sand.u32 %s800, 1
        %s1901 = smul.addr %s1900, 2048
        %s1902 = scalar_lea.vmem [#allocation42], %s1901
        %p1903 = pneg %p813
        %p1904 = pneg %p810
        %s1905 = sand.u32 %s114, 1
        %s1906 = scalar_lea.sflag [#allocation43], %s1905
        %s1907 = sand.u32 %s826, 1
        %s1908 = smul.addr %s1907, 2
        %s1909 = scalar_lea.vmem [#allocation44], %s1908
        %p1910 = pneg %p839
        %p1911 = pneg %p836
        %p1912 = pneg %p860
        %p1913 = pneg %p857
        %p1914 = pneg %p881
        %p1915 = pneg %p878
        %p1916 = pneg %p902
        %p1917 = pneg %p899
        %p1919 = scmp.eq.s32.totalorder %s118, 0
        // Predicated region
        $region257: #{basic_detr_forward.1} parent=139 // pred_check
          %p1920 = pneg %p1919
        $region258: #{basic_detr_forward.1} parent=139 // pred_check_branch
          %1922 = sbr.rel (%p1920) target = $region260
        $region259: #{basic_detr_forward.1} parent=139 // pred_region
          %v1923 = vld [vmem:[#allocation3] sm:$0xff]
          %v1924 = vld [vmem:[#allocation3 + $0x8] sm:$0xff]
          %s1925 = smul.u32 %s119, 2
          %s1926 = smul.addr %s1925, 8
          %s1927 = scalar_lea.vmem [#allocation2], %s1926
          %1928 = vst [vmem:[%s1927] sm:$0xff] %v1923
          %1929 = vst [vmem:[%s1927 + $0x8] sm:$0xff] %v1924
        $region260: #{basic_detr_forward.1} parent=139 // pred_fallthru
          _
        %s1930 = smul.u32 %s119, 2
        %s1931 = smul.addr %s1930, 8
        %s1932 = scalar_lea.vmem [#allocation2], %s1931
        %v1933 = vld [vmem:[%s1932] sm:$0xff]
        %v1934 = vld [vmem:[%s1932 + $0x8] sm:$0xff]
        %s1935 = smul.u32 %s119, 64
        %s1936 = smul.addr %s1935, 4
        %s1937 = scalar_lea.vmem %s1, %s1936
        %v1938 = vld [vmem:[%s1937] sm:$0xff]
        %v1939 = vld [vmem:[%s1937 + $0x8] sm:$0xff]
        %v1940 = vld [vmem:[%s1937 + $0x10] sm:$0xff]
        %v1941 = vld [vmem:[%s1937 + $0x18] sm:$0xff]
        %v1942 = vld [vmem:[%s1937 + $0x20] sm:$0xff]
        %v1943 = vld [vmem:[%s1937 + $0x28] sm:$0xff]
        %v1944 = vld [vmem:[%s1937 + $0x30] sm:$0xff]
        %v1945 = vld [vmem:[%s1937 + $0x38] sm:$0xff]
        %v1946 = vld [vmem:[%s1937 + $0x40] sm:$0xff]
        %v1947 = vld [vmem:[%s1937 + $0x48] sm:$0xff]
        %v1948 = vld [vmem:[%s1937 + $0x50] sm:$0xff]
        %v1949 = vld [vmem:[%s1937 + $0x58] sm:$0xff]
        %v1950 = vld [vmem:[%s1937 + $0x60] sm:$0xff]
        %v1951 = vld [vmem:[%s1937 + $0x68] sm:$0xff]
        %v1952 = vld [vmem:[%s1937 + $0x70] sm:$0xff]
        %v1953 = vld [vmem:[%s1937 + $0x78] sm:$0xff]
        %v1954 = vld [vmem:[%s1937 + $0x80] sm:$0xff]
        %v1955 = vld [vmem:[%s1937 + $0x88] sm:$0xff]
        %v1956 = vld [vmem:[%s1937 + $0x90] sm:$0xff]
        %v1957 = vld [vmem:[%s1937 + $0x98] sm:$0xff]
        %v1958 = vld [vmem:[%s1937 + $0xa0] sm:$0xff]
        %v1959 = vld [vmem:[%s1937 + $0xa8] sm:$0xff]
        %v1960 = vld [vmem:[%s1937 + $0xb0] sm:$0xff]
        %v1961 = vld [vmem:[%s1937 + $0xb8] sm:$0xff]
        %v1962 = vld [vmem:[%s1937 + $0xc0] sm:$0xff]
        %v1963 = vld [vmem:[%s1937 + $0xc8] sm:$0xff]
        %v1964 = vld [vmem:[%s1937 + $0xd0] sm:$0xff]
        %v1965 = vld [vmem:[%s1937 + $0xd8] sm:$0xff]
        %v1966 = vld [vmem:[%s1937 + $0xe0] sm:$0xff]
        %v1967 = vld [vmem:[%s1937 + $0xe8] sm:$0xff]
        %v1968 = vld [vmem:[%s1937 + $0xf0] sm:$0xff]
        %v1969 = vld [vmem:[%s1937 + $0xf8] sm:$0xff]
        %v1970 = vpack.c.bf16 %v1933, %v1933
        %v1971 = vpack.c.bf16 %v1934, %v1934
        %v1972 = vld [vmem:[%s1488] sm:$0xff]
        %v1973 = vld [vmem:[%s1488 + $0x8] sm:$0xff]
        %v1974 = vld [vmem:[%s1488 + $0x10] sm:$0xff]
        %v1975 = vld [vmem:[%s1488 + $0x18] sm:$0xff]
        %v1976 = vld [vmem:[%s1488 + $0x20] sm:$0xff]
        %v1977 = vld [vmem:[%s1488 + $0x28] sm:$0xff]
        %v1978 = vld [vmem:[%s1488 + $0x30] sm:$0xff]
        %v1979 = vld [vmem:[%s1488 + $0x38] sm:$0xff]
        %v1980 = vld [vmem:[%s1488 + $0x40] sm:$0xff]
        %v1981 = vld [vmem:[%s1488 + $0x48] sm:$0xff]
        %v1982 = vld [vmem:[%s1488 + $0x50] sm:$0xff]
        %v1983 = vld [vmem:[%s1488 + $0x58] sm:$0xff]
        %v1984 = vld [vmem:[%s1488 + $0x60] sm:$0xff]
        %v1985 = vld [vmem:[%s1488 + $0x68] sm:$0xff]
        %v1986 = vld [vmem:[%s1488 + $0x70] sm:$0xff]
        %v1987 = vld [vmem:[%s1488 + $0x78] sm:$0xff]
        %v1988 = vld [vmem:[%s1488 + $0x80] sm:$0xff]
        %v1989 = vld [vmem:[%s1488 + $0x88] sm:$0xff]
        %v1990 = vld [vmem:[%s1488 + $0x90] sm:$0xff]
        %v1991 = vld [vmem:[%s1488 + $0x98] sm:$0xff]
        %v1992 = vld [vmem:[%s1488 + $0xa0] sm:$0xff]
        %v1993 = vld [vmem:[%s1488 + $0xa8] sm:$0xff]
        %v1994 = vld [vmem:[%s1488 + $0xb0] sm:$0xff]
        %v1995 = vld [vmem:[%s1488 + $0xb8] sm:$0xff]
        %v1996 = vld [vmem:[%s1488 + $0xc0] sm:$0xff]
        %v1997 = vld [vmem:[%s1488 + $0xc8] sm:$0xff]
        %v1998 = vld [vmem:[%s1488 + $0xd0] sm:$0xff]
        %v1999 = vld [vmem:[%s1488 + $0xd8] sm:$0xff]
        %v2000 = vld [vmem:[%s1488 + $0xe0] sm:$0xff]
        %v2001 = vld [vmem:[%s1488 + $0xe8] sm:$0xff]
        %v2002 = vld [vmem:[%s1488 + $0xf0] sm:$0xff]
        %v2003 = vld [vmem:[%s1488 + $0xf8] sm:$0xff]
        %v2004 = vld [vmem:[%s1497] sm:$0x3]
        %v2005 = vld [vmem:[%s1506] sm:$0xff]
        %v2006 = vld [vmem:[%s1506 + $0x8] sm:$0xff]
        %v2007 = vld [vmem:[%s1506 + $0x10] sm:$0xff]
        %v2008 = vld [vmem:[%s1506 + $0x18] sm:$0xff]
        %v2009 = vld [vmem:[%s1506 + $0x20] sm:$0xff]
        %v2010 = vld [vmem:[%s1506 + $0x28] sm:$0xff]
        %v2011 = vld [vmem:[%s1506 + $0x30] sm:$0xff]
        %v2012 = vld [vmem:[%s1506 + $0x38] sm:$0xff]
        %v2013 = vld [vmem:[%s1506 + $0x40] sm:$0xff]
        %v2014 = vld [vmem:[%s1506 + $0x48] sm:$0xff]
        %v2015 = vld [vmem:[%s1506 + $0x50] sm:$0xff]
        %v2016 = vld [vmem:[%s1506 + $0x58] sm:$0xff]
        %v2017 = vld [vmem:[%s1506 + $0x60] sm:$0xff]
        %v2018 = vld [vmem:[%s1506 + $0x68] sm:$0xff]
        %v2019 = vld [vmem:[%s1506 + $0x70] sm:$0xff]
        %v2020 = vld [vmem:[%s1506 + $0x78] sm:$0xff]
        %v2021 = vld [vmem:[%s1506 + $0x80] sm:$0xff]
        %v2022 = vld [vmem:[%s1506 + $0x88] sm:$0xff]
        %v2023 = vld [vmem:[%s1506 + $0x90] sm:$0xff]
        %v2024 = vld [vmem:[%s1506 + $0x98] sm:$0xff]
        %v2025 = vld [vmem:[%s1506 + $0xa0] sm:$0xff]
        %v2026 = vld [vmem:[%s1506 + $0xa8] sm:$0xff]
        %v2027 = vld [vmem:[%s1506 + $0xb0] sm:$0xff]
        %v2028 = vld [vmem:[%s1506 + $0xb8] sm:$0xff]
        %v2029 = vld [vmem:[%s1506 + $0xc0] sm:$0xff]
        %v2030 = vld [vmem:[%s1506 + $0xc8] sm:$0xff]
        %v2031 = vld [vmem:[%s1506 + $0xd0] sm:$0xff]
        %v2032 = vld [vmem:[%s1506 + $0xd8] sm:$0xff]
        %v2033 = vld [vmem:[%s1506 + $0xe0] sm:$0xff]
        %v2034 = vld [vmem:[%s1506 + $0xe8] sm:$0xff]
        %v2035 = vld [vmem:[%s1506 + $0xf0] sm:$0xff]
        %v2036 = vld [vmem:[%s1506 + $0xf8] sm:$0xff]
        %v2037 = vld [vmem:[%s1515] sm:$0x3]
        %v2038 = vld [vmem:[%s1524] sm:$0xff]
        %v2039 = vld [vmem:[%s1524 + $0x8] sm:$0xff]
        %v2040 = vld [vmem:[%s1524 + $0x10] sm:$0xff]
        %v2041 = vld [vmem:[%s1524 + $0x18] sm:$0xff]
        %v2042 = vld [vmem:[%s1524 + $0x20] sm:$0xff]
        %v2043 = vld [vmem:[%s1524 + $0x28] sm:$0xff]
        %v2044 = vld [vmem:[%s1524 + $0x30] sm:$0xff]
        %v2045 = vld [vmem:[%s1524 + $0x38] sm:$0xff]
        %v2046 = vld [vmem:[%s1524 + $0x40] sm:$0xff]
        %v2047 = vld [vmem:[%s1524 + $0x48] sm:$0xff]
        %v2048 = vld [vmem:[%s1524 + $0x50] sm:$0xff]
        %v2049 = vld [vmem:[%s1524 + $0x58] sm:$0xff]
        %v2050 = vld [vmem:[%s1524 + $0x60] sm:$0xff]
        %v2051 = vld [vmem:[%s1524 + $0x68] sm:$0xff]
        %v2052 = vld [vmem:[%s1524 + $0x70] sm:$0xff]
        %v2053 = vld [vmem:[%s1524 + $0x78] sm:$0xff]
        %v2054 = vld [vmem:[%s1524 + $0x80] sm:$0xff]
        %v2055 = vld [vmem:[%s1524 + $0x88] sm:$0xff]
        %v2056 = vld [vmem:[%s1524 + $0x90] sm:$0xff]
        %v2057 = vld [vmem:[%s1524 + $0x98] sm:$0xff]
        %v2058 = vld [vmem:[%s1524 + $0xa0] sm:$0xff]
        %v2059 = vld [vmem:[%s1524 + $0xa8] sm:$0xff]
        %v2060 = vld [vmem:[%s1524 + $0xb0] sm:$0xff]
        %v2061 = vld [vmem:[%s1524 + $0xb8] sm:$0xff]
        %v2062 = vld [vmem:[%s1524 + $0xc0] sm:$0xff]
        %v2063 = vld [vmem:[%s1524 + $0xc8] sm:$0xff]
        %v2064 = vld [vmem:[%s1524 + $0xd0] sm:$0xff]
        %v2065 = vld [vmem:[%s1524 + $0xd8] sm:$0xff]
        %v2066 = vld [vmem:[%s1524 + $0xe0] sm:$0xff]
        %v2067 = vld [vmem:[%s1524 + $0xe8] sm:$0xff]
        %v2068 = vld [vmem:[%s1524 + $0xf0] sm:$0xff]
        %v2069 = vld [vmem:[%s1524 + $0xf8] sm:$0xff]
        %v2070 = vld [vmem:[%s1533] sm:$0x3]
        %v2071 = vld [vmem:[%s1542] sm:$0xff]
        %v2072 = vld [vmem:[%s1542 + $0x8] sm:$0xff]
        %v2073 = vld [vmem:[%s1542 + $0x10] sm:$0xff]
        %v2074 = vld [vmem:[%s1542 + $0x18] sm:$0xff]
        %v2075 = vld [vmem:[%s1542 + $0x20] sm:$0xff]
        %v2076 = vld [vmem:[%s1542 + $0x28] sm:$0xff]
        %v2077 = vld [vmem:[%s1542 + $0x30] sm:$0xff]
        %v2078 = vld [vmem:[%s1542 + $0x38] sm:$0xff]
        %v2079 = vld [vmem:[%s1542 + $0x40] sm:$0xff]
        %v2080 = vld [vmem:[%s1542 + $0x48] sm:$0xff]
        %v2081 = vld [vmem:[%s1542 + $0x50] sm:$0xff]
        %v2082 = vld [vmem:[%s1542 + $0x58] sm:$0xff]
        %v2083 = vld [vmem:[%s1542 + $0x60] sm:$0xff]
        %v2084 = vld [vmem:[%s1542 + $0x68] sm:$0xff]
        %v2085 = vld [vmem:[%s1542 + $0x70] sm:$0xff]
        %v2086 = vld [vmem:[%s1542 + $0x78] sm:$0xff]
        %v2087 = vld [vmem:[%s1542 + $0x80] sm:$0xff]
        %v2088 = vld [vmem:[%s1542 + $0x88] sm:$0xff]
        %v2089 = vld [vmem:[%s1542 + $0x90] sm:$0xff]
        %v2090 = vld [vmem:[%s1542 + $0x98] sm:$0xff]
        %v2091 = vld [vmem:[%s1542 + $0xa0] sm:$0xff]
        %v2092 = vld [vmem:[%s1542 + $0xa8] sm:$0xff]
        %v2093 = vld [vmem:[%s1542 + $0xb0] sm:$0xff]
        %v2094 = vld [vmem:[%s1542 + $0xb8] sm:$0xff]
        %v2095 = vld [vmem:[%s1542 + $0xc0] sm:$0xff]
        %v2096 = vld [vmem:[%s1542 + $0xc8] sm:$0xff]
        %v2097 = vld [vmem:[%s1542 + $0xd0] sm:$0xff]
        %v2098 = vld [vmem:[%s1542 + $0xd8] sm:$0xff]
        %v2099 = vld [vmem:[%s1542 + $0xe0] sm:$0xff]
        %v2100 = vld [vmem:[%s1542 + $0xe8] sm:$0xff]
        %v2101 = vld [vmem:[%s1542 + $0xf0] sm:$0xff]
        %v2102 = vld [vmem:[%s1542 + $0xf8] sm:$0xff]
        %v2103 = vld [vmem:[%s1551] sm:$0x3]
        %v2105 = vlaneseq
        %v2106 = vshrl.u32 %v2105, 7
        %v2107 = vsub.s32 0, %v2106
        %v2108 = vrot.slane %v2004, %v2107
        %v2109 = vlaneseq
        %v2110 = vshrl.u32 %v2109, 7
        %v2111 = vsub.s32 1, %v2110
        %v2112 = vrot.slane %v2004, %v2111
        %v2147 = vunpack.c.l.b16 %v1972
        %v2148 = vunpack.c.h.b16 %v1972
        %v2149 = vunpack.c.l.b16 %v1973
        %v2150 = vunpack.c.h.b16 %v1973
        %v2151 = vunpack.c.l.b16 %v1974
        %v2152 = vunpack.c.h.b16 %v1974
        %v2153 = vunpack.c.l.b16 %v1975
        %v2154 = vunpack.c.h.b16 %v1975
        %v2155 = vunpack.c.l.b16 %v1976
        %v2156 = vunpack.c.h.b16 %v1976
        %v2157 = vunpack.c.l.b16 %v1977
        %v2158 = vunpack.c.h.b16 %v1977
        %v2159 = vunpack.c.l.b16 %v1978
        %v2160 = vunpack.c.h.b16 %v1978
        %v2161 = vunpack.c.l.b16 %v1979
        %v2162 = vunpack.c.h.b16 %v1979
        %v2163 = vunpack.c.l.b16 %v1980
        %v2164 = vunpack.c.h.b16 %v1980
        %v2165 = vunpack.c.l.b16 %v1981
        %v2166 = vunpack.c.h.b16 %v1981
        %v2167 = vunpack.c.l.b16 %v1982
        %v2168 = vunpack.c.h.b16 %v1982
        %v2169 = vunpack.c.l.b16 %v1983
        %v2170 = vunpack.c.h.b16 %v1983
        %v2171 = vunpack.c.l.b16 %v1984
        %v2172 = vunpack.c.h.b16 %v1984
        %v2173 = vunpack.c.l.b16 %v1985
        %v2174 = vunpack.c.h.b16 %v1985
        %v2175 = vunpack.c.l.b16 %v1986
        %v2176 = vunpack.c.h.b16 %v1986
        %v2177 = vunpack.c.l.b16 %v1987
        %v2178 = vunpack.c.h.b16 %v1987
        %v2179 = vunpack.c.l.b16 %v1988
        %v2180 = vunpack.c.h.b16 %v1988
        %v2181 = vunpack.c.l.b16 %v1989
        %v2182 = vunpack.c.h.b16 %v1989
        %v2183 = vunpack.c.l.b16 %v1990
        %v2184 = vunpack.c.h.b16 %v1990
        %v2185 = vunpack.c.l.b16 %v1991
        %v2186 = vunpack.c.h.b16 %v1991
        %v2187 = vunpack.c.l.b16 %v1992
        %v2188 = vunpack.c.h.b16 %v1992
        %v2189 = vunpack.c.l.b16 %v1993
        %v2190 = vunpack.c.h.b16 %v1993
        %v2191 = vunpack.c.l.b16 %v1994
        %v2192 = vunpack.c.h.b16 %v1994
        %v2193 = vunpack.c.l.b16 %v1995
        %v2194 = vunpack.c.h.b16 %v1995
        %v2195 = vunpack.c.l.b16 %v1996
        %v2196 = vunpack.c.h.b16 %v1996
        %v2197 = vunpack.c.l.b16 %v1997
        %v2198 = vunpack.c.h.b16 %v1997
        %v2199 = vunpack.c.l.b16 %v1998
        %v2200 = vunpack.c.h.b16 %v1998
        %v2201 = vunpack.c.l.b16 %v1999
        %v2202 = vunpack.c.h.b16 %v1999
        %v2203 = vunpack.c.l.b16 %v2000
        %v2204 = vunpack.c.h.b16 %v2000
        %v2205 = vunpack.c.l.b16 %v2001
        %v2206 = vunpack.c.h.b16 %v2001
        %v2207 = vunpack.c.l.b16 %v2002
        %v2208 = vunpack.c.h.b16 %v2002
        %v2209 = vunpack.c.l.b16 %v2003
        %v2210 = vunpack.c.h.b16 %v2003
        %v2211 = vpack.c.b16 %v2149, %v2147
        %v2212 = vpack.c.b16 %v2150, %v2148
        %v2213 = vpack.c.b16 %v2153, %v2151
        %v2214 = vpack.c.b16 %v2154, %v2152
        %v2215 = vpack.c.b16 %v2157, %v2155
        %v2216 = vpack.c.b16 %v2158, %v2156
        %v2217 = vpack.c.b16 %v2161, %v2159
        %v2218 = vpack.c.b16 %v2162, %v2160
        %v2219 = vpack.c.b16 %v2165, %v2163
        %v2220 = vpack.c.b16 %v2166, %v2164
        %v2221 = vpack.c.b16 %v2169, %v2167
        %v2222 = vpack.c.b16 %v2170, %v2168
        %v2223 = vpack.c.b16 %v2173, %v2171
        %v2224 = vpack.c.b16 %v2174, %v2172
        %v2225 = vpack.c.b16 %v2177, %v2175
        %v2226 = vpack.c.b16 %v2178, %v2176
        %v2227 = vpack.c.b16 %v2181, %v2179
        %v2228 = vpack.c.b16 %v2182, %v2180
        %v2229 = vpack.c.b16 %v2185, %v2183
        %v2230 = vpack.c.b16 %v2186, %v2184
        %v2231 = vpack.c.b16 %v2189, %v2187
        %v2232 = vpack.c.b16 %v2190, %v2188
        %v2233 = vpack.c.b16 %v2193, %v2191
        %v2234 = vpack.c.b16 %v2194, %v2192
        %v2235 = vpack.c.b16 %v2197, %v2195
        %v2236 = vpack.c.b16 %v2198, %v2196
        %v2237 = vpack.c.b16 %v2201, %v2199
        %v2238 = vpack.c.b16 %v2202, %v2200
        %v2239 = vpack.c.b16 %v2205, %v2203
        %v2240 = vpack.c.b16 %v2206, %v2204
        %v2241 = vpack.c.b16 %v2209, %v2207
        %v2242 = vpack.c.b16 %v2210, %v2208
        %2275 = vmatprep.subr.bf16.mxu0 %v2212
        %2276 = vmatpush1.bf16.msra.mxu0 %v2211
        %2277 = vmatprep.subr.bf16.mxu0 %v2214
        %2278 = vmatpush1.bf16.msra.mxu0 %v2213
        %2279 = vmatprep.subr.bf16.mxu0 %v2216
        %2280 = vmatpush1.bf16.msra.mxu0 %v2215
        %2281 = vmatprep.subr.bf16.mxu0 %v2218
        %2282 = vmatpush1.bf16.msra.mxu0 %v2217
        %2283 = vmatprep.subr.bf16.mxu0 %v2220
        %2284 = vmatpush1.bf16.msra.mxu0 %v2219
        %2285 = vmatprep.subr.bf16.mxu0 %v2222
        %2286 = vmatpush1.bf16.msra.mxu0 %v2221
        %2287 = vmatprep.subr.bf16.mxu0 %v2224
        %2288 = vmatpush1.bf16.msra.mxu0 %v2223
        %2289 = vmatprep.subr.bf16.mxu0 %v2226
        %2290 = vmatpush1.bf16.msra.mxu0 %v2225
        %2291 = vmatprep.subr.bf16.mxu0 %v2228
        %2292 = vmatpush1.bf16.msra.mxu0 %v2227
        %2293 = vmatprep.subr.bf16.mxu0 %v2230
        %2294 = vmatpush1.bf16.msra.mxu0 %v2229
        %2295 = vmatprep.subr.bf16.mxu0 %v2232
        %2296 = vmatpush1.bf16.msra.mxu0 %v2231
        %2297 = vmatprep.subr.bf16.mxu0 %v2234
        %2298 = vmatpush1.bf16.msra.mxu0 %v2233
        %2299 = vmatprep.subr.bf16.mxu0 %v2236
        %2300 = vmatpush1.bf16.msra.mxu0 %v2235
        %2301 = vmatprep.subr.bf16.mxu0 %v2238
        %2302 = vmatpush1.bf16.msra.mxu0 %v2237
        %2303 = vmatprep.subr.bf16.mxu0 %v2240
        %2304 = vmatpush1.bf16.msra.mxu0 %v2239
        %2305 = vmatprep.subr.bf16.mxu0 %v2242
        %2306 = vmatpush1.bf16.msra.mxu0 %v2241
        %2307 = vmatprep.mubr.bf16.mxu0 %v1971
        %2308 = vmatmul.mubr.bf16.gmra.mrb[0].mxu0 %v1970
        %v2309 = vpop.f32.mrb[0].mxu0
        %v2310 = vadd.f32 %v2108, %v2309
        %v2311 = vpop.f32.mrb[0].mxu0
        %v2312 = vadd.f32 %v2112, %v2311
        %v2313 = vpop.f32.mrb[0].mxu0
        %v2314 = vpop.f32.mrb[0].mxu0
        %2315 = vdwg.mxu0
        %v2317 = vlaneseq
        %v2318 = vshrl.u32 %v2317, 7
        %v2319 = vsub.s32 0, %v2318
        %v2320 = vrot.slane %v2037, %v2319
        %v2321 = vlaneseq
        %v2322 = vshrl.u32 %v2321, 7
        %v2323 = vsub.s32 1, %v2322
        %v2324 = vrot.slane %v2037, %v2323
        %v2359 = vunpack.c.l.b16 %v2005
        %v2360 = vunpack.c.h.b16 %v2005
        %v2361 = vunpack.c.l.b16 %v2006
        %v2362 = vunpack.c.h.b16 %v2006
        %v2363 = vunpack.c.l.b16 %v2007
        %v2364 = vunpack.c.h.b16 %v2007
        %v2365 = vunpack.c.l.b16 %v2008
        %v2366 = vunpack.c.h.b16 %v2008
        %v2367 = vunpack.c.l.b16 %v2009
        %v2368 = vunpack.c.h.b16 %v2009
        %v2369 = vunpack.c.l.b16 %v2010
        %v2370 = vunpack.c.h.b16 %v2010
        %v2371 = vunpack.c.l.b16 %v2011
        %v2372 = vunpack.c.h.b16 %v2011
        %v2373 = vunpack.c.l.b16 %v2012
        %v2374 = vunpack.c.h.b16 %v2012
        %v2375 = vunpack.c.l.b16 %v2013
        %v2376 = vunpack.c.h.b16 %v2013
        %v2377 = vunpack.c.l.b16 %v2014
        %v2378 = vunpack.c.h.b16 %v2014
        %v2379 = vunpack.c.l.b16 %v2015
        %v2380 = vunpack.c.h.b16 %v2015
        %v2381 = vunpack.c.l.b16 %v2016
        %v2382 = vunpack.c.h.b16 %v2016
        %v2383 = vunpack.c.l.b16 %v2017
        %v2384 = vunpack.c.h.b16 %v2017
        %v2385 = vunpack.c.l.b16 %v2018
        %v2386 = vunpack.c.h.b16 %v2018
        %v2387 = vunpack.c.l.b16 %v2019
        %v2388 = vunpack.c.h.b16 %v2019
        %v2389 = vunpack.c.l.b16 %v2020
        %v2390 = vunpack.c.h.b16 %v2020
        %v2391 = vunpack.c.l.b16 %v2021
        %v2392 = vunpack.c.h.b16 %v2021
        %v2393 = vunpack.c.l.b16 %v2022
        %v2394 = vunpack.c.h.b16 %v2022
        %v2395 = vunpack.c.l.b16 %v2023
        %v2396 = vunpack.c.h.b16 %v2023
        %v2397 = vunpack.c.l.b16 %v2024
        %v2398 = vunpack.c.h.b16 %v2024
        %v2399 = vunpack.c.l.b16 %v2025
        %v2400 = vunpack.c.h.b16 %v2025
        %v2401 = vunpack.c.l.b16 %v2026
        %v2402 = vunpack.c.h.b16 %v2026
        %v2403 = vunpack.c.l.b16 %v2027
        %v2404 = vunpack.c.h.b16 %v2027
        %v2405 = vunpack.c.l.b16 %v2028
        %v2406 = vunpack.c.h.b16 %v2028
        %v2407 = vunpack.c.l.b16 %v2029
        %v2408 = vunpack.c.h.b16 %v2029
        %v2409 = vunpack.c.l.b16 %v2030
        %v2410 = vunpack.c.h.b16 %v2030
        %v2411 = vunpack.c.l.b16 %v2031
        %v2412 = vunpack.c.h.b16 %v2031
        %v2413 = vunpack.c.l.b16 %v2032
        %v2414 = vunpack.c.h.b16 %v2032
        %v2415 = vunpack.c.l.b16 %v2033
        %v2416 = vunpack.c.h.b16 %v2033
        %v2417 = vunpack.c.l.b16 %v2034
        %v2418 = vunpack.c.h.b16 %v2034
        %v2419 = vunpack.c.l.b16 %v2035
        %v2420 = vunpack.c.h.b16 %v2035
        %v2421 = vunpack.c.l.b16 %v2036
        %v2422 = vunpack.c.h.b16 %v2036
        %v2423 = vpack.c.b16 %v2361, %v2359
        %v2424 = vpack.c.b16 %v2362, %v2360
        %v2425 = vpack.c.b16 %v2365, %v2363
        %v2426 = vpack.c.b16 %v2366, %v2364
        %v2427 = vpack.c.b16 %v2369, %v2367
        %v2428 = vpack.c.b16 %v2370, %v2368
        %v2429 = vpack.c.b16 %v2373, %v2371
        %v2430 = vpack.c.b16 %v2374, %v2372
        %v2431 = vpack.c.b16 %v2377, %v2375
        %v2432 = vpack.c.b16 %v2378, %v2376
        %v2433 = vpack.c.b16 %v2381, %v2379
        %v2434 = vpack.c.b16 %v2382, %v2380
        %v2435 = vpack.c.b16 %v2385, %v2383
        %v2436 = vpack.c.b16 %v2386, %v2384
        %v2437 = vpack.c.b16 %v2389, %v2387
        %v2438 = vpack.c.b16 %v2390, %v2388
        %v2439 = vpack.c.b16 %v2393, %v2391
        %v2440 = vpack.c.b16 %v2394, %v2392
        %v2441 = vpack.c.b16 %v2397, %v2395
        %v2442 = vpack.c.b16 %v2398, %v2396
        %v2443 = vpack.c.b16 %v2401, %v2399
        %v2444 = vpack.c.b16 %v2402, %v2400
        %v2445 = vpack.c.b16 %v2405, %v2403
        %v2446 = vpack.c.b16 %v2406, %v2404
        %v2447 = vpack.c.b16 %v2409, %v2407
        %v2448 = vpack.c.b16 %v2410, %v2408
        %v2449 = vpack.c.b16 %v2413, %v2411
        %v2450 = vpack.c.b16 %v2414, %v2412
        %v2451 = vpack.c.b16 %v2417, %v2415
        %v2452 = vpack.c.b16 %v2418, %v2416
        %v2453 = vpack.c.b16 %v2421, %v2419
        %v2454 = vpack.c.b16 %v2422, %v2420
        %2487 = vmatprep.subr.bf16.mxu0 %v2424
        %2488 = vmatpush1.bf16.msra.mxu0 %v2423
        %2489 = vmatprep.subr.bf16.mxu0 %v2426
        %2490 = vmatpush1.bf16.msra.mxu0 %v2425
        %2491 = vmatprep.subr.bf16.mxu0 %v2428
        %2492 = vmatpush1.bf16.msra.mxu0 %v2427
        %2493 = vmatprep.subr.bf16.mxu0 %v2430
        %2494 = vmatpush1.bf16.msra.mxu0 %v2429
        %2495 = vmatprep.subr.bf16.mxu0 %v2432
        %2496 = vmatpush1.bf16.msra.mxu0 %v2431
        %2497 = vmatprep.subr.bf16.mxu0 %v2434
        %2498 = vmatpush1.bf16.msra.mxu0 %v2433
        %2499 = vmatprep.subr.bf16.mxu0 %v2436
        %2500 = vmatpush1.bf16.msra.mxu0 %v2435
        %2501 = vmatprep.subr.bf16.mxu0 %v2438
        %2502 = vmatpush1.bf16.msra.mxu0 %v2437
        %2503 = vmatprep.subr.bf16.mxu0 %v2440
        %2504 = vmatpush1.bf16.msra.mxu0 %v2439
        %2505 = vmatprep.subr.bf16.mxu0 %v2442
        %2506 = vmatpush1.bf16.msra.mxu0 %v2441
        %2507 = vmatprep.subr.bf16.mxu0 %v2444
        %2508 = vmatpush1.bf16.msra.mxu0 %v2443
        %2509 = vmatprep.subr.bf16.mxu0 %v2446
        %2510 = vmatpush1.bf16.msra.mxu0 %v2445
        %2511 = vmatprep.subr.bf16.mxu0 %v2448
        %2512 = vmatpush1.bf16.msra.mxu0 %v2447
        %2513 = vmatprep.subr.bf16.mxu0 %v2450
        %2514 = vmatpush1.bf16.msra.mxu0 %v2449
        %2515 = vmatprep.subr.bf16.mxu0 %v2452
        %2516 = vmatpush1.bf16.msra.mxu0 %v2451
        %2517 = vmatprep.subr.bf16.mxu0 %v2454
        %2518 = vmatpush1.bf16.msra.mxu0 %v2453
        %2519 = vmatprep.mubr.bf16.mxu0 %v1971
        %2520 = vmatmul.mubr.bf16.gmra.mrb[0].mxu0 %v1970
        %v2521 = vpop.f32.mrb[0].mxu0
        %v2522 = vadd.f32 %v2320, %v2521
        %v2523 = vpop.f32.mrb[0].mxu0
        %v2524 = vadd.f32 %v2324, %v2523
        %v2525 = vpop.f32.mrb[0].mxu0
        %v2526 = vpop.f32.mrb[0].mxu0
        %2527 = vdwg.mxu0
        %v2529 = vlaneseq
        %v2530 = vshrl.u32 %v2529, 7
        %v2531 = vsub.s32 0, %v2530
        %v2532 = vrot.slane %v2070, %v2531
        %v2533 = vlaneseq
        %v2534 = vshrl.u32 %v2533, 7
        %v2535 = vsub.s32 1, %v2534
        %v2536 = vrot.slane %v2070, %v2535
        %v2571 = vunpack.c.l.b16 %v2038
        %v2572 = vunpack.c.h.b16 %v2038
        %v2573 = vunpack.c.l.b16 %v2039
        %v2574 = vunpack.c.h.b16 %v2039
        %v2575 = vunpack.c.l.b16 %v2040
        %v2576 = vunpack.c.h.b16 %v2040
        %v2577 = vunpack.c.l.b16 %v2041
        %v2578 = vunpack.c.h.b16 %v2041
        %v2579 = vunpack.c.l.b16 %v2042
        %v2580 = vunpack.c.h.b16 %v2042
        %v2581 = vunpack.c.l.b16 %v2043
        %v2582 = vunpack.c.h.b16 %v2043
        %v2583 = vunpack.c.l.b16 %v2044
        %v2584 = vunpack.c.h.b16 %v2044
        %v2585 = vunpack.c.l.b16 %v2045
        %v2586 = vunpack.c.h.b16 %v2045
        %v2587 = vunpack.c.l.b16 %v2046
        %v2588 = vunpack.c.h.b16 %v2046
        %v2589 = vunpack.c.l.b16 %v2047
        %v2590 = vunpack.c.h.b16 %v2047
        %v2591 = vunpack.c.l.b16 %v2048
        %v2592 = vunpack.c.h.b16 %v2048
        %v2593 = vunpack.c.l.b16 %v2049
        %v2594 = vunpack.c.h.b16 %v2049
        %v2595 = vunpack.c.l.b16 %v2050
        %v2596 = vunpack.c.h.b16 %v2050
        %v2597 = vunpack.c.l.b16 %v2051
        %v2598 = vunpack.c.h.b16 %v2051
        %v2599 = vunpack.c.l.b16 %v2052
        %v2600 = vunpack.c.h.b16 %v2052
        %v2601 = vunpack.c.l.b16 %v2053
        %v2602 = vunpack.c.h.b16 %v2053
        %v2603 = vunpack.c.l.b16 %v2054
        %v2604 = vunpack.c.h.b16 %v2054
        %v2605 = vunpack.c.l.b16 %v2055
        %v2606 = vunpack.c.h.b16 %v2055
        %v2607 = vunpack.c.l.b16 %v2056
        %v2608 = vunpack.c.h.b16 %v2056
        %v2609 = vunpack.c.l.b16 %v2057
        %v2610 = vunpack.c.h.b16 %v2057
        %v2611 = vunpack.c.l.b16 %v2058
        %v2612 = vunpack.c.h.b16 %v2058
        %v2613 = vunpack.c.l.b16 %v2059
        %v2614 = vunpack.c.h.b16 %v2059
        %v2615 = vunpack.c.l.b16 %v2060
        %v2616 = vunpack.c.h.b16 %v2060
        %v2617 = vunpack.c.l.b16 %v2061
        %v2618 = vunpack.c.h.b16 %v2061
        %v2619 = vunpack.c.l.b16 %v2062
        %v2620 = vunpack.c.h.b16 %v2062
        %v2621 = vunpack.c.l.b16 %v2063
        %v2622 = vunpack.c.h.b16 %v2063
        %v2623 = vunpack.c.l.b16 %v2064
        %v2624 = vunpack.c.h.b16 %v2064
        %v2625 = vunpack.c.l.b16 %v2065
        %v2626 = vunpack.c.h.b16 %v2065
        %v2627 = vunpack.c.l.b16 %v2066
        %v2628 = vunpack.c.h.b16 %v2066
        %v2629 = vunpack.c.l.b16 %v2067
        %v2630 = vunpack.c.h.b16 %v2067
        %v2631 = vunpack.c.l.b16 %v2068
        %v2632 = vunpack.c.h.b16 %v2068
        %v2633 = vunpack.c.l.b16 %v2069
        %v2634 = vunpack.c.h.b16 %v2069
        %v2635 = vpack.c.b16 %v2573, %v2571
        %v2636 = vpack.c.b16 %v2574, %v2572
        %v2637 = vpack.c.b16 %v2577, %v2575
        %v2638 = vpack.c.b16 %v2578, %v2576
        %v2639 = vpack.c.b16 %v2581, %v2579
        %v2640 = vpack.c.b16 %v2582, %v2580
        %v2641 = vpack.c.b16 %v2585, %v2583
        %v2642 = vpack.c.b16 %v2586, %v2584
        %v2643 = vpack.c.b16 %v2589, %v2587
        %v2644 = vpack.c.b16 %v2590, %v2588
        %v2645 = vpack.c.b16 %v2593, %v2591
        %v2646 = vpack.c.b16 %v2594, %v2592
        %v2647 = vpack.c.b16 %v2597, %v2595
        %v2648 = vpack.c.b16 %v2598, %v2596
        %v2649 = vpack.c.b16 %v2601, %v2599
        %v2650 = vpack.c.b16 %v2602, %v2600
        %v2651 = vpack.c.b16 %v2605, %v2603
        %v2652 = vpack.c.b16 %v2606, %v2604
        %v2653 = vpack.c.b16 %v2609, %v2607
        %v2654 = vpack.c.b16 %v2610, %v2608
        %v2655 = vpack.c.b16 %v2613, %v2611
        %v2656 = vpack.c.b16 %v2614, %v2612
        %v2657 = vpack.c.b16 %v2617, %v2615
        %v2658 = vpack.c.b16 %v2618, %v2616
        %v2659 = vpack.c.b16 %v2621, %v2619
        %v2660 = vpack.c.b16 %v2622, %v2620
        %v2661 = vpack.c.b16 %v2625, %v2623
        %v2662 = vpack.c.b16 %v2626, %v2624
        %v2663 = vpack.c.b16 %v2629, %v2627
        %v2664 = vpack.c.b16 %v2630, %v2628
        %v2665 = vpack.c.b16 %v2633, %v2631
        %v2666 = vpack.c.b16 %v2634, %v2632
        %2699 = vmatprep.subr.bf16.mxu0 %v2636
        %2700 = vmatpush1.bf16.msra.mxu0 %v2635
        %2701 = vmatprep.subr.bf16.mxu0 %v2638
        %2702 = vmatpush1.bf16.msra.mxu0 %v2637
        %2703 = vmatprep.subr.bf16.mxu0 %v2640
        %2704 = vmatpush1.bf16.msra.mxu0 %v2639
        %2705 = vmatprep.subr.bf16.mxu0 %v2642
        %2706 = vmatpush1.bf16.msra.mxu0 %v2641
        %2707 = vmatprep.subr.bf16.mxu0 %v2644
        %2708 = vmatpush1.bf16.msra.mxu0 %v2643
        %2709 = vmatprep.subr.bf16.mxu0 %v2646
        %2710 = vmatpush1.bf16.msra.mxu0 %v2645
        %2711 = vmatprep.subr.bf16.mxu0 %v2648
        %2712 = vmatpush1.bf16.msra.mxu0 %v2647
        %2713 = vmatprep.subr.bf16.mxu0 %v2650
        %2714 = vmatpush1.bf16.msra.mxu0 %v2649
        %2715 = vmatprep.subr.bf16.mxu0 %v2652
        %2716 = vmatpush1.bf16.msra.mxu0 %v2651
        %2717 = vmatprep.subr.bf16.mxu0 %v2654
        %2718 = vmatpush1.bf16.msra.mxu0 %v2653
        %2719 = vmatprep.subr.bf16.mxu0 %v2656
        %2720 = vmatpush1.bf16.msra.mxu0 %v2655
        %2721 = vmatprep.subr.bf16.mxu0 %v2658
        %2722 = vmatpush1.bf16.msra.mxu0 %v2657
        %2723 = vmatprep.subr.bf16.mxu0 %v2660
        %2724 = vmatpush1.bf16.msra.mxu0 %v2659
        %2725 = vmatprep.subr.bf16.mxu0 %v2662
        %2726 = vmatpush1.bf16.msra.mxu0 %v2661
        %2727 = vmatprep.subr.bf16.mxu0 %v2664
        %2728 = vmatpush1.bf16.msra.mxu0 %v2663
        %2729 = vmatprep.subr.bf16.mxu0 %v2666
        %2730 = vmatpush1.bf16.msra.mxu0 %v2665
        %2731 = vmatprep.mubr.bf16.mxu0 %v1971
        %2732 = vmatmul.mubr.bf16.gmra.mrb[0].mxu0 %v1970
        %v2733 = vpop.f32.mrb[0].mxu0
        %v2734 = vadd.f32 %v2532, %v2733
        %v2735 = vpop.f32.mrb[0].mxu0
        %v2736 = vadd.f32 %v2536, %v2735
        %v2737 = vpop.f32.mrb[0].mxu0
        %v2738 = vpop.f32.mrb[0].mxu0
        %2739 = vdwg.mxu0
        %v2740 = vmul.f32 %v2310, 0.125
        %v2741 = vmul.f32 %v2312, 0.125
        %v2742 = vpack.c.bf16 %v2740, %v2740
        %v2743 = vpack.c.bf16 %v2522, %v2522
        %v2744 = vpack.c.bf16 %v2734, %v2734
        %vm2745 = vcmask 523264
        %v2747 = vsel %vm2745, %v2742, 0
        %v2750 = vsel %vm2745, %v2743, 0
        %2752 = vmatprep.subr.bf16.mxu0 0
        %2753 = vmatpush1.bf16.xpose.msra.mxu0 %v2750
        %2754 = vmatprep.subr.bf16.mxu0 0
        %2755 = vmatpush1.bf16.xpose.msra.mxu0 0
        %2756 = vmatprep.subr.bf16.mxu0 0
        %2757 = vmatpush1.bf16.xpose.msra.mxu0 0
        %2758 = vmatprep.subr.bf16.mxu0 0
        %2759 = vmatpush1.bf16.xpose.msra.mxu0 0
        %2760 = vmatprep.subr.bf16.mxu0 0
        %2761 = vmatpush1.bf16.xpose.msra.mxu0 0
        %2762 = vmatprep.subr.bf16.mxu0 0
        %2763 = vmatpush1.bf16.xpose.msra.mxu0 0
        %2764 = vmatprep.subr.bf16.mxu0 0
        %2765 = vmatpush1.bf16.xpose.msra.mxu0 0
        %2766 = vmatprep.subr.bf16.mxu0 0
        %2767 = vmatpush1.bf16.xpose.msra.mxu0 0
        %2768 = vmatprep.subr.bf16.mxu0 0
        %2769 = vmatpush1.bf16.xpose.msra.mxu0 0
        %2770 = vmatprep.subr.bf16.mxu0 0
        %2771 = vmatpush1.bf16.xpose.msra.mxu0 0
        %2772 = vmatprep.subr.bf16.mxu0 0
        %2773 = vmatpush1.bf16.xpose.msra.mxu0 0
        %2774 = vmatprep.subr.bf16.mxu0 0
        %2775 = vmatpush1.bf16.xpose.msra.mxu0 0
        %2776 = vmatprep.subr.bf16.mxu0 0
        %2777 = vmatpush1.bf16.xpose.msra.mxu0 0
        %2778 = vmatprep.subr.bf16.mxu0 0
        %2779 = vmatpush1.bf16.xpose.msra.mxu0 0
        %2780 = vmatprep.subr.bf16.mxu0 0
        %2781 = vmatpush1.bf16.xpose.msra.mxu0 0
        %2782 = vmatprep.subr.bf16.mxu0 0
        %2783 = vmatpush1.bf16.xpose.msra.mxu0 0
        %2784 = vmatprep.mubr.bf16.mxu0 0
        %2785 = vmatmul.mubr.bf16.gmra.mrb[0].mxu0 %v2747
        %v2786 = vpop.f32.mrb[0].mxu0
        %v2787 = vadd.f32 0.0, %v2786
        %v2788 = vpop.f32.mrb[0].mxu0
        %v2789 = vpop.f32.mrb[0].mxu0
        %v2790 = vpop.f32.mrb[0].mxu0
        %2791 = vdwg.mxu0
        %vm2792 = vcmask 64512
        %v2793 = vsel %vm2792, %v2787, -inf
        %2794 = vmax.xlane.f32.xlu0 %v2793
        %v2795 = vpop.xlane.xlu0 %2794
        %v2796 = vsub.f32 %v2787, %v2795
        %v2797 = vmul.f32 %v2796, 1.442695
        %v2798 = vpow.pop %v2797
        %v2799 = vsel %vm2792, %v2798, 0.0
        %2800 = vadd.xlane.f32.xlu0 %v2799
        %v2801 = vpop.xlane.xlu0 %2800
        %v2802 = vrcp.pop %v2801
        %v2803 = vmul.f32 %v2798, %v2802
        %v2804 = vpack.c.bf16 %v2803, %v2803
        %v2806 = vsel %vm2792, %v2804, 0
        %vm2808 = vcmask 1043456
        %v2810 = vsel %vm2808, %v2744, 0
        %2812 = vmatprep.subr.bf16.mxu0 0
        %2813 = vmatpush1.bf16.msra.mxu0 %v2810
        %2814 = vmatprep.subr.bf16.mxu0 0
        %2815 = vmatpush1.bf16.msra.mxu0 0
        %2816 = vmatprep.subr.bf16.mxu0 0
        %2817 = vmatpush1.bf16.msra.mxu0 0
        %2818 = vmatprep.subr.bf16.mxu0 0
        %2819 = vmatpush1.bf16.msra.mxu0 0
        %2820 = vmatprep.subr.bf16.mxu0 0
        %2821 = vmatpush1.bf16.msra.mxu0 0
        %2822 = vmatprep.subr.bf16.mxu0 0
        %2823 = vmatpush1.bf16.msra.mxu0 0
        %2824 = vmatprep.subr.bf16.mxu0 0
        %2825 = vmatpush1.bf16.msra.mxu0 0
        %2826 = vmatprep.subr.bf16.mxu0 0
        %2827 = vmatpush1.bf16.msra.mxu0 0
        %2828 = vmatprep.subr.bf16.mxu0 0
        %2829 = vmatpush1.bf16.msra.mxu0 0
        %2830 = vmatprep.subr.bf16.mxu0 0
        %2831 = vmatpush1.bf16.msra.mxu0 0
        %2832 = vmatprep.subr.bf16.mxu0 0
        %2833 = vmatpush1.bf16.msra.mxu0 0
        %2834 = vmatprep.subr.bf16.mxu0 0
        %2835 = vmatpush1.bf16.msra.mxu0 0
        %2836 = vmatprep.subr.bf16.mxu0 0
        %2837 = vmatpush1.bf16.msra.mxu0 0
        %2838 = vmatprep.subr.bf16.mxu0 0
        %2839 = vmatpush1.bf16.msra.mxu0 0
        %2840 = vmatprep.subr.bf16.mxu0 0
        %2841 = vmatpush1.bf16.msra.mxu0 0
        %2842 = vmatprep.subr.bf16.mxu0 0
        %2843 = vmatpush1.bf16.msra.mxu0 0
        %2844 = vmatprep.mubr.bf16.mxu0 0
        %2845 = vmatmul.mubr.bf16.gmra.mrb[0].mxu0 %v2806
        %v2846 = vpop.f32.mrb[0].mxu0
        %v2847 = vadd.f32 0.0, %v2846
        %v2848 = vpop.f32.mrb[0].mxu0
        %v2849 = vpop.f32.mrb[0].mxu0
        %v2850 = vpop.f32.mrb[0].mxu0
        %2851 = vdwg.mxu0
        %2853 = vrot.lane.b32.xlu0 %v2742, 64
        %v2854 = vpop.permute.xlu0 %2853
        %2856 = vrot.lane.b32.xlu0 %v2743, 64
        %v2857 = vpop.permute.xlu0 %2856
        %v2859 = vsel %vm2745, %v2854, 0
        %v2862 = vsel %vm2745, %v2857, 0
        %2864 = vmatprep.subr.bf16.mxu0 0
        %2865 = vmatpush1.bf16.xpose.msra.mxu0 %v2862
        %2866 = vmatprep.subr.bf16.mxu0 0
        %2867 = vmatpush1.bf16.xpose.msra.mxu0 0
        %2868 = vmatprep.subr.bf16.mxu0 0
        %2869 = vmatpush1.bf16.xpose.msra.mxu0 0
        %2870 = vmatprep.subr.bf16.mxu0 0
        %2871 = vmatpush1.bf16.xpose.msra.mxu0 0
        %2872 = vmatprep.subr.bf16.mxu0 0
        %2873 = vmatpush1.bf16.xpose.msra.mxu0 0
        %2874 = vmatprep.subr.bf16.mxu0 0
        %2875 = vmatpush1.bf16.xpose.msra.mxu0 0
        %2876 = vmatprep.subr.bf16.mxu0 0
        %2877 = vmatpush1.bf16.xpose.msra.mxu0 0
        %2878 = vmatprep.subr.bf16.mxu0 0
        %2879 = vmatpush1.bf16.xpose.msra.mxu0 0
        %2880 = vmatprep.subr.bf16.mxu0 0
        %2881 = vmatpush1.bf16.xpose.msra.mxu0 0
        %2882 = vmatprep.subr.bf16.mxu0 0
        %2883 = vmatpush1.bf16.xpose.msra.mxu0 0
        %2884 = vmatprep.subr.bf16.mxu0 0
        %2885 = vmatpush1.bf16.xpose.msra.mxu0 0
        %2886 = vmatprep.subr.bf16.mxu0 0
        %2887 = vmatpush1.bf16.xpose.msra.mxu0 0
        %2888 = vmatprep.subr.bf16.mxu0 0
        %2889 = vmatpush1.bf16.xpose.msra.mxu0 0
        %2890 = vmatprep.subr.bf16.mxu0 0
        %2891 = vmatpush1.bf16.xpose.msra.mxu0 0
        %2892 = vmatprep.subr.bf16.mxu0 0
        %2893 = vmatpush1.bf16.xpose.msra.mxu0 0
        %2894 = vmatprep.subr.bf16.mxu0 0
        %2895 = vmatpush1.bf16.xpose.msra.mxu0 0
        %2896 = vmatprep.mubr.bf16.mxu0 0
        %2897 = vmatmul.mubr.bf16.gmra.mrb[0].mxu0 %v2859
        %v2898 = vpop.f32.mrb[0].mxu0
        %v2899 = vadd.f32 0.0, %v2898
        %v2900 = vpop.f32.mrb[0].mxu0
        %v2901 = vpop.f32.mrb[0].mxu0
        %v2902 = vpop.f32.mrb[0].mxu0
        %2903 = vdwg.mxu0
        %v2904 = vsel %vm2792, %v2899, -inf
        %2905 = vmax.xlane.f32.xlu0 %v2904
        %v2906 = vpop.xlane.xlu0 %2905
        %v2907 = vsub.f32 %v2899, %v2906
        %v2908 = vmul.f32 %v2907, 1.442695
        %v2909 = vpow.pop %v2908
        %v2910 = vsel %vm2792, %v2909, 0.0
        %2911 = vadd.xlane.f32.xlu0 %v2910
        %v2912 = vpop.xlane.xlu0 %2911
        %v2913 = vrcp.pop %v2912
        %v2914 = vmul.f32 %v2909, %v2913
        %v2915 = vpack.c.bf16 %v2914, %v2914
        %2917 = vrot.lane.b32.xlu0 %v2744, 64
        %v2918 = vpop.permute.xlu0 %2917
        %v2920 = vsel %vm2792, %v2915, 0
        %v2923 = vsel %vm2808, %v2918, 0
        %2925 = vmatprep.subr.bf16.mxu0 0
        %2926 = vmatpush1.bf16.msra.mxu0 %v2923
        %2927 = vmatprep.subr.bf16.mxu0 0
        %2928 = vmatpush1.bf16.msra.mxu0 0
        %2929 = vmatprep.subr.bf16.mxu0 0
        %2930 = vmatpush1.bf16.msra.mxu0 0
        %2931 = vmatprep.subr.bf16.mxu0 0
        %2932 = vmatpush1.bf16.msra.mxu0 0
        %2933 = vmatprep.subr.bf16.mxu0 0
        %2934 = vmatpush1.bf16.msra.mxu0 0
        %2935 = vmatprep.subr.bf16.mxu0 0
        %2936 = vmatpush1.bf16.msra.mxu0 0
        %2937 = vmatprep.subr.bf16.mxu0 0
        %2938 = vmatpush1.bf16.msra.mxu0 0
        %2939 = vmatprep.subr.bf16.mxu0 0
        %2940 = vmatpush1.bf16.msra.mxu0 0
        %2941 = vmatprep.subr.bf16.mxu0 0
        %2942 = vmatpush1.bf16.msra.mxu0 0
        %2943 = vmatprep.subr.bf16.mxu0 0
        %2944 = vmatpush1.bf16.msra.mxu0 0
        %2945 = vmatprep.subr.bf16.mxu0 0
        %2946 = vmatpush1.bf16.msra.mxu0 0
        %2947 = vmatprep.subr.bf16.mxu0 0
        %2948 = vmatpush1.bf16.msra.mxu0 0
        %2949 = vmatprep.subr.bf16.mxu0 0
        %2950 = vmatpush1.bf16.msra.mxu0 0
        %2951 = vmatprep.subr.bf16.mxu0 0
        %2952 = vmatpush1.bf16.msra.mxu0 0
        %2953 = vmatprep.subr.bf16.mxu0 0
        %2954 = vmatpush1.bf16.msra.mxu0 0
        %2955 = vmatprep.subr.bf16.mxu0 0
        %2956 = vmatpush1.bf16.msra.mxu0 0
        %2957 = vmatprep.mubr.bf16.mxu0 0
        %2958 = vmatmul.mubr.bf16.gmra.mrb[0].mxu0 %v2920
        %v2959 = vpop.f32.mrb[0].mxu0
        %v2960 = vadd.f32 0.0, %v2959
        %v2961 = vpop.f32.mrb[0].mxu0
        %v2962 = vpop.f32.mrb[0].mxu0
        %v2963 = vpop.f32.mrb[0].mxu0
        %2964 = vdwg.mxu0
        %v2965 = vpack.c.bf16 %v2741, %v2741
        %v2966 = vpack.c.bf16 %v2524, %v2524
        %v2967 = vpack.c.bf16 %v2736, %v2736
        %v2969 = vsel %vm2745, %v2965, 0
        %v2972 = vsel %vm2745, %v2966, 0
        %2974 = vmatprep.subr.bf16.mxu0 0
        %2975 = vmatpush1.bf16.xpose.msra.mxu0 %v2972
        %2976 = vmatprep.subr.bf16.mxu0 0
        %2977 = vmatpush1.bf16.xpose.msra.mxu0 0
        %2978 = vmatprep.subr.bf16.mxu0 0
        %2979 = vmatpush1.bf16.xpose.msra.mxu0 0
        %2980 = vmatprep.subr.bf16.mxu0 0
        %2981 = vmatpush1.bf16.xpose.msra.mxu0 0
        %2982 = vmatprep.subr.bf16.mxu0 0
        %2983 = vmatpush1.bf16.xpose.msra.mxu0 0
        %2984 = vmatprep.subr.bf16.mxu0 0
        %2985 = vmatpush1.bf16.xpose.msra.mxu0 0
        %2986 = vmatprep.subr.bf16.mxu0 0
        %2987 = vmatpush1.bf16.xpose.msra.mxu0 0
        %2988 = vmatprep.subr.bf16.mxu0 0
        %2989 = vmatpush1.bf16.xpose.msra.mxu0 0
        %2990 = vmatprep.subr.bf16.mxu0 0
        %2991 = vmatpush1.bf16.xpose.msra.mxu0 0
        %2992 = vmatprep.subr.bf16.mxu0 0
        %2993 = vmatpush1.bf16.xpose.msra.mxu0 0
        %2994 = vmatprep.subr.bf16.mxu0 0
        %2995 = vmatpush1.bf16.xpose.msra.mxu0 0
        %2996 = vmatprep.subr.bf16.mxu0 0
        %2997 = vmatpush1.bf16.xpose.msra.mxu0 0
        %2998 = vmatprep.subr.bf16.mxu0 0
        %2999 = vmatpush1.bf16.xpose.msra.mxu0 0
        %3000 = vmatprep.subr.bf16.mxu0 0
        %3001 = vmatpush1.bf16.xpose.msra.mxu0 0
        %3002 = vmatprep.subr.bf16.mxu0 0
        %3003 = vmatpush1.bf16.xpose.msra.mxu0 0
        %3004 = vmatprep.subr.bf16.mxu0 0
        %3005 = vmatpush1.bf16.xpose.msra.mxu0 0
        %3006 = vmatprep.mubr.bf16.mxu0 0
        %3007 = vmatmul.mubr.bf16.gmra.mrb[0].mxu0 %v2969
        %v3008 = vpop.f32.mrb[0].mxu0
        %v3009 = vadd.f32 0.0, %v3008
        %v3010 = vpop.f32.mrb[0].mxu0
        %v3011 = vpop.f32.mrb[0].mxu0
        %v3012 = vpop.f32.mrb[0].mxu0
        %3013 = vdwg.mxu0
        %v3014 = vsel %vm2792, %v3009, -inf
        %3015 = vmax.xlane.f32.xlu0 %v3014
        %v3016 = vpop.xlane.xlu0 %3015
        %v3017 = vsub.f32 %v3009, %v3016
        %v3018 = vmul.f32 %v3017, 1.442695
        %v3019 = vpow.pop %v3018
        %v3020 = vsel %vm2792, %v3019, 0.0
        %3021 = vadd.xlane.f32.xlu0 %v3020
        %v3022 = vpop.xlane.xlu0 %3021
        %v3023 = vrcp.pop %v3022
        %v3024 = vmul.f32 %v3019, %v3023
        %v3025 = vpack.c.bf16 %v3024, %v3024
        %v3027 = vsel %vm2792, %v3025, 0
        %v3030 = vsel %vm2808, %v2967, 0
        %3032 = vmatprep.subr.bf16.mxu0 0
        %3033 = vmatpush1.bf16.msra.mxu0 %v3030
        %3034 = vmatprep.subr.bf16.mxu0 0
        %3035 = vmatpush1.bf16.msra.mxu0 0
        %3036 = vmatprep.subr.bf16.mxu0 0
        %3037 = vmatpush1.bf16.msra.mxu0 0
        %3038 = vmatprep.subr.bf16.mxu0 0
        %3039 = vmatpush1.bf16.msra.mxu0 0
        %3040 = vmatprep.subr.bf16.mxu0 0
        %3041 = vmatpush1.bf16.msra.mxu0 0
        %3042 = vmatprep.subr.bf16.mxu0 0
        %3043 = vmatpush1.bf16.msra.mxu0 0
        %3044 = vmatprep.subr.bf16.mxu0 0
        %3045 = vmatpush1.bf16.msra.mxu0 0
        %3046 = vmatprep.subr.bf16.mxu0 0
        %3047 = vmatpush1.bf16.msra.mxu0 0
        %3048 = vmatprep.subr.bf16.mxu0 0
        %3049 = vmatpush1.bf16.msra.mxu0 0
        %3050 = vmatprep.subr.bf16.mxu0 0
        %3051 = vmatpush1.bf16.msra.mxu0 0
        %3052 = vmatprep.subr.bf16.mxu0 0
        %3053 = vmatpush1.bf16.msra.mxu0 0
        %3054 = vmatprep.subr.bf16.mxu0 0
        %3055 = vmatpush1.bf16.msra.mxu0 0
        %3056 = vmatprep.subr.bf16.mxu0 0
        %3057 = vmatpush1.bf16.msra.mxu0 0
        %3058 = vmatprep.subr.bf16.mxu0 0
        %3059 = vmatpush1.bf16.msra.mxu0 0
        %3060 = vmatprep.subr.bf16.mxu0 0
        %3061 = vmatpush1.bf16.msra.mxu0 0
        %3062 = vmatprep.subr.bf16.mxu0 0
        %3063 = vmatpush1.bf16.msra.mxu0 0
        %3064 = vmatprep.mubr.bf16.mxu0 0
        %3065 = vmatmul.mubr.bf16.gmra.mrb[0].mxu0 %v3027
        %v3066 = vpop.f32.mrb[0].mxu0
        %v3067 = vadd.f32 0.0, %v3066
        %v3068 = vpop.f32.mrb[0].mxu0
        %v3069 = vpop.f32.mrb[0].mxu0
        %v3070 = vpop.f32.mrb[0].mxu0
        %3071 = vdwg.mxu0
        %3073 = vrot.lane.b32.xlu0 %v2965, 64
        %v3074 = vpop.permute.xlu0 %3073
        %3076 = vrot.lane.b32.xlu0 %v2966, 64
        %v3077 = vpop.permute.xlu0 %3076
        %v3079 = vsel %vm2745, %v3074, 0
        %v3082 = vsel %vm2745, %v3077, 0
        %3084 = vmatprep.subr.bf16.mxu0 0
        %3085 = vmatpush1.bf16.xpose.msra.mxu0 %v3082
        %3086 = vmatprep.subr.bf16.mxu0 0
        %3087 = vmatpush1.bf16.xpose.msra.mxu0 0
        %3088 = vmatprep.subr.bf16.mxu0 0
        %3089 = vmatpush1.bf16.xpose.msra.mxu0 0
        %3090 = vmatprep.subr.bf16.mxu0 0
        %3091 = vmatpush1.bf16.xpose.msra.mxu0 0
        %3092 = vmatprep.subr.bf16.mxu0 0
        %3093 = vmatpush1.bf16.xpose.msra.mxu0 0
        %3094 = vmatprep.subr.bf16.mxu0 0
        %3095 = vmatpush1.bf16.xpose.msra.mxu0 0
        %3096 = vmatprep.subr.bf16.mxu0 0
        %3097 = vmatpush1.bf16.xpose.msra.mxu0 0
        %3098 = vmatprep.subr.bf16.mxu0 0
        %3099 = vmatpush1.bf16.xpose.msra.mxu0 0
        %3100 = vmatprep.subr.bf16.mxu0 0
        %3101 = vmatpush1.bf16.xpose.msra.mxu0 0
        %3102 = vmatprep.subr.bf16.mxu0 0
        %3103 = vmatpush1.bf16.xpose.msra.mxu0 0
        %3104 = vmatprep.subr.bf16.mxu0 0
        %3105 = vmatpush1.bf16.xpose.msra.mxu0 0
        %3106 = vmatprep.subr.bf16.mxu0 0
        %3107 = vmatpush1.bf16.xpose.msra.mxu0 0
        %3108 = vmatprep.subr.bf16.mxu0 0
        %3109 = vmatpush1.bf16.xpose.msra.mxu0 0
        %3110 = vmatprep.subr.bf16.mxu0 0
        %3111 = vmatpush1.bf16.xpose.msra.mxu0 0
        %3112 = vmatprep.subr.bf16.mxu0 0
        %3113 = vmatpush1.bf16.xpose.msra.mxu0 0
        %3114 = vmatprep.subr.bf16.mxu0 0
        %3115 = vmatpush1.bf16.xpose.msra.mxu0 0
        %3116 = vmatprep.mubr.bf16.mxu0 0
        %3117 = vmatmul.mubr.bf16.gmra.mrb[0].mxu0 %v3079
        %v3118 = vpop.f32.mrb[0].mxu0
        %v3119 = vadd.f32 0.0, %v3118
        %v3120 = vpop.f32.mrb[0].mxu0
        %v3121 = vpop.f32.mrb[0].mxu0
        %v3122 = vpop.f32.mrb[0].mxu0
        %3123 = vdwg.mxu0
        %v3124 = vsel %vm2792, %v3119, -inf
        %3125 = vmax.xlane.f32.xlu0 %v3124
        %v3126 = vpop.xlane.xlu0 %3125
        %v3127 = vsub.f32 %v3119, %v3126
        %v3128 = vmul.f32 %v3127, 1.442695
        %v3129 = vpow.pop %v3128
        %v3130 = vsel %vm2792, %v3129, 0.0
        %3131 = vadd.xlane.f32.xlu0 %v3130
        %v3132 = vpop.xlane.xlu0 %3131
        %v3133 = vrcp.pop %v3132
        %v3134 = vmul.f32 %v3129, %v3133
        %v3135 = vpack.c.bf16 %v3134, %v3134
        %3137 = vrot.lane.b32.xlu0 %v2967, 64
        %v3138 = vpop.permute.xlu0 %3137
        %v3140 = vsel %vm2792, %v3135, 0
        %v3143 = vsel %vm2808, %v3138, 0
        %3145 = vmatprep.subr.bf16.mxu0 0
        %3146 = vmatpush1.bf16.msra.mxu0 %v3143
        %3147 = vmatprep.subr.bf16.mxu0 0
        %3148 = vmatpush1.bf16.msra.mxu0 0
        %3149 = vmatprep.subr.bf16.mxu0 0
        %3150 = vmatpush1.bf16.msra.mxu0 0
        %3151 = vmatprep.subr.bf16.mxu0 0
        %3152 = vmatpush1.bf16.msra.mxu0 0
        %3153 = vmatprep.subr.bf16.mxu0 0
        %3154 = vmatpush1.bf16.msra.mxu0 0
        %3155 = vmatprep.subr.bf16.mxu0 0
        %3156 = vmatpush1.bf16.msra.mxu0 0
        %3157 = vmatprep.subr.bf16.mxu0 0
        %3158 = vmatpush1.bf16.msra.mxu0 0
        %3159 = vmatprep.subr.bf16.mxu0 0
        %3160 = vmatpush1.bf16.msra.mxu0 0
        %3161 = vmatprep.subr.bf16.mxu0 0
        %3162 = vmatpush1.bf16.msra.mxu0 0
        %3163 = vmatprep.subr.bf16.mxu0 0
        %3164 = vmatpush1.bf16.msra.mxu0 0
        %3165 = vmatprep.subr.bf16.mxu0 0
        %3166 = vmatpush1.bf16.msra.mxu0 0
        %3167 = vmatprep.subr.bf16.mxu0 0
        %3168 = vmatpush1.bf16.msra.mxu0 0
        %3169 = vmatprep.subr.bf16.mxu0 0
        %3170 = vmatpush1.bf16.msra.mxu0 0
        %3171 = vmatprep.subr.bf16.mxu0 0
        %3172 = vmatpush1.bf16.msra.mxu0 0
        %3173 = vmatprep.subr.bf16.mxu0 0
        %3174 = vmatpush1.bf16.msra.mxu0 0
        %3175 = vmatprep.subr.bf16.mxu0 0
        %3176 = vmatpush1.bf16.msra.mxu0 0
        %3177 = vmatprep.mubr.bf16.mxu0 0
        %3178 = vmatmul.mubr.bf16.gmra.mrb[0].mxu0 %v3140
        %v3179 = vpop.f32.mrb[0].mxu0
        %v3180 = vadd.f32 0.0, %v3179
        %v3181 = vpop.f32.mrb[0].mxu0
        %v3182 = vpop.f32.mrb[0].mxu0
        %v3183 = vpop.f32.mrb[0].mxu0
        %3184 = vdwg.mxu0
        %3186 = vrot.lane.b32.xlu0 %v2960, 64
        %v3187 = vpop.permute.xlu0 %3186
        %3190 = vrot.lane.b32.xlu0 %v3180, 64
        %v3191 = vpop.permute.xlu0 %3190
        %v3193 = vsel %vm2745, %v2847, %v3187
        %v3194 = vsel %vm2745, %v3067, %v3191
        %v3195 = vpack.c.bf16 %v3193, %v3193
        %v3196 = vpack.c.bf16 %v3194, %v3194
        %v3198 = vlaneseq
        %v3199 = vshrl.u32 %v3198, 7
        %v3200 = vsub.s32 0, %v3199
        %v3201 = vrot.slane %v2103, %v3200
        %v3202 = vlaneseq
        %v3203 = vshrl.u32 %v3202, 7
        %v3204 = vsub.s32 1, %v3203
        %v3205 = vrot.slane %v2103, %v3204
        %v3240 = vunpack.c.l.b16 %v2071
        %v3241 = vunpack.c.h.b16 %v2071
        %v3242 = vunpack.c.l.b16 %v2072
        %v3243 = vunpack.c.h.b16 %v2072
        %v3244 = vunpack.c.l.b16 %v2073
        %v3245 = vunpack.c.h.b16 %v2073
        %v3246 = vunpack.c.l.b16 %v2074
        %v3247 = vunpack.c.h.b16 %v2074
        %v3248 = vunpack.c.l.b16 %v2075
        %v3249 = vunpack.c.h.b16 %v2075
        %v3250 = vunpack.c.l.b16 %v2076
        %v3251 = vunpack.c.h.b16 %v2076
        %v3252 = vunpack.c.l.b16 %v2077
        %v3253 = vunpack.c.h.b16 %v2077
        %v3254 = vunpack.c.l.b16 %v2078
        %v3255 = vunpack.c.h.b16 %v2078
        %v3256 = vunpack.c.l.b16 %v2079
        %v3257 = vunpack.c.h.b16 %v2079
        %v3258 = vunpack.c.l.b16 %v2080
        %v3259 = vunpack.c.h.b16 %v2080
        %v3260 = vunpack.c.l.b16 %v2081
        %v3261 = vunpack.c.h.b16 %v2081
        %v3262 = vunpack.c.l.b16 %v2082
        %v3263 = vunpack.c.h.b16 %v2082
        %v3264 = vunpack.c.l.b16 %v2083
        %v3265 = vunpack.c.h.b16 %v2083
        %v3266 = vunpack.c.l.b16 %v2084
        %v3267 = vunpack.c.h.b16 %v2084
        %v3268 = vunpack.c.l.b16 %v2085
        %v3269 = vunpack.c.h.b16 %v2085
        %v3270 = vunpack.c.l.b16 %v2086
        %v3271 = vunpack.c.h.b16 %v2086
        %v3272 = vunpack.c.l.b16 %v2087
        %v3273 = vunpack.c.h.b16 %v2087
        %v3274 = vunpack.c.l.b16 %v2088
        %v3275 = vunpack.c.h.b16 %v2088
        %v3276 = vunpack.c.l.b16 %v2089
        %v3277 = vunpack.c.h.b16 %v2089
        %v3278 = vunpack.c.l.b16 %v2090
        %v3279 = vunpack.c.h.b16 %v2090
        %v3280 = vunpack.c.l.b16 %v2091
        %v3281 = vunpack.c.h.b16 %v2091
        %v3282 = vunpack.c.l.b16 %v2092
        %v3283 = vunpack.c.h.b16 %v2092
        %v3284 = vunpack.c.l.b16 %v2093
        %v3285 = vunpack.c.h.b16 %v2093
        %v3286 = vunpack.c.l.b16 %v2094
        %v3287 = vunpack.c.h.b16 %v2094
        %v3288 = vunpack.c.l.b16 %v2095
        %v3289 = vunpack.c.h.b16 %v2095
        %v3290 = vunpack.c.l.b16 %v2096
        %v3291 = vunpack.c.h.b16 %v2096
        %v3292 = vunpack.c.l.b16 %v2097
        %v3293 = vunpack.c.h.b16 %v2097
        %v3294 = vunpack.c.l.b16 %v2098
        %v3295 = vunpack.c.h.b16 %v2098
        %v3296 = vunpack.c.l.b16 %v2099
        %v3297 = vunpack.c.h.b16 %v2099
        %v3298 = vunpack.c.l.b16 %v2100
        %v3299 = vunpack.c.h.b16 %v2100
        %v3300 = vunpack.c.l.b16 %v2101
        %v3301 = vunpack.c.h.b16 %v2101
        %v3302 = vunpack.c.l.b16 %v2102
        %v3303 = vunpack.c.h.b16 %v2102
        %v3304 = vpack.c.b16 %v3242, %v3240
        %v3305 = vpack.c.b16 %v3243, %v3241
        %v3306 = vpack.c.b16 %v3246, %v3244
        %v3307 = vpack.c.b16 %v3247, %v3245
        %v3308 = vpack.c.b16 %v3250, %v3248
        %v3309 = vpack.c.b16 %v3251, %v3249
        %v3310 = vpack.c.b16 %v3254, %v3252
        %v3311 = vpack.c.b16 %v3255, %v3253
        %v3312 = vpack.c.b16 %v3258, %v3256
        %v3313 = vpack.c.b16 %v3259, %v3257
        %v3314 = vpack.c.b16 %v3262, %v3260
        %v3315 = vpack.c.b16 %v3263, %v3261
        %v3316 = vpack.c.b16 %v3266, %v3264
        %v3317 = vpack.c.b16 %v3267, %v3265
        %v3318 = vpack.c.b16 %v3270, %v3268
        %v3319 = vpack.c.b16 %v3271, %v3269
        %v3320 = vpack.c.b16 %v3274, %v3272
        %v3321 = vpack.c.b16 %v3275, %v3273
        %v3322 = vpack.c.b16 %v3278, %v3276
        %v3323 = vpack.c.b16 %v3279, %v3277
        %v3324 = vpack.c.b16 %v3282, %v3280
        %v3325 = vpack.c.b16 %v3283, %v3281
        %v3326 = vpack.c.b16 %v3286, %v3284
        %v3327 = vpack.c.b16 %v3287, %v3285
        %v3328 = vpack.c.b16 %v3290, %v3288
        %v3329 = vpack.c.b16 %v3291, %v3289
        %v3330 = vpack.c.b16 %v3294, %v3292
        %v3331 = vpack.c.b16 %v3295, %v3293
        %v3332 = vpack.c.b16 %v3298, %v3296
        %v3333 = vpack.c.b16 %v3299, %v3297
        %v3334 = vpack.c.b16 %v3302, %v3300
        %v3335 = vpack.c.b16 %v3303, %v3301
        %3368 = vmatprep.subr.bf16.mxu0 %v3305
        %3369 = vmatpush1.bf16.msra.mxu0 %v3304
        %3370 = vmatprep.subr.bf16.mxu0 %v3307
        %3371 = vmatpush1.bf16.msra.mxu0 %v3306
        %3372 = vmatprep.subr.bf16.mxu0 %v3309
        %3373 = vmatpush1.bf16.msra.mxu0 %v3308
        %3374 = vmatprep.subr.bf16.mxu0 %v3311
        %3375 = vmatpush1.bf16.msra.mxu0 %v3310
        %3376 = vmatprep.subr.bf16.mxu0 %v3313
        %3377 = vmatpush1.bf16.msra.mxu0 %v3312
        %3378 = vmatprep.subr.bf16.mxu0 %v3315
        %3379 = vmatpush1.bf16.msra.mxu0 %v3314
        %3380 = vmatprep.subr.bf16.mxu0 %v3317
        %3381 = vmatpush1.bf16.msra.mxu0 %v3316
        %3382 = vmatprep.subr.bf16.mxu0 %v3319
        %3383 = vmatpush1.bf16.msra.mxu0 %v3318
        %3384 = vmatprep.subr.bf16.mxu0 %v3321
        %3385 = vmatpush1.bf16.msra.mxu0 %v3320
        %3386 = vmatprep.subr.bf16.mxu0 %v3323
        %3387 = vmatpush1.bf16.msra.mxu0 %v3322
        %3388 = vmatprep.subr.bf16.mxu0 %v3325
        %3389 = vmatpush1.bf16.msra.mxu0 %v3324
        %3390 = vmatprep.subr.bf16.mxu0 %v3327
        %3391 = vmatpush1.bf16.msra.mxu0 %v3326
        %3392 = vmatprep.subr.bf16.mxu0 %v3329
        %3393 = vmatpush1.bf16.msra.mxu0 %v3328
        %3394 = vmatprep.subr.bf16.mxu0 %v3331
        %3395 = vmatpush1.bf16.msra.mxu0 %v3330
        %3396 = vmatprep.subr.bf16.mxu0 %v3333
        %3397 = vmatpush1.bf16.msra.mxu0 %v3332
        %3398 = vmatprep.subr.bf16.mxu0 %v3335
        %3399 = vmatpush1.bf16.msra.mxu0 %v3334
        %3400 = vmatprep.mubr.bf16.mxu0 %v3196
        %3401 = vmatmul.mubr.bf16.gmra.mrb[0].mxu0 %v3195
        %v3402 = vpop.f32.mrb[0].mxu0
        %v3403 = vadd.f32 %v3201, %v3402
        %v3404 = vpop.f32.mrb[0].mxu0
        %v3405 = vadd.f32 %v3205, %v3404
        %v3406 = vpop.f32.mrb[0].mxu0
        %v3407 = vpop.f32.mrb[0].mxu0
        %3408 = vdwg.mxu0
        %v3409 = vadd.f32 %v1933, %v3403
        %v3410 = vadd.f32 %v1934, %v3405
        %v3411 = vld [vmem:[%s1632] sm:$0x3]
        %v3412 = vld [vmem:[%s1641] sm:$0x3]
        %v3413 = vadd.f32 %v3409, %v3410
        %3414 = vadd.xlane.f32.xlu0 %v3413
        %v3415 = vpop.xlane.xlu0 %3414
        %v3416 = vrcp.pop 256.0
        %v3417 = vmul.f32 %v3415, %v3416
        %v3418 = vsub.f32 %v3409, %v3417
        %v3419 = vsub.f32 %v3410, %v3417
        %v3420 = vmul.f32 %v3418, %v3418
        %v3421 = vmul.f32 %v3419, %v3419
        %v3422 = vadd.f32 %v3420, %v3421
        %3423 = vadd.xlane.f32.xlu0 %v3422
        %v3424 = vpop.xlane.xlu0 %3423
        %v3425 = vmul.f32 %v3424, %v3416
        %v3426 = vadd.f32 %v3425, 1e-05
        %v3427 = vrsqrt.pop %v3426
        %v3428 = vmul.f32 %v3418, %v3427
        %v3429 = vmul.f32 %v3419, %v3427
        %v3431 = vlaneseq
        %v3432 = vshrl.u32 %v3431, 7
        %v3433 = vsub.s32 0, %v3432
        %v3434 = vrot.slane %v3411, %v3433
        %v3435 = vlaneseq
        %v3436 = vshrl.u32 %v3435, 7
        %v3437 = vsub.s32 1, %v3436
        %v3438 = vrot.slane %v3411, %v3437
        %v3441 = vmul.f32 %v3428, %v3434
        %v3442 = vmul.f32 %v3429, %v3438
        %v3444 = vlaneseq
        %v3445 = vshrl.u32 %v3444, 7
        %v3446 = vsub.s32 0, %v3445
        %v3447 = vrot.slane %v3412, %v3446
        %v3448 = vlaneseq
        %v3449 = vshrl.u32 %v3448, 7
        %v3450 = vsub.s32 1, %v3449
        %v3451 = vrot.slane %v3412, %v3450
        %v3454 = vadd.f32 %v3441, %v3447
        %v3455 = vadd.f32 %v3442, %v3451
        %v3456 = vpack.c.bf16 %v3454, %v3454
        %v3457 = vpack.c.bf16 %v3455, %v3455
        %v3458 = vld [vmem:[%s1560] sm:$0xff]
        %v3459 = vld [vmem:[%s1560 + $0x8] sm:$0xff]
        %v3460 = vld [vmem:[%s1560 + $0x10] sm:$0xff]
        %v3461 = vld [vmem:[%s1560 + $0x18] sm:$0xff]
        %v3462 = vld [vmem:[%s1560 + $0x20] sm:$0xff]
        %v3463 = vld [vmem:[%s1560 + $0x28] sm:$0xff]
        %v3464 = vld [vmem:[%s1560 + $0x30] sm:$0xff]
        %v3465 = vld [vmem:[%s1560 + $0x38] sm:$0xff]
        %v3466 = vld [vmem:[%s1560 + $0x40] sm:$0xff]
        %v3467 = vld [vmem:[%s1560 + $0x48] sm:$0xff]
        %v3468 = vld [vmem:[%s1560 + $0x50] sm:$0xff]
        %v3469 = vld [vmem:[%s1560 + $0x58] sm:$0xff]
        %v3470 = vld [vmem:[%s1560 + $0x60] sm:$0xff]
        %v3471 = vld [vmem:[%s1560 + $0x68] sm:$0xff]
        %v3472 = vld [vmem:[%s1560 + $0x70] sm:$0xff]
        %v3473 = vld [vmem:[%s1560 + $0x78] sm:$0xff]
        %v3474 = vld [vmem:[%s1560 + $0x80] sm:$0xff]
        %v3475 = vld [vmem:[%s1560 + $0x88] sm:$0xff]
        %v3476 = vld [vmem:[%s1560 + $0x90] sm:$0xff]
        %v3477 = vld [vmem:[%s1560 + $0x98] sm:$0xff]
        %v3478 = vld [vmem:[%s1560 + $0xa0] sm:$0xff]
        %v3479 = vld [vmem:[%s1560 + $0xa8] sm:$0xff]
        %v3480 = vld [vmem:[%s1560 + $0xb0] sm:$0xff]
        %v3481 = vld [vmem:[%s1560 + $0xb8] sm:$0xff]
        %v3482 = vld [vmem:[%s1560 + $0xc0] sm:$0xff]
        %v3483 = vld [vmem:[%s1560 + $0xc8] sm:$0xff]
        %v3484 = vld [vmem:[%s1560 + $0xd0] sm:$0xff]
        %v3485 = vld [vmem:[%s1560 + $0xd8] sm:$0xff]
        %v3486 = vld [vmem:[%s1560 + $0xe0] sm:$0xff]
        %v3487 = vld [vmem:[%s1560 + $0xe8] sm:$0xff]
        %v3488 = vld [vmem:[%s1560 + $0xf0] sm:$0xff]
        %v3489 = vld [vmem:[%s1560 + $0xf8] sm:$0xff]
        %v3490 = vld [vmem:[%s1569] sm:$0x3]
        %v3491 = vld [vmem:[%s1578] sm:$0xff]
        %v3492 = vld [vmem:[%s1578 + $0x8] sm:$0xff]
        %v3493 = vld [vmem:[%s1578 + $0x10] sm:$0xff]
        %v3494 = vld [vmem:[%s1578 + $0x18] sm:$0xff]
        %v3495 = vld [vmem:[%s1578 + $0x20] sm:$0xff]
        %v3496 = vld [vmem:[%s1578 + $0x28] sm:$0xff]
        %v3497 = vld [vmem:[%s1578 + $0x30] sm:$0xff]
        %v3498 = vld [vmem:[%s1578 + $0x38] sm:$0xff]
        %v3499 = vld [vmem:[%s1578 + $0x40] sm:$0xff]
        %v3500 = vld [vmem:[%s1578 + $0x48] sm:$0xff]
        %v3501 = vld [vmem:[%s1578 + $0x50] sm:$0xff]
        %v3502 = vld [vmem:[%s1578 + $0x58] sm:$0xff]
        %v3503 = vld [vmem:[%s1578 + $0x60] sm:$0xff]
        %v3504 = vld [vmem:[%s1578 + $0x68] sm:$0xff]
        %v3505 = vld [vmem:[%s1578 + $0x70] sm:$0xff]
        %v3506 = vld [vmem:[%s1578 + $0x78] sm:$0xff]
        %v3507 = vld [vmem:[%s1578 + $0x80] sm:$0xff]
        %v3508 = vld [vmem:[%s1578 + $0x88] sm:$0xff]
        %v3509 = vld [vmem:[%s1578 + $0x90] sm:$0xff]
        %v3510 = vld [vmem:[%s1578 + $0x98] sm:$0xff]
        %v3511 = vld [vmem:[%s1578 + $0xa0] sm:$0xff]
        %v3512 = vld [vmem:[%s1578 + $0xa8] sm:$0xff]
        %v3513 = vld [vmem:[%s1578 + $0xb0] sm:$0xff]
        %v3514 = vld [vmem:[%s1578 + $0xb8] sm:$0xff]
        %v3515 = vld [vmem:[%s1578 + $0xc0] sm:$0xff]
        %v3516 = vld [vmem:[%s1578 + $0xc8] sm:$0xff]
        %v3517 = vld [vmem:[%s1578 + $0xd0] sm:$0xff]
        %v3518 = vld [vmem:[%s1578 + $0xd8] sm:$0xff]
        %v3519 = vld [vmem:[%s1578 + $0xe0] sm:$0xff]
        %v3520 = vld [vmem:[%s1578 + $0xe8] sm:$0xff]
        %v3521 = vld [vmem:[%s1578 + $0xf0] sm:$0xff]
        %v3522 = vld [vmem:[%s1578 + $0xf8] sm:$0xff]
        %v3523 = vld [vmem:[%s1587] sm:$0x3]
        %v3524 = vld [vmem:[%s1596] sm:$0xff]
        %v3525 = vld [vmem:[%s1596 + $0x8] sm:$0xff]
        %v3526 = vld [vmem:[%s1596 + $0x10] sm:$0xff]
        %v3527 = vld [vmem:[%s1596 + $0x18] sm:$0xff]
        %v3528 = vld [vmem:[%s1596 + $0x20] sm:$0xff]
        %v3529 = vld [vmem:[%s1596 + $0x28] sm:$0xff]
        %v3530 = vld [vmem:[%s1596 + $0x30] sm:$0xff]
        %v3531 = vld [vmem:[%s1596 + $0x38] sm:$0xff]
        %v3532 = vld [vmem:[%s1596 + $0x40] sm:$0xff]
        %v3533 = vld [vmem:[%s1596 + $0x48] sm:$0xff]
        %v3534 = vld [vmem:[%s1596 + $0x50] sm:$0xff]
        %v3535 = vld [vmem:[%s1596 + $0x58] sm:$0xff]
        %v3536 = vld [vmem:[%s1596 + $0x60] sm:$0xff]
        %v3537 = vld [vmem:[%s1596 + $0x68] sm:$0xff]
        %v3538 = vld [vmem:[%s1596 + $0x70] sm:$0xff]
        %v3539 = vld [vmem:[%s1596 + $0x78] sm:$0xff]
        %v3540 = vld [vmem:[%s1596 + $0x80] sm:$0xff]
        %v3541 = vld [vmem:[%s1596 + $0x88] sm:$0xff]
        %v3542 = vld [vmem:[%s1596 + $0x90] sm:$0xff]
        %v3543 = vld [vmem:[%s1596 + $0x98] sm:$0xff]
        %v3544 = vld [vmem:[%s1596 + $0xa0] sm:$0xff]
        %v3545 = vld [vmem:[%s1596 + $0xa8] sm:$0xff]
        %v3546 = vld [vmem:[%s1596 + $0xb0] sm:$0xff]
        %v3547 = vld [vmem:[%s1596 + $0xb8] sm:$0xff]
        %v3548 = vld [vmem:[%s1596 + $0xc0] sm:$0xff]
        %v3549 = vld [vmem:[%s1596 + $0xc8] sm:$0xff]
        %v3550 = vld [vmem:[%s1596 + $0xd0] sm:$0xff]
        %v3551 = vld [vmem:[%s1596 + $0xd8] sm:$0xff]
        %v3552 = vld [vmem:[%s1596 + $0xe0] sm:$0xff]
        %v3553 = vld [vmem:[%s1596 + $0xe8] sm:$0xff]
        %v3554 = vld [vmem:[%s1596 + $0xf0] sm:$0xff]
        %v3555 = vld [vmem:[%s1596 + $0xf8] sm:$0xff]
        %v3556 = vld [vmem:[%s1605] sm:$0x3]
        %v3557 = vld [vmem:[%s1614] sm:$0xff]
        %v3558 = vld [vmem:[%s1614 + $0x8] sm:$0xff]
        %v3559 = vld [vmem:[%s1614 + $0x10] sm:$0xff]
        %v3560 = vld [vmem:[%s1614 + $0x18] sm:$0xff]
        %v3561 = vld [vmem:[%s1614 + $0x20] sm:$0xff]
        %v3562 = vld [vmem:[%s1614 + $0x28] sm:$0xff]
        %v3563 = vld [vmem:[%s1614 + $0x30] sm:$0xff]
        %v3564 = vld [vmem:[%s1614 + $0x38] sm:$0xff]
        %v3565 = vld [vmem:[%s1614 + $0x40] sm:$0xff]
        %v3566 = vld [vmem:[%s1614 + $0x48] sm:$0xff]
        %v3567 = vld [vmem:[%s1614 + $0x50] sm:$0xff]
        %v3568 = vld [vmem:[%s1614 + $0x58] sm:$0xff]
        %v3569 = vld [vmem:[%s1614 + $0x60] sm:$0xff]
        %v3570 = vld [vmem:[%s1614 + $0x68] sm:$0xff]
        %v3571 = vld [vmem:[%s1614 + $0x70] sm:$0xff]
        %v3572 = vld [vmem:[%s1614 + $0x78] sm:$0xff]
        %v3573 = vld [vmem:[%s1614 + $0x80] sm:$0xff]
        %v3574 = vld [vmem:[%s1614 + $0x88] sm:$0xff]
        %v3575 = vld [vmem:[%s1614 + $0x90] sm:$0xff]
        %v3576 = vld [vmem:[%s1614 + $0x98] sm:$0xff]
        %v3577 = vld [vmem:[%s1614 + $0xa0] sm:$0xff]
        %v3578 = vld [vmem:[%s1614 + $0xa8] sm:$0xff]
        %v3579 = vld [vmem:[%s1614 + $0xb0] sm:$0xff]
        %v3580 = vld [vmem:[%s1614 + $0xb8] sm:$0xff]
        %v3581 = vld [vmem:[%s1614 + $0xc0] sm:$0xff]
        %v3582 = vld [vmem:[%s1614 + $0xc8] sm:$0xff]
        %v3583 = vld [vmem:[%s1614 + $0xd0] sm:$0xff]
        %v3584 = vld [vmem:[%s1614 + $0xd8] sm:$0xff]
        %v3585 = vld [vmem:[%s1614 + $0xe0] sm:$0xff]
        %v3586 = vld [vmem:[%s1614 + $0xe8] sm:$0xff]
        %v3587 = vld [vmem:[%s1614 + $0xf0] sm:$0xff]
        %v3588 = vld [vmem:[%s1614 + $0xf8] sm:$0xff]
        %v3589 = vld [vmem:[%s1623] sm:$0x3]
        %v3591 = vlaneseq
        %v3592 = vshrl.u32 %v3591, 7
        %v3593 = vsub.s32 0, %v3592
        %v3594 = vrot.slane %v3490, %v3593
        %v3595 = vlaneseq
        %v3596 = vshrl.u32 %v3595, 7
        %v3597 = vsub.s32 1, %v3596
        %v3598 = vrot.slane %v3490, %v3597
        %v3633 = vunpack.c.l.b16 %v3458
        %v3634 = vunpack.c.h.b16 %v3458
        %v3635 = vunpack.c.l.b16 %v3459
        %v3636 = vunpack.c.h.b16 %v3459
        %v3637 = vunpack.c.l.b16 %v3460
        %v3638 = vunpack.c.h.b16 %v3460
        %v3639 = vunpack.c.l.b16 %v3461
        %v3640 = vunpack.c.h.b16 %v3461
        %v3641 = vunpack.c.l.b16 %v3462
        %v3642 = vunpack.c.h.b16 %v3462
        %v3643 = vunpack.c.l.b16 %v3463
        %v3644 = vunpack.c.h.b16 %v3463
        %v3645 = vunpack.c.l.b16 %v3464
        %v3646 = vunpack.c.h.b16 %v3464
        %v3647 = vunpack.c.l.b16 %v3465
        %v3648 = vunpack.c.h.b16 %v3465
        %v3649 = vunpack.c.l.b16 %v3466
        %v3650 = vunpack.c.h.b16 %v3466
        %v3651 = vunpack.c.l.b16 %v3467
        %v3652 = vunpack.c.h.b16 %v3467
        %v3653 = vunpack.c.l.b16 %v3468
        %v3654 = vunpack.c.h.b16 %v3468
        %v3655 = vunpack.c.l.b16 %v3469
        %v3656 = vunpack.c.h.b16 %v3469
        %v3657 = vunpack.c.l.b16 %v3470
        %v3658 = vunpack.c.h.b16 %v3470
        %v3659 = vunpack.c.l.b16 %v3471
        %v3660 = vunpack.c.h.b16 %v3471
        %v3661 = vunpack.c.l.b16 %v3472
        %v3662 = vunpack.c.h.b16 %v3472
        %v3663 = vunpack.c.l.b16 %v3473
        %v3664 = vunpack.c.h.b16 %v3473
        %v3665 = vunpack.c.l.b16 %v3474
        %v3666 = vunpack.c.h.b16 %v3474
        %v3667 = vunpack.c.l.b16 %v3475
        %v3668 = vunpack.c.h.b16 %v3475
        %v3669 = vunpack.c.l.b16 %v3476
        %v3670 = vunpack.c.h.b16 %v3476
        %v3671 = vunpack.c.l.b16 %v3477
        %v3672 = vunpack.c.h.b16 %v3477
        %v3673 = vunpack.c.l.b16 %v3478
        %v3674 = vunpack.c.h.b16 %v3478
        %v3675 = vunpack.c.l.b16 %v3479
        %v3676 = vunpack.c.h.b16 %v3479
        %v3677 = vunpack.c.l.b16 %v3480
        %v3678 = vunpack.c.h.b16 %v3480
        %v3679 = vunpack.c.l.b16 %v3481
        %v3680 = vunpack.c.h.b16 %v3481
        %v3681 = vunpack.c.l.b16 %v3482
        %v3682 = vunpack.c.h.b16 %v3482
        %v3683 = vunpack.c.l.b16 %v3483
        %v3684 = vunpack.c.h.b16 %v3483
        %v3685 = vunpack.c.l.b16 %v3484
        %v3686 = vunpack.c.h.b16 %v3484
        %v3687 = vunpack.c.l.b16 %v3485
        %v3688 = vunpack.c.h.b16 %v3485
        %v3689 = vunpack.c.l.b16 %v3486
        %v3690 = vunpack.c.h.b16 %v3486
        %v3691 = vunpack.c.l.b16 %v3487
        %v3692 = vunpack.c.h.b16 %v3487
        %v3693 = vunpack.c.l.b16 %v3488
        %v3694 = vunpack.c.h.b16 %v3488
        %v3695 = vunpack.c.l.b16 %v3489
        %v3696 = vunpack.c.h.b16 %v3489
        %v3697 = vpack.c.b16 %v3635, %v3633
        %v3698 = vpack.c.b16 %v3636, %v3634
        %v3699 = vpack.c.b16 %v3639, %v3637
        %v3700 = vpack.c.b16 %v3640, %v3638
        %v3701 = vpack.c.b16 %v3643, %v3641
        %v3702 = vpack.c.b16 %v3644, %v3642
        %v3703 = vpack.c.b16 %v3647, %v3645
        %v3704 = vpack.c.b16 %v3648, %v3646
        %v3705 = vpack.c.b16 %v3651, %v3649
        %v3706 = vpack.c.b16 %v3652, %v3650
        %v3707 = vpack.c.b16 %v3655, %v3653
        %v3708 = vpack.c.b16 %v3656, %v3654
        %v3709 = vpack.c.b16 %v3659, %v3657
        %v3710 = vpack.c.b16 %v3660, %v3658
        %v3711 = vpack.c.b16 %v3663, %v3661
        %v3712 = vpack.c.b16 %v3664, %v3662
        %v3713 = vpack.c.b16 %v3667, %v3665
        %v3714 = vpack.c.b16 %v3668, %v3666
        %v3715 = vpack.c.b16 %v3671, %v3669
        %v3716 = vpack.c.b16 %v3672, %v3670
        %v3717 = vpack.c.b16 %v3675, %v3673
        %v3718 = vpack.c.b16 %v3676, %v3674
        %v3719 = vpack.c.b16 %v3679, %v3677
        %v3720 = vpack.c.b16 %v3680, %v3678
        %v3721 = vpack.c.b16 %v3683, %v3681
        %v3722 = vpack.c.b16 %v3684, %v3682
        %v3723 = vpack.c.b16 %v3687, %v3685
        %v3724 = vpack.c.b16 %v3688, %v3686
        %v3725 = vpack.c.b16 %v3691, %v3689
        %v3726 = vpack.c.b16 %v3692, %v3690
        %v3727 = vpack.c.b16 %v3695, %v3693
        %v3728 = vpack.c.b16 %v3696, %v3694
        %3761 = vmatprep.subr.bf16.mxu0 %v3698
        %3762 = vmatpush1.bf16.msra.mxu0 %v3697
        %3763 = vmatprep.subr.bf16.mxu0 %v3700
        %3764 = vmatpush1.bf16.msra.mxu0 %v3699
        %3765 = vmatprep.subr.bf16.mxu0 %v3702
        %3766 = vmatpush1.bf16.msra.mxu0 %v3701
        %3767 = vmatprep.subr.bf16.mxu0 %v3704
        %3768 = vmatpush1.bf16.msra.mxu0 %v3703
        %3769 = vmatprep.subr.bf16.mxu0 %v3706
        %3770 = vmatpush1.bf16.msra.mxu0 %v3705
        %3771 = vmatprep.subr.bf16.mxu0 %v3708
        %3772 = vmatpush1.bf16.msra.mxu0 %v3707
        %3773 = vmatprep.subr.bf16.mxu0 %v3710
        %3774 = vmatpush1.bf16.msra.mxu0 %v3709
        %3775 = vmatprep.subr.bf16.mxu0 %v3712
        %3776 = vmatpush1.bf16.msra.mxu0 %v3711
        %3777 = vmatprep.subr.bf16.mxu0 %v3714
        %3778 = vmatpush1.bf16.msra.mxu0 %v3713
        %3779 = vmatprep.subr.bf16.mxu0 %v3716
        %3780 = vmatpush1.bf16.msra.mxu0 %v3715
        %3781 = vmatprep.subr.bf16.mxu0 %v3718
        %3782 = vmatpush1.bf16.msra.mxu0 %v3717
        %3783 = vmatprep.subr.bf16.mxu0 %v3720
        %3784 = vmatpush1.bf16.msra.mxu0 %v3719
        %3785 = vmatprep.subr.bf16.mxu0 %v3722
        %3786 = vmatpush1.bf16.msra.mxu0 %v3721
        %3787 = vmatprep.subr.bf16.mxu0 %v3724
        %3788 = vmatpush1.bf16.msra.mxu0 %v3723
        %3789 = vmatprep.subr.bf16.mxu0 %v3726
        %3790 = vmatpush1.bf16.msra.mxu0 %v3725
        %3791 = vmatprep.subr.bf16.mxu0 %v3728
        %3792 = vmatpush1.bf16.msra.mxu0 %v3727
        %3793 = vmatprep.mubr.bf16.mxu0 %v3457
        %3794 = vmatmul.mubr.bf16.gmra.mrb[0].mxu0 %v3456
        %v3795 = vpop.f32.mrb[0].mxu0
        %v3796 = vadd.f32 %v3594, %v3795
        %v3797 = vpop.f32.mrb[0].mxu0
        %v3798 = vadd.f32 %v3598, %v3797
        %v3799 = vpop.f32.mrb[0].mxu0
        %v3800 = vpop.f32.mrb[0].mxu0
        %3801 = vdwg.mxu0
        %v3803 = vlaneseq
        %v3804 = vshrl.u32 %v3803, 7
        %v3805 = vsub.s32 0, %v3804
        %v3806 = vrot.slane %v3523, %v3805
        %v3807 = vlaneseq
        %v3808 = vshrl.u32 %v3807, 7
        %v3809 = vsub.s32 1, %v3808
        %v3810 = vrot.slane %v3523, %v3809
        %v3845 = vunpack.c.l.b16 %v1938
        %v3846 = vunpack.c.h.b16 %v1938
        %v3847 = vunpack.c.l.b16 %v1939
        %v3848 = vunpack.c.h.b16 %v1939
        %v3849 = vunpack.c.l.b16 %v1940
        %v3850 = vunpack.c.h.b16 %v1940
        %v3851 = vunpack.c.l.b16 %v1941
        %v3852 = vunpack.c.h.b16 %v1941
        %v3853 = vunpack.c.l.b16 %v1942
        %v3854 = vunpack.c.h.b16 %v1942
        %v3855 = vunpack.c.l.b16 %v1943
        %v3856 = vunpack.c.h.b16 %v1943
        %v3857 = vunpack.c.l.b16 %v1944
        %v3858 = vunpack.c.h.b16 %v1944
        %v3859 = vunpack.c.l.b16 %v1945
        %v3860 = vunpack.c.h.b16 %v1945
        %v3861 = vunpack.c.l.b16 %v1946
        %v3862 = vunpack.c.h.b16 %v1946
        %v3863 = vunpack.c.l.b16 %v1947
        %v3864 = vunpack.c.h.b16 %v1947
        %v3865 = vunpack.c.l.b16 %v1948
        %v3866 = vunpack.c.h.b16 %v1948
        %v3867 = vunpack.c.l.b16 %v1949
        %v3868 = vunpack.c.h.b16 %v1949
        %v3869 = vunpack.c.l.b16 %v1950
        %v3870 = vunpack.c.h.b16 %v1950
        %v3871 = vunpack.c.l.b16 %v1951
        %v3872 = vunpack.c.h.b16 %v1951
        %v3873 = vunpack.c.l.b16 %v1952
        %v3874 = vunpack.c.h.b16 %v1952
        %v3875 = vunpack.c.l.b16 %v1953
        %v3876 = vunpack.c.h.b16 %v1953
        %v3877 = vunpack.c.l.b16 %v1954
        %v3878 = vunpack.c.h.b16 %v1954
        %v3879 = vunpack.c.l.b16 %v1955
        %v3880 = vunpack.c.h.b16 %v1955
        %v3881 = vunpack.c.l.b16 %v1956
        %v3882 = vunpack.c.h.b16 %v1956
        %v3883 = vunpack.c.l.b16 %v1957
        %v3884 = vunpack.c.h.b16 %v1957
        %v3885 = vunpack.c.l.b16 %v1958
        %v3886 = vunpack.c.h.b16 %v1958
        %v3887 = vunpack.c.l.b16 %v1959
        %v3888 = vunpack.c.h.b16 %v1959
        %v3889 = vunpack.c.l.b16 %v1960
        %v3890 = vunpack.c.h.b16 %v1960
        %v3891 = vunpack.c.l.b16 %v1961
        %v3892 = vunpack.c.h.b16 %v1961
        %v3893 = vunpack.c.l.b16 %v1962
        %v3894 = vunpack.c.h.b16 %v1962
        %v3895 = vunpack.c.l.b16 %v1963
        %v3896 = vunpack.c.h.b16 %v1963
        %v3897 = vunpack.c.l.b16 %v1964
        %v3898 = vunpack.c.h.b16 %v1964
        %v3899 = vunpack.c.l.b16 %v1965
        %v3900 = vunpack.c.h.b16 %v1965
        %v3901 = vunpack.c.l.b16 %v1966
        %v3902 = vunpack.c.h.b16 %v1966
        %v3903 = vunpack.c.l.b16 %v1967
        %v3904 = vunpack.c.h.b16 %v1967
        %v3905 = vunpack.c.l.b16 %v1968
        %v3906 = vunpack.c.h.b16 %v1968
        %v3907 = vunpack.c.l.b16 %v1969
        %v3908 = vunpack.c.h.b16 %v1969
        %v3909 = vpack.c.b16 %v3847, %v3845
        %v3910 = vpack.c.b16 %v3848, %v3846
        %v3911 = vpack.c.b16 %v3851, %v3849
        %v3912 = vpack.c.b16 %v3852, %v3850
        %v3913 = vpack.c.b16 %v3855, %v3853
        %v3914 = vpack.c.b16 %v3856, %v3854
        %v3915 = vpack.c.b16 %v3859, %v3857
        %v3916 = vpack.c.b16 %v3860, %v3858
        %v3917 = vpack.c.b16 %v3863, %v3861
        %v3918 = vpack.c.b16 %v3864, %v3862
        %v3919 = vpack.c.b16 %v3867, %v3865
        %v3920 = vpack.c.b16 %v3868, %v3866
        %v3921 = vpack.c.b16 %v3871, %v3869
        %v3922 = vpack.c.b16 %v3872, %v3870
        %v3923 = vpack.c.b16 %v3875, %v3873
        %v3924 = vpack.c.b16 %v3876, %v3874
        %v3925 = vpack.c.b16 %v3879, %v3877
        %v3926 = vpack.c.b16 %v3880, %v3878
        %v3927 = vpack.c.b16 %v3883, %v3881
        %v3928 = vpack.c.b16 %v3884, %v3882
        %v3929 = vpack.c.b16 %v3887, %v3885
        %v3930 = vpack.c.b16 %v3888, %v3886
        %v3931 = vpack.c.b16 %v3891, %v3889
        %v3932 = vpack.c.b16 %v3892, %v3890
        %v3933 = vpack.c.b16 %v3895, %v3893
        %v3934 = vpack.c.b16 %v3896, %v3894
        %v3935 = vpack.c.b16 %v3899, %v3897
        %v3936 = vpack.c.b16 %v3900, %v3898
        %v3937 = vpack.c.b16 %v3903, %v3901
        %v3938 = vpack.c.b16 %v3904, %v3902
        %v3939 = vpack.c.b16 %v3907, %v3905
        %v3940 = vpack.c.b16 %v3908, %v3906
        %v4005 = vunpack.c.l.b16 %v3491
        %v4006 = vunpack.c.h.b16 %v3491
        %v4007 = vunpack.c.l.b16 %v3492
        %v4008 = vunpack.c.h.b16 %v3492
        %v4009 = vunpack.c.l.b16 %v3493
        %v4010 = vunpack.c.h.b16 %v3493
        %v4011 = vunpack.c.l.b16 %v3494
        %v4012 = vunpack.c.h.b16 %v3494
        %v4013 = vunpack.c.l.b16 %v3495
        %v4014 = vunpack.c.h.b16 %v3495
        %v4015 = vunpack.c.l.b16 %v3496
        %v4016 = vunpack.c.h.b16 %v3496
        %v4017 = vunpack.c.l.b16 %v3497
        %v4018 = vunpack.c.h.b16 %v3497
        %v4019 = vunpack.c.l.b16 %v3498
        %v4020 = vunpack.c.h.b16 %v3498
        %v4021 = vunpack.c.l.b16 %v3499
        %v4022 = vunpack.c.h.b16 %v3499
        %v4023 = vunpack.c.l.b16 %v3500
        %v4024 = vunpack.c.h.b16 %v3500
        %v4025 = vunpack.c.l.b16 %v3501
        %v4026 = vunpack.c.h.b16 %v3501
        %v4027 = vunpack.c.l.b16 %v3502
        %v4028 = vunpack.c.h.b16 %v3502
        %v4029 = vunpack.c.l.b16 %v3503
        %v4030 = vunpack.c.h.b16 %v3503
        %v4031 = vunpack.c.l.b16 %v3504
        %v4032 = vunpack.c.h.b16 %v3504
        %v4033 = vunpack.c.l.b16 %v3505
        %v4034 = vunpack.c.h.b16 %v3505
        %v4035 = vunpack.c.l.b16 %v3506
        %v4036 = vunpack.c.h.b16 %v3506
        %v4037 = vunpack.c.l.b16 %v3507
        %v4038 = vunpack.c.h.b16 %v3507
        %v4039 = vunpack.c.l.b16 %v3508
        %v4040 = vunpack.c.h.b16 %v3508
        %v4041 = vunpack.c.l.b16 %v3509
        %v4042 = vunpack.c.h.b16 %v3509
        %v4043 = vunpack.c.l.b16 %v3510
        %v4044 = vunpack.c.h.b16 %v3510
        %v4045 = vunpack.c.l.b16 %v3511
        %v4046 = vunpack.c.h.b16 %v3511
        %v4047 = vunpack.c.l.b16 %v3512
        %v4048 = vunpack.c.h.b16 %v3512
        %v4049 = vunpack.c.l.b16 %v3513
        %v4050 = vunpack.c.h.b16 %v3513
        %v4051 = vunpack.c.l.b16 %v3514
        %v4052 = vunpack.c.h.b16 %v3514
        %v4053 = vunpack.c.l.b16 %v3515
        %v4054 = vunpack.c.h.b16 %v3515
        %v4055 = vunpack.c.l.b16 %v3516
        %v4056 = vunpack.c.h.b16 %v3516
        %v4057 = vunpack.c.l.b16 %v3517
        %v4058 = vunpack.c.h.b16 %v3517
        %v4059 = vunpack.c.l.b16 %v3518
        %v4060 = vunpack.c.h.b16 %v3518
        %v4061 = vunpack.c.l.b16 %v3519
        %v4062 = vunpack.c.h.b16 %v3519
        %v4063 = vunpack.c.l.b16 %v3520
        %v4064 = vunpack.c.h.b16 %v3520
        %v4065 = vunpack.c.l.b16 %v3521
        %v4066 = vunpack.c.h.b16 %v3521
        %v4067 = vunpack.c.l.b16 %v3522
        %v4068 = vunpack.c.h.b16 %v3522
        %v4069 = vpack.c.b16 %v4007, %v4005
        %v4070 = vpack.c.b16 %v4008, %v4006
        %v4071 = vpack.c.b16 %v4011, %v4009
        %v4072 = vpack.c.b16 %v4012, %v4010
        %v4073 = vpack.c.b16 %v4015, %v4013
        %v4074 = vpack.c.b16 %v4016, %v4014
        %v4075 = vpack.c.b16 %v4019, %v4017
        %v4076 = vpack.c.b16 %v4020, %v4018
        %v4077 = vpack.c.b16 %v4023, %v4021
        %v4078 = vpack.c.b16 %v4024, %v4022
        %v4079 = vpack.c.b16 %v4027, %v4025
        %v4080 = vpack.c.b16 %v4028, %v4026
        %v4081 = vpack.c.b16 %v4031, %v4029
        %v4082 = vpack.c.b16 %v4032, %v4030
        %v4083 = vpack.c.b16 %v4035, %v4033
        %v4084 = vpack.c.b16 %v4036, %v4034
        %v4085 = vpack.c.b16 %v4039, %v4037
        %v4086 = vpack.c.b16 %v4040, %v4038
        %v4087 = vpack.c.b16 %v4043, %v4041
        %v4088 = vpack.c.b16 %v4044, %v4042
        %v4089 = vpack.c.b16 %v4047, %v4045
        %v4090 = vpack.c.b16 %v4048, %v4046
        %v4091 = vpack.c.b16 %v4051, %v4049
        %v4092 = vpack.c.b16 %v4052, %v4050
        %v4093 = vpack.c.b16 %v4055, %v4053
        %v4094 = vpack.c.b16 %v4056, %v4054
        %v4095 = vpack.c.b16 %v4059, %v4057
        %v4096 = vpack.c.b16 %v4060, %v4058
        %v4097 = vpack.c.b16 %v4063, %v4061
        %v4098 = vpack.c.b16 %v4064, %v4062
        %v4099 = vpack.c.b16 %v4067, %v4065
        %v4100 = vpack.c.b16 %v4068, %v4066
        %4133 = vmatprep.subr.bf16.mxu0 %v4070
        %4134 = vmatpush1.bf16.msra.mxu0 %v4069
        %4135 = vmatprep.subr.bf16.mxu0 %v4072
        %4136 = vmatpush1.bf16.msra.mxu0 %v4071
        %4137 = vmatprep.subr.bf16.mxu0 %v4074
        %4138 = vmatpush1.bf16.msra.mxu0 %v4073
        %4139 = vmatprep.subr.bf16.mxu0 %v4076
        %4140 = vmatpush1.bf16.msra.mxu0 %v4075
        %4141 = vmatprep.subr.bf16.mxu0 %v4078
        %4142 = vmatpush1.bf16.msra.mxu0 %v4077
        %4143 = vmatprep.subr.bf16.mxu0 %v4080
        %4144 = vmatpush1.bf16.msra.mxu0 %v4079
        %4145 = vmatprep.subr.bf16.mxu0 %v4082
        %4146 = vmatpush1.bf16.msra.mxu0 %v4081
        %4147 = vmatprep.subr.bf16.mxu0 %v4084
        %4148 = vmatpush1.bf16.msra.mxu0 %v4083
        %4149 = vmatprep.subr.bf16.mxu0 %v4086
        %4150 = vmatpush1.bf16.msra.mxu0 %v4085
        %4151 = vmatprep.subr.bf16.mxu0 %v4088
        %4152 = vmatpush1.bf16.msra.mxu0 %v4087
        %4153 = vmatprep.subr.bf16.mxu0 %v4090
        %4154 = vmatpush1.bf16.msra.mxu0 %v4089
        %4155 = vmatprep.subr.bf16.mxu0 %v4092
        %4156 = vmatpush1.bf16.msra.mxu0 %v4091
        %4157 = vmatprep.subr.bf16.mxu0 %v4094
        %4158 = vmatpush1.bf16.msra.mxu0 %v4093
        %4159 = vmatprep.subr.bf16.mxu0 %v4096
        %4160 = vmatpush1.bf16.msra.mxu0 %v4095
        %4161 = vmatprep.subr.bf16.mxu0 %v4098
        %4162 = vmatpush1.bf16.msra.mxu0 %v4097
        %4163 = vmatprep.subr.bf16.mxu0 %v4100
        %4164 = vmatpush1.bf16.msra.mxu0 %v4099
        %4165 = vmatprep.mubr.bf16.mxu0 %v3910
        %4166 = vmatmul.mubr.bf16.gmra.mrb[0].mxu0 %v3909
        %v4167 = vpop.f32.mrb[0].mxu0
        %v4168 = vadd.f32 %v3806, %v4167
        %v4169 = vpop.f32.mrb[0].mxu0
        %v4170 = vadd.f32 %v3810, %v4169
        %v4171 = vpop.f32.mrb[0].mxu0
        %v4172 = vadd.f32 %v3806, %v4171
        %v4173 = vpop.f32.mrb[0].mxu0
        %v4174 = vadd.f32 %v3810, %v4173
        %4175 = vmatprep.mubr.bf16.mxu0 %v3912
        %4176 = vmatmul.mubr.bf16.gmra.mrb[0].mxu0 %v3911
        %v4177 = vpop.f32.mrb[0].mxu0
        %v4178 = vadd.f32 %v3806, %v4177
        %v4179 = vpop.f32.mrb[0].mxu0
        %v4180 = vadd.f32 %v3810, %v4179
        %v4181 = vpop.f32.mrb[0].mxu0
        %v4182 = vadd.f32 %v3806, %v4181
        %v4183 = vpop.f32.mrb[0].mxu0
        %v4184 = vadd.f32 %v3810, %v4183
        %4185 = vmatprep.mubr.bf16.mxu0 %v3914
        %4186 = vmatmul.mubr.bf16.gmra.mrb[0].mxu0 %v3913
        %v4187 = vpop.f32.mrb[0].mxu0
        %v4188 = vadd.f32 %v3806, %v4187
        %v4189 = vpop.f32.mrb[0].mxu0
        %v4190 = vadd.f32 %v3810, %v4189
        %v4191 = vpop.f32.mrb[0].mxu0
        %v4192 = vadd.f32 %v3806, %v4191
        %v4193 = vpop.f32.mrb[0].mxu0
        %v4194 = vadd.f32 %v3810, %v4193
        %4195 = vmatprep.mubr.bf16.mxu0 %v3916
        %4196 = vmatmul.mubr.bf16.gmra.mrb[0].mxu0 %v3915
        %v4197 = vpop.f32.mrb[0].mxu0
        %v4198 = vadd.f32 %v3806, %v4197
        %v4199 = vpop.f32.mrb[0].mxu0
        %v4200 = vadd.f32 %v3810, %v4199
        %v4201 = vpop.f32.mrb[0].mxu0
        %v4202 = vadd.f32 %v3806, %v4201
        %v4203 = vpop.f32.mrb[0].mxu0
        %v4204 = vadd.f32 %v3810, %v4203
        %4205 = vmatprep.mubr.bf16.mxu0 %v3918
        %4206 = vmatmul.mubr.bf16.gmra.mrb[0].mxu0 %v3917
        %v4207 = vpop.f32.mrb[0].mxu0
        %v4208 = vadd.f32 %v3806, %v4207
        %v4209 = vpop.f32.mrb[0].mxu0
        %v4210 = vadd.f32 %v3810, %v4209
        %v4211 = vpop.f32.mrb[0].mxu0
        %v4212 = vadd.f32 %v3806, %v4211
        %v4213 = vpop.f32.mrb[0].mxu0
        %v4214 = vadd.f32 %v3810, %v4213
        %4215 = vmatprep.mubr.bf16.mxu0 %v3920
        %4216 = vmatmul.mubr.bf16.gmra.mrb[0].mxu0 %v3919
        %v4217 = vpop.f32.mrb[0].mxu0
        %v4218 = vadd.f32 %v3806, %v4217
        %v4219 = vpop.f32.mrb[0].mxu0
        %v4220 = vadd.f32 %v3810, %v4219
        %v4221 = vpop.f32.mrb[0].mxu0
        %v4222 = vadd.f32 %v3806, %v4221
        %v4223 = vpop.f32.mrb[0].mxu0
        %v4224 = vadd.f32 %v3810, %v4223
        %4225 = vmatprep.mubr.bf16.mxu0 %v3922
        %4226 = vmatmul.mubr.bf16.gmra.mrb[0].mxu0 %v3921
        %v4227 = vpop.f32.mrb[0].mxu0
        %v4228 = vadd.f32 %v3806, %v4227
        %v4229 = vpop.f32.mrb[0].mxu0
        %v4230 = vadd.f32 %v3810, %v4229
        %v4231 = vpop.f32.mrb[0].mxu0
        %v4232 = vadd.f32 %v3806, %v4231
        %v4233 = vpop.f32.mrb[0].mxu0
        %v4234 = vadd.f32 %v3810, %v4233
        %4235 = vmatprep.mubr.bf16.mxu0 %v3924
        %4236 = vmatmul.mubr.bf16.gmra.mrb[0].mxu0 %v3923
        %v4237 = vpop.f32.mrb[0].mxu0
        %v4238 = vadd.f32 %v3806, %v4237
        %v4239 = vpop.f32.mrb[0].mxu0
        %v4240 = vadd.f32 %v3810, %v4239
        %v4241 = vpop.f32.mrb[0].mxu0
        %v4242 = vadd.f32 %v3806, %v4241
        %v4243 = vpop.f32.mrb[0].mxu0
        %v4244 = vadd.f32 %v3810, %v4243
        %4245 = vmatprep.mubr.bf16.mxu0 %v3926
        %4246 = vmatmul.mubr.bf16.gmra.mrb[0].mxu0 %v3925
        %v4247 = vpop.f32.mrb[0].mxu0
        %v4248 = vadd.f32 %v3806, %v4247
        %v4249 = vpop.f32.mrb[0].mxu0
        %v4250 = vadd.f32 %v3810, %v4249
        %v4251 = vpop.f32.mrb[0].mxu0
        %v4252 = vadd.f32 %v3806, %v4251
        %v4253 = vpop.f32.mrb[0].mxu0
        %v4254 = vadd.f32 %v3810, %v4253
        %4255 = vmatprep.mubr.bf16.mxu0 %v3928
        %4256 = vmatmul.mubr.bf16.gmra.mrb[0].mxu0 %v3927
        %v4257 = vpop.f32.mrb[0].mxu0
        %v4258 = vadd.f32 %v3806, %v4257
        %v4259 = vpop.f32.mrb[0].mxu0
        %v4260 = vadd.f32 %v3810, %v4259
        %v4261 = vpop.f32.mrb[0].mxu0
        %v4262 = vadd.f32 %v3806, %v4261
        %v4263 = vpop.f32.mrb[0].mxu0
        %v4264 = vadd.f32 %v3810, %v4263
        %4265 = vmatprep.mubr.bf16.mxu0 %v3930
        %4266 = vmatmul.mubr.bf16.gmra.mrb[0].mxu0 %v3929
        %v4267 = vpop.f32.mrb[0].mxu0
        %v4268 = vadd.f32 %v3806, %v4267
        %v4269 = vpop.f32.mrb[0].mxu0
        %v4270 = vadd.f32 %v3810, %v4269
        %v4271 = vpop.f32.mrb[0].mxu0
        %v4272 = vadd.f32 %v3806, %v4271
        %v4273 = vpop.f32.mrb[0].mxu0
        %v4274 = vadd.f32 %v3810, %v4273
        %4275 = vmatprep.mubr.bf16.mxu0 %v3932
        %4276 = vmatmul.mubr.bf16.gmra.mrb[0].mxu0 %v3931
        %v4277 = vpop.f32.mrb[0].mxu0
        %v4278 = vadd.f32 %v3806, %v4277
        %v4279 = vpop.f32.mrb[0].mxu0
        %v4280 = vadd.f32 %v3810, %v4279
        %v4281 = vpop.f32.mrb[0].mxu0
        %v4282 = vadd.f32 %v3806, %v4281
        %v4283 = vpop.f32.mrb[0].mxu0
        %v4284 = vadd.f32 %v3810, %v4283
        %4285 = vmatprep.mubr.bf16.mxu0 %v3934
        %4286 = vmatmul.mubr.bf16.gmra.mrb[0].mxu0 %v3933
        %v4287 = vpop.f32.mrb[0].mxu0
        %v4288 = vadd.f32 %v3806, %v4287
        %v4289 = vpop.f32.mrb[0].mxu0
        %v4290 = vadd.f32 %v3810, %v4289
        %v4291 = vpop.f32.mrb[0].mxu0
        %v4292 = vadd.f32 %v3806, %v4291
        %v4293 = vpop.f32.mrb[0].mxu0
        %v4294 = vadd.f32 %v3810, %v4293
        %4295 = vmatprep.mubr.bf16.mxu0 %v3936
        %4296 = vmatmul.mubr.bf16.gmra.mrb[0].mxu0 %v3935
        %v4297 = vpop.f32.mrb[0].mxu0
        %v4298 = vadd.f32 %v3806, %v4297
        %v4299 = vpop.f32.mrb[0].mxu0
        %v4300 = vadd.f32 %v3810, %v4299
        %v4301 = vpop.f32.mrb[0].mxu0
        %v4302 = vadd.f32 %v3806, %v4301
        %v4303 = vpop.f32.mrb[0].mxu0
        %v4304 = vadd.f32 %v3810, %v4303
        %4305 = vmatprep.mubr.bf16.mxu0 %v3938
        %4306 = vmatmul.mubr.bf16.gmra.mrb[0].mxu0 %v3937
        %v4307 = vpop.f32.mrb[0].mxu0
        %v4308 = vadd.f32 %v3806, %v4307
        %v4309 = vpop.f32.mrb[0].mxu0
        %v4310 = vadd.f32 %v3810, %v4309
        %v4311 = vpop.f32.mrb[0].mxu0
        %v4312 = vadd.f32 %v3806, %v4311
        %v4313 = vpop.f32.mrb[0].mxu0
        %v4314 = vadd.f32 %v3810, %v4313
        %4315 = vmatprep.mubr.bf16.mxu0 %v3940
        %4316 = vmatmul.mubr.bf16.gmra.mrb[0].mxu0 %v3939
        %v4317 = vpop.f32.mrb[0].mxu0
        %v4318 = vadd.f32 %v3806, %v4317
        %v4319 = vpop.f32.mrb[0].mxu0
        %v4320 = vadd.f32 %v3810, %v4319
        %v4321 = vpop.f32.mrb[0].mxu0
        %v4322 = vadd.f32 %v3806, %v4321
        %v4323 = vpop.f32.mrb[0].mxu0
        %v4324 = vadd.f32 %v3810, %v4323
        %4325 = vdwg.mxu0
        %v4327 = vlaneseq
        %v4328 = vshrl.u32 %v4327, 7
        %v4329 = vsub.s32 0, %v4328
        %v4330 = vrot.slane %v3556, %v4329
        %v4331 = vlaneseq
        %v4332 = vshrl.u32 %v4331, 7
        %v4333 = vsub.s32 1, %v4332
        %v4334 = vrot.slane %v3556, %v4333
        %v4369 = vunpack.c.l.b16 %v3524
        %v4370 = vunpack.c.h.b16 %v3524
        %v4371 = vunpack.c.l.b16 %v3525
        %v4372 = vunpack.c.h.b16 %v3525
        %v4373 = vunpack.c.l.b16 %v3526
        %v4374 = vunpack.c.h.b16 %v3526
        %v4375 = vunpack.c.l.b16 %v3527
        %v4376 = vunpack.c.h.b16 %v3527
        %v4377 = vunpack.c.l.b16 %v3528
        %v4378 = vunpack.c.h.b16 %v3528
        %v4379 = vunpack.c.l.b16 %v3529
        %v4380 = vunpack.c.h.b16 %v3529
        %v4381 = vunpack.c.l.b16 %v3530
        %v4382 = vunpack.c.h.b16 %v3530
        %v4383 = vunpack.c.l.b16 %v3531
        %v4384 = vunpack.c.h.b16 %v3531
        %v4385 = vunpack.c.l.b16 %v3532
        %v4386 = vunpack.c.h.b16 %v3532
        %v4387 = vunpack.c.l.b16 %v3533
        %v4388 = vunpack.c.h.b16 %v3533
        %v4389 = vunpack.c.l.b16 %v3534
        %v4390 = vunpack.c.h.b16 %v3534
        %v4391 = vunpack.c.l.b16 %v3535
        %v4392 = vunpack.c.h.b16 %v3535
        %v4393 = vunpack.c.l.b16 %v3536
        %v4394 = vunpack.c.h.b16 %v3536
        %v4395 = vunpack.c.l.b16 %v3537
        %v4396 = vunpack.c.h.b16 %v3537
        %v4397 = vunpack.c.l.b16 %v3538
        %v4398 = vunpack.c.h.b16 %v3538
        %v4399 = vunpack.c.l.b16 %v3539
        %v4400 = vunpack.c.h.b16 %v3539
        %v4401 = vunpack.c.l.b16 %v3540
        %v4402 = vunpack.c.h.b16 %v3540
        %v4403 = vunpack.c.l.b16 %v3541
        %v4404 = vunpack.c.h.b16 %v3541
        %v4405 = vunpack.c.l.b16 %v3542
        %v4406 = vunpack.c.h.b16 %v3542
        %v4407 = vunpack.c.l.b16 %v3543
        %v4408 = vunpack.c.h.b16 %v3543
        %v4409 = vunpack.c.l.b16 %v3544
        %v4410 = vunpack.c.h.b16 %v3544
        %v4411 = vunpack.c.l.b16 %v3545
        %v4412 = vunpack.c.h.b16 %v3545
        %v4413 = vunpack.c.l.b16 %v3546
        %v4414 = vunpack.c.h.b16 %v3546
        %v4415 = vunpack.c.l.b16 %v3547
        %v4416 = vunpack.c.h.b16 %v3547
        %v4417 = vunpack.c.l.b16 %v3548
        %v4418 = vunpack.c.h.b16 %v3548
        %v4419 = vunpack.c.l.b16 %v3549
        %v4420 = vunpack.c.h.b16 %v3549
        %v4421 = vunpack.c.l.b16 %v3550
        %v4422 = vunpack.c.h.b16 %v3550
        %v4423 = vunpack.c.l.b16 %v3551
        %v4424 = vunpack.c.h.b16 %v3551
        %v4425 = vunpack.c.l.b16 %v3552
        %v4426 = vunpack.c.h.b16 %v3552
        %v4427 = vunpack.c.l.b16 %v3553
        %v4428 = vunpack.c.h.b16 %v3553
        %v4429 = vunpack.c.l.b16 %v3554
        %v4430 = vunpack.c.h.b16 %v3554
        %v4431 = vunpack.c.l.b16 %v3555
        %v4432 = vunpack.c.h.b16 %v3555
        %v4433 = vpack.c.b16 %v4371, %v4369
        %v4434 = vpack.c.b16 %v4372, %v4370
        %v4435 = vpack.c.b16 %v4375, %v4373
        %v4436 = vpack.c.b16 %v4376, %v4374
        %v4437 = vpack.c.b16 %v4379, %v4377
        %v4438 = vpack.c.b16 %v4380, %v4378
        %v4439 = vpack.c.b16 %v4383, %v4381
        %v4440 = vpack.c.b16 %v4384, %v4382
        %v4441 = vpack.c.b16 %v4387, %v4385
        %v4442 = vpack.c.b16 %v4388, %v4386
        %v4443 = vpack.c.b16 %v4391, %v4389
        %v4444 = vpack.c.b16 %v4392, %v4390
        %v4445 = vpack.c.b16 %v4395, %v4393
        %v4446 = vpack.c.b16 %v4396, %v4394
        %v4447 = vpack.c.b16 %v4399, %v4397
        %v4448 = vpack.c.b16 %v4400, %v4398
        %v4449 = vpack.c.b16 %v4403, %v4401
        %v4450 = vpack.c.b16 %v4404, %v4402
        %v4451 = vpack.c.b16 %v4407, %v4405
        %v4452 = vpack.c.b16 %v4408, %v4406
        %v4453 = vpack.c.b16 %v4411, %v4409
        %v4454 = vpack.c.b16 %v4412, %v4410
        %v4455 = vpack.c.b16 %v4415, %v4413
        %v4456 = vpack.c.b16 %v4416, %v4414
        %v4457 = vpack.c.b16 %v4419, %v4417
        %v4458 = vpack.c.b16 %v4420, %v4418
        %v4459 = vpack.c.b16 %v4423, %v4421
        %v4460 = vpack.c.b16 %v4424, %v4422
        %v4461 = vpack.c.b16 %v4427, %v4425
        %v4462 = vpack.c.b16 %v4428, %v4426
        %v4463 = vpack.c.b16 %v4431, %v4429
        %v4464 = vpack.c.b16 %v4432, %v4430
        %4497 = vmatprep.subr.bf16.mxu0 %v4434
        %4498 = vmatpush1.bf16.msra.mxu0 %v4433
        %4499 = vmatprep.subr.bf16.mxu0 %v4436
        %4500 = vmatpush1.bf16.msra.mxu0 %v4435
        %4501 = vmatprep.subr.bf16.mxu0 %v4438
        %4502 = vmatpush1.bf16.msra.mxu0 %v4437
        %4503 = vmatprep.subr.bf16.mxu0 %v4440
        %4504 = vmatpush1.bf16.msra.mxu0 %v4439
        %4505 = vmatprep.subr.bf16.mxu0 %v4442
        %4506 = vmatpush1.bf16.msra.mxu0 %v4441
        %4507 = vmatprep.subr.bf16.mxu0 %v4444
        %4508 = vmatpush1.bf16.msra.mxu0 %v4443
        %4509 = vmatprep.subr.bf16.mxu0 %v4446
        %4510 = vmatpush1.bf16.msra.mxu0 %v4445
        %4511 = vmatprep.subr.bf16.mxu0 %v4448
        %4512 = vmatpush1.bf16.msra.mxu0 %v4447
        %4513 = vmatprep.subr.bf16.mxu0 %v4450
        %4514 = vmatpush1.bf16.msra.mxu0 %v4449
        %4515 = vmatprep.subr.bf16.mxu0 %v4452
        %4516 = vmatpush1.bf16.msra.mxu0 %v4451
        %4517 = vmatprep.subr.bf16.mxu0 %v4454
        %4518 = vmatpush1.bf16.msra.mxu0 %v4453
        %4519 = vmatprep.subr.bf16.mxu0 %v4456
        %4520 = vmatpush1.bf16.msra.mxu0 %v4455
        %4521 = vmatprep.subr.bf16.mxu0 %v4458
        %4522 = vmatpush1.bf16.msra.mxu0 %v4457
        %4523 = vmatprep.subr.bf16.mxu0 %v4460
        %4524 = vmatpush1.bf16.msra.mxu0 %v4459
        %4525 = vmatprep.subr.bf16.mxu0 %v4462
        %4526 = vmatpush1.bf16.msra.mxu0 %v4461
        %4527 = vmatprep.subr.bf16.mxu0 %v4464
        %4528 = vmatpush1.bf16.msra.mxu0 %v4463
        %4529 = vmatprep.mubr.bf16.mxu0 %v3910
        %4530 = vmatmul.mubr.bf16.gmra.mrb[0].mxu0 %v3909
        %v4531 = vpop.f32.mrb[0].mxu0
        %v4532 = vadd.f32 %v4330, %v4531
        %v4533 = vpop.f32.mrb[0].mxu0
        %v4534 = vadd.f32 %v4334, %v4533
        %v4535 = vpop.f32.mrb[0].mxu0
        %v4536 = vadd.f32 %v4330, %v4535
        %v4537 = vpop.f32.mrb[0].mxu0
        %v4538 = vadd.f32 %v4334, %v4537
        %4539 = vmatprep.mubr.bf16.mxu0 %v3912
        %4540 = vmatmul.mubr.bf16.gmra.mrb[0].mxu0 %v3911
        %v4541 = vpop.f32.mrb[0].mxu0
        %v4542 = vadd.f32 %v4330, %v4541
        %v4543 = vpop.f32.mrb[0].mxu0
        %v4544 = vadd.f32 %v4334, %v4543
        %v4545 = vpop.f32.mrb[0].mxu0
        %v4546 = vadd.f32 %v4330, %v4545
        %v4547 = vpop.f32.mrb[0].mxu0
        %v4548 = vadd.f32 %v4334, %v4547
        %4549 = vmatprep.mubr.bf16.mxu0 %v3914
        %4550 = vmatmul.mubr.bf16.gmra.mrb[0].mxu0 %v3913
        %v4551 = vpop.f32.mrb[0].mxu0
        %v4552 = vadd.f32 %v4330, %v4551
        %v4553 = vpop.f32.mrb[0].mxu0
        %v4554 = vadd.f32 %v4334, %v4553
        %v4555 = vpop.f32.mrb[0].mxu0
        %v4556 = vadd.f32 %v4330, %v4555
        %v4557 = vpop.f32.mrb[0].mxu0
        %v4558 = vadd.f32 %v4334, %v4557
        %4559 = vmatprep.mubr.bf16.mxu0 %v3916
        %4560 = vmatmul.mubr.bf16.gmra.mrb[0].mxu0 %v3915
        %v4561 = vpop.f32.mrb[0].mxu0
        %v4562 = vadd.f32 %v4330, %v4561
        %v4563 = vpop.f32.mrb[0].mxu0
        %v4564 = vadd.f32 %v4334, %v4563
        %v4565 = vpop.f32.mrb[0].mxu0
        %v4566 = vadd.f32 %v4330, %v4565
        %v4567 = vpop.f32.mrb[0].mxu0
        %v4568 = vadd.f32 %v4334, %v4567
        %4569 = vmatprep.mubr.bf16.mxu0 %v3918
        %4570 = vmatmul.mubr.bf16.gmra.mrb[0].mxu0 %v3917
        %v4571 = vpop.f32.mrb[0].mxu0
        %v4572 = vadd.f32 %v4330, %v4571
        %v4573 = vpop.f32.mrb[0].mxu0
        %v4574 = vadd.f32 %v4334, %v4573
        %v4575 = vpop.f32.mrb[0].mxu0
        %v4576 = vadd.f32 %v4330, %v4575
        %v4577 = vpop.f32.mrb[0].mxu0
        %v4578 = vadd.f32 %v4334, %v4577
        %4579 = vmatprep.mubr.bf16.mxu0 %v3920
        %4580 = vmatmul.mubr.bf16.gmra.mrb[0].mxu0 %v3919
        %v4581 = vpop.f32.mrb[0].mxu0
        %v4582 = vadd.f32 %v4330, %v4581
        %v4583 = vpop.f32.mrb[0].mxu0
        %v4584 = vadd.f32 %v4334, %v4583
        %v4585 = vpop.f32.mrb[0].mxu0
        %v4586 = vadd.f32 %v4330, %v4585
        %v4587 = vpop.f32.mrb[0].mxu0
        %v4588 = vadd.f32 %v4334, %v4587
        %4589 = vmatprep.mubr.bf16.mxu0 %v3922
        %4590 = vmatmul.mubr.bf16.gmra.mrb[0].mxu0 %v3921
        %v4591 = vpop.f32.mrb[0].mxu0
        %v4592 = vadd.f32 %v4330, %v4591
        %v4593 = vpop.f32.mrb[0].mxu0
        %v4594 = vadd.f32 %v4334, %v4593
        %v4595 = vpop.f32.mrb[0].mxu0
        %v4596 = vadd.f32 %v4330, %v4595
        %v4597 = vpop.f32.mrb[0].mxu0
        %v4598 = vadd.f32 %v4334, %v4597
        %4599 = vmatprep.mubr.bf16.mxu0 %v3924
        %4600 = vmatmul.mubr.bf16.gmra.mrb[0].mxu0 %v3923
        %v4601 = vpop.f32.mrb[0].mxu0
        %v4602 = vadd.f32 %v4330, %v4601
        %v4603 = vpop.f32.mrb[0].mxu0
        %v4604 = vadd.f32 %v4334, %v4603
        %v4605 = vpop.f32.mrb[0].mxu0
        %v4606 = vadd.f32 %v4330, %v4605
        %v4607 = vpop.f32.mrb[0].mxu0
        %v4608 = vadd.f32 %v4334, %v4607
        %4609 = vmatprep.mubr.bf16.mxu0 %v3926
        %4610 = vmatmul.mubr.bf16.gmra.mrb[0].mxu0 %v3925
        %v4611 = vpop.f32.mrb[0].mxu0
        %v4612 = vadd.f32 %v4330, %v4611
        %v4613 = vpop.f32.mrb[0].mxu0
        %v4614 = vadd.f32 %v4334, %v4613
        %v4615 = vpop.f32.mrb[0].mxu0
        %v4616 = vadd.f32 %v4330, %v4615
        %v4617 = vpop.f32.mrb[0].mxu0
        %v4618 = vadd.f32 %v4334, %v4617
        %4619 = vmatprep.mubr.bf16.mxu0 %v3928
        %4620 = vmatmul.mubr.bf16.gmra.mrb[0].mxu0 %v3927
        %v4621 = vpop.f32.mrb[0].mxu0
        %v4622 = vadd.f32 %v4330, %v4621
        %v4623 = vpop.f32.mrb[0].mxu0
        %v4624 = vadd.f32 %v4334, %v4623
        %v4625 = vpop.f32.mrb[0].mxu0
        %v4626 = vadd.f32 %v4330, %v4625
        %v4627 = vpop.f32.mrb[0].mxu0
        %v4628 = vadd.f32 %v4334, %v4627
        %4629 = vmatprep.mubr.bf16.mxu0 %v3930
        %4630 = vmatmul.mubr.bf16.gmra.mrb[0].mxu0 %v3929
        %v4631 = vpop.f32.mrb[0].mxu0
        %v4632 = vadd.f32 %v4330, %v4631
        %v4633 = vpop.f32.mrb[0].mxu0
        %v4634 = vadd.f32 %v4334, %v4633
        %v4635 = vpop.f32.mrb[0].mxu0
        %v4636 = vadd.f32 %v4330, %v4635
        %v4637 = vpop.f32.mrb[0].mxu0
        %v4638 = vadd.f32 %v4334, %v4637
        %4639 = vmatprep.mubr.bf16.mxu0 %v3932
        %4640 = vmatmul.mubr.bf16.gmra.mrb[0].mxu0 %v3931
        %v4641 = vpop.f32.mrb[0].mxu0
        %v4642 = vadd.f32 %v4330, %v4641
        %v4643 = vpop.f32.mrb[0].mxu0
        %v4644 = vadd.f32 %v4334, %v4643
        %v4645 = vpop.f32.mrb[0].mxu0
        %v4646 = vadd.f32 %v4330, %v4645
        %v4647 = vpop.f32.mrb[0].mxu0
        %v4648 = vadd.f32 %v4334, %v4647
        %4649 = vmatprep.mubr.bf16.mxu0 %v3934
        %4650 = vmatmul.mubr.bf16.gmra.mrb[0].mxu0 %v3933
        %v4651 = vpop.f32.mrb[0].mxu0
        %v4652 = vadd.f32 %v4330, %v4651
        %v4653 = vpop.f32.mrb[0].mxu0
        %v4654 = vadd.f32 %v4334, %v4653
        %v4655 = vpop.f32.mrb[0].mxu0
        %v4656 = vadd.f32 %v4330, %v4655
        %v4657 = vpop.f32.mrb[0].mxu0
        %v4658 = vadd.f32 %v4334, %v4657
        %4659 = vmatprep.mubr.bf16.mxu0 %v3936
        %4660 = vmatmul.mubr.bf16.gmra.mrb[0].mxu0 %v3935
        %v4661 = vpop.f32.mrb[0].mxu0
        %v4662 = vadd.f32 %v4330, %v4661
        %v4663 = vpop.f32.mrb[0].mxu0
        %v4664 = vadd.f32 %v4334, %v4663
        %v4665 = vpop.f32.mrb[0].mxu0
        %v4666 = vadd.f32 %v4330, %v4665
        %v4667 = vpop.f32.mrb[0].mxu0
        %v4668 = vadd.f32 %v4334, %v4667
        %4669 = vmatprep.mubr.bf16.mxu0 %v3938
        %4670 = vmatmul.mubr.bf16.gmra.mrb[0].mxu0 %v3937
        %v4671 = vpop.f32.mrb[0].mxu0
        %v4672 = vadd.f32 %v4330, %v4671
        %v4673 = vpop.f32.mrb[0].mxu0
        %v4674 = vadd.f32 %v4334, %v4673
        %v4675 = vpop.f32.mrb[0].mxu0
        %v4676 = vadd.f32 %v4330, %v4675
        %v4677 = vpop.f32.mrb[0].mxu0
        %v4678 = vadd.f32 %v4334, %v4677
        %4679 = vmatprep.mubr.bf16.mxu0 %v3940
        %4680 = vmatmul.mubr.bf16.gmra.mrb[0].mxu0 %v3939
        %v4681 = vpop.f32.mrb[0].mxu0
        %v4682 = vadd.f32 %v4330, %v4681
        %v4683 = vpop.f32.mrb[0].mxu0
        %v4684 = vadd.f32 %v4334, %v4683
        %v4685 = vpop.f32.mrb[0].mxu0
        %v4686 = vadd.f32 %v4330, %v4685
        %v4687 = vpop.f32.mrb[0].mxu0
        %v4688 = vadd.f32 %v4334, %v4687
        %4689 = vdwg.mxu0
        %v4690 = vmul.f32 %v3796, 0.125
        %v4691 = vmul.f32 %v3798, 0.125
        %v4692 = vpack.c.bf16 %v4690, %v4690
        %v4693 = vpack.c.bf16 %v4172, %v4168
        %v4694 = vpack.c.bf16 %v4182, %v4178
        %v4695 = vpack.c.bf16 %v4192, %v4188
        %v4696 = vpack.c.bf16 %v4202, %v4198
        %v4697 = vpack.c.bf16 %v4212, %v4208
        %v4698 = vpack.c.bf16 %v4222, %v4218
        %v4699 = vpack.c.bf16 %v4232, %v4228
        %v4700 = vpack.c.bf16 %v4242, %v4238
        %v4701 = vpack.c.bf16 %v4252, %v4248
        %v4702 = vpack.c.bf16 %v4262, %v4258
        %v4703 = vpack.c.bf16 %v4272, %v4268
        %v4704 = vpack.c.bf16 %v4282, %v4278
        %v4705 = vpack.c.bf16 %v4292, %v4288
        %v4706 = vpack.c.bf16 %v4302, %v4298
        %v4707 = vpack.c.bf16 %v4312, %v4308
        %v4708 = vpack.c.bf16 %v4322, %v4318
        %v4709 = vpack.c.bf16 %v4536, %v4532
        %v4710 = vpack.c.bf16 %v4546, %v4542
        %v4711 = vpack.c.bf16 %v4556, %v4552
        %v4712 = vpack.c.bf16 %v4566, %v4562
        %v4713 = vpack.c.bf16 %v4576, %v4572
        %v4714 = vpack.c.bf16 %v4586, %v4582
        %v4715 = vpack.c.bf16 %v4596, %v4592
        %v4716 = vpack.c.bf16 %v4606, %v4602
        %v4717 = vpack.c.bf16 %v4616, %v4612
        %v4718 = vpack.c.bf16 %v4626, %v4622
        %v4719 = vpack.c.bf16 %v4636, %v4632
        %v4720 = vpack.c.bf16 %v4646, %v4642
        %v4721 = vpack.c.bf16 %v4656, %v4652
        %v4722 = vpack.c.bf16 %v4666, %v4662
        %v4723 = vpack.c.bf16 %v4676, %v4672
        %v4724 = vpack.c.bf16 %v4686, %v4682
        %v4726 = vsel %vm2745, %v4692, 0
        %v4729 = vsel %vm2745, %v4693, 0
        %v4732 = vsel %vm2745, %v4694, 0
        %v4735 = vsel %vm2745, %v4695, 0
        %v4738 = vsel %vm2745, %v4696, 0
        %v4741 = vsel %vm2745, %v4697, 0
        %v4744 = vsel %vm2745, %v4698, 0
        %v4747 = vsel %vm2745, %v4699, 0
        %v4750 = vsel %vm2745, %v4700, 0
        %v4753 = vsel %vm2745, %v4701, 0
        %v4756 = vsel %vm2745, %v4702, 0
        %v4759 = vsel %vm2745, %v4703, 0
        %v4762 = vsel %vm2745, %v4704, 0
        %v4765 = vsel %vm2745, %v4705, 0
        %v4768 = vsel %vm2745, %v4706, 0
        %v4771 = vsel %vm2745, %v4707, 0
        %v4774 = vsel %vm2745, %v4708, 0
        %4776 = vmatprep.subr.bf16.mxu0 0
        %4777 = vmatpush1.bf16.xpose.msra.mxu0 %v4729
        %4778 = vmatprep.subr.bf16.mxu0 0
        %4779 = vmatpush1.bf16.xpose.msra.mxu0 %v4732
        %4780 = vmatprep.subr.bf16.mxu0 0
        %4781 = vmatpush1.bf16.xpose.msra.mxu0 %v4735
        %4782 = vmatprep.subr.bf16.mxu0 0
        %4783 = vmatpush1.bf16.xpose.msra.mxu0 %v4738
        %4784 = vmatprep.subr.bf16.mxu0 0
        %4785 = vmatpush1.bf16.xpose.msra.mxu0 %v4741
        %4786 = vmatprep.subr.bf16.mxu0 0
        %4787 = vmatpush1.bf16.xpose.msra.mxu0 %v4744
        %4788 = vmatprep.subr.bf16.mxu0 0
        %4789 = vmatpush1.bf16.xpose.msra.mxu0 %v4747
        %4790 = vmatprep.subr.bf16.mxu0 0
        %4791 = vmatpush1.bf16.xpose.msra.mxu0 %v4750
        %4792 = vmatprep.subr.bf16.mxu0 0
        %4793 = vmatpush1.bf16.xpose.msra.mxu0 %v4753
        %4794 = vmatprep.subr.bf16.mxu0 0
        %4795 = vmatpush1.bf16.xpose.msra.mxu0 %v4756
        %4796 = vmatprep.subr.bf16.mxu0 0
        %4797 = vmatpush1.bf16.xpose.msra.mxu0 %v4759
        %4798 = vmatprep.subr.bf16.mxu0 0
        %4799 = vmatpush1.bf16.xpose.msra.mxu0 %v4762
        %4800 = vmatprep.subr.bf16.mxu0 0
        %4801 = vmatpush1.bf16.xpose.msra.mxu0 %v4765
        %4802 = vmatprep.subr.bf16.mxu0 0
        %4803 = vmatpush1.bf16.xpose.msra.mxu0 %v4768
        %4804 = vmatprep.subr.bf16.mxu0 0
        %4805 = vmatpush1.bf16.xpose.msra.mxu0 %v4771
        %4806 = vmatprep.subr.bf16.mxu0 0
        %4807 = vmatpush1.bf16.xpose.msra.mxu0 %v4774
        %4808 = vmatprep.mubr.bf16.mxu0 0
        %4809 = vmatmul.mubr.bf16.gmra.mrb[0].mxu0 %v4726
        %v4810 = vpop.f32.mrb[0].mxu0
        %v4811 = vadd.f32 0.0, %v4810
        %v4812 = vpop.f32.mrb[0].mxu0
        %v4813 = vadd.f32 0.0, %v4812
        %v4814 = vpop.f32.mrb[0].mxu0
        %v4815 = vpop.f32.mrb[0].mxu0
        %4816 = vdwg.mxu0
        %v4817 = vmax.f32 %v4811, %v4813
        %4818 = vmax.xlane.f32.xlu0 %v4817
        %v4819 = vpop.xlane.xlu0 %4818
        %v4820 = vsub.f32 %v4811, %v4819
        %v4821 = vsub.f32 %v4813, %v4819
        %v4822 = vmul.f32 %v4820, 1.442695
        %v4823 = vpow.pop %v4822
        %v4824 = vmul.f32 %v4821, 1.442695
        %v4825 = vpow.pop %v4824
        %v4826 = vadd.f32 %v4823, %v4825
        %4827 = vadd.xlane.f32.xlu0 %v4826
        %v4828 = vpop.xlane.xlu0 %4827
        %v4829 = vrcp.pop %v4828
        %v4830 = vmul.f32 %v4823, %v4829
        %v4831 = vmul.f32 %v4825, %v4829
        %v4832 = vpack.c.bf16 %v4830, %v4830
        %v4833 = vpack.c.bf16 %v4831, %v4831
        %4834 = vmatprep.subr.bf16.mxu0 0
        %4835 = vmatpush1.bf16.msra.mxu0 %v4709
        %4836 = vmatprep.subr.bf16.mxu0 0
        %4837 = vmatpush1.bf16.msra.mxu0 %v4710
        %4838 = vmatprep.subr.bf16.mxu0 0
        %4839 = vmatpush1.bf16.msra.mxu0 %v4711
        %4840 = vmatprep.subr.bf16.mxu0 0
        %4841 = vmatpush1.bf16.msra.mxu0 %v4712
        %4842 = vmatprep.subr.bf16.mxu0 0
        %4843 = vmatpush1.bf16.msra.mxu0 %v4713
        %4844 = vmatprep.subr.bf16.mxu0 0
        %4845 = vmatpush1.bf16.msra.mxu0 %v4714
        %4846 = vmatprep.subr.bf16.mxu0 0
        %4847 = vmatpush1.bf16.msra.mxu0 %v4715
        %4848 = vmatprep.subr.bf16.mxu0 0
        %4849 = vmatpush1.bf16.msra.mxu0 %v4716
        %4850 = vmatprep.subr.bf16.mxu0 0
        %4851 = vmatpush1.bf16.msra.mxu0 %v4717
        %4852 = vmatprep.subr.bf16.mxu0 0
        %4853 = vmatpush1.bf16.msra.mxu0 %v4718
        %4854 = vmatprep.subr.bf16.mxu0 0
        %4855 = vmatpush1.bf16.msra.mxu0 %v4719
        %4856 = vmatprep.subr.bf16.mxu0 0
        %4857 = vmatpush1.bf16.msra.mxu0 %v4720
        %4858 = vmatprep.subr.bf16.mxu0 0
        %4859 = vmatpush1.bf16.msra.mxu0 %v4721
        %4860 = vmatprep.subr.bf16.mxu0 0
        %4861 = vmatpush1.bf16.msra.mxu0 %v4722
        %4862 = vmatprep.subr.bf16.mxu0 0
        %4863 = vmatpush1.bf16.msra.mxu0 %v4723
        %4864 = vmatprep.subr.bf16.mxu0 0
        %4865 = vmatpush1.bf16.msra.mxu0 %v4724
        %4866 = vmatprep.mubr.bf16.mxu0 %v4833
        %4867 = vmatmul.mubr.bf16.gmra.mrb[0].mxu0 %v4832
        %v4868 = vpop.f32.mrb[0].mxu0
        %v4869 = vadd.f32 0.0, %v4868
        %v4870 = vpop.f32.mrb[0].mxu0
        %v4871 = vpop.f32.mrb[0].mxu0
        %v4872 = vpop.f32.mrb[0].mxu0
        %4873 = vdwg.mxu0
        %4875 = vrot.lane.b32.xlu0 %v4692, 64
        %v4876 = vpop.permute.xlu0 %4875
        %4893 = vrot.lane.b32.xlu0 %v4693, 64
        %v4894 = vpop.permute.xlu0 %4893
        %4895 = vrot.lane.b32.xlu0 %v4694, 64
        %v4896 = vpop.permute.xlu0 %4895
        %4897 = vrot.lane.b32.xlu0 %v4695, 64
        %v4898 = vpop.permute.xlu0 %4897
        %4899 = vrot.lane.b32.xlu0 %v4696, 64
        %v4900 = vpop.permute.xlu0 %4899
        %4901 = vrot.lane.b32.xlu0 %v4697, 64
        %v4902 = vpop.permute.xlu0 %4901
        %4903 = vrot.lane.b32.xlu0 %v4698, 64
        %v4904 = vpop.permute.xlu0 %4903
        %4905 = vrot.lane.b32.xlu0 %v4699, 64
        %v4906 = vpop.permute.xlu0 %4905
        %4907 = vrot.lane.b32.xlu0 %v4700, 64
        %v4908 = vpop.permute.xlu0 %4907
        %4909 = vrot.lane.b32.xlu0 %v4701, 64
        %v4910 = vpop.permute.xlu0 %4909
        %4911 = vrot.lane.b32.xlu0 %v4702, 64
        %v4912 = vpop.permute.xlu0 %4911
        %4913 = vrot.lane.b32.xlu0 %v4703, 64
        %v4914 = vpop.permute.xlu0 %4913
        %4915 = vrot.lane.b32.xlu0 %v4704, 64
        %v4916 = vpop.permute.xlu0 %4915
        %4917 = vrot.lane.b32.xlu0 %v4705, 64
        %v4918 = vpop.permute.xlu0 %4917
        %4919 = vrot.lane.b32.xlu0 %v4706, 64
        %v4920 = vpop.permute.xlu0 %4919
        %4921 = vrot.lane.b32.xlu0 %v4707, 64
        %v4922 = vpop.permute.xlu0 %4921
        %4923 = vrot.lane.b32.xlu0 %v4708, 64
        %v4924 = vpop.permute.xlu0 %4923
        %v4926 = vsel %vm2745, %v4876, 0
        %v4929 = vsel %vm2745, %v4894, 0
        %v4932 = vsel %vm2745, %v4896, 0
        %v4935 = vsel %vm2745, %v4898, 0
        %v4938 = vsel %vm2745, %v4900, 0
        %v4941 = vsel %vm2745, %v4902, 0
        %v4944 = vsel %vm2745, %v4904, 0
        %v4947 = vsel %vm2745, %v4906, 0
        %v4950 = vsel %vm2745, %v4908, 0
        %v4953 = vsel %vm2745, %v4910, 0
        %v4956 = vsel %vm2745, %v4912, 0
        %v4959 = vsel %vm2745, %v4914, 0
        %v4962 = vsel %vm2745, %v4916, 0
        %v4965 = vsel %vm2745, %v4918, 0
        %v4968 = vsel %vm2745, %v4920, 0
        %v4971 = vsel %vm2745, %v4922, 0
        %v4974 = vsel %vm2745, %v4924, 0
        %4976 = vmatprep.subr.bf16.mxu0 0
        %4977 = vmatpush1.bf16.xpose.msra.mxu0 %v4929
        %4978 = vmatprep.subr.bf16.mxu0 0
        %4979 = vmatpush1.bf16.xpose.msra.mxu0 %v4932
        %4980 = vmatprep.subr.bf16.mxu0 0
        %4981 = vmatpush1.bf16.xpose.msra.mxu0 %v4935
        %4982 = vmatprep.subr.bf16.mxu0 0
        %4983 = vmatpush1.bf16.xpose.msra.mxu0 %v4938
        %4984 = vmatprep.subr.bf16.mxu0 0
        %4985 = vmatpush1.bf16.xpose.msra.mxu0 %v4941
        %4986 = vmatprep.subr.bf16.mxu0 0
        %4987 = vmatpush1.bf16.xpose.msra.mxu0 %v4944
        %4988 = vmatprep.subr.bf16.mxu0 0
        %4989 = vmatpush1.bf16.xpose.msra.mxu0 %v4947
        %4990 = vmatprep.subr.bf16.mxu0 0
        %4991 = vmatpush1.bf16.xpose.msra.mxu0 %v4950
        %4992 = vmatprep.subr.bf16.mxu0 0
        %4993 = vmatpush1.bf16.xpose.msra.mxu0 %v4953
        %4994 = vmatprep.subr.bf16.mxu0 0
        %4995 = vmatpush1.bf16.xpose.msra.mxu0 %v4956
        %4996 = vmatprep.subr.bf16.mxu0 0
        %4997 = vmatpush1.bf16.xpose.msra.mxu0 %v4959
        %4998 = vmatprep.subr.bf16.mxu0 0
        %4999 = vmatpush1.bf16.xpose.msra.mxu0 %v4962
        %5000 = vmatprep.subr.bf16.mxu0 0
        %5001 = vmatpush1.bf16.xpose.msra.mxu0 %v4965
        %5002 = vmatprep.subr.bf16.mxu0 0
        %5003 = vmatpush1.bf16.xpose.msra.mxu0 %v4968
        %5004 = vmatprep.subr.bf16.mxu0 0
        %5005 = vmatpush1.bf16.xpose.msra.mxu0 %v4971
        %5006 = vmatprep.subr.bf16.mxu0 0
        %5007 = vmatpush1.bf16.xpose.msra.mxu0 %v4974
        %5008 = vmatprep.mubr.bf16.mxu0 0
        %5009 = vmatmul.mubr.bf16.gmra.mrb[0].mxu0 %v4926
        %v5010 = vpop.f32.mrb[0].mxu0
        %v5011 = vadd.f32 0.0, %v5010
        %v5012 = vpop.f32.mrb[0].mxu0
        %v5013 = vadd.f32 0.0, %v5012
        %v5014 = vpop.f32.mrb[0].mxu0
        %v5015 = vpop.f32.mrb[0].mxu0
        %5016 = vdwg.mxu0
        %v5017 = vmax.f32 %v5011, %v5013
        %5018 = vmax.xlane.f32.xlu0 %v5017
        %v5019 = vpop.xlane.xlu0 %5018
        %v5020 = vsub.f32 %v5011, %v5019
        %v5021 = vsub.f32 %v5013, %v5019
        %v5022 = vmul.f32 %v5020, 1.442695
        %v5023 = vpow.pop %v5022
        %v5024 = vmul.f32 %v5021, 1.442695
        %v5025 = vpow.pop %v5024
        %v5026 = vadd.f32 %v5023, %v5025
        %5027 = vadd.xlane.f32.xlu0 %v5026
        %v5028 = vpop.xlane.xlu0 %5027
        %v5029 = vrcp.pop %v5028
        %v5030 = vmul.f32 %v5023, %v5029
        %v5031 = vmul.f32 %v5025, %v5029
        %v5032 = vpack.c.bf16 %v5030, %v5030
        %v5033 = vpack.c.bf16 %v5031, %v5031
        %5050 = vrot.lane.b32.xlu0 %v4709, 64
        %v5051 = vpop.permute.xlu0 %5050
        %5052 = vrot.lane.b32.xlu0 %v4710, 64
        %v5053 = vpop.permute.xlu0 %5052
        %5054 = vrot.lane.b32.xlu0 %v4711, 64
        %v5055 = vpop.permute.xlu0 %5054
        %5056 = vrot.lane.b32.xlu0 %v4712, 64
        %v5057 = vpop.permute.xlu0 %5056
        %5058 = vrot.lane.b32.xlu0 %v4713, 64
        %v5059 = vpop.permute.xlu0 %5058
        %5060 = vrot.lane.b32.xlu0 %v4714, 64
        %v5061 = vpop.permute.xlu0 %5060
        %5062 = vrot.lane.b32.xlu0 %v4715, 64
        %v5063 = vpop.permute.xlu0 %5062
        %5064 = vrot.lane.b32.xlu0 %v4716, 64
        %v5065 = vpop.permute.xlu0 %5064
        %5066 = vrot.lane.b32.xlu0 %v4717, 64
        %v5067 = vpop.permute.xlu0 %5066
        %5068 = vrot.lane.b32.xlu0 %v4718, 64
        %v5069 = vpop.permute.xlu0 %5068
        %5070 = vrot.lane.b32.xlu0 %v4719, 64
        %v5071 = vpop.permute.xlu0 %5070
        %5072 = vrot.lane.b32.xlu0 %v4720, 64
        %v5073 = vpop.permute.xlu0 %5072
        %5074 = vrot.lane.b32.xlu0 %v4721, 64
        %v5075 = vpop.permute.xlu0 %5074
        %5076 = vrot.lane.b32.xlu0 %v4722, 64
        %v5077 = vpop.permute.xlu0 %5076
        %5078 = vrot.lane.b32.xlu0 %v4723, 64
        %v5079 = vpop.permute.xlu0 %5078
        %5080 = vrot.lane.b32.xlu0 %v4724, 64
        %v5081 = vpop.permute.xlu0 %5080
        %5098 = vmatprep.subr.bf16.mxu0 0
        %5099 = vmatpush1.bf16.msra.mxu0 %v5051
        %5100 = vmatprep.subr.bf16.mxu0 0
        %5101 = vmatpush1.bf16.msra.mxu0 %v5053
        %5102 = vmatprep.subr.bf16.mxu0 0
        %5103 = vmatpush1.bf16.msra.mxu0 %v5055
        %5104 = vmatprep.subr.bf16.mxu0 0
        %5105 = vmatpush1.bf16.msra.mxu0 %v5057
        %5106 = vmatprep.subr.bf16.mxu0 0
        %5107 = vmatpush1.bf16.msra.mxu0 %v5059
        %5108 = vmatprep.subr.bf16.mxu0 0
        %5109 = vmatpush1.bf16.msra.mxu0 %v5061
        %5110 = vmatprep.subr.bf16.mxu0 0
        %5111 = vmatpush1.bf16.msra.mxu0 %v5063
        %5112 = vmatprep.subr.bf16.mxu0 0
        %5113 = vmatpush1.bf16.msra.mxu0 %v5065
        %5114 = vmatprep.subr.bf16.mxu0 0
        %5115 = vmatpush1.bf16.msra.mxu0 %v5067
        %5116 = vmatprep.subr.bf16.mxu0 0
        %5117 = vmatpush1.bf16.msra.mxu0 %v5069
        %5118 = vmatprep.subr.bf16.mxu0 0
        %5119 = vmatpush1.bf16.msra.mxu0 %v5071
        %5120 = vmatprep.subr.bf16.mxu0 0
        %5121 = vmatpush1.bf16.msra.mxu0 %v5073
        %5122 = vmatprep.subr.bf16.mxu0 0
        %5123 = vmatpush1.bf16.msra.mxu0 %v5075
        %5124 = vmatprep.subr.bf16.mxu0 0
        %5125 = vmatpush1.bf16.msra.mxu0 %v5077
        %5126 = vmatprep.subr.bf16.mxu0 0
        %5127 = vmatpush1.bf16.msra.mxu0 %v5079
        %5128 = vmatprep.subr.bf16.mxu0 0
        %5129 = vmatpush1.bf16.msra.mxu0 %v5081
        %5130 = vmatprep.mubr.bf16.mxu0 %v5033
        %5131 = vmatmul.mubr.bf16.gmra.mrb[0].mxu0 %v5032
        %v5132 = vpop.f32.mrb[0].mxu0
        %v5133 = vadd.f32 0.0, %v5132
        %v5134 = vpop.f32.mrb[0].mxu0
        %v5135 = vpop.f32.mrb[0].mxu0
        %v5136 = vpop.f32.mrb[0].mxu0
        %5137 = vdwg.mxu0
        %v5138 = vpack.c.bf16 %v4691, %v4691
        %v5139 = vpack.c.bf16 %v4174, %v4170
        %v5140 = vpack.c.bf16 %v4184, %v4180
        %v5141 = vpack.c.bf16 %v4194, %v4190
        %v5142 = vpack.c.bf16 %v4204, %v4200
        %v5143 = vpack.c.bf16 %v4214, %v4210
        %v5144 = vpack.c.bf16 %v4224, %v4220
        %v5145 = vpack.c.bf16 %v4234, %v4230
        %v5146 = vpack.c.bf16 %v4244, %v4240
        %v5147 = vpack.c.bf16 %v4254, %v4250
        %v5148 = vpack.c.bf16 %v4264, %v4260
        %v5149 = vpack.c.bf16 %v4274, %v4270
        %v5150 = vpack.c.bf16 %v4284, %v4280
        %v5151 = vpack.c.bf16 %v4294, %v4290
        %v5152 = vpack.c.bf16 %v4304, %v4300
        %v5153 = vpack.c.bf16 %v4314, %v4310
        %v5154 = vpack.c.bf16 %v4324, %v4320
        %v5155 = vpack.c.bf16 %v4538, %v4534
        %v5156 = vpack.c.bf16 %v4548, %v4544
        %v5157 = vpack.c.bf16 %v4558, %v4554
        %v5158 = vpack.c.bf16 %v4568, %v4564
        %v5159 = vpack.c.bf16 %v4578, %v4574
        %v5160 = vpack.c.bf16 %v4588, %v4584
        %v5161 = vpack.c.bf16 %v4598, %v4594
        %v5162 = vpack.c.bf16 %v4608, %v4604
        %v5163 = vpack.c.bf16 %v4618, %v4614
        %v5164 = vpack.c.bf16 %v4628, %v4624
        %v5165 = vpack.c.bf16 %v4638, %v4634
        %v5166 = vpack.c.bf16 %v4648, %v4644
        %v5167 = vpack.c.bf16 %v4658, %v4654
        %v5168 = vpack.c.bf16 %v4668, %v4664
        %v5169 = vpack.c.bf16 %v4678, %v4674
        %v5170 = vpack.c.bf16 %v4688, %v4684
        %v5172 = vsel %vm2745, %v5138, 0
        %v5175 = vsel %vm2745, %v5139, 0
        %v5178 = vsel %vm2745, %v5140, 0
        %v5181 = vsel %vm2745, %v5141, 0
        %v5184 = vsel %vm2745, %v5142, 0
        %v5187 = vsel %vm2745, %v5143, 0
        %v5190 = vsel %vm2745, %v5144, 0
        %v5193 = vsel %vm2745, %v5145, 0
        %v5196 = vsel %vm2745, %v5146, 0
        %v5199 = vsel %vm2745, %v5147, 0
        %v5202 = vsel %vm2745, %v5148, 0
        %v5205 = vsel %vm2745, %v5149, 0
        %v5208 = vsel %vm2745, %v5150, 0
        %v5211 = vsel %vm2745, %v5151, 0
        %v5214 = vsel %vm2745, %v5152, 0
        %v5217 = vsel %vm2745, %v5153, 0
        %v5220 = vsel %vm2745, %v5154, 0
        %5222 = vmatprep.subr.bf16.mxu0 0
        %5223 = vmatpush1.bf16.xpose.msra.mxu0 %v5175
        %5224 = vmatprep.subr.bf16.mxu0 0
        %5225 = vmatpush1.bf16.xpose.msra.mxu0 %v5178
        %5226 = vmatprep.subr.bf16.mxu0 0
        %5227 = vmatpush1.bf16.xpose.msra.mxu0 %v5181
        %5228 = vmatprep.subr.bf16.mxu0 0
        %5229 = vmatpush1.bf16.xpose.msra.mxu0 %v5184
        %5230 = vmatprep.subr.bf16.mxu0 0
        %5231 = vmatpush1.bf16.xpose.msra.mxu0 %v5187
        %5232 = vmatprep.subr.bf16.mxu0 0
        %5233 = vmatpush1.bf16.xpose.msra.mxu0 %v5190
        %5234 = vmatprep.subr.bf16.mxu0 0
        %5235 = vmatpush1.bf16.xpose.msra.mxu0 %v5193
        %5236 = vmatprep.subr.bf16.mxu0 0
        %5237 = vmatpush1.bf16.xpose.msra.mxu0 %v5196
        %5238 = vmatprep.subr.bf16.mxu0 0
        %5239 = vmatpush1.bf16.xpose.msra.mxu0 %v5199
        %5240 = vmatprep.subr.bf16.mxu0 0
        %5241 = vmatpush1.bf16.xpose.msra.mxu0 %v5202
        %5242 = vmatprep.subr.bf16.mxu0 0
        %5243 = vmatpush1.bf16.xpose.msra.mxu0 %v5205
        %5244 = vmatprep.subr.bf16.mxu0 0
        %5245 = vmatpush1.bf16.xpose.msra.mxu0 %v5208
        %5246 = vmatprep.subr.bf16.mxu0 0
        %5247 = vmatpush1.bf16.xpose.msra.mxu0 %v5211
        %5248 = vmatprep.subr.bf16.mxu0 0
        %5249 = vmatpush1.bf16.xpose.msra.mxu0 %v5214
        %5250 = vmatprep.subr.bf16.mxu0 0
        %5251 = vmatpush1.bf16.xpose.msra.mxu0 %v5217
        %5252 = vmatprep.subr.bf16.mxu0 0
        %5253 = vmatpush1.bf16.xpose.msra.mxu0 %v5220
        %5254 = vmatprep.mubr.bf16.mxu0 0
        %5255 = vmatmul.mubr.bf16.gmra.mrb[0].mxu0 %v5172
        %v5256 = vpop.f32.mrb[0].mxu0
        %v5257 = vadd.f32 0.0, %v5256
        %v5258 = vpop.f32.mrb[0].mxu0
        %v5259 = vadd.f32 0.0, %v5258
        %v5260 = vpop.f32.mrb[0].mxu0
        %v5261 = vpop.f32.mrb[0].mxu0
        %5262 = vdwg.mxu0
        %v5263 = vmax.f32 %v5257, %v5259
        %5264 = vmax.xlane.f32.xlu0 %v5263
        %v5265 = vpop.xlane.xlu0 %5264
        %v5266 = vsub.f32 %v5257, %v5265
        %v5267 = vsub.f32 %v5259, %v5265
        %v5268 = vmul.f32 %v5266, 1.442695
        %v5269 = vpow.pop %v5268
        %v5270 = vmul.f32 %v5267, 1.442695
        %v5271 = vpow.pop %v5270
        %v5272 = vadd.f32 %v5269, %v5271
        %5273 = vadd.xlane.f32.xlu0 %v5272
        %v5274 = vpop.xlane.xlu0 %5273
        %v5275 = vrcp.pop %v5274
        %v5276 = vmul.f32 %v5269, %v5275
        %v5277 = vmul.f32 %v5271, %v5275
        %v5278 = vpack.c.bf16 %v5276, %v5276
        %v5279 = vpack.c.bf16 %v5277, %v5277
        %5280 = vmatprep.subr.bf16.mxu0 0
        %5281 = vmatpush1.bf16.msra.mxu0 %v5155
        %5282 = vmatprep.subr.bf16.mxu0 0
        %5283 = vmatpush1.bf16.msra.mxu0 %v5156
        %5284 = vmatprep.subr.bf16.mxu0 0
        %5285 = vmatpush1.bf16.msra.mxu0 %v5157
        %5286 = vmatprep.subr.bf16.mxu0 0
        %5287 = vmatpush1.bf16.msra.mxu0 %v5158
        %5288 = vmatprep.subr.bf16.mxu0 0
        %5289 = vmatpush1.bf16.msra.mxu0 %v5159
        %5290 = vmatprep.subr.bf16.mxu0 0
        %5291 = vmatpush1.bf16.msra.mxu0 %v5160
        %5292 = vmatprep.subr.bf16.mxu0 0
        %5293 = vmatpush1.bf16.msra.mxu0 %v5161
        %5294 = vmatprep.subr.bf16.mxu0 0
        %5295 = vmatpush1.bf16.msra.mxu0 %v5162
        %5296 = vmatprep.subr.bf16.mxu0 0
        %5297 = vmatpush1.bf16.msra.mxu0 %v5163
        %5298 = vmatprep.subr.bf16.mxu0 0
        %5299 = vmatpush1.bf16.msra.mxu0 %v5164
        %5300 = vmatprep.subr.bf16.mxu0 0
        %5301 = vmatpush1.bf16.msra.mxu0 %v5165
        %5302 = vmatprep.subr.bf16.mxu0 0
        %5303 = vmatpush1.bf16.msra.mxu0 %v5166
        %5304 = vmatprep.subr.bf16.mxu0 0
        %5305 = vmatpush1.bf16.msra.mxu0 %v5167
        %5306 = vmatprep.subr.bf16.mxu0 0
        %5307 = vmatpush1.bf16.msra.mxu0 %v5168
        %5308 = vmatprep.subr.bf16.mxu0 0
        %5309 = vmatpush1.bf16.msra.mxu0 %v5169
        %5310 = vmatprep.subr.bf16.mxu0 0
        %5311 = vmatpush1.bf16.msra.mxu0 %v5170
        %5312 = vmatprep.mubr.bf16.mxu0 %v5279
        %5313 = vmatmul.mubr.bf16.gmra.mrb[0].mxu0 %v5278
        %v5314 = vpop.f32.mrb[0].mxu0
        %v5315 = vadd.f32 0.0, %v5314
        %v5316 = vpop.f32.mrb[0].mxu0
        %v5317 = vpop.f32.mrb[0].mxu0
        %v5318 = vpop.f32.mrb[0].mxu0
        %5319 = vdwg.mxu0
        %5321 = vrot.lane.b32.xlu0 %v5138, 64
        %v5322 = vpop.permute.xlu0 %5321
        %5339 = vrot.lane.b32.xlu0 %v5139, 64
        %v5340 = vpop.permute.xlu0 %5339
        %5341 = vrot.lane.b32.xlu0 %v5140, 64
        %v5342 = vpop.permute.xlu0 %5341
        %5343 = vrot.lane.b32.xlu0 %v5141, 64
        %v5344 = vpop.permute.xlu0 %5343
        %5345 = vrot.lane.b32.xlu0 %v5142, 64
        %v5346 = vpop.permute.xlu0 %5345
        %5347 = vrot.lane.b32.xlu0 %v5143, 64
        %v5348 = vpop.permute.xlu0 %5347
        %5349 = vrot.lane.b32.xlu0 %v5144, 64
        %v5350 = vpop.permute.xlu0 %5349
        %5351 = vrot.lane.b32.xlu0 %v5145, 64
        %v5352 = vpop.permute.xlu0 %5351
        %5353 = vrot.lane.b32.xlu0 %v5146, 64
        %v5354 = vpop.permute.xlu0 %5353
        %5355 = vrot.lane.b32.xlu0 %v5147, 64
        %v5356 = vpop.permute.xlu0 %5355
        %5357 = vrot.lane.b32.xlu0 %v5148, 64
        %v5358 = vpop.permute.xlu0 %5357
        %5359 = vrot.lane.b32.xlu0 %v5149, 64
        %v5360 = vpop.permute.xlu0 %5359
        %5361 = vrot.lane.b32.xlu0 %v5150, 64
        %v5362 = vpop.permute.xlu0 %5361
        %5363 = vrot.lane.b32.xlu0 %v5151, 64
        %v5364 = vpop.permute.xlu0 %5363
        %5365 = vrot.lane.b32.xlu0 %v5152, 64
        %v5366 = vpop.permute.xlu0 %5365
        %5367 = vrot.lane.b32.xlu0 %v5153, 64
        %v5368 = vpop.permute.xlu0 %5367
        %5369 = vrot.lane.b32.xlu0 %v5154, 64
        %v5370 = vpop.permute.xlu0 %5369
        %v5372 = vsel %vm2745, %v5322, 0
        %v5375 = vsel %vm2745, %v5340, 0
        %v5378 = vsel %vm2745, %v5342, 0
        %v5381 = vsel %vm2745, %v5344, 0
        %v5384 = vsel %vm2745, %v5346, 0
        %v5387 = vsel %vm2745, %v5348, 0
        %v5390 = vsel %vm2745, %v5350, 0
        %v5393 = vsel %vm2745, %v5352, 0
        %v5396 = vsel %vm2745, %v5354, 0
        %v5399 = vsel %vm2745, %v5356, 0
        %v5402 = vsel %vm2745, %v5358, 0
        %v5405 = vsel %vm2745, %v5360, 0
        %v5408 = vsel %vm2745, %v5362, 0
        %v5411 = vsel %vm2745, %v5364, 0
        %v5414 = vsel %vm2745, %v5366, 0
        %v5417 = vsel %vm2745, %v5368, 0
        %v5420 = vsel %vm2745, %v5370, 0
        %5422 = vmatprep.subr.bf16.mxu0 0
        %5423 = vmatpush1.bf16.xpose.msra.mxu0 %v5375
        %5424 = vmatprep.subr.bf16.mxu0 0
        %5425 = vmatpush1.bf16.xpose.msra.mxu0 %v5378
        %5426 = vmatprep.subr.bf16.mxu0 0
        %5427 = vmatpush1.bf16.xpose.msra.mxu0 %v5381
        %5428 = vmatprep.subr.bf16.mxu0 0
        %5429 = vmatpush1.bf16.xpose.msra.mxu0 %v5384
        %5430 = vmatprep.subr.bf16.mxu0 0
        %5431 = vmatpush1.bf16.xpose.msra.mxu0 %v5387
        %5432 = vmatprep.subr.bf16.mxu0 0
        %5433 = vmatpush1.bf16.xpose.msra.mxu0 %v5390
        %5434 = vmatprep.subr.bf16.mxu0 0
        %5435 = vmatpush1.bf16.xpose.msra.mxu0 %v5393
        %5436 = vmatprep.subr.bf16.mxu0 0
        %5437 = vmatpush1.bf16.xpose.msra.mxu0 %v5396
        %5438 = vmatprep.subr.bf16.mxu0 0
        %5439 = vmatpush1.bf16.xpose.msra.mxu0 %v5399
        %5440 = vmatprep.subr.bf16.mxu0 0
        %5441 = vmatpush1.bf16.xpose.msra.mxu0 %v5402
        %5442 = vmatprep.subr.bf16.mxu0 0
        %5443 = vmatpush1.bf16.xpose.msra.mxu0 %v5405
        %5444 = vmatprep.subr.bf16.mxu0 0
        %5445 = vmatpush1.bf16.xpose.msra.mxu0 %v5408
        %5446 = vmatprep.subr.bf16.mxu0 0
        %5447 = vmatpush1.bf16.xpose.msra.mxu0 %v5411
        %5448 = vmatprep.subr.bf16.mxu0 0
        %5449 = vmatpush1.bf16.xpose.msra.mxu0 %v5414
        %5450 = vmatprep.subr.bf16.mxu0 0
        %5451 = vmatpush1.bf16.xpose.msra.mxu0 %v5417
        %5452 = vmatprep.subr.bf16.mxu0 0
        %5453 = vmatpush1.bf16.xpose.msra.mxu0 %v5420
        %5454 = vmatprep.mubr.bf16.mxu0 0
        %5455 = vmatmul.mubr.bf16.gmra.mrb[0].mxu0 %v5372
        %v5456 = vpop.f32.mrb[0].mxu0
        %v5457 = vadd.f32 0.0, %v5456
        %v5458 = vpop.f32.mrb[0].mxu0
        %v5459 = vadd.f32 0.0, %v5458
        %v5460 = vpop.f32.mrb[0].mxu0
        %v5461 = vpop.f32.mrb[0].mxu0
        %5462 = vdwg.mxu0
        %v5463 = vmax.f32 %v5457, %v5459
        %5464 = vmax.xlane.f32.xlu0 %v5463
        %v5465 = vpop.xlane.xlu0 %5464
        %v5466 = vsub.f32 %v5457, %v5465
        %v5467 = vsub.f32 %v5459, %v5465
        %v5468 = vmul.f32 %v5466, 1.442695
        %v5469 = vpow.pop %v5468
        %v5470 = vmul.f32 %v5467, 1.442695
        %v5471 = vpow.pop %v5470
        %v5472 = vadd.f32 %v5469, %v5471
        %5473 = vadd.xlane.f32.xlu0 %v5472
        %v5474 = vpop.xlane.xlu0 %5473
        %v5475 = vrcp.pop %v5474
        %v5476 = vmul.f32 %v5469, %v5475
        %v5477 = vmul.f32 %v5471, %v5475
        %v5478 = vpack.c.bf16 %v5476, %v5476
        %v5479 = vpack.c.bf16 %v5477, %v5477
        %5496 = vrot.lane.b32.xlu0 %v5155, 64
        %v5497 = vpop.permute.xlu0 %5496
        %5498 = vrot.lane.b32.xlu0 %v5156, 64
        %v5499 = vpop.permute.xlu0 %5498
        %5500 = vrot.lane.b32.xlu0 %v5157, 64
        %v5501 = vpop.permute.xlu0 %5500
        %5502 = vrot.lane.b32.xlu0 %v5158, 64
        %v5503 = vpop.permute.xlu0 %5502
        %5504 = vrot.lane.b32.xlu0 %v5159, 64
        %v5505 = vpop.permute.xlu0 %5504
        %5506 = vrot.lane.b32.xlu0 %v5160, 64
        %v5507 = vpop.permute.xlu0 %5506
        %5508 = vrot.lane.b32.xlu0 %v5161, 64
        %v5509 = vpop.permute.xlu0 %5508
        %5510 = vrot.lane.b32.xlu0 %v5162, 64
        %v5511 = vpop.permute.xlu0 %5510
        %5512 = vrot.lane.b32.xlu0 %v5163, 64
        %v5513 = vpop.permute.xlu0 %5512
        %5514 = vrot.lane.b32.xlu0 %v5164, 64
        %v5515 = vpop.permute.xlu0 %5514
        %5516 = vrot.lane.b32.xlu0 %v5165, 64
        %v5517 = vpop.permute.xlu0 %5516
        %5518 = vrot.lane.b32.xlu0 %v5166, 64
        %v5519 = vpop.permute.xlu0 %5518
        %5520 = vrot.lane.b32.xlu0 %v5167, 64
        %v5521 = vpop.permute.xlu0 %5520
        %5522 = vrot.lane.b32.xlu0 %v5168, 64
        %v5523 = vpop.permute.xlu0 %5522
        %5524 = vrot.lane.b32.xlu0 %v5169, 64
        %v5525 = vpop.permute.xlu0 %5524
        %5526 = vrot.lane.b32.xlu0 %v5170, 64
        %v5527 = vpop.permute.xlu0 %5526
        %5544 = vmatprep.subr.bf16.mxu0 0
        %5545 = vmatpush1.bf16.msra.mxu0 %v5497
        %5546 = vmatprep.subr.bf16.mxu0 0
        %5547 = vmatpush1.bf16.msra.mxu0 %v5499
        %5548 = vmatprep.subr.bf16.mxu0 0
        %5549 = vmatpush1.bf16.msra.mxu0 %v5501
        %5550 = vmatprep.subr.bf16.mxu0 0
        %5551 = vmatpush1.bf16.msra.mxu0 %v5503
        %5552 = vmatprep.subr.bf16.mxu0 0
        %5553 = vmatpush1.bf16.msra.mxu0 %v5505
        %5554 = vmatprep.subr.bf16.mxu0 0
        %5555 = vmatpush1.bf16.msra.mxu0 %v5507
        %5556 = vmatprep.subr.bf16.mxu0 0
        %5557 = vmatpush1.bf16.msra.mxu0 %v5509
        %5558 = vmatprep.subr.bf16.mxu0 0
        %5559 = vmatpush1.bf16.msra.mxu0 %v5511
        %5560 = vmatprep.subr.bf16.mxu0 0
        %5561 = vmatpush1.bf16.msra.mxu0 %v5513
        %5562 = vmatprep.subr.bf16.mxu0 0
        %5563 = vmatpush1.bf16.msra.mxu0 %v5515
        %5564 = vmatprep.subr.bf16.mxu0 0
        %5565 = vmatpush1.bf16.msra.mxu0 %v5517
        %5566 = vmatprep.subr.bf16.mxu0 0
        %5567 = vmatpush1.bf16.msra.mxu0 %v5519
        %5568 = vmatprep.subr.bf16.mxu0 0
        %5569 = vmatpush1.bf16.msra.mxu0 %v5521
        %5570 = vmatprep.subr.bf16.mxu0 0
        %5571 = vmatpush1.bf16.msra.mxu0 %v5523
        %5572 = vmatprep.subr.bf16.mxu0 0
        %5573 = vmatpush1.bf16.msra.mxu0 %v5525
        %5574 = vmatprep.subr.bf16.mxu0 0
        %5575 = vmatpush1.bf16.msra.mxu0 %v5527
        %5576 = vmatprep.mubr.bf16.mxu0 %v5479
        %5577 = vmatmul.mubr.bf16.gmra.mrb[0].mxu0 %v5478
        %v5578 = vpop.f32.mrb[0].mxu0
        %v5579 = vadd.f32 0.0, %v5578
        %v5580 = vpop.f32.mrb[0].mxu0
        %v5581 = vpop.f32.mrb[0].mxu0
        %v5582 = vpop.f32.mrb[0].mxu0
        %5583 = vdwg.mxu0
        %5585 = vrot.lane.b32.xlu0 %v5133, 64
        %v5586 = vpop.permute.xlu0 %5585
        %5589 = vrot.lane.b32.xlu0 %v5579, 64
        %v5590 = vpop.permute.xlu0 %5589
        %v5592 = vsel %vm2745, %v4869, %v5586
        %v5593 = vsel %vm2745, %v5315, %v5590
        %v5594 = vpack.c.bf16 %v5592, %v5592
        %v5595 = vpack.c.bf16 %v5593, %v5593
        %v5597 = vlaneseq
        %v5598 = vshrl.u32 %v5597, 7
        %v5599 = vsub.s32 0, %v5598
        %v5600 = vrot.slane %v3589, %v5599
        %v5601 = vlaneseq
        %v5602 = vshrl.u32 %v5601, 7
        %v5603 = vsub.s32 1, %v5602
        %v5604 = vrot.slane %v3589, %v5603
        %v5639 = vunpack.c.l.b16 %v3557
        %v5640 = vunpack.c.h.b16 %v3557
        %v5641 = vunpack.c.l.b16 %v3558
        %v5642 = vunpack.c.h.b16 %v3558
        %v5643 = vunpack.c.l.b16 %v3559
        %v5644 = vunpack.c.h.b16 %v3559
        %v5645 = vunpack.c.l.b16 %v3560
        %v5646 = vunpack.c.h.b16 %v3560
        %v5647 = vunpack.c.l.b16 %v3561
        %v5648 = vunpack.c.h.b16 %v3561
        %v5649 = vunpack.c.l.b16 %v3562
        %v5650 = vunpack.c.h.b16 %v3562
        %v5651 = vunpack.c.l.b16 %v3563
        %v5652 = vunpack.c.h.b16 %v3563
        %v5653 = vunpack.c.l.b16 %v3564
        %v5654 = vunpack.c.h.b16 %v3564
        %v5655 = vunpack.c.l.b16 %v3565
        %v5656 = vunpack.c.h.b16 %v3565
        %v5657 = vunpack.c.l.b16 %v3566
        %v5658 = vunpack.c.h.b16 %v3566
        %v5659 = vunpack.c.l.b16 %v3567
        %v5660 = vunpack.c.h.b16 %v3567
        %v5661 = vunpack.c.l.b16 %v3568
        %v5662 = vunpack.c.h.b16 %v3568
        %v5663 = vunpack.c.l.b16 %v3569
        %v5664 = vunpack.c.h.b16 %v3569
        %v5665 = vunpack.c.l.b16 %v3570
        %v5666 = vunpack.c.h.b16 %v3570
        %v5667 = vunpack.c.l.b16 %v3571
        %v5668 = vunpack.c.h.b16 %v3571
        %v5669 = vunpack.c.l.b16 %v3572
        %v5670 = vunpack.c.h.b16 %v3572
        %v5671 = vunpack.c.l.b16 %v3573
        %v5672 = vunpack.c.h.b16 %v3573
        %v5673 = vunpack.c.l.b16 %v3574
        %v5674 = vunpack.c.h.b16 %v3574
        %v5675 = vunpack.c.l.b16 %v3575
        %v5676 = vunpack.c.h.b16 %v3575
        %v5677 = vunpack.c.l.b16 %v3576
        %v5678 = vunpack.c.h.b16 %v3576
        %v5679 = vunpack.c.l.b16 %v3577
        %v5680 = vunpack.c.h.b16 %v3577
        %v5681 = vunpack.c.l.b16 %v3578
        %v5682 = vunpack.c.h.b16 %v3578
        %v5683 = vunpack.c.l.b16 %v3579
        %v5684 = vunpack.c.h.b16 %v3579
        %v5685 = vunpack.c.l.b16 %v3580
        %v5686 = vunpack.c.h.b16 %v3580
        %v5687 = vunpack.c.l.b16 %v3581
        %v5688 = vunpack.c.h.b16 %v3581
        %v5689 = vunpack.c.l.b16 %v3582
        %v5690 = vunpack.c.h.b16 %v3582
        %v5691 = vunpack.c.l.b16 %v3583
        %v5692 = vunpack.c.h.b16 %v3583
        %v5693 = vunpack.c.l.b16 %v3584
        %v5694 = vunpack.c.h.b16 %v3584
        %v5695 = vunpack.c.l.b16 %v3585
        %v5696 = vunpack.c.h.b16 %v3585
        %v5697 = vunpack.c.l.b16 %v3586
        %v5698 = vunpack.c.h.b16 %v3586
        %v5699 = vunpack.c.l.b16 %v3587
        %v5700 = vunpack.c.h.b16 %v3587
        %v5701 = vunpack.c.l.b16 %v3588
        %v5702 = vunpack.c.h.b16 %v3588
        %v5703 = vpack.c.b16 %v5641, %v5639
        %v5704 = vpack.c.b16 %v5642, %v5640
        %v5705 = vpack.c.b16 %v5645, %v5643
        %v5706 = vpack.c.b16 %v5646, %v5644
        %v5707 = vpack.c.b16 %v5649, %v5647
        %v5708 = vpack.c.b16 %v5650, %v5648
        %v5709 = vpack.c.b16 %v5653, %v5651
        %v5710 = vpack.c.b16 %v5654, %v5652
        %v5711 = vpack.c.b16 %v5657, %v5655
        %v5712 = vpack.c.b16 %v5658, %v5656
        %v5713 = vpack.c.b16 %v5661, %v5659
        %v5714 = vpack.c.b16 %v5662, %v5660
        %v5715 = vpack.c.b16 %v5665, %v5663
        %v5716 = vpack.c.b16 %v5666, %v5664
        %v5717 = vpack.c.b16 %v5669, %v5667
        %v5718 = vpack.c.b16 %v5670, %v5668
        %v5719 = vpack.c.b16 %v5673, %v5671
        %v5720 = vpack.c.b16 %v5674, %v5672
        %v5721 = vpack.c.b16 %v5677, %v5675
        %v5722 = vpack.c.b16 %v5678, %v5676
        %v5723 = vpack.c.b16 %v5681, %v5679
        %v5724 = vpack.c.b16 %v5682, %v5680
        %v5725 = vpack.c.b16 %v5685, %v5683
        %v5726 = vpack.c.b16 %v5686, %v5684
        %v5727 = vpack.c.b16 %v5689, %v5687
        %v5728 = vpack.c.b16 %v5690, %v5688
        %v5729 = vpack.c.b16 %v5693, %v5691
        %v5730 = vpack.c.b16 %v5694, %v5692
        %v5731 = vpack.c.b16 %v5697, %v5695
        %v5732 = vpack.c.b16 %v5698, %v5696
        %v5733 = vpack.c.b16 %v5701, %v5699
        %v5734 = vpack.c.b16 %v5702, %v5700
        %5767 = vmatprep.subr.bf16.mxu0 %v5704
        %5768 = vmatpush1.bf16.msra.mxu0 %v5703
        %5769 = vmatprep.subr.bf16.mxu0 %v5706
        %5770 = vmatpush1.bf16.msra.mxu0 %v5705
        %5771 = vmatprep.subr.bf16.mxu0 %v5708
        %5772 = vmatpush1.bf16.msra.mxu0 %v5707
        %5773 = vmatprep.subr.bf16.mxu0 %v5710
        %5774 = vmatpush1.bf16.msra.mxu0 %v5709
        %5775 = vmatprep.subr.bf16.mxu0 %v5712
        %5776 = vmatpush1.bf16.msra.mxu0 %v5711
        %5777 = vmatprep.subr.bf16.mxu0 %v5714
        %5778 = vmatpush1.bf16.msra.mxu0 %v5713
        %5779 = vmatprep.subr.bf16.mxu0 %v5716
        %5780 = vmatpush1.bf16.msra.mxu0 %v5715
        %5781 = vmatprep.subr.bf16.mxu0 %v5718
        %5782 = vmatpush1.bf16.msra.mxu0 %v5717
        %5783 = vmatprep.subr.bf16.mxu0 %v5720
        %5784 = vmatpush1.bf16.msra.mxu0 %v5719
        %5785 = vmatprep.subr.bf16.mxu0 %v5722
        %5786 = vmatpush1.bf16.msra.mxu0 %v5721
        %5787 = vmatprep.subr.bf16.mxu0 %v5724
        %5788 = vmatpush1.bf16.msra.mxu0 %v5723
        %5789 = vmatprep.subr.bf16.mxu0 %v5726
        %5790 = vmatpush1.bf16.msra.mxu0 %v5725
        %5791 = vmatprep.subr.bf16.mxu0 %v5728
        %5792 = vmatpush1.bf16.msra.mxu0 %v5727
        %5793 = vmatprep.subr.bf16.mxu0 %v5730
        %5794 = vmatpush1.bf16.msra.mxu0 %v5729
        %5795 = vmatprep.subr.bf16.mxu0 %v5732
        %5796 = vmatpush1.bf16.msra.mxu0 %v5731
        %5797 = vmatprep.subr.bf16.mxu0 %v5734
        %5798 = vmatpush1.bf16.msra.mxu0 %v5733
        %5799 = vmatprep.mubr.bf16.mxu0 %v5595
        %5800 = vmatmul.mubr.bf16.gmra.mrb[0].mxu0 %v5594
        %v5801 = vpop.f32.mrb[0].mxu0
        %v5802 = vadd.f32 %v5600, %v5801
        %v5803 = vpop.f32.mrb[0].mxu0
        %v5804 = vadd.f32 %v5604, %v5803
        %v5805 = vpop.f32.mrb[0].mxu0
        %v5806 = vpop.f32.mrb[0].mxu0
        %5807 = vdwg.mxu0
        %v5808 = vadd.f32 %v3454, %v5802
        %v5809 = vadd.f32 %v3455, %v5804
        %v5810 = vld [vmem:[%s1650] sm:$0x3]
        %v5811 = vld [vmem:[%s1659] sm:$0x3]
        %v5812 = vadd.f32 %v5808, %v5809
        %5813 = vadd.xlane.f32.xlu0 %v5812
        %v5814 = vpop.xlane.xlu0 %5813
        %v5815 = vmul.f32 %v5814, %v3416
        %v5816 = vsub.f32 %v5808, %v5815
        %v5817 = vsub.f32 %v5809, %v5815
        %v5818 = vmul.f32 %v5816, %v5816
        %v5819 = vmul.f32 %v5817, %v5817
        %v5820 = vadd.f32 %v5818, %v5819
        %5821 = vadd.xlane.f32.xlu0 %v5820
        %v5822 = vpop.xlane.xlu0 %5821
        %v5823 = vmul.f32 %v5822, %v3416
        %v5824 = vadd.f32 %v5823, 1e-05
        %v5825 = vrsqrt.pop %v5824
        %v5826 = vmul.f32 %v5816, %v5825
        %v5827 = vmul.f32 %v5817, %v5825
        %v5829 = vlaneseq
        %v5830 = vshrl.u32 %v5829, 7
        %v5831 = vsub.s32 0, %v5830
        %v5832 = vrot.slane %v5810, %v5831
        %v5833 = vlaneseq
        %v5834 = vshrl.u32 %v5833, 7
        %v5835 = vsub.s32 1, %v5834
        %v5836 = vrot.slane %v5810, %v5835
        %v5839 = vmul.f32 %v5826, %v5832
        %v5840 = vmul.f32 %v5827, %v5836
        %v5842 = vlaneseq
        %v5843 = vshrl.u32 %v5842, 7
        %v5844 = vsub.s32 0, %v5843
        %v5845 = vrot.slane %v5811, %v5844
        %v5846 = vlaneseq
        %v5847 = vshrl.u32 %v5846, 7
        %v5848 = vsub.s32 1, %v5847
        %v5849 = vrot.slane %v5811, %v5848
        %v5852 = vadd.f32 %v5839, %v5845
        %v5853 = vadd.f32 %v5840, %v5849
        %v5854 = vpack.c.bf16 %v5852, %v5852
        %v5855 = vpack.c.bf16 %v5853, %v5853
        %v5856 = vld [vmem:[%s1686] sm:$0xff]
        %v5857 = vld [vmem:[%s1686 + $0x8] sm:$0xff]
        %v5858 = vld [vmem:[%s1686 + $0x10] sm:$0xff]
        %v5859 = vld [vmem:[%s1686 + $0x18] sm:$0xff]
        %v5860 = vld [vmem:[%s1686 + $0x20] sm:$0xff]
        %v5861 = vld [vmem:[%s1686 + $0x28] sm:$0xff]
        %v5862 = vld [vmem:[%s1686 + $0x30] sm:$0xff]
        %v5863 = vld [vmem:[%s1686 + $0x38] sm:$0xff]
        %v5864 = vld [vmem:[%s1686 + $0x40] sm:$0xff]
        %v5865 = vld [vmem:[%s1686 + $0x48] sm:$0xff]
        %v5866 = vld [vmem:[%s1686 + $0x50] sm:$0xff]
        %v5867 = vld [vmem:[%s1686 + $0x58] sm:$0xff]
        %v5868 = vld [vmem:[%s1686 + $0x60] sm:$0xff]
        %v5869 = vld [vmem:[%s1686 + $0x68] sm:$0xff]
        %v5870 = vld [vmem:[%s1686 + $0x70] sm:$0xff]
        %v5871 = vld [vmem:[%s1686 + $0x78] sm:$0xff]
        %v5872 = vld [vmem:[%s1686 + $0x80] sm:$0xff]
        %v5873 = vld [vmem:[%s1686 + $0x88] sm:$0xff]
        %v5874 = vld [vmem:[%s1686 + $0x90] sm:$0xff]
        %v5875 = vld [vmem:[%s1686 + $0x98] sm:$0xff]
        %v5876 = vld [vmem:[%s1686 + $0xa0] sm:$0xff]
        %v5877 = vld [vmem:[%s1686 + $0xa8] sm:$0xff]
        %v5878 = vld [vmem:[%s1686 + $0xb0] sm:$0xff]
        %v5879 = vld [vmem:[%s1686 + $0xb8] sm:$0xff]
        %v5880 = vld [vmem:[%s1686 + $0xc0] sm:$0xff]
        %v5881 = vld [vmem:[%s1686 + $0xc8] sm:$0xff]
        %v5882 = vld [vmem:[%s1686 + $0xd0] sm:$0xff]
        %v5883 = vld [vmem:[%s1686 + $0xd8] sm:$0xff]
        %v5884 = vld [vmem:[%s1686 + $0xe0] sm:$0xff]
        %v5885 = vld [vmem:[%s1686 + $0xe8] sm:$0xff]
        %v5886 = vld [vmem:[%s1686 + $0xf0] sm:$0xff]
        %v5887 = vld [vmem:[%s1686 + $0xf8] sm:$0xff]
        %v5888 = vld [vmem:[%s1686 + $0x100] sm:$0xff]
        %v5889 = vld [vmem:[%s1686 + $0x108] sm:$0xff]
        %v5890 = vld [vmem:[%s1686 + $0x110] sm:$0xff]
        %v5891 = vld [vmem:[%s1686 + $0x118] sm:$0xff]
        %v5892 = vld [vmem:[%s1686 + $0x120] sm:$0xff]
        %v5893 = vld [vmem:[%s1686 + $0x128] sm:$0xff]
        %v5894 = vld [vmem:[%s1686 + $0x130] sm:$0xff]
        %v5895 = vld [vmem:[%s1686 + $0x138] sm:$0xff]
        %v5896 = vld [vmem:[%s1686 + $0x140] sm:$0xff]
        %v5897 = vld [vmem:[%s1686 + $0x148] sm:$0xff]
        %v5898 = vld [vmem:[%s1686 + $0x150] sm:$0xff]
        %v5899 = vld [vmem:[%s1686 + $0x158] sm:$0xff]
        %v5900 = vld [vmem:[%s1686 + $0x160] sm:$0xff]
        %v5901 = vld [vmem:[%s1686 + $0x168] sm:$0xff]
        %v5902 = vld [vmem:[%s1686 + $0x170] sm:$0xff]
        %v5903 = vld [vmem:[%s1686 + $0x178] sm:$0xff]
        %v5904 = vld [vmem:[%s1686 + $0x180] sm:$0xff]
        %v5905 = vld [vmem:[%s1686 + $0x188] sm:$0xff]
        %v5906 = vld [vmem:[%s1686 + $0x190] sm:$0xff]
        %v5907 = vld [vmem:[%s1686 + $0x198] sm:$0xff]
        %v5908 = vld [vmem:[%s1686 + $0x1a0] sm:$0xff]
        %v5909 = vld [vmem:[%s1686 + $0x1a8] sm:$0xff]
        %v5910 = vld [vmem:[%s1686 + $0x1b0] sm:$0xff]
        %v5911 = vld [vmem:[%s1686 + $0x1b8] sm:$0xff]
        %v5912 = vld [vmem:[%s1686 + $0x1c0] sm:$0xff]
        %v5913 = vld [vmem:[%s1686 + $0x1c8] sm:$0xff]
        %v5914 = vld [vmem:[%s1686 + $0x1d0] sm:$0xff]
        %v5915 = vld [vmem:[%s1686 + $0x1d8] sm:$0xff]
        %v5916 = vld [vmem:[%s1686 + $0x1e0] sm:$0xff]
        %v5917 = vld [vmem:[%s1686 + $0x1e8] sm:$0xff]
        %v5918 = vld [vmem:[%s1686 + $0x1f0] sm:$0xff]
        %v5919 = vld [vmem:[%s1686 + $0x1f8] sm:$0xff]
        %v5920 = vld [vmem:[%s1686 + $0x200] sm:$0xff]
        %v5921 = vld [vmem:[%s1686 + $0x208] sm:$0xff]
        %v5922 = vld [vmem:[%s1686 + $0x210] sm:$0xff]
        %v5923 = vld [vmem:[%s1686 + $0x218] sm:$0xff]
        %v5924 = vld [vmem:[%s1686 + $0x220] sm:$0xff]
        %v5925 = vld [vmem:[%s1686 + $0x228] sm:$0xff]
        %v5926 = vld [vmem:[%s1686 + $0x230] sm:$0xff]
        %v5927 = vld [vmem:[%s1686 + $0x238] sm:$0xff]
        %v5928 = vld [vmem:[%s1686 + $0x240] sm:$0xff]
        %v5929 = vld [vmem:[%s1686 + $0x248] sm:$0xff]
        %v5930 = vld [vmem:[%s1686 + $0x250] sm:$0xff]
        %v5931 = vld [vmem:[%s1686 + $0x258] sm:$0xff]
        %v5932 = vld [vmem:[%s1686 + $0x260] sm:$0xff]
        %v5933 = vld [vmem:[%s1686 + $0x268] sm:$0xff]
        %v5934 = vld [vmem:[%s1686 + $0x270] sm:$0xff]
        %v5935 = vld [vmem:[%s1686 + $0x278] sm:$0xff]
        %v5936 = vld [vmem:[%s1686 + $0x280] sm:$0xff]
        %v5937 = vld [vmem:[%s1686 + $0x288] sm:$0xff]
        %v5938 = vld [vmem:[%s1686 + $0x290] sm:$0xff]
        %v5939 = vld [vmem:[%s1686 + $0x298] sm:$0xff]
        %v5940 = vld [vmem:[%s1686 + $0x2a0] sm:$0xff]
        %v5941 = vld [vmem:[%s1686 + $0x2a8] sm:$0xff]
        %v5942 = vld [vmem:[%s1686 + $0x2b0] sm:$0xff]
        %v5943 = vld [vmem:[%s1686 + $0x2b8] sm:$0xff]
        %v5944 = vld [vmem:[%s1686 + $0x2c0] sm:$0xff]
        %v5945 = vld [vmem:[%s1686 + $0x2c8] sm:$0xff]
        %v5946 = vld [vmem:[%s1686 + $0x2d0] sm:$0xff]
        %v5947 = vld [vmem:[%s1686 + $0x2d8] sm:$0xff]
        %v5948 = vld [vmem:[%s1686 + $0x2e0] sm:$0xff]
        %v5949 = vld [vmem:[%s1686 + $0x2e8] sm:$0xff]
        %v5950 = vld [vmem:[%s1686 + $0x2f0] sm:$0xff]
        %v5951 = vld [vmem:[%s1686 + $0x2f8] sm:$0xff]
        %v5952 = vld [vmem:[%s1686 + $0x300] sm:$0xff]
        %v5953 = vld [vmem:[%s1686 + $0x308] sm:$0xff]
        %v5954 = vld [vmem:[%s1686 + $0x310] sm:$0xff]
        %v5955 = vld [vmem:[%s1686 + $0x318] sm:$0xff]
        %v5956 = vld [vmem:[%s1686 + $0x320] sm:$0xff]
        %v5957 = vld [vmem:[%s1686 + $0x328] sm:$0xff]
        %v5958 = vld [vmem:[%s1686 + $0x330] sm:$0xff]
        %v5959 = vld [vmem:[%s1686 + $0x338] sm:$0xff]
        %v5960 = vld [vmem:[%s1686 + $0x340] sm:$0xff]
        %v5961 = vld [vmem:[%s1686 + $0x348] sm:$0xff]
        %v5962 = vld [vmem:[%s1686 + $0x350] sm:$0xff]
        %v5963 = vld [vmem:[%s1686 + $0x358] sm:$0xff]
        %v5964 = vld [vmem:[%s1686 + $0x360] sm:$0xff]
        %v5965 = vld [vmem:[%s1686 + $0x368] sm:$0xff]
        %v5966 = vld [vmem:[%s1686 + $0x370] sm:$0xff]
        %v5967 = vld [vmem:[%s1686 + $0x378] sm:$0xff]
        %v5968 = vld [vmem:[%s1686 + $0x380] sm:$0xff]
        %v5969 = vld [vmem:[%s1686 + $0x388] sm:$0xff]
        %v5970 = vld [vmem:[%s1686 + $0x390] sm:$0xff]
        %v5971 = vld [vmem:[%s1686 + $0x398] sm:$0xff]
        %v5972 = vld [vmem:[%s1686 + $0x3a0] sm:$0xff]
        %v5973 = vld [vmem:[%s1686 + $0x3a8] sm:$0xff]
        %v5974 = vld [vmem:[%s1686 + $0x3b0] sm:$0xff]
        %v5975 = vld [vmem:[%s1686 + $0x3b8] sm:$0xff]
        %v5976 = vld [vmem:[%s1686 + $0x3c0] sm:$0xff]
        %v5977 = vld [vmem:[%s1686 + $0x3c8] sm:$0xff]
        %v5978 = vld [vmem:[%s1686 + $0x3d0] sm:$0xff]
        %v5979 = vld [vmem:[%s1686 + $0x3d8] sm:$0xff]
        %v5980 = vld [vmem:[%s1686 + $0x3e0] sm:$0xff]
        %v5981 = vld [vmem:[%s1686 + $0x3e8] sm:$0xff]
        %v5982 = vld [vmem:[%s1686 + $0x3f0] sm:$0xff]
        %v5983 = vld [vmem:[%s1686 + $0x3f8] sm:$0xff]
        %v5984 = vld [vmem:[%s1686 + $0x400] sm:$0xff]
        %v5985 = vld [vmem:[%s1686 + $0x408] sm:$0xff]
        %v5986 = vld [vmem:[%s1686 + $0x410] sm:$0xff]
        %v5987 = vld [vmem:[%s1686 + $0x418] sm:$0xff]
        %v5988 = vld [vmem:[%s1686 + $0x420] sm:$0xff]
        %v5989 = vld [vmem:[%s1686 + $0x428] sm:$0xff]
        %v5990 = vld [vmem:[%s1686 + $0x430] sm:$0xff]
        %v5991 = vld [vmem:[%s1686 + $0x438] sm:$0xff]
        %v5992 = vld [vmem:[%s1686 + $0x440] sm:$0xff]
        %v5993 = vld [vmem:[%s1686 + $0x448] sm:$0xff]
        %v5994 = vld [vmem:[%s1686 + $0x450] sm:$0xff]
        %v5995 = vld [vmem:[%s1686 + $0x458] sm:$0xff]
        %v5996 = vld [vmem:[%s1686 + $0x460] sm:$0xff]
        %v5997 = vld [vmem:[%s1686 + $0x468] sm:$0xff]
        %v5998 = vld [vmem:[%s1686 + $0x470] sm:$0xff]
        %v5999 = vld [vmem:[%s1686 + $0x478] sm:$0xff]
        %v6000 = vld [vmem:[%s1686 + $0x480] sm:$0xff]
        %v6001 = vld [vmem:[%s1686 + $0x488] sm:$0xff]
        %v6002 = vld [vmem:[%s1686 + $0x490] sm:$0xff]
        %v6003 = vld [vmem:[%s1686 + $0x498] sm:$0xff]
        %v6004 = vld [vmem:[%s1686 + $0x4a0] sm:$0xff]
        %v6005 = vld [vmem:[%s1686 + $0x4a8] sm:$0xff]
        %v6006 = vld [vmem:[%s1686 + $0x4b0] sm:$0xff]
        %v6007 = vld [vmem:[%s1686 + $0x4b8] sm:$0xff]
        %v6008 = vld [vmem:[%s1686 + $0x4c0] sm:$0xff]
        %v6009 = vld [vmem:[%s1686 + $0x4c8] sm:$0xff]
        %v6010 = vld [vmem:[%s1686 + $0x4d0] sm:$0xff]
        %v6011 = vld [vmem:[%s1686 + $0x4d8] sm:$0xff]
        %v6012 = vld [vmem:[%s1686 + $0x4e0] sm:$0xff]
        %v6013 = vld [vmem:[%s1686 + $0x4e8] sm:$0xff]
        %v6014 = vld [vmem:[%s1686 + $0x4f0] sm:$0xff]
        %v6015 = vld [vmem:[%s1686 + $0x4f8] sm:$0xff]
        %v6016 = vld [vmem:[%s1686 + $0x500] sm:$0xff]
        %v6017 = vld [vmem:[%s1686 + $0x508] sm:$0xff]
        %v6018 = vld [vmem:[%s1686 + $0x510] sm:$0xff]
        %v6019 = vld [vmem:[%s1686 + $0x518] sm:$0xff]
        %v6020 = vld [vmem:[%s1686 + $0x520] sm:$0xff]
        %v6021 = vld [vmem:[%s1686 + $0x528] sm:$0xff]
        %v6022 = vld [vmem:[%s1686 + $0x530] sm:$0xff]
        %v6023 = vld [vmem:[%s1686 + $0x538] sm:$0xff]
        %v6024 = vld [vmem:[%s1686 + $0x540] sm:$0xff]
        %v6025 = vld [vmem:[%s1686 + $0x548] sm:$0xff]
        %v6026 = vld [vmem:[%s1686 + $0x550] sm:$0xff]
        %v6027 = vld [vmem:[%s1686 + $0x558] sm:$0xff]
        %v6028 = vld [vmem:[%s1686 + $0x560] sm:$0xff]
        %v6029 = vld [vmem:[%s1686 + $0x568] sm:$0xff]
        %v6030 = vld [vmem:[%s1686 + $0x570] sm:$0xff]
        %v6031 = vld [vmem:[%s1686 + $0x578] sm:$0xff]
        %v6032 = vld [vmem:[%s1686 + $0x580] sm:$0xff]
        %v6033 = vld [vmem:[%s1686 + $0x588] sm:$0xff]
        %v6034 = vld [vmem:[%s1686 + $0x590] sm:$0xff]
        %v6035 = vld [vmem:[%s1686 + $0x598] sm:$0xff]
        %v6036 = vld [vmem:[%s1686 + $0x5a0] sm:$0xff]
        %v6037 = vld [vmem:[%s1686 + $0x5a8] sm:$0xff]
        %v6038 = vld [vmem:[%s1686 + $0x5b0] sm:$0xff]
        %v6039 = vld [vmem:[%s1686 + $0x5b8] sm:$0xff]
        %v6040 = vld [vmem:[%s1686 + $0x5c0] sm:$0xff]
        %v6041 = vld [vmem:[%s1686 + $0x5c8] sm:$0xff]
        %v6042 = vld [vmem:[%s1686 + $0x5d0] sm:$0xff]
        %v6043 = vld [vmem:[%s1686 + $0x5d8] sm:$0xff]
        %v6044 = vld [vmem:[%s1686 + $0x5e0] sm:$0xff]
        %v6045 = vld [vmem:[%s1686 + $0x5e8] sm:$0xff]
        %v6046 = vld [vmem:[%s1686 + $0x5f0] sm:$0xff]
        %v6047 = vld [vmem:[%s1686 + $0x5f8] sm:$0xff]
        %v6048 = vld [vmem:[%s1686 + $0x600] sm:$0xff]
        %v6049 = vld [vmem:[%s1686 + $0x608] sm:$0xff]
        %v6050 = vld [vmem:[%s1686 + $0x610] sm:$0xff]
        %v6051 = vld [vmem:[%s1686 + $0x618] sm:$0xff]
        %v6052 = vld [vmem:[%s1686 + $0x620] sm:$0xff]
        %v6053 = vld [vmem:[%s1686 + $0x628] sm:$0xff]
        %v6054 = vld [vmem:[%s1686 + $0x630] sm:$0xff]
        %v6055 = vld [vmem:[%s1686 + $0x638] sm:$0xff]
        %v6056 = vld [vmem:[%s1686 + $0x640] sm:$0xff]
        %v6057 = vld [vmem:[%s1686 + $0x648] sm:$0xff]
        %v6058 = vld [vmem:[%s1686 + $0x650] sm:$0xff]
        %v6059 = vld [vmem:[%s1686 + $0x658] sm:$0xff]
        %v6060 = vld [vmem:[%s1686 + $0x660] sm:$0xff]
        %v6061 = vld [vmem:[%s1686 + $0x668] sm:$0xff]
        %v6062 = vld [vmem:[%s1686 + $0x670] sm:$0xff]
        %v6063 = vld [vmem:[%s1686 + $0x678] sm:$0xff]
        %v6064 = vld [vmem:[%s1686 + $0x680] sm:$0xff]
        %v6065 = vld [vmem:[%s1686 + $0x688] sm:$0xff]
        %v6066 = vld [vmem:[%s1686 + $0x690] sm:$0xff]
        %v6067 = vld [vmem:[%s1686 + $0x698] sm:$0xff]
        %v6068 = vld [vmem:[%s1686 + $0x6a0] sm:$0xff]
        %v6069 = vld [vmem:[%s1686 + $0x6a8] sm:$0xff]
        %v6070 = vld [vmem:[%s1686 + $0x6b0] sm:$0xff]
        %v6071 = vld [vmem:[%s1686 + $0x6b8] sm:$0xff]
        %v6072 = vld [vmem:[%s1686 + $0x6c0] sm:$0xff]
        %v6073 = vld [vmem:[%s1686 + $0x6c8] sm:$0xff]
        %v6074 = vld [vmem:[%s1686 + $0x6d0] sm:$0xff]
        %v6075 = vld [vmem:[%s1686 + $0x6d8] sm:$0xff]
        %v6076 = vld [vmem:[%s1686 + $0x6e0] sm:$0xff]
        %v6077 = vld [vmem:[%s1686 + $0x6e8] sm:$0xff]
        %v6078 = vld [vmem:[%s1686 + $0x6f0] sm:$0xff]
        %v6079 = vld [vmem:[%s1686 + $0x6f8] sm:$0xff]
        %v6080 = vld [vmem:[%s1686 + $0x700] sm:$0xff]
        %v6081 = vld [vmem:[%s1686 + $0x708] sm:$0xff]
        %v6082 = vld [vmem:[%s1686 + $0x710] sm:$0xff]
        %v6083 = vld [vmem:[%s1686 + $0x718] sm:$0xff]
        %v6084 = vld [vmem:[%s1686 + $0x720] sm:$0xff]
        %v6085 = vld [vmem:[%s1686 + $0x728] sm:$0xff]
        %v6086 = vld [vmem:[%s1686 + $0x730] sm:$0xff]
        %v6087 = vld [vmem:[%s1686 + $0x738] sm:$0xff]
        %v6088 = vld [vmem:[%s1686 + $0x740] sm:$0xff]
        %v6089 = vld [vmem:[%s1686 + $0x748] sm:$0xff]
        %v6090 = vld [vmem:[%s1686 + $0x750] sm:$0xff]
        %v6091 = vld [vmem:[%s1686 + $0x758] sm:$0xff]
        %v6092 = vld [vmem:[%s1686 + $0x760] sm:$0xff]
        %v6093 = vld [vmem:[%s1686 + $0x768] sm:$0xff]
        %v6094 = vld [vmem:[%s1686 + $0x770] sm:$0xff]
        %v6095 = vld [vmem:[%s1686 + $0x778] sm:$0xff]
        %v6096 = vld [vmem:[%s1686 + $0x780] sm:$0xff]
        %v6097 = vld [vmem:[%s1686 + $0x788] sm:$0xff]
        %v6098 = vld [vmem:[%s1686 + $0x790] sm:$0xff]
        %v6099 = vld [vmem:[%s1686 + $0x798] sm:$0xff]
        %v6100 = vld [vmem:[%s1686 + $0x7a0] sm:$0xff]
        %v6101 = vld [vmem:[%s1686 + $0x7a8] sm:$0xff]
        %v6102 = vld [vmem:[%s1686 + $0x7b0] sm:$0xff]
        %v6103 = vld [vmem:[%s1686 + $0x7b8] sm:$0xff]
        %v6104 = vld [vmem:[%s1686 + $0x7c0] sm:$0xff]
        %v6105 = vld [vmem:[%s1686 + $0x7c8] sm:$0xff]
        %v6106 = vld [vmem:[%s1686 + $0x7d0] sm:$0xff]
        %v6107 = vld [vmem:[%s1686 + $0x7d8] sm:$0xff]
        %v6108 = vld [vmem:[%s1686 + $0x7e0] sm:$0xff]
        %v6109 = vld [vmem:[%s1686 + $0x7e8] sm:$0xff]
        %v6110 = vld [vmem:[%s1686 + $0x7f0] sm:$0xff]
        %v6111 = vld [vmem:[%s1686 + $0x7f8] sm:$0xff]
        %v6112 = vld [vmem:[%s1695] sm:$0xff]
        %v6113 = vld [vmem:[%s1695 + $0x8] sm:$0xff]
        %v6116 = vlaneseq
        %v6117 = vshrl.u32 %v6116, 7
        %v6118 = vsub.s32 0, %v6117
        %v6119 = vrot.slane %v6112, %v6118
        %v6120 = vlaneseq
        %v6121 = vshrl.u32 %v6120, 7
        %v6122 = vsub.s32 1, %v6121
        %v6123 = vrot.slane %v6112, %v6122
        %v6124 = vlaneseq
        %v6125 = vshrl.u32 %v6124, 7
        %v6126 = vsub.s32 2, %v6125
        %v6127 = vrot.slane %v6112, %v6126
        %v6128 = vlaneseq
        %v6129 = vshrl.u32 %v6128, 7
        %v6130 = vsub.s32 3, %v6129
        %v6131 = vrot.slane %v6112, %v6130
        %v6132 = vlaneseq
        %v6133 = vshrl.u32 %v6132, 7
        %v6134 = vsub.s32 4, %v6133
        %v6135 = vrot.slane %v6112, %v6134
        %v6136 = vlaneseq
        %v6137 = vshrl.u32 %v6136, 7
        %v6138 = vsub.s32 5, %v6137
        %v6139 = vrot.slane %v6112, %v6138
        %v6140 = vlaneseq
        %v6141 = vshrl.u32 %v6140, 7
        %v6142 = vsub.s32 6, %v6141
        %v6143 = vrot.slane %v6112, %v6142
        %v6144 = vlaneseq
        %v6145 = vshrl.u32 %v6144, 7
        %v6146 = vsub.s32 7, %v6145
        %v6147 = vrot.slane %v6112, %v6146
        %v6148 = vlaneseq
        %v6149 = vshrl.u32 %v6148, 7
        %v6150 = vsub.s32 0, %v6149
        %v6151 = vrot.slane %v6113, %v6150
        %v6152 = vlaneseq
        %v6153 = vshrl.u32 %v6152, 7
        %v6154 = vsub.s32 1, %v6153
        %v6155 = vrot.slane %v6113, %v6154
        %v6156 = vlaneseq
        %v6157 = vshrl.u32 %v6156, 7
        %v6158 = vsub.s32 2, %v6157
        %v6159 = vrot.slane %v6113, %v6158
        %v6160 = vlaneseq
        %v6161 = vshrl.u32 %v6160, 7
        %v6162 = vsub.s32 3, %v6161
        %v6163 = vrot.slane %v6113, %v6162
        %v6164 = vlaneseq
        %v6165 = vshrl.u32 %v6164, 7
        %v6166 = vsub.s32 4, %v6165
        %v6167 = vrot.slane %v6113, %v6166
        %v6168 = vlaneseq
        %v6169 = vshrl.u32 %v6168, 7
        %v6170 = vsub.s32 5, %v6169
        %v6171 = vrot.slane %v6113, %v6170
        %v6172 = vlaneseq
        %v6173 = vshrl.u32 %v6172, 7
        %v6174 = vsub.s32 6, %v6173
        %v6175 = vrot.slane %v6113, %v6174
        %v6176 = vlaneseq
        %v6177 = vshrl.u32 %v6176, 7
        %v6178 = vsub.s32 7, %v6177
        %v6179 = vrot.slane %v6113, %v6178
        %v6452 = vunpack.c.l.b16 %v5856
        %v6453 = vunpack.c.h.b16 %v5856
        %v6454 = vunpack.c.l.b16 %v5857
        %v6455 = vunpack.c.h.b16 %v5857
        %v6456 = vunpack.c.l.b16 %v5858
        %v6457 = vunpack.c.h.b16 %v5858
        %v6458 = vunpack.c.l.b16 %v5859
        %v6459 = vunpack.c.h.b16 %v5859
        %v6460 = vunpack.c.l.b16 %v5860
        %v6461 = vunpack.c.h.b16 %v5860
        %v6462 = vunpack.c.l.b16 %v5861
        %v6463 = vunpack.c.h.b16 %v5861
        %v6464 = vunpack.c.l.b16 %v5862
        %v6465 = vunpack.c.h.b16 %v5862
        %v6466 = vunpack.c.l.b16 %v5863
        %v6467 = vunpack.c.h.b16 %v5863
        %v6468 = vunpack.c.l.b16 %v5864
        %v6469 = vunpack.c.h.b16 %v5864
        %v6470 = vunpack.c.l.b16 %v5865
        %v6471 = vunpack.c.h.b16 %v5865
        %v6472 = vunpack.c.l.b16 %v5866
        %v6473 = vunpack.c.h.b16 %v5866
        %v6474 = vunpack.c.l.b16 %v5867
        %v6475 = vunpack.c.h.b16 %v5867
        %v6476 = vunpack.c.l.b16 %v5868
        %v6477 = vunpack.c.h.b16 %v5868
        %v6478 = vunpack.c.l.b16 %v5869
        %v6479 = vunpack.c.h.b16 %v5869
        %v6480 = vunpack.c.l.b16 %v5870
        %v6481 = vunpack.c.h.b16 %v5870
        %v6482 = vunpack.c.l.b16 %v5871
        %v6483 = vunpack.c.h.b16 %v5871
        %v6484 = vunpack.c.l.b16 %v5872
        %v6485 = vunpack.c.h.b16 %v5872
        %v6486 = vunpack.c.l.b16 %v5873
        %v6487 = vunpack.c.h.b16 %v5873
        %v6488 = vunpack.c.l.b16 %v5874
        %v6489 = vunpack.c.h.b16 %v5874
        %v6490 = vunpack.c.l.b16 %v5875
        %v6491 = vunpack.c.h.b16 %v5875
        %v6492 = vunpack.c.l.b16 %v5876
        %v6493 = vunpack.c.h.b16 %v5876
        %v6494 = vunpack.c.l.b16 %v5877
        %v6495 = vunpack.c.h.b16 %v5877
        %v6496 = vunpack.c.l.b16 %v5878
        %v6497 = vunpack.c.h.b16 %v5878
        %v6498 = vunpack.c.l.b16 %v5879
        %v6499 = vunpack.c.h.b16 %v5879
        %v6500 = vunpack.c.l.b16 %v5880
        %v6501 = vunpack.c.h.b16 %v5880
        %v6502 = vunpack.c.l.b16 %v5881
        %v6503 = vunpack.c.h.b16 %v5881
        %v6504 = vunpack.c.l.b16 %v5882
        %v6505 = vunpack.c.h.b16 %v5882
        %v6506 = vunpack.c.l.b16 %v5883
        %v6507 = vunpack.c.h.b16 %v5883
        %v6508 = vunpack.c.l.b16 %v5884
        %v6509 = vunpack.c.h.b16 %v5884
        %v6510 = vunpack.c.l.b16 %v5885
        %v6511 = vunpack.c.h.b16 %v5885
        %v6512 = vunpack.c.l.b16 %v5886
        %v6513 = vunpack.c.h.b16 %v5886
        %v6514 = vunpack.c.l.b16 %v5887
        %v6515 = vunpack.c.h.b16 %v5887
        %v6516 = vunpack.c.l.b16 %v5888
        %v6517 = vunpack.c.h.b16 %v5888
        %v6518 = vunpack.c.l.b16 %v5889
        %v6519 = vunpack.c.h.b16 %v5889
        %v6520 = vunpack.c.l.b16 %v5890
        %v6521 = vunpack.c.h.b16 %v5890
        %v6522 = vunpack.c.l.b16 %v5891
        %v6523 = vunpack.c.h.b16 %v5891
        %v6524 = vunpack.c.l.b16 %v5892
        %v6525 = vunpack.c.h.b16 %v5892
        %v6526 = vunpack.c.l.b16 %v5893
        %v6527 = vunpack.c.h.b16 %v5893
        %v6528 = vunpack.c.l.b16 %v5894
        %v6529 = vunpack.c.h.b16 %v5894
        %v6530 = vunpack.c.l.b16 %v5895
        %v6531 = vunpack.c.h.b16 %v5895
        %v6532 = vunpack.c.l.b16 %v5896
        %v6533 = vunpack.c.h.b16 %v5896
        %v6534 = vunpack.c.l.b16 %v5897
        %v6535 = vunpack.c.h.b16 %v5897
        %v6536 = vunpack.c.l.b16 %v5898
        %v6537 = vunpack.c.h.b16 %v5898
        %v6538 = vunpack.c.l.b16 %v5899
        %v6539 = vunpack.c.h.b16 %v5899
        %v6540 = vunpack.c.l.b16 %v5900
        %v6541 = vunpack.c.h.b16 %v5900
        %v6542 = vunpack.c.l.b16 %v5901
        %v6543 = vunpack.c.h.b16 %v5901
        %v6544 = vunpack.c.l.b16 %v5902
        %v6545 = vunpack.c.h.b16 %v5902
        %v6546 = vunpack.c.l.b16 %v5903
        %v6547 = vunpack.c.h.b16 %v5903
        %v6548 = vunpack.c.l.b16 %v5904
        %v6549 = vunpack.c.h.b16 %v5904
        %v6550 = vunpack.c.l.b16 %v5905
        %v6551 = vunpack.c.h.b16 %v5905
        %v6552 = vunpack.c.l.b16 %v5906
        %v6553 = vunpack.c.h.b16 %v5906
        %v6554 = vunpack.c.l.b16 %v5907
        %v6555 = vunpack.c.h.b16 %v5907
        %v6556 = vunpack.c.l.b16 %v5908
        %v6557 = vunpack.c.h.b16 %v5908
        %v6558 = vunpack.c.l.b16 %v5909
        %v6559 = vunpack.c.h.b16 %v5909
        %v6560 = vunpack.c.l.b16 %v5910
        %v6561 = vunpack.c.h.b16 %v5910
        %v6562 = vunpack.c.l.b16 %v5911
        %v6563 = vunpack.c.h.b16 %v5911
        %v6564 = vunpack.c.l.b16 %v5912
        %v6565 = vunpack.c.h.b16 %v5912
        %v6566 = vunpack.c.l.b16 %v5913
        %v6567 = vunpack.c.h.b16 %v5913
        %v6568 = vunpack.c.l.b16 %v5914
        %v6569 = vunpack.c.h.b16 %v5914
        %v6570 = vunpack.c.l.b16 %v5915
        %v6571 = vunpack.c.h.b16 %v5915
        %v6572 = vunpack.c.l.b16 %v5916
        %v6573 = vunpack.c.h.b16 %v5916
        %v6574 = vunpack.c.l.b16 %v5917
        %v6575 = vunpack.c.h.b16 %v5917
        %v6576 = vunpack.c.l.b16 %v5918
        %v6577 = vunpack.c.h.b16 %v5918
        %v6578 = vunpack.c.l.b16 %v5919
        %v6579 = vunpack.c.h.b16 %v5919
        %v6580 = vunpack.c.l.b16 %v5920
        %v6581 = vunpack.c.h.b16 %v5920
        %v6582 = vunpack.c.l.b16 %v5921
        %v6583 = vunpack.c.h.b16 %v5921
        %v6584 = vunpack.c.l.b16 %v5922
        %v6585 = vunpack.c.h.b16 %v5922
        %v6586 = vunpack.c.l.b16 %v5923
        %v6587 = vunpack.c.h.b16 %v5923
        %v6588 = vunpack.c.l.b16 %v5924
        %v6589 = vunpack.c.h.b16 %v5924
        %v6590 = vunpack.c.l.b16 %v5925
        %v6591 = vunpack.c.h.b16 %v5925
        %v6592 = vunpack.c.l.b16 %v5926
        %v6593 = vunpack.c.h.b16 %v5926
        %v6594 = vunpack.c.l.b16 %v5927
        %v6595 = vunpack.c.h.b16 %v5927
        %v6596 = vunpack.c.l.b16 %v5928
        %v6597 = vunpack.c.h.b16 %v5928
        %v6598 = vunpack.c.l.b16 %v5929
        %v6599 = vunpack.c.h.b16 %v5929
        %v6600 = vunpack.c.l.b16 %v5930
        %v6601 = vunpack.c.h.b16 %v5930
        %v6602 = vunpack.c.l.b16 %v5931
        %v6603 = vunpack.c.h.b16 %v5931
        %v6604 = vunpack.c.l.b16 %v5932
        %v6605 = vunpack.c.h.b16 %v5932
        %v6606 = vunpack.c.l.b16 %v5933
        %v6607 = vunpack.c.h.b16 %v5933
        %v6608 = vunpack.c.l.b16 %v5934
        %v6609 = vunpack.c.h.b16 %v5934
        %v6610 = vunpack.c.l.b16 %v5935
        %v6611 = vunpack.c.h.b16 %v5935
        %v6612 = vunpack.c.l.b16 %v5936
        %v6613 = vunpack.c.h.b16 %v5936
        %v6614 = vunpack.c.l.b16 %v5937
        %v6615 = vunpack.c.h.b16 %v5937
        %v6616 = vunpack.c.l.b16 %v5938
        %v6617 = vunpack.c.h.b16 %v5938
        %v6618 = vunpack.c.l.b16 %v5939
        %v6619 = vunpack.c.h.b16 %v5939
        %v6620 = vunpack.c.l.b16 %v5940
        %v6621 = vunpack.c.h.b16 %v5940
        %v6622 = vunpack.c.l.b16 %v5941
        %v6623 = vunpack.c.h.b16 %v5941
        %v6624 = vunpack.c.l.b16 %v5942
        %v6625 = vunpack.c.h.b16 %v5942
        %v6626 = vunpack.c.l.b16 %v5943
        %v6627 = vunpack.c.h.b16 %v5943
        %v6628 = vunpack.c.l.b16 %v5944
        %v6629 = vunpack.c.h.b16 %v5944
        %v6630 = vunpack.c.l.b16 %v5945
        %v6631 = vunpack.c.h.b16 %v5945
        %v6632 = vunpack.c.l.b16 %v5946
        %v6633 = vunpack.c.h.b16 %v5946
        %v6634 = vunpack.c.l.b16 %v5947
        %v6635 = vunpack.c.h.b16 %v5947
        %v6636 = vunpack.c.l.b16 %v5948
        %v6637 = vunpack.c.h.b16 %v5948
        %v6638 = vunpack.c.l.b16 %v5949
        %v6639 = vunpack.c.h.b16 %v5949
        %v6640 = vunpack.c.l.b16 %v5950
        %v6641 = vunpack.c.h.b16 %v5950
        %v6642 = vunpack.c.l.b16 %v5951
        %v6643 = vunpack.c.h.b16 %v5951
        %v6644 = vunpack.c.l.b16 %v5952
        %v6645 = vunpack.c.h.b16 %v5952
        %v6646 = vunpack.c.l.b16 %v5953
        %v6647 = vunpack.c.h.b16 %v5953
        %v6648 = vunpack.c.l.b16 %v5954
        %v6649 = vunpack.c.h.b16 %v5954
        %v6650 = vunpack.c.l.b16 %v5955
        %v6651 = vunpack.c.h.b16 %v5955
        %v6652 = vunpack.c.l.b16 %v5956
        %v6653 = vunpack.c.h.b16 %v5956
        %v6654 = vunpack.c.l.b16 %v5957
        %v6655 = vunpack.c.h.b16 %v5957
        %v6656 = vunpack.c.l.b16 %v5958
        %v6657 = vunpack.c.h.b16 %v5958
        %v6658 = vunpack.c.l.b16 %v5959
        %v6659 = vunpack.c.h.b16 %v5959
        %v6660 = vunpack.c.l.b16 %v5960
        %v6661 = vunpack.c.h.b16 %v5960
        %v6662 = vunpack.c.l.b16 %v5961
        %v6663 = vunpack.c.h.b16 %v5961
        %v6664 = vunpack.c.l.b16 %v5962
        %v6665 = vunpack.c.h.b16 %v5962
        %v6666 = vunpack.c.l.b16 %v5963
        %v6667 = vunpack.c.h.b16 %v5963
        %v6668 = vunpack.c.l.b16 %v5964
        %v6669 = vunpack.c.h.b16 %v5964
        %v6670 = vunpack.c.l.b16 %v5965
        %v6671 = vunpack.c.h.b16 %v5965
        %v6672 = vunpack.c.l.b16 %v5966
        %v6673 = vunpack.c.h.b16 %v5966
        %v6674 = vunpack.c.l.b16 %v5967
        %v6675 = vunpack.c.h.b16 %v5967
        %v6676 = vunpack.c.l.b16 %v5968
        %v6677 = vunpack.c.h.b16 %v5968
        %v6678 = vunpack.c.l.b16 %v5969
        %v6679 = vunpack.c.h.b16 %v5969
        %v6680 = vunpack.c.l.b16 %v5970
        %v6681 = vunpack.c.h.b16 %v5970
        %v6682 = vunpack.c.l.b16 %v5971
        %v6683 = vunpack.c.h.b16 %v5971
        %v6684 = vunpack.c.l.b16 %v5972
        %v6685 = vunpack.c.h.b16 %v5972
        %v6686 = vunpack.c.l.b16 %v5973
        %v6687 = vunpack.c.h.b16 %v5973
        %v6688 = vunpack.c.l.b16 %v5974
        %v6689 = vunpack.c.h.b16 %v5974
        %v6690 = vunpack.c.l.b16 %v5975
        %v6691 = vunpack.c.h.b16 %v5975
        %v6692 = vunpack.c.l.b16 %v5976
        %v6693 = vunpack.c.h.b16 %v5976
        %v6694 = vunpack.c.l.b16 %v5977
        %v6695 = vunpack.c.h.b16 %v5977
        %v6696 = vunpack.c.l.b16 %v5978
        %v6697 = vunpack.c.h.b16 %v5978
        %v6698 = vunpack.c.l.b16 %v5979
        %v6699 = vunpack.c.h.b16 %v5979
        %v6700 = vunpack.c.l.b16 %v5980
        %v6701 = vunpack.c.h.b16 %v5980
        %v6702 = vunpack.c.l.b16 %v5981
        %v6703 = vunpack.c.h.b16 %v5981
        %v6704 = vunpack.c.l.b16 %v5982
        %v6705 = vunpack.c.h.b16 %v5982
        %v6706 = vunpack.c.l.b16 %v5983
        %v6707 = vunpack.c.h.b16 %v5983
        %v6708 = vunpack.c.l.b16 %v5984
        %v6709 = vunpack.c.h.b16 %v5984
        %v6710 = vunpack.c.l.b16 %v5985
        %v6711 = vunpack.c.h.b16 %v5985
        %v6712 = vunpack.c.l.b16 %v5986
        %v6713 = vunpack.c.h.b16 %v5986
        %v6714 = vunpack.c.l.b16 %v5987
        %v6715 = vunpack.c.h.b16 %v5987
        %v6716 = vunpack.c.l.b16 %v5988
        %v6717 = vunpack.c.h.b16 %v5988
        %v6718 = vunpack.c.l.b16 %v5989
        %v6719 = vunpack.c.h.b16 %v5989
        %v6720 = vunpack.c.l.b16 %v5990
        %v6721 = vunpack.c.h.b16 %v5990
        %v6722 = vunpack.c.l.b16 %v5991
        %v6723 = vunpack.c.h.b16 %v5991
        %v6724 = vunpack.c.l.b16 %v5992
        %v6725 = vunpack.c.h.b16 %v5992
        %v6726 = vunpack.c.l.b16 %v5993
        %v6727 = vunpack.c.h.b16 %v5993
        %v6728 = vunpack.c.l.b16 %v5994
        %v6729 = vunpack.c.h.b16 %v5994
        %v6730 = vunpack.c.l.b16 %v5995
        %v6731 = vunpack.c.h.b16 %v5995
        %v6732 = vunpack.c.l.b16 %v5996
        %v6733 = vunpack.c.h.b16 %v5996
        %v6734 = vunpack.c.l.b16 %v5997
        %v6735 = vunpack.c.h.b16 %v5997
        %v6736 = vunpack.c.l.b16 %v5998
        %v6737 = vunpack.c.h.b16 %v5998
        %v6738 = vunpack.c.l.b16 %v5999
        %v6739 = vunpack.c.h.b16 %v5999
        %v6740 = vunpack.c.l.b16 %v6000
        %v6741 = vunpack.c.h.b16 %v6000
        %v6742 = vunpack.c.l.b16 %v6001
        %v6743 = vunpack.c.h.b16 %v6001
        %v6744 = vunpack.c.l.b16 %v6002
        %v6745 = vunpack.c.h.b16 %v6002
        %v6746 = vunpack.c.l.b16 %v6003
        %v6747 = vunpack.c.h.b16 %v6003
        %v6748 = vunpack.c.l.b16 %v6004
        %v6749 = vunpack.c.h.b16 %v6004
        %v6750 = vunpack.c.l.b16 %v6005
        %v6751 = vunpack.c.h.b16 %v6005
        %v6752 = vunpack.c.l.b16 %v6006
        %v6753 = vunpack.c.h.b16 %v6006
        %v6754 = vunpack.c.l.b16 %v6007
        %v6755 = vunpack.c.h.b16 %v6007
        %v6756 = vunpack.c.l.b16 %v6008
        %v6757 = vunpack.c.h.b16 %v6008
        %v6758 = vunpack.c.l.b16 %v6009
        %v6759 = vunpack.c.h.b16 %v6009
        %v6760 = vunpack.c.l.b16 %v6010
        %v6761 = vunpack.c.h.b16 %v6010
        %v6762 = vunpack.c.l.b16 %v6011
        %v6763 = vunpack.c.h.b16 %v6011
        %v6764 = vunpack.c.l.b16 %v6012
        %v6765 = vunpack.c.h.b16 %v6012
        %v6766 = vunpack.c.l.b16 %v6013
        %v6767 = vunpack.c.h.b16 %v6013
        %v6768 = vunpack.c.l.b16 %v6014
        %v6769 = vunpack.c.h.b16 %v6014
        %v6770 = vunpack.c.l.b16 %v6015
        %v6771 = vunpack.c.h.b16 %v6015
        %v6772 = vunpack.c.l.b16 %v6016
        %v6773 = vunpack.c.h.b16 %v6016
        %v6774 = vunpack.c.l.b16 %v6017
        %v6775 = vunpack.c.h.b16 %v6017
        %v6776 = vunpack.c.l.b16 %v6018
        %v6777 = vunpack.c.h.b16 %v6018
        %v6778 = vunpack.c.l.b16 %v6019
        %v6779 = vunpack.c.h.b16 %v6019
        %v6780 = vunpack.c.l.b16 %v6020
        %v6781 = vunpack.c.h.b16 %v6020
        %v6782 = vunpack.c.l.b16 %v6021
        %v6783 = vunpack.c.h.b16 %v6021
        %v6784 = vunpack.c.l.b16 %v6022
        %v6785 = vunpack.c.h.b16 %v6022
        %v6786 = vunpack.c.l.b16 %v6023
        %v6787 = vunpack.c.h.b16 %v6023
        %v6788 = vunpack.c.l.b16 %v6024
        %v6789 = vunpack.c.h.b16 %v6024
        %v6790 = vunpack.c.l.b16 %v6025
        %v6791 = vunpack.c.h.b16 %v6025
        %v6792 = vunpack.c.l.b16 %v6026
        %v6793 = vunpack.c.h.b16 %v6026
        %v6794 = vunpack.c.l.b16 %v6027
        %v6795 = vunpack.c.h.b16 %v6027
        %v6796 = vunpack.c.l.b16 %v6028
        %v6797 = vunpack.c.h.b16 %v6028
        %v6798 = vunpack.c.l.b16 %v6029
        %v6799 = vunpack.c.h.b16 %v6029
        %v6800 = vunpack.c.l.b16 %v6030
        %v6801 = vunpack.c.h.b16 %v6030
        %v6802 = vunpack.c.l.b16 %v6031
        %v6803 = vunpack.c.h.b16 %v6031
        %v6804 = vunpack.c.l.b16 %v6032
        %v6805 = vunpack.c.h.b16 %v6032
        %v6806 = vunpack.c.l.b16 %v6033
        %v6807 = vunpack.c.h.b16 %v6033
        %v6808 = vunpack.c.l.b16 %v6034
        %v6809 = vunpack.c.h.b16 %v6034
        %v6810 = vunpack.c.l.b16 %v6035
        %v6811 = vunpack.c.h.b16 %v6035
        %v6812 = vunpack.c.l.b16 %v6036
        %v6813 = vunpack.c.h.b16 %v6036
        %v6814 = vunpack.c.l.b16 %v6037
        %v6815 = vunpack.c.h.b16 %v6037
        %v6816 = vunpack.c.l.b16 %v6038
        %v6817 = vunpack.c.h.b16 %v6038
        %v6818 = vunpack.c.l.b16 %v6039
        %v6819 = vunpack.c.h.b16 %v6039
        %v6820 = vunpack.c.l.b16 %v6040
        %v6821 = vunpack.c.h.b16 %v6040
        %v6822 = vunpack.c.l.b16 %v6041
        %v6823 = vunpack.c.h.b16 %v6041
        %v6824 = vunpack.c.l.b16 %v6042
        %v6825 = vunpack.c.h.b16 %v6042
        %v6826 = vunpack.c.l.b16 %v6043
        %v6827 = vunpack.c.h.b16 %v6043
        %v6828 = vunpack.c.l.b16 %v6044
        %v6829 = vunpack.c.h.b16 %v6044
        %v6830 = vunpack.c.l.b16 %v6045
        %v6831 = vunpack.c.h.b16 %v6045
        %v6832 = vunpack.c.l.b16 %v6046
        %v6833 = vunpack.c.h.b16 %v6046
        %v6834 = vunpack.c.l.b16 %v6047
        %v6835 = vunpack.c.h.b16 %v6047
        %v6836 = vunpack.c.l.b16 %v6048
        %v6837 = vunpack.c.h.b16 %v6048
        %v6838 = vunpack.c.l.b16 %v6049
        %v6839 = vunpack.c.h.b16 %v6049
        %v6840 = vunpack.c.l.b16 %v6050
        %v6841 = vunpack.c.h.b16 %v6050
        %v6842 = vunpack.c.l.b16 %v6051
        %v6843 = vunpack.c.h.b16 %v6051
        %v6844 = vunpack.c.l.b16 %v6052
        %v6845 = vunpack.c.h.b16 %v6052
        %v6846 = vunpack.c.l.b16 %v6053
        %v6847 = vunpack.c.h.b16 %v6053
        %v6848 = vunpack.c.l.b16 %v6054
        %v6849 = vunpack.c.h.b16 %v6054
        %v6850 = vunpack.c.l.b16 %v6055
        %v6851 = vunpack.c.h.b16 %v6055
        %v6852 = vunpack.c.l.b16 %v6056
        %v6853 = vunpack.c.h.b16 %v6056
        %v6854 = vunpack.c.l.b16 %v6057
        %v6855 = vunpack.c.h.b16 %v6057
        %v6856 = vunpack.c.l.b16 %v6058
        %v6857 = vunpack.c.h.b16 %v6058
        %v6858 = vunpack.c.l.b16 %v6059
        %v6859 = vunpack.c.h.b16 %v6059
        %v6860 = vunpack.c.l.b16 %v6060
        %v6861 = vunpack.c.h.b16 %v6060
        %v6862 = vunpack.c.l.b16 %v6061
        %v6863 = vunpack.c.h.b16 %v6061
        %v6864 = vunpack.c.l.b16 %v6062
        %v6865 = vunpack.c.h.b16 %v6062
        %v6866 = vunpack.c.l.b16 %v6063
        %v6867 = vunpack.c.h.b16 %v6063
        %v6868 = vunpack.c.l.b16 %v6064
        %v6869 = vunpack.c.h.b16 %v6064
        %v6870 = vunpack.c.l.b16 %v6065
        %v6871 = vunpack.c.h.b16 %v6065
        %v6872 = vunpack.c.l.b16 %v6066
        %v6873 = vunpack.c.h.b16 %v6066
        %v6874 = vunpack.c.l.b16 %v6067
        %v6875 = vunpack.c.h.b16 %v6067
        %v6876 = vunpack.c.l.b16 %v6068
        %v6877 = vunpack.c.h.b16 %v6068
        %v6878 = vunpack.c.l.b16 %v6069
        %v6879 = vunpack.c.h.b16 %v6069
        %v6880 = vunpack.c.l.b16 %v6070
        %v6881 = vunpack.c.h.b16 %v6070
        %v6882 = vunpack.c.l.b16 %v6071
        %v6883 = vunpack.c.h.b16 %v6071
        %v6884 = vunpack.c.l.b16 %v6072
        %v6885 = vunpack.c.h.b16 %v6072
        %v6886 = vunpack.c.l.b16 %v6073
        %v6887 = vunpack.c.h.b16 %v6073
        %v6888 = vunpack.c.l.b16 %v6074
        %v6889 = vunpack.c.h.b16 %v6074
        %v6890 = vunpack.c.l.b16 %v6075
        %v6891 = vunpack.c.h.b16 %v6075
        %v6892 = vunpack.c.l.b16 %v6076
        %v6893 = vunpack.c.h.b16 %v6076
        %v6894 = vunpack.c.l.b16 %v6077
        %v6895 = vunpack.c.h.b16 %v6077
        %v6896 = vunpack.c.l.b16 %v6078
        %v6897 = vunpack.c.h.b16 %v6078
        %v6898 = vunpack.c.l.b16 %v6079
        %v6899 = vunpack.c.h.b16 %v6079
        %v6900 = vunpack.c.l.b16 %v6080
        %v6901 = vunpack.c.h.b16 %v6080
        %v6902 = vunpack.c.l.b16 %v6081
        %v6903 = vunpack.c.h.b16 %v6081
        %v6904 = vunpack.c.l.b16 %v6082
        %v6905 = vunpack.c.h.b16 %v6082
        %v6906 = vunpack.c.l.b16 %v6083
        %v6907 = vunpack.c.h.b16 %v6083
        %v6908 = vunpack.c.l.b16 %v6084
        %v6909 = vunpack.c.h.b16 %v6084
        %v6910 = vunpack.c.l.b16 %v6085
        %v6911 = vunpack.c.h.b16 %v6085
        %v6912 = vunpack.c.l.b16 %v6086
        %v6913 = vunpack.c.h.b16 %v6086
        %v6914 = vunpack.c.l.b16 %v6087
        %v6915 = vunpack.c.h.b16 %v6087
        %v6916 = vunpack.c.l.b16 %v6088
        %v6917 = vunpack.c.h.b16 %v6088
        %v6918 = vunpack.c.l.b16 %v6089
        %v6919 = vunpack.c.h.b16 %v6089
        %v6920 = vunpack.c.l.b16 %v6090
        %v6921 = vunpack.c.h.b16 %v6090
        %v6922 = vunpack.c.l.b16 %v6091
        %v6923 = vunpack.c.h.b16 %v6091
        %v6924 = vunpack.c.l.b16 %v6092
        %v6925 = vunpack.c.h.b16 %v6092
        %v6926 = vunpack.c.l.b16 %v6093
        %v6927 = vunpack.c.h.b16 %v6093
        %v6928 = vunpack.c.l.b16 %v6094
        %v6929 = vunpack.c.h.b16 %v6094
        %v6930 = vunpack.c.l.b16 %v6095
        %v6931 = vunpack.c.h.b16 %v6095
        %v6932 = vunpack.c.l.b16 %v6096
        %v6933 = vunpack.c.h.b16 %v6096
        %v6934 = vunpack.c.l.b16 %v6097
        %v6935 = vunpack.c.h.b16 %v6097
        %v6936 = vunpack.c.l.b16 %v6098
        %v6937 = vunpack.c.h.b16 %v6098
        %v6938 = vunpack.c.l.b16 %v6099
        %v6939 = vunpack.c.h.b16 %v6099
        %v6940 = vunpack.c.l.b16 %v6100
        %v6941 = vunpack.c.h.b16 %v6100
        %v6942 = vunpack.c.l.b16 %v6101
        %v6943 = vunpack.c.h.b16 %v6101
        %v6944 = vunpack.c.l.b16 %v6102
        %v6945 = vunpack.c.h.b16 %v6102
        %v6946 = vunpack.c.l.b16 %v6103
        %v6947 = vunpack.c.h.b16 %v6103
        %v6948 = vunpack.c.l.b16 %v6104
        %v6949 = vunpack.c.h.b16 %v6104
        %v6950 = vunpack.c.l.b16 %v6105
        %v6951 = vunpack.c.h.b16 %v6105
        %v6952 = vunpack.c.l.b16 %v6106
        %v6953 = vunpack.c.h.b16 %v6106
        %v6954 = vunpack.c.l.b16 %v6107
        %v6955 = vunpack.c.h.b16 %v6107
        %v6956 = vunpack.c.l.b16 %v6108
        %v6957 = vunpack.c.h.b16 %v6108
        %v6958 = vunpack.c.l.b16 %v6109
        %v6959 = vunpack.c.h.b16 %v6109
        %v6960 = vunpack.c.l.b16 %v6110
        %v6961 = vunpack.c.h.b16 %v6110
        %v6962 = vunpack.c.l.b16 %v6111
        %v6963 = vunpack.c.h.b16 %v6111
        %v6964 = vpack.c.b16 %v6468, %v6452
        %v6965 = vpack.c.b16 %v6469, %v6453
        %v6966 = vpack.c.b16 %v6470, %v6454
        %v6967 = vpack.c.b16 %v6471, %v6455
        %v6968 = vpack.c.b16 %v6472, %v6456
        %v6969 = vpack.c.b16 %v6473, %v6457
        %v6970 = vpack.c.b16 %v6474, %v6458
        %v6971 = vpack.c.b16 %v6475, %v6459
        %v6972 = vpack.c.b16 %v6476, %v6460
        %v6973 = vpack.c.b16 %v6477, %v6461
        %v6974 = vpack.c.b16 %v6478, %v6462
        %v6975 = vpack.c.b16 %v6479, %v6463
        %v6976 = vpack.c.b16 %v6480, %v6464
        %v6977 = vpack.c.b16 %v6481, %v6465
        %v6978 = vpack.c.b16 %v6482, %v6466
        %v6979 = vpack.c.b16 %v6483, %v6467
        %v6980 = vpack.c.b16 %v6500, %v6484
        %v6981 = vpack.c.b16 %v6501, %v6485
        %v6982 = vpack.c.b16 %v6502, %v6486
        %v6983 = vpack.c.b16 %v6503, %v6487
        %v6984 = vpack.c.b16 %v6504, %v6488
        %v6985 = vpack.c.b16 %v6505, %v6489
        %v6986 = vpack.c.b16 %v6506, %v6490
        %v6987 = vpack.c.b16 %v6507, %v6491
        %v6988 = vpack.c.b16 %v6508, %v6492
        %v6989 = vpack.c.b16 %v6509, %v6493
        %v6990 = vpack.c.b16 %v6510, %v6494
        %v6991 = vpack.c.b16 %v6511, %v6495
        %v6992 = vpack.c.b16 %v6512, %v6496
        %v6993 = vpack.c.b16 %v6513, %v6497
        %v6994 = vpack.c.b16 %v6514, %v6498
        %v6995 = vpack.c.b16 %v6515, %v6499
        %v6996 = vpack.c.b16 %v6532, %v6516
        %v6997 = vpack.c.b16 %v6533, %v6517
        %v6998 = vpack.c.b16 %v6534, %v6518
        %v6999 = vpack.c.b16 %v6535, %v6519
        %v7000 = vpack.c.b16 %v6536, %v6520
        %v7001 = vpack.c.b16 %v6537, %v6521
        %v7002 = vpack.c.b16 %v6538, %v6522
        %v7003 = vpack.c.b16 %v6539, %v6523
        %v7004 = vpack.c.b16 %v6540, %v6524
        %v7005 = vpack.c.b16 %v6541, %v6525
        %v7006 = vpack.c.b16 %v6542, %v6526
        %v7007 = vpack.c.b16 %v6543, %v6527
        %v7008 = vpack.c.b16 %v6544, %v6528
        %v7009 = vpack.c.b16 %v6545, %v6529
        %v7010 = vpack.c.b16 %v6546, %v6530
        %v7011 = vpack.c.b16 %v6547, %v6531
        %v7012 = vpack.c.b16 %v6564, %v6548
        %v7013 = vpack.c.b16 %v6565, %v6549
        %v7014 = vpack.c.b16 %v6566, %v6550
        %v7015 = vpack.c.b16 %v6567, %v6551
        %v7016 = vpack.c.b16 %v6568, %v6552
        %v7017 = vpack.c.b16 %v6569, %v6553
        %v7018 = vpack.c.b16 %v6570, %v6554
        %v7019 = vpack.c.b16 %v6571, %v6555
        %v7020 = vpack.c.b16 %v6572, %v6556
        %v7021 = vpack.c.b16 %v6573, %v6557
        %v7022 = vpack.c.b16 %v6574, %v6558
        %v7023 = vpack.c.b16 %v6575, %v6559
        %v7024 = vpack.c.b16 %v6576, %v6560
        %v7025 = vpack.c.b16 %v6577, %v6561
        %v7026 = vpack.c.b16 %v6578, %v6562
        %v7027 = vpack.c.b16 %v6579, %v6563
        %v7028 = vpack.c.b16 %v6596, %v6580
        %v7029 = vpack.c.b16 %v6597, %v6581
        %v7030 = vpack.c.b16 %v6598, %v6582
        %v7031 = vpack.c.b16 %v6599, %v6583
        %v7032 = vpack.c.b16 %v6600, %v6584
        %v7033 = vpack.c.b16 %v6601, %v6585
        %v7034 = vpack.c.b16 %v6602, %v6586
        %v7035 = vpack.c.b16 %v6603, %v6587
        %v7036 = vpack.c.b16 %v6604, %v6588
        %v7037 = vpack.c.b16 %v6605, %v6589
        %v7038 = vpack.c.b16 %v6606, %v6590
        %v7039 = vpack.c.b16 %v6607, %v6591
        %v7040 = vpack.c.b16 %v6608, %v6592
        %v7041 = vpack.c.b16 %v6609, %v6593
        %v7042 = vpack.c.b16 %v6610, %v6594
        %v7043 = vpack.c.b16 %v6611, %v6595
        %v7044 = vpack.c.b16 %v6628, %v6612
        %v7045 = vpack.c.b16 %v6629, %v6613
        %v7046 = vpack.c.b16 %v6630, %v6614
        %v7047 = vpack.c.b16 %v6631, %v6615
        %v7048 = vpack.c.b16 %v6632, %v6616
        %v7049 = vpack.c.b16 %v6633, %v6617
        %v7050 = vpack.c.b16 %v6634, %v6618
        %v7051 = vpack.c.b16 %v6635, %v6619
        %v7052 = vpack.c.b16 %v6636, %v6620
        %v7053 = vpack.c.b16 %v6637, %v6621
        %v7054 = vpack.c.b16 %v6638, %v6622
        %v7055 = vpack.c.b16 %v6639, %v6623
        %v7056 = vpack.c.b16 %v6640, %v6624
        %v7057 = vpack.c.b16 %v6641, %v6625
        %v7058 = vpack.c.b16 %v6642, %v6626
        %v7059 = vpack.c.b16 %v6643, %v6627
        %v7060 = vpack.c.b16 %v6660, %v6644
        %v7061 = vpack.c.b16 %v6661, %v6645
        %v7062 = vpack.c.b16 %v6662, %v6646
        %v7063 = vpack.c.b16 %v6663, %v6647
        %v7064 = vpack.c.b16 %v6664, %v6648
        %v7065 = vpack.c.b16 %v6665, %v6649
        %v7066 = vpack.c.b16 %v6666, %v6650
        %v7067 = vpack.c.b16 %v6667, %v6651
        %v7068 = vpack.c.b16 %v6668, %v6652
        %v7069 = vpack.c.b16 %v6669, %v6653
        %v7070 = vpack.c.b16 %v6670, %v6654
        %v7071 = vpack.c.b16 %v6671, %v6655
        %v7072 = vpack.c.b16 %v6672, %v6656
        %v7073 = vpack.c.b16 %v6673, %v6657
        %v7074 = vpack.c.b16 %v6674, %v6658
        %v7075 = vpack.c.b16 %v6675, %v6659
        %v7076 = vpack.c.b16 %v6692, %v6676
        %v7077 = vpack.c.b16 %v6693, %v6677
        %v7078 = vpack.c.b16 %v6694, %v6678
        %v7079 = vpack.c.b16 %v6695, %v6679
        %v7080 = vpack.c.b16 %v6696, %v6680
        %v7081 = vpack.c.b16 %v6697, %v6681
        %v7082 = vpack.c.b16 %v6698, %v6682
        %v7083 = vpack.c.b16 %v6699, %v6683
        %v7084 = vpack.c.b16 %v6700, %v6684
        %v7085 = vpack.c.b16 %v6701, %v6685
        %v7086 = vpack.c.b16 %v6702, %v6686
        %v7087 = vpack.c.b16 %v6703, %v6687
        %v7088 = vpack.c.b16 %v6704, %v6688
        %v7089 = vpack.c.b16 %v6705, %v6689
        %v7090 = vpack.c.b16 %v6706, %v6690
        %v7091 = vpack.c.b16 %v6707, %v6691
        %v7092 = vpack.c.b16 %v6724, %v6708
        %v7093 = vpack.c.b16 %v6725, %v6709
        %v7094 = vpack.c.b16 %v6726, %v6710
        %v7095 = vpack.c.b16 %v6727, %v6711
        %v7096 = vpack.c.b16 %v6728, %v6712
        %v7097 = vpack.c.b16 %v6729, %v6713
        %v7098 = vpack.c.b16 %v6730, %v6714
        %v7099 = vpack.c.b16 %v6731, %v6715
        %v7100 = vpack.c.b16 %v6732, %v6716
        %v7101 = vpack.c.b16 %v6733, %v6717
        %v7102 = vpack.c.b16 %v6734, %v6718
        %v7103 = vpack.c.b16 %v6735, %v6719
        %v7104 = vpack.c.b16 %v6736, %v6720
        %v7105 = vpack.c.b16 %v6737, %v6721
        %v7106 = vpack.c.b16 %v6738, %v6722
        %v7107 = vpack.c.b16 %v6739, %v6723
        %v7108 = vpack.c.b16 %v6756, %v6740
        %v7109 = vpack.c.b16 %v6757, %v6741
        %v7110 = vpack.c.b16 %v6758, %v6742
        %v7111 = vpack.c.b16 %v6759, %v6743
        %v7112 = vpack.c.b16 %v6760, %v6744
        %v7113 = vpack.c.b16 %v6761, %v6745
        %v7114 = vpack.c.b16 %v6762, %v6746
        %v7115 = vpack.c.b16 %v6763, %v6747
        %v7116 = vpack.c.b16 %v6764, %v6748
        %v7117 = vpack.c.b16 %v6765, %v6749
        %v7118 = vpack.c.b16 %v6766, %v6750
        %v7119 = vpack.c.b16 %v6767, %v6751
        %v7120 = vpack.c.b16 %v6768, %v6752
        %v7121 = vpack.c.b16 %v6769, %v6753
        %v7122 = vpack.c.b16 %v6770, %v6754
        %v7123 = vpack.c.b16 %v6771, %v6755
        %v7124 = vpack.c.b16 %v6788, %v6772
        %v7125 = vpack.c.b16 %v6789, %v6773
        %v7126 = vpack.c.b16 %v6790, %v6774
        %v7127 = vpack.c.b16 %v6791, %v6775
        %v7128 = vpack.c.b16 %v6792, %v6776
        %v7129 = vpack.c.b16 %v6793, %v6777
        %v7130 = vpack.c.b16 %v6794, %v6778
        %v7131 = vpack.c.b16 %v6795, %v6779
        %v7132 = vpack.c.b16 %v6796, %v6780
        %v7133 = vpack.c.b16 %v6797, %v6781
        %v7134 = vpack.c.b16 %v6798, %v6782
        %v7135 = vpack.c.b16 %v6799, %v6783
        %v7136 = vpack.c.b16 %v6800, %v6784
        %v7137 = vpack.c.b16 %v6801, %v6785
        %v7138 = vpack.c.b16 %v6802, %v6786
        %v7139 = vpack.c.b16 %v6803, %v6787
        %v7140 = vpack.c.b16 %v6820, %v6804
        %v7141 = vpack.c.b16 %v6821, %v6805
        %v7142 = vpack.c.b16 %v6822, %v6806
        %v7143 = vpack.c.b16 %v6823, %v6807
        %v7144 = vpack.c.b16 %v6824, %v6808
        %v7145 = vpack.c.b16 %v6825, %v6809
        %v7146 = vpack.c.b16 %v6826, %v6810
        %v7147 = vpack.c.b16 %v6827, %v6811
        %v7148 = vpack.c.b16 %v6828, %v6812
        %v7149 = vpack.c.b16 %v6829, %v6813
        %v7150 = vpack.c.b16 %v6830, %v6814
        %v7151 = vpack.c.b16 %v6831, %v6815
        %v7152 = vpack.c.b16 %v6832, %v6816
        %v7153 = vpack.c.b16 %v6833, %v6817
        %v7154 = vpack.c.b16 %v6834, %v6818
        %v7155 = vpack.c.b16 %v6835, %v6819
        %v7156 = vpack.c.b16 %v6852, %v6836
        %v7157 = vpack.c.b16 %v6853, %v6837
        %v7158 = vpack.c.b16 %v6854, %v6838
        %v7159 = vpack.c.b16 %v6855, %v6839
        %v7160 = vpack.c.b16 %v6856, %v6840
        %v7161 = vpack.c.b16 %v6857, %v6841
        %v7162 = vpack.c.b16 %v6858, %v6842
        %v7163 = vpack.c.b16 %v6859, %v6843
        %v7164 = vpack.c.b16 %v6860, %v6844
        %v7165 = vpack.c.b16 %v6861, %v6845
        %v7166 = vpack.c.b16 %v6862, %v6846
        %v7167 = vpack.c.b16 %v6863, %v6847
        %v7168 = vpack.c.b16 %v6864, %v6848
        %v7169 = vpack.c.b16 %v6865, %v6849
        %v7170 = vpack.c.b16 %v6866, %v6850
        %v7171 = vpack.c.b16 %v6867, %v6851
        %v7172 = vpack.c.b16 %v6884, %v6868
        %v7173 = vpack.c.b16 %v6885, %v6869
        %v7174 = vpack.c.b16 %v6886, %v6870
        %v7175 = vpack.c.b16 %v6887, %v6871
        %v7176 = vpack.c.b16 %v6888, %v6872
        %v7177 = vpack.c.b16 %v6889, %v6873
        %v7178 = vpack.c.b16 %v6890, %v6874
        %v7179 = vpack.c.b16 %v6891, %v6875
        %v7180 = vpack.c.b16 %v6892, %v6876
        %v7181 = vpack.c.b16 %v6893, %v6877
        %v7182 = vpack.c.b16 %v6894, %v6878
        %v7183 = vpack.c.b16 %v6895, %v6879
        %v7184 = vpack.c.b16 %v6896, %v6880
        %v7185 = vpack.c.b16 %v6897, %v6881
        %v7186 = vpack.c.b16 %v6898, %v6882
        %v7187 = vpack.c.b16 %v6899, %v6883
        %v7188 = vpack.c.b16 %v6916, %v6900
        %v7189 = vpack.c.b16 %v6917, %v6901
        %v7190 = vpack.c.b16 %v6918, %v6902
        %v7191 = vpack.c.b16 %v6919, %v6903
        %v7192 = vpack.c.b16 %v6920, %v6904
        %v7193 = vpack.c.b16 %v6921, %v6905
        %v7194 = vpack.c.b16 %v6922, %v6906
        %v7195 = vpack.c.b16 %v6923, %v6907
        %v7196 = vpack.c.b16 %v6924, %v6908
        %v7197 = vpack.c.b16 %v6925, %v6909
        %v7198 = vpack.c.b16 %v6926, %v6910
        %v7199 = vpack.c.b16 %v6927, %v6911
        %v7200 = vpack.c.b16 %v6928, %v6912
        %v7201 = vpack.c.b16 %v6929, %v6913
        %v7202 = vpack.c.b16 %v6930, %v6914
        %v7203 = vpack.c.b16 %v6931, %v6915
        %v7204 = vpack.c.b16 %v6948, %v6932
        %v7205 = vpack.c.b16 %v6949, %v6933
        %v7206 = vpack.c.b16 %v6950, %v6934
        %v7207 = vpack.c.b16 %v6951, %v6935
        %v7208 = vpack.c.b16 %v6952, %v6936
        %v7209 = vpack.c.b16 %v6953, %v6937
        %v7210 = vpack.c.b16 %v6954, %v6938
        %v7211 = vpack.c.b16 %v6955, %v6939
        %v7212 = vpack.c.b16 %v6956, %v6940
        %v7213 = vpack.c.b16 %v6957, %v6941
        %v7214 = vpack.c.b16 %v6958, %v6942
        %v7215 = vpack.c.b16 %v6959, %v6943
        %v7216 = vpack.c.b16 %v6960, %v6944
        %v7217 = vpack.c.b16 %v6961, %v6945
        %v7218 = vpack.c.b16 %v6962, %v6946
        %v7219 = vpack.c.b16 %v6963, %v6947
        %7476 = vmatprep.subr.bf16.mxu0 %v6965
        %7477 = vmatpush1.bf16.msra.mxu0 %v6964
        %7478 = vmatprep.subr.bf16.mxu0 %v6981
        %7479 = vmatpush1.bf16.msra.mxu0 %v6980
        %7480 = vmatprep.subr.bf16.mxu0 %v6997
        %7481 = vmatpush1.bf16.msra.mxu0 %v6996
        %7482 = vmatprep.subr.bf16.mxu0 %v7013
        %7483 = vmatpush1.bf16.msra.mxu0 %v7012
        %7484 = vmatprep.subr.bf16.mxu0 %v7029
        %7485 = vmatpush1.bf16.msra.mxu0 %v7028
        %7486 = vmatprep.subr.bf16.mxu0 %v7045
        %7487 = vmatpush1.bf16.msra.mxu0 %v7044
        %7488 = vmatprep.subr.bf16.mxu0 %v7061
        %7489 = vmatpush1.bf16.msra.mxu0 %v7060
        %7490 = vmatprep.subr.bf16.mxu0 %v7077
        %7491 = vmatpush1.bf16.msra.mxu0 %v7076
        %7492 = vmatprep.subr.bf16.mxu0 %v7093
        %7493 = vmatpush1.bf16.msra.mxu0 %v7092
        %7494 = vmatprep.subr.bf16.mxu0 %v7109
        %7495 = vmatpush1.bf16.msra.mxu0 %v7108
        %7496 = vmatprep.subr.bf16.mxu0 %v7125
        %7497 = vmatpush1.bf16.msra.mxu0 %v7124
        %7498 = vmatprep.subr.bf16.mxu0 %v7141
        %7499 = vmatpush1.bf16.msra.mxu0 %v7140
        %7500 = vmatprep.subr.bf16.mxu0 %v7157
        %7501 = vmatpush1.bf16.msra.mxu0 %v7156
        %7502 = vmatprep.subr.bf16.mxu0 %v7173
        %7503 = vmatpush1.bf16.msra.mxu0 %v7172
        %7504 = vmatprep.subr.bf16.mxu0 %v7189
        %7505 = vmatpush1.bf16.msra.mxu0 %v7188
        %7506 = vmatprep.subr.bf16.mxu0 %v7205
        %7507 = vmatpush1.bf16.msra.mxu0 %v7204
        %7508 = vmatprep.mubr.bf16.mxu0 %v5855
        %7509 = vmatmul.mubr.bf16.gmra.mrb[0].mxu0 %v5854
        %v7510 = vpop.f32.mrb[0].mxu0
        %v7511 = vadd.f32 %v6119, %v7510
        %v7512 = vpop.f32.mrb[0].mxu0
        %v7513 = vadd.f32 %v6123, %v7512
        %v7514 = vpop.f32.mrb[0].mxu0
        %v7515 = vpop.f32.mrb[0].mxu0
        %7516 = vdwg.mxu0
        %7517 = vmatprep.subr.bf16.mxu0 %v6967
        %7518 = vmatpush1.bf16.msra.mxu0 %v6966
        %7519 = vmatprep.subr.bf16.mxu0 %v6983
        %7520 = vmatpush1.bf16.msra.mxu0 %v6982
        %7521 = vmatprep.subr.bf16.mxu0 %v6999
        %7522 = vmatpush1.bf16.msra.mxu0 %v6998
        %7523 = vmatprep.subr.bf16.mxu0 %v7015
        %7524 = vmatpush1.bf16.msra.mxu0 %v7014
        %7525 = vmatprep.subr.bf16.mxu0 %v7031
        %7526 = vmatpush1.bf16.msra.mxu0 %v7030
        %7527 = vmatprep.subr.bf16.mxu0 %v7047
        %7528 = vmatpush1.bf16.msra.mxu0 %v7046
        %7529 = vmatprep.subr.bf16.mxu0 %v7063
        %7530 = vmatpush1.bf16.msra.mxu0 %v7062
        %7531 = vmatprep.subr.bf16.mxu0 %v7079
        %7532 = vmatpush1.bf16.msra.mxu0 %v7078
        %7533 = vmatprep.subr.bf16.mxu0 %v7095
        %7534 = vmatpush1.bf16.msra.mxu0 %v7094
        %7535 = vmatprep.subr.bf16.mxu0 %v7111
        %7536 = vmatpush1.bf16.msra.mxu0 %v7110
        %7537 = vmatprep.subr.bf16.mxu0 %v7127
        %7538 = vmatpush1.bf16.msra.mxu0 %v7126
        %7539 = vmatprep.subr.bf16.mxu0 %v7143
        %7540 = vmatpush1.bf16.msra.mxu0 %v7142
        %7541 = vmatprep.subr.bf16.mxu0 %v7159
        %7542 = vmatpush1.bf16.msra.mxu0 %v7158
        %7543 = vmatprep.subr.bf16.mxu0 %v7175
        %7544 = vmatpush1.bf16.msra.mxu0 %v7174
        %7545 = vmatprep.subr.bf16.mxu0 %v7191
        %7546 = vmatpush1.bf16.msra.mxu0 %v7190
        %7547 = vmatprep.subr.bf16.mxu0 %v7207
        %7548 = vmatpush1.bf16.msra.mxu0 %v7206
        %7549 = vmatprep.mubr.bf16.mxu0 %v5855
        %7550 = vmatmul.mubr.bf16.gmra.mrb[0].mxu0 %v5854
        %v7551 = vpop.f32.mrb[0].mxu0
        %v7552 = vadd.f32 %v6127, %v7551
        %v7553 = vpop.f32.mrb[0].mxu0
        %v7554 = vadd.f32 %v6131, %v7553
        %v7555 = vpop.f32.mrb[0].mxu0
        %v7556 = vpop.f32.mrb[0].mxu0
        %7557 = vdwg.mxu0
        %7558 = vmatprep.subr.bf16.mxu0 %v6969
        %7559 = vmatpush1.bf16.msra.mxu0 %v6968
        %7560 = vmatprep.subr.bf16.mxu0 %v6985
        %7561 = vmatpush1.bf16.msra.mxu0 %v6984
        %7562 = vmatprep.subr.bf16.mxu0 %v7001
        %7563 = vmatpush1.bf16.msra.mxu0 %v7000
        %7564 = vmatprep.subr.bf16.mxu0 %v7017
        %7565 = vmatpush1.bf16.msra.mxu0 %v7016
        %7566 = vmatprep.subr.bf16.mxu0 %v7033
        %7567 = vmatpush1.bf16.msra.mxu0 %v7032
        %7568 = vmatprep.subr.bf16.mxu0 %v7049
        %7569 = vmatpush1.bf16.msra.mxu0 %v7048
        %7570 = vmatprep.subr.bf16.mxu0 %v7065
        %7571 = vmatpush1.bf16.msra.mxu0 %v7064
        %7572 = vmatprep.subr.bf16.mxu0 %v7081
        %7573 = vmatpush1.bf16.msra.mxu0 %v7080
        %7574 = vmatprep.subr.bf16.mxu0 %v7097
        %7575 = vmatpush1.bf16.msra.mxu0 %v7096
        %7576 = vmatprep.subr.bf16.mxu0 %v7113
        %7577 = vmatpush1.bf16.msra.mxu0 %v7112
        %7578 = vmatprep.subr.bf16.mxu0 %v7129
        %7579 = vmatpush1.bf16.msra.mxu0 %v7128
        %7580 = vmatprep.subr.bf16.mxu0 %v7145
        %7581 = vmatpush1.bf16.msra.mxu0 %v7144
        %7582 = vmatprep.subr.bf16.mxu0 %v7161
        %7583 = vmatpush1.bf16.msra.mxu0 %v7160
        %7584 = vmatprep.subr.bf16.mxu0 %v7177
        %7585 = vmatpush1.bf16.msra.mxu0 %v7176
        %7586 = vmatprep.subr.bf16.mxu0 %v7193
        %7587 = vmatpush1.bf16.msra.mxu0 %v7192
        %7588 = vmatprep.subr.bf16.mxu0 %v7209
        %7589 = vmatpush1.bf16.msra.mxu0 %v7208
        %7590 = vmatprep.mubr.bf16.mxu0 %v5855
        %7591 = vmatmul.mubr.bf16.gmra.mrb[0].mxu0 %v5854
        %v7592 = vpop.f32.mrb[0].mxu0
        %v7593 = vadd.f32 %v6135, %v7592
        %v7594 = vpop.f32.mrb[0].mxu0
        %v7595 = vadd.f32 %v6139, %v7594
        %v7596 = vpop.f32.mrb[0].mxu0
        %v7597 = vpop.f32.mrb[0].mxu0
        %7598 = vdwg.mxu0
        %7599 = vmatprep.subr.bf16.mxu0 %v6971
        %7600 = vmatpush1.bf16.msra.mxu0 %v6970
        %7601 = vmatprep.subr.bf16.mxu0 %v6987
        %7602 = vmatpush1.bf16.msra.mxu0 %v6986
        %7603 = vmatprep.subr.bf16.mxu0 %v7003
        %7604 = vmatpush1.bf16.msra.mxu0 %v7002
        %7605 = vmatprep.subr.bf16.mxu0 %v7019
        %7606 = vmatpush1.bf16.msra.mxu0 %v7018
        %7607 = vmatprep.subr.bf16.mxu0 %v7035
        %7608 = vmatpush1.bf16.msra.mxu0 %v7034
        %7609 = vmatprep.subr.bf16.mxu0 %v7051
        %7610 = vmatpush1.bf16.msra.mxu0 %v7050
        %7611 = vmatprep.subr.bf16.mxu0 %v7067
        %7612 = vmatpush1.bf16.msra.mxu0 %v7066
        %7613 = vmatprep.subr.bf16.mxu0 %v7083
        %7614 = vmatpush1.bf16.msra.mxu0 %v7082
        %7615 = vmatprep.subr.bf16.mxu0 %v7099
        %7616 = vmatpush1.bf16.msra.mxu0 %v7098
        %7617 = vmatprep.subr.bf16.mxu0 %v7115
        %7618 = vmatpush1.bf16.msra.mxu0 %v7114
        %7619 = vmatprep.subr.bf16.mxu0 %v7131
        %7620 = vmatpush1.bf16.msra.mxu0 %v7130
        %7621 = vmatprep.subr.bf16.mxu0 %v7147
        %7622 = vmatpush1.bf16.msra.mxu0 %v7146
        %7623 = vmatprep.subr.bf16.mxu0 %v7163
        %7624 = vmatpush1.bf16.msra.mxu0 %v7162
        %7625 = vmatprep.subr.bf16.mxu0 %v7179
        %7626 = vmatpush1.bf16.msra.mxu0 %v7178
        %7627 = vmatprep.subr.bf16.mxu0 %v7195
        %7628 = vmatpush1.bf16.msra.mxu0 %v7194
        %7629 = vmatprep.subr.bf16.mxu0 %v7211
        %7630 = vmatpush1.bf16.msra.mxu0 %v7210
        %7631 = vmatprep.mubr.bf16.mxu0 %v5855
        %7632 = vmatmul.mubr.bf16.gmra.mrb[0].mxu0 %v5854
        %v7633 = vpop.f32.mrb[0].mxu0
        %v7634 = vadd.f32 %v6143, %v7633
        %v7635 = vpop.f32.mrb[0].mxu0
        %v7636 = vadd.f32 %v6147, %v7635
        %v7637 = vpop.f32.mrb[0].mxu0
        %v7638 = vpop.f32.mrb[0].mxu0
        %7639 = vdwg.mxu0
        %7640 = vmatprep.subr.bf16.mxu0 %v6973
        %7641 = vmatpush1.bf16.msra.mxu0 %v6972
        %7642 = vmatprep.subr.bf16.mxu0 %v6989
        %7643 = vmatpush1.bf16.msra.mxu0 %v6988
        %7644 = vmatprep.subr.bf16.mxu0 %v7005
        %7645 = vmatpush1.bf16.msra.mxu0 %v7004
        %7646 = vmatprep.subr.bf16.mxu0 %v7021
        %7647 = vmatpush1.bf16.msra.mxu0 %v7020
        %7648 = vmatprep.subr.bf16.mxu0 %v7037
        %7649 = vmatpush1.bf16.msra.mxu0 %v7036
        %7650 = vmatprep.subr.bf16.mxu0 %v7053
        %7651 = vmatpush1.bf16.msra.mxu0 %v7052
        %7652 = vmatprep.subr.bf16.mxu0 %v7069
        %7653 = vmatpush1.bf16.msra.mxu0 %v7068
        %7654 = vmatprep.subr.bf16.mxu0 %v7085
        %7655 = vmatpush1.bf16.msra.mxu0 %v7084
        %7656 = vmatprep.subr.bf16.mxu0 %v7101
        %7657 = vmatpush1.bf16.msra.mxu0 %v7100
        %7658 = vmatprep.subr.bf16.mxu0 %v7117
        %7659 = vmatpush1.bf16.msra.mxu0 %v7116
        %7660 = vmatprep.subr.bf16.mxu0 %v7133
        %7661 = vmatpush1.bf16.msra.mxu0 %v7132
        %7662 = vmatprep.subr.bf16.mxu0 %v7149
        %7663 = vmatpush1.bf16.msra.mxu0 %v7148
        %7664 = vmatprep.subr.bf16.mxu0 %v7165
        %7665 = vmatpush1.bf16.msra.mxu0 %v7164
        %7666 = vmatprep.subr.bf16.mxu0 %v7181
        %7667 = vmatpush1.bf16.msra.mxu0 %v7180
        %7668 = vmatprep.subr.bf16.mxu0 %v7197
        %7669 = vmatpush1.bf16.msra.mxu0 %v7196
        %7670 = vmatprep.subr.bf16.mxu0 %v7213
        %7671 = vmatpush1.bf16.msra.mxu0 %v7212
        %7672 = vmatprep.mubr.bf16.mxu0 %v5855
        %7673 = vmatmul.mubr.bf16.gmra.mrb[0].mxu0 %v5854
        %v7674 = vpop.f32.mrb[0].mxu0
        %v7675 = vadd.f32 %v6151, %v7674
        %v7676 = vpop.f32.mrb[0].mxu0
        %v7677 = vadd.f32 %v6155, %v7676
        %v7678 = vpop.f32.mrb[0].mxu0
        %v7679 = vpop.f32.mrb[0].mxu0
        %7680 = vdwg.mxu0
        %7681 = vmatprep.subr.bf16.mxu0 %v6975
        %7682 = vmatpush1.bf16.msra.mxu0 %v6974
        %7683 = vmatprep.subr.bf16.mxu0 %v6991
        %7684 = vmatpush1.bf16.msra.mxu0 %v6990
        %7685 = vmatprep.subr.bf16.mxu0 %v7007
        %7686 = vmatpush1.bf16.msra.mxu0 %v7006
        %7687 = vmatprep.subr.bf16.mxu0 %v7023
        %7688 = vmatpush1.bf16.msra.mxu0 %v7022
        %7689 = vmatprep.subr.bf16.mxu0 %v7039
        %7690 = vmatpush1.bf16.msra.mxu0 %v7038
        %7691 = vmatprep.subr.bf16.mxu0 %v7055
        %7692 = vmatpush1.bf16.msra.mxu0 %v7054
        %7693 = vmatprep.subr.bf16.mxu0 %v7071
        %7694 = vmatpush1.bf16.msra.mxu0 %v7070
        %7695 = vmatprep.subr.bf16.mxu0 %v7087
        %7696 = vmatpush1.bf16.msra.mxu0 %v7086
        %7697 = vmatprep.subr.bf16.mxu0 %v7103
        %7698 = vmatpush1.bf16.msra.mxu0 %v7102
        %7699 = vmatprep.subr.bf16.mxu0 %v7119
        %7700 = vmatpush1.bf16.msra.mxu0 %v7118
        %7701 = vmatprep.subr.bf16.mxu0 %v7135
        %7702 = vmatpush1.bf16.msra.mxu0 %v7134
        %7703 = vmatprep.subr.bf16.mxu0 %v7151
        %7704 = vmatpush1.bf16.msra.mxu0 %v7150
        %7705 = vmatprep.subr.bf16.mxu0 %v7167
        %7706 = vmatpush1.bf16.msra.mxu0 %v7166
        %7707 = vmatprep.subr.bf16.mxu0 %v7183
        %7708 = vmatpush1.bf16.msra.mxu0 %v7182
        %7709 = vmatprep.subr.bf16.mxu0 %v7199
        %7710 = vmatpush1.bf16.msra.mxu0 %v7198
        %7711 = vmatprep.subr.bf16.mxu0 %v7215
        %7712 = vmatpush1.bf16.msra.mxu0 %v7214
        %7713 = vmatprep.mubr.bf16.mxu0 %v5855
        %7714 = vmatmul.mubr.bf16.gmra.mrb[0].mxu0 %v5854
        %v7715 = vpop.f32.mrb[0].mxu0
        %v7716 = vadd.f32 %v6159, %v7715
        %v7717 = vpop.f32.mrb[0].mxu0
        %v7718 = vadd.f32 %v6163, %v7717
        %v7719 = vpop.f32.mrb[0].mxu0
        %v7720 = vpop.f32.mrb[0].mxu0
        %7721 = vdwg.mxu0
        %7722 = vmatprep.subr.bf16.mxu0 %v6977
        %7723 = vmatpush1.bf16.msra.mxu0 %v6976
        %7724 = vmatprep.subr.bf16.mxu0 %v6993
        %7725 = vmatpush1.bf16.msra.mxu0 %v6992
        %7726 = vmatprep.subr.bf16.mxu0 %v7009
        %7727 = vmatpush1.bf16.msra.mxu0 %v7008
        %7728 = vmatprep.subr.bf16.mxu0 %v7025
        %7729 = vmatpush1.bf16.msra.mxu0 %v7024
        %7730 = vmatprep.subr.bf16.mxu0 %v7041
        %7731 = vmatpush1.bf16.msra.mxu0 %v7040
        %7732 = vmatprep.subr.bf16.mxu0 %v7057
        %7733 = vmatpush1.bf16.msra.mxu0 %v7056
        %7734 = vmatprep.subr.bf16.mxu0 %v7073
        %7735 = vmatpush1.bf16.msra.mxu0 %v7072
        %7736 = vmatprep.subr.bf16.mxu0 %v7089
        %7737 = vmatpush1.bf16.msra.mxu0 %v7088
        %7738 = vmatprep.subr.bf16.mxu0 %v7105
        %7739 = vmatpush1.bf16.msra.mxu0 %v7104
        %7740 = vmatprep.subr.bf16.mxu0 %v7121
        %7741 = vmatpush1.bf16.msra.mxu0 %v7120
        %7742 = vmatprep.subr.bf16.mxu0 %v7137
        %7743 = vmatpush1.bf16.msra.mxu0 %v7136
        %7744 = vmatprep.subr.bf16.mxu0 %v7153
        %7745 = vmatpush1.bf16.msra.mxu0 %v7152
        %7746 = vmatprep.subr.bf16.mxu0 %v7169
        %7747 = vmatpush1.bf16.msra.mxu0 %v7168
        %7748 = vmatprep.subr.bf16.mxu0 %v7185
        %7749 = vmatpush1.bf16.msra.mxu0 %v7184
        %7750 = vmatprep.subr.bf16.mxu0 %v7201
        %7751 = vmatpush1.bf16.msra.mxu0 %v7200
        %7752 = vmatprep.subr.bf16.mxu0 %v7217
        %7753 = vmatpush1.bf16.msra.mxu0 %v7216
        %7754 = vmatprep.mubr.bf16.mxu0 %v5855
        %7755 = vmatmul.mubr.bf16.gmra.mrb[0].mxu0 %v5854
        %v7756 = vpop.f32.mrb[0].mxu0
        %v7757 = vadd.f32 %v6167, %v7756
        %v7758 = vpop.f32.mrb[0].mxu0
        %v7759 = vadd.f32 %v6171, %v7758
        %v7760 = vpop.f32.mrb[0].mxu0
        %v7761 = vpop.f32.mrb[0].mxu0
        %7762 = vdwg.mxu0
        %7763 = vmatprep.subr.bf16.mxu0 %v6979
        %7764 = vmatpush1.bf16.msra.mxu0 %v6978
        %7765 = vmatprep.subr.bf16.mxu0 %v6995
        %7766 = vmatpush1.bf16.msra.mxu0 %v6994
        %7767 = vmatprep.subr.bf16.mxu0 %v7011
        %7768 = vmatpush1.bf16.msra.mxu0 %v7010
        %7769 = vmatprep.subr.bf16.mxu0 %v7027
        %7770 = vmatpush1.bf16.msra.mxu0 %v7026
        %7771 = vmatprep.subr.bf16.mxu0 %v7043
        %7772 = vmatpush1.bf16.msra.mxu0 %v7042
        %7773 = vmatprep.subr.bf16.mxu0 %v7059
        %7774 = vmatpush1.bf16.msra.mxu0 %v7058
        %7775 = vmatprep.subr.bf16.mxu0 %v7075
        %7776 = vmatpush1.bf16.msra.mxu0 %v7074
        %7777 = vmatprep.subr.bf16.mxu0 %v7091
        %7778 = vmatpush1.bf16.msra.mxu0 %v7090
        %7779 = vmatprep.subr.bf16.mxu0 %v7107
        %7780 = vmatpush1.bf16.msra.mxu0 %v7106
        %7781 = vmatprep.subr.bf16.mxu0 %v7123
        %7782 = vmatpush1.bf16.msra.mxu0 %v7122
        %7783 = vmatprep.subr.bf16.mxu0 %v7139
        %7784 = vmatpush1.bf16.msra.mxu0 %v7138
        %7785 = vmatprep.subr.bf16.mxu0 %v7155
        %7786 = vmatpush1.bf16.msra.mxu0 %v7154
        %7787 = vmatprep.subr.bf16.mxu0 %v7171
        %7788 = vmatpush1.bf16.msra.mxu0 %v7170
        %7789 = vmatprep.subr.bf16.mxu0 %v7187
        %7790 = vmatpush1.bf16.msra.mxu0 %v7186
        %7791 = vmatprep.subr.bf16.mxu0 %v7203
        %7792 = vmatpush1.bf16.msra.mxu0 %v7202
        %7793 = vmatprep.subr.bf16.mxu0 %v7219
        %7794 = vmatpush1.bf16.msra.mxu0 %v7218
        %7795 = vmatprep.mubr.bf16.mxu0 %v5855
        %7796 = vmatmul.mubr.bf16.gmra.mrb[0].mxu0 %v5854
        %v7797 = vpop.f32.mrb[0].mxu0
        %v7798 = vadd.f32 %v6175, %v7797
        %v7799 = vpop.f32.mrb[0].mxu0
        %v7800 = vadd.f32 %v6179, %v7799
        %v7801 = vpop.f32.mrb[0].mxu0
        %v7802 = vpop.f32.mrb[0].mxu0
        %7803 = vdwg.mxu0
        %v7804 = vmax.f32 %v7511, 0.0
        %v7805 = vmax.f32 %v7513, 0.0
        %v7806 = vmax.f32 %v7552, 0.0
        %v7807 = vmax.f32 %v7554, 0.0
        %v7808 = vmax.f32 %v7593, 0.0
        %v7809 = vmax.f32 %v7595, 0.0
        %v7810 = vmax.f32 %v7634, 0.0
        %v7811 = vmax.f32 %v7636, 0.0
        %v7812 = vmax.f32 %v7675, 0.0
        %v7813 = vmax.f32 %v7677, 0.0
        %v7814 = vmax.f32 %v7716, 0.0
        %v7815 = vmax.f32 %v7718, 0.0
        %v7816 = vmax.f32 %v7757, 0.0
        %v7817 = vmax.f32 %v7759, 0.0
        %v7818 = vmax.f32 %v7798, 0.0
        %v7819 = vmax.f32 %v7800, 0.0
        %v7820 = vpack.c.bf16 %v7804, %v7804
        %v7821 = vpack.c.bf16 %v7805, %v7805
        %v7822 = vpack.c.bf16 %v7806, %v7806
        %v7823 = vpack.c.bf16 %v7807, %v7807
        %v7824 = vpack.c.bf16 %v7808, %v7808
        %v7825 = vpack.c.bf16 %v7809, %v7809
        %v7826 = vpack.c.bf16 %v7810, %v7810
        %v7827 = vpack.c.bf16 %v7811, %v7811
        %v7828 = vpack.c.bf16 %v7812, %v7812
        %v7829 = vpack.c.bf16 %v7813, %v7813
        %v7830 = vpack.c.bf16 %v7814, %v7814
        %v7831 = vpack.c.bf16 %v7815, %v7815
        %v7832 = vpack.c.bf16 %v7816, %v7816
        %v7833 = vpack.c.bf16 %v7817, %v7817
        %v7834 = vpack.c.bf16 %v7818, %v7818
        %v7835 = vpack.c.bf16 %v7819, %v7819
        %v7836 = vld [vmem:[%s1704] sm:$0xff]
        %v7837 = vld [vmem:[%s1704 + $0x8] sm:$0xff]
        %v7838 = vld [vmem:[%s1704 + $0x10] sm:$0xff]
        %v7839 = vld [vmem:[%s1704 + $0x18] sm:$0xff]
        %v7840 = vld [vmem:[%s1704 + $0x20] sm:$0xff]
        %v7841 = vld [vmem:[%s1704 + $0x28] sm:$0xff]
        %v7842 = vld [vmem:[%s1704 + $0x30] sm:$0xff]
        %v7843 = vld [vmem:[%s1704 + $0x38] sm:$0xff]
        %v7844 = vld [vmem:[%s1704 + $0x40] sm:$0xff]
        %v7845 = vld [vmem:[%s1704 + $0x48] sm:$0xff]
        %v7846 = vld [vmem:[%s1704 + $0x50] sm:$0xff]
        %v7847 = vld [vmem:[%s1704 + $0x58] sm:$0xff]
        %v7848 = vld [vmem:[%s1704 + $0x60] sm:$0xff]
        %v7849 = vld [vmem:[%s1704 + $0x68] sm:$0xff]
        %v7850 = vld [vmem:[%s1704 + $0x70] sm:$0xff]
        %v7851 = vld [vmem:[%s1704 + $0x78] sm:$0xff]
        %v7852 = vld [vmem:[%s1704 + $0x80] sm:$0xff]
        %v7853 = vld [vmem:[%s1704 + $0x88] sm:$0xff]
        %v7854 = vld [vmem:[%s1704 + $0x90] sm:$0xff]
        %v7855 = vld [vmem:[%s1704 + $0x98] sm:$0xff]
        %v7856 = vld [vmem:[%s1704 + $0xa0] sm:$0xff]
        %v7857 = vld [vmem:[%s1704 + $0xa8] sm:$0xff]
        %v7858 = vld [vmem:[%s1704 + $0xb0] sm:$0xff]
        %v7859 = vld [vmem:[%s1704 + $0xb8] sm:$0xff]
        %v7860 = vld [vmem:[%s1704 + $0xc0] sm:$0xff]
        %v7861 = vld [vmem:[%s1704 + $0xc8] sm:$0xff]
        %v7862 = vld [vmem:[%s1704 + $0xd0] sm:$0xff]
        %v7863 = vld [vmem:[%s1704 + $0xd8] sm:$0xff]
        %v7864 = vld [vmem:[%s1704 + $0xe0] sm:$0xff]
        %v7865 = vld [vmem:[%s1704 + $0xe8] sm:$0xff]
        %v7866 = vld [vmem:[%s1704 + $0xf0] sm:$0xff]
        %v7867 = vld [vmem:[%s1704 + $0xf8] sm:$0xff]
        %v7868 = vld [vmem:[%s1704 + $0x100] sm:$0xff]
        %v7869 = vld [vmem:[%s1704 + $0x108] sm:$0xff]
        %v7870 = vld [vmem:[%s1704 + $0x110] sm:$0xff]
        %v7871 = vld [vmem:[%s1704 + $0x118] sm:$0xff]
        %v7872 = vld [vmem:[%s1704 + $0x120] sm:$0xff]
        %v7873 = vld [vmem:[%s1704 + $0x128] sm:$0xff]
        %v7874 = vld [vmem:[%s1704 + $0x130] sm:$0xff]
        %v7875 = vld [vmem:[%s1704 + $0x138] sm:$0xff]
        %v7876 = vld [vmem:[%s1704 + $0x140] sm:$0xff]
        %v7877 = vld [vmem:[%s1704 + $0x148] sm:$0xff]
        %v7878 = vld [vmem:[%s1704 + $0x150] sm:$0xff]
        %v7879 = vld [vmem:[%s1704 + $0x158] sm:$0xff]
        %v7880 = vld [vmem:[%s1704 + $0x160] sm:$0xff]
        %v7881 = vld [vmem:[%s1704 + $0x168] sm:$0xff]
        %v7882 = vld [vmem:[%s1704 + $0x170] sm:$0xff]
        %v7883 = vld [vmem:[%s1704 + $0x178] sm:$0xff]
        %v7884 = vld [vmem:[%s1704 + $0x180] sm:$0xff]
        %v7885 = vld [vmem:[%s1704 + $0x188] sm:$0xff]
        %v7886 = vld [vmem:[%s1704 + $0x190] sm:$0xff]
        %v7887 = vld [vmem:[%s1704 + $0x198] sm:$0xff]
        %v7888 = vld [vmem:[%s1704 + $0x1a0] sm:$0xff]
        %v7889 = vld [vmem:[%s1704 + $0x1a8] sm:$0xff]
        %v7890 = vld [vmem:[%s1704 + $0x1b0] sm:$0xff]
        %v7891 = vld [vmem:[%s1704 + $0x1b8] sm:$0xff]
        %v7892 = vld [vmem:[%s1704 + $0x1c0] sm:$0xff]
        %v7893 = vld [vmem:[%s1704 + $0x1c8] sm:$0xff]
        %v7894 = vld [vmem:[%s1704 + $0x1d0] sm:$0xff]
        %v7895 = vld [vmem:[%s1704 + $0x1d8] sm:$0xff]
        %v7896 = vld [vmem:[%s1704 + $0x1e0] sm:$0xff]
        %v7897 = vld [vmem:[%s1704 + $0x1e8] sm:$0xff]
        %v7898 = vld [vmem:[%s1704 + $0x1f0] sm:$0xff]
        %v7899 = vld [vmem:[%s1704 + $0x1f8] sm:$0xff]
        %v7900 = vld [vmem:[%s1704 + $0x200] sm:$0xff]
        %v7901 = vld [vmem:[%s1704 + $0x208] sm:$0xff]
        %v7902 = vld [vmem:[%s1704 + $0x210] sm:$0xff]
        %v7903 = vld [vmem:[%s1704 + $0x218] sm:$0xff]
        %v7904 = vld [vmem:[%s1704 + $0x220] sm:$0xff]
        %v7905 = vld [vmem:[%s1704 + $0x228] sm:$0xff]
        %v7906 = vld [vmem:[%s1704 + $0x230] sm:$0xff]
        %v7907 = vld [vmem:[%s1704 + $0x238] sm:$0xff]
        %v7908 = vld [vmem:[%s1704 + $0x240] sm:$0xff]
        %v7909 = vld [vmem:[%s1704 + $0x248] sm:$0xff]
        %v7910 = vld [vmem:[%s1704 + $0x250] sm:$0xff]
        %v7911 = vld [vmem:[%s1704 + $0x258] sm:$0xff]
        %v7912 = vld [vmem:[%s1704 + $0x260] sm:$0xff]
        %v7913 = vld [vmem:[%s1704 + $0x268] sm:$0xff]
        %v7914 = vld [vmem:[%s1704 + $0x270] sm:$0xff]
        %v7915 = vld [vmem:[%s1704 + $0x278] sm:$0xff]
        %v7916 = vld [vmem:[%s1704 + $0x280] sm:$0xff]
        %v7917 = vld [vmem:[%s1704 + $0x288] sm:$0xff]
        %v7918 = vld [vmem:[%s1704 + $0x290] sm:$0xff]
        %v7919 = vld [vmem:[%s1704 + $0x298] sm:$0xff]
        %v7920 = vld [vmem:[%s1704 + $0x2a0] sm:$0xff]
        %v7921 = vld [vmem:[%s1704 + $0x2a8] sm:$0xff]
        %v7922 = vld [vmem:[%s1704 + $0x2b0] sm:$0xff]
        %v7923 = vld [vmem:[%s1704 + $0x2b8] sm:$0xff]
        %v7924 = vld [vmem:[%s1704 + $0x2c0] sm:$0xff]
        %v7925 = vld [vmem:[%s1704 + $0x2c8] sm:$0xff]
        %v7926 = vld [vmem:[%s1704 + $0x2d0] sm:$0xff]
        %v7927 = vld [vmem:[%s1704 + $0x2d8] sm:$0xff]
        %v7928 = vld [vmem:[%s1704 + $0x2e0] sm:$0xff]
        %v7929 = vld [vmem:[%s1704 + $0x2e8] sm:$0xff]
        %v7930 = vld [vmem:[%s1704 + $0x2f0] sm:$0xff]
        %v7931 = vld [vmem:[%s1704 + $0x2f8] sm:$0xff]
        %v7932 = vld [vmem:[%s1704 + $0x300] sm:$0xff]
        %v7933 = vld [vmem:[%s1704 + $0x308] sm:$0xff]
        %v7934 = vld [vmem:[%s1704 + $0x310] sm:$0xff]
        %v7935 = vld [vmem:[%s1704 + $0x318] sm:$0xff]
        %v7936 = vld [vmem:[%s1704 + $0x320] sm:$0xff]
        %v7937 = vld [vmem:[%s1704 + $0x328] sm:$0xff]
        %v7938 = vld [vmem:[%s1704 + $0x330] sm:$0xff]
        %v7939 = vld [vmem:[%s1704 + $0x338] sm:$0xff]
        %v7940 = vld [vmem:[%s1704 + $0x340] sm:$0xff]
        %v7941 = vld [vmem:[%s1704 + $0x348] sm:$0xff]
        %v7942 = vld [vmem:[%s1704 + $0x350] sm:$0xff]
        %v7943 = vld [vmem:[%s1704 + $0x358] sm:$0xff]
        %v7944 = vld [vmem:[%s1704 + $0x360] sm:$0xff]
        %v7945 = vld [vmem:[%s1704 + $0x368] sm:$0xff]
        %v7946 = vld [vmem:[%s1704 + $0x370] sm:$0xff]
        %v7947 = vld [vmem:[%s1704 + $0x378] sm:$0xff]
        %v7948 = vld [vmem:[%s1704 + $0x380] sm:$0xff]
        %v7949 = vld [vmem:[%s1704 + $0x388] sm:$0xff]
        %v7950 = vld [vmem:[%s1704 + $0x390] sm:$0xff]
        %v7951 = vld [vmem:[%s1704 + $0x398] sm:$0xff]
        %v7952 = vld [vmem:[%s1704 + $0x3a0] sm:$0xff]
        %v7953 = vld [vmem:[%s1704 + $0x3a8] sm:$0xff]
        %v7954 = vld [vmem:[%s1704 + $0x3b0] sm:$0xff]
        %v7955 = vld [vmem:[%s1704 + $0x3b8] sm:$0xff]
        %v7956 = vld [vmem:[%s1704 + $0x3c0] sm:$0xff]
        %v7957 = vld [vmem:[%s1704 + $0x3c8] sm:$0xff]
        %v7958 = vld [vmem:[%s1704 + $0x3d0] sm:$0xff]
        %v7959 = vld [vmem:[%s1704 + $0x3d8] sm:$0xff]
        %v7960 = vld [vmem:[%s1704 + $0x3e0] sm:$0xff]
        %v7961 = vld [vmem:[%s1704 + $0x3e8] sm:$0xff]
        %v7962 = vld [vmem:[%s1704 + $0x3f0] sm:$0xff]
        %v7963 = vld [vmem:[%s1704 + $0x3f8] sm:$0xff]
        %v7964 = vld [vmem:[%s1704 + $0x400] sm:$0xff]
        %v7965 = vld [vmem:[%s1704 + $0x408] sm:$0xff]
        %v7966 = vld [vmem:[%s1704 + $0x410] sm:$0xff]
        %v7967 = vld [vmem:[%s1704 + $0x418] sm:$0xff]
        %v7968 = vld [vmem:[%s1704 + $0x420] sm:$0xff]
        %v7969 = vld [vmem:[%s1704 + $0x428] sm:$0xff]
        %v7970 = vld [vmem:[%s1704 + $0x430] sm:$0xff]
        %v7971 = vld [vmem:[%s1704 + $0x438] sm:$0xff]
        %v7972 = vld [vmem:[%s1704 + $0x440] sm:$0xff]
        %v7973 = vld [vmem:[%s1704 + $0x448] sm:$0xff]
        %v7974 = vld [vmem:[%s1704 + $0x450] sm:$0xff]
        %v7975 = vld [vmem:[%s1704 + $0x458] sm:$0xff]
        %v7976 = vld [vmem:[%s1704 + $0x460] sm:$0xff]
        %v7977 = vld [vmem:[%s1704 + $0x468] sm:$0xff]
        %v7978 = vld [vmem:[%s1704 + $0x470] sm:$0xff]
        %v7979 = vld [vmem:[%s1704 + $0x478] sm:$0xff]
        %v7980 = vld [vmem:[%s1704 + $0x480] sm:$0xff]
        %v7981 = vld [vmem:[%s1704 + $0x488] sm:$0xff]
        %v7982 = vld [vmem:[%s1704 + $0x490] sm:$0xff]
        %v7983 = vld [vmem:[%s1704 + $0x498] sm:$0xff]
        %v7984 = vld [vmem:[%s1704 + $0x4a0] sm:$0xff]
        %v7985 = vld [vmem:[%s1704 + $0x4a8] sm:$0xff]
        %v7986 = vld [vmem:[%s1704 + $0x4b0] sm:$0xff]
        %v7987 = vld [vmem:[%s1704 + $0x4b8] sm:$0xff]
        %v7988 = vld [vmem:[%s1704 + $0x4c0] sm:$0xff]
        %v7989 = vld [vmem:[%s1704 + $0x4c8] sm:$0xff]
        %v7990 = vld [vmem:[%s1704 + $0x4d0] sm:$0xff]
        %v7991 = vld [vmem:[%s1704 + $0x4d8] sm:$0xff]
        %v7992 = vld [vmem:[%s1704 + $0x4e0] sm:$0xff]
        %v7993 = vld [vmem:[%s1704 + $0x4e8] sm:$0xff]
        %v7994 = vld [vmem:[%s1704 + $0x4f0] sm:$0xff]
        %v7995 = vld [vmem:[%s1704 + $0x4f8] sm:$0xff]
        %v7996 = vld [vmem:[%s1704 + $0x500] sm:$0xff]
        %v7997 = vld [vmem:[%s1704 + $0x508] sm:$0xff]
        %v7998 = vld [vmem:[%s1704 + $0x510] sm:$0xff]
        %v7999 = vld [vmem:[%s1704 + $0x518] sm:$0xff]
        %v8000 = vld [vmem:[%s1704 + $0x520] sm:$0xff]
        %v8001 = vld [vmem:[%s1704 + $0x528] sm:$0xff]
        %v8002 = vld [vmem:[%s1704 + $0x530] sm:$0xff]
        %v8003 = vld [vmem:[%s1704 + $0x538] sm:$0xff]
        %v8004 = vld [vmem:[%s1704 + $0x540] sm:$0xff]
        %v8005 = vld [vmem:[%s1704 + $0x548] sm:$0xff]
        %v8006 = vld [vmem:[%s1704 + $0x550] sm:$0xff]
        %v8007 = vld [vmem:[%s1704 + $0x558] sm:$0xff]
        %v8008 = vld [vmem:[%s1704 + $0x560] sm:$0xff]
        %v8009 = vld [vmem:[%s1704 + $0x568] sm:$0xff]
        %v8010 = vld [vmem:[%s1704 + $0x570] sm:$0xff]
        %v8011 = vld [vmem:[%s1704 + $0x578] sm:$0xff]
        %v8012 = vld [vmem:[%s1704 + $0x580] sm:$0xff]
        %v8013 = vld [vmem:[%s1704 + $0x588] sm:$0xff]
        %v8014 = vld [vmem:[%s1704 + $0x590] sm:$0xff]
        %v8015 = vld [vmem:[%s1704 + $0x598] sm:$0xff]
        %v8016 = vld [vmem:[%s1704 + $0x5a0] sm:$0xff]
        %v8017 = vld [vmem:[%s1704 + $0x5a8] sm:$0xff]
        %v8018 = vld [vmem:[%s1704 + $0x5b0] sm:$0xff]
        %v8019 = vld [vmem:[%s1704 + $0x5b8] sm:$0xff]
        %v8020 = vld [vmem:[%s1704 + $0x5c0] sm:$0xff]
        %v8021 = vld [vmem:[%s1704 + $0x5c8] sm:$0xff]
        %v8022 = vld [vmem:[%s1704 + $0x5d0] sm:$0xff]
        %v8023 = vld [vmem:[%s1704 + $0x5d8] sm:$0xff]
        %v8024 = vld [vmem:[%s1704 + $0x5e0] sm:$0xff]
        %v8025 = vld [vmem:[%s1704 + $0x5e8] sm:$0xff]
        %v8026 = vld [vmem:[%s1704 + $0x5f0] sm:$0xff]
        %v8027 = vld [vmem:[%s1704 + $0x5f8] sm:$0xff]
        %v8028 = vld [vmem:[%s1704 + $0x600] sm:$0xff]
        %v8029 = vld [vmem:[%s1704 + $0x608] sm:$0xff]
        %v8030 = vld [vmem:[%s1704 + $0x610] sm:$0xff]
        %v8031 = vld [vmem:[%s1704 + $0x618] sm:$0xff]
        %v8032 = vld [vmem:[%s1704 + $0x620] sm:$0xff]
        %v8033 = vld [vmem:[%s1704 + $0x628] sm:$0xff]
        %v8034 = vld [vmem:[%s1704 + $0x630] sm:$0xff]
        %v8035 = vld [vmem:[%s1704 + $0x638] sm:$0xff]
        %v8036 = vld [vmem:[%s1704 + $0x640] sm:$0xff]
        %v8037 = vld [vmem:[%s1704 + $0x648] sm:$0xff]
        %v8038 = vld [vmem:[%s1704 + $0x650] sm:$0xff]
        %v8039 = vld [vmem:[%s1704 + $0x658] sm:$0xff]
        %v8040 = vld [vmem:[%s1704 + $0x660] sm:$0xff]
        %v8041 = vld [vmem:[%s1704 + $0x668] sm:$0xff]
        %v8042 = vld [vmem:[%s1704 + $0x670] sm:$0xff]
        %v8043 = vld [vmem:[%s1704 + $0x678] sm:$0xff]
        %v8044 = vld [vmem:[%s1704 + $0x680] sm:$0xff]
        %v8045 = vld [vmem:[%s1704 + $0x688] sm:$0xff]
        %v8046 = vld [vmem:[%s1704 + $0x690] sm:$0xff]
        %v8047 = vld [vmem:[%s1704 + $0x698] sm:$0xff]
        %v8048 = vld [vmem:[%s1704 + $0x6a0] sm:$0xff]
        %v8049 = vld [vmem:[%s1704 + $0x6a8] sm:$0xff]
        %v8050 = vld [vmem:[%s1704 + $0x6b0] sm:$0xff]
        %v8051 = vld [vmem:[%s1704 + $0x6b8] sm:$0xff]
        %v8052 = vld [vmem:[%s1704 + $0x6c0] sm:$0xff]
        %v8053 = vld [vmem:[%s1704 + $0x6c8] sm:$0xff]
        %v8054 = vld [vmem:[%s1704 + $0x6d0] sm:$0xff]
        %v8055 = vld [vmem:[%s1704 + $0x6d8] sm:$0xff]
        %v8056 = vld [vmem:[%s1704 + $0x6e0] sm:$0xff]
        %v8057 = vld [vmem:[%s1704 + $0x6e8] sm:$0xff]
        %v8058 = vld [vmem:[%s1704 + $0x6f0] sm:$0xff]
        %v8059 = vld [vmem:[%s1704 + $0x6f8] sm:$0xff]
        %v8060 = vld [vmem:[%s1704 + $0x700] sm:$0xff]
        %v8061 = vld [vmem:[%s1704 + $0x708] sm:$0xff]
        %v8062 = vld [vmem:[%s1704 + $0x710] sm:$0xff]
        %v8063 = vld [vmem:[%s1704 + $0x718] sm:$0xff]
        %v8064 = vld [vmem:[%s1704 + $0x720] sm:$0xff]
        %v8065 = vld [vmem:[%s1704 + $0x728] sm:$0xff]
        %v8066 = vld [vmem:[%s1704 + $0x730] sm:$0xff]
        %v8067 = vld [vmem:[%s1704 + $0x738] sm:$0xff]
        %v8068 = vld [vmem:[%s1704 + $0x740] sm:$0xff]
        %v8069 = vld [vmem:[%s1704 + $0x748] sm:$0xff]
        %v8070 = vld [vmem:[%s1704 + $0x750] sm:$0xff]
        %v8071 = vld [vmem:[%s1704 + $0x758] sm:$0xff]
        %v8072 = vld [vmem:[%s1704 + $0x760] sm:$0xff]
        %v8073 = vld [vmem:[%s1704 + $0x768] sm:$0xff]
        %v8074 = vld [vmem:[%s1704 + $0x770] sm:$0xff]
        %v8075 = vld [vmem:[%s1704 + $0x778] sm:$0xff]
        %v8076 = vld [vmem:[%s1704 + $0x780] sm:$0xff]
        %v8077 = vld [vmem:[%s1704 + $0x788] sm:$0xff]
        %v8078 = vld [vmem:[%s1704 + $0x790] sm:$0xff]
        %v8079 = vld [vmem:[%s1704 + $0x798] sm:$0xff]
        %v8080 = vld [vmem:[%s1704 + $0x7a0] sm:$0xff]
        %v8081 = vld [vmem:[%s1704 + $0x7a8] sm:$0xff]
        %v8082 = vld [vmem:[%s1704 + $0x7b0] sm:$0xff]
        %v8083 = vld [vmem:[%s1704 + $0x7b8] sm:$0xff]
        %v8084 = vld [vmem:[%s1704 + $0x7c0] sm:$0xff]
        %v8085 = vld [vmem:[%s1704 + $0x7c8] sm:$0xff]
        %v8086 = vld [vmem:[%s1704 + $0x7d0] sm:$0xff]
        %v8087 = vld [vmem:[%s1704 + $0x7d8] sm:$0xff]
        %v8088 = vld [vmem:[%s1704 + $0x7e0] sm:$0xff]
        %v8089 = vld [vmem:[%s1704 + $0x7e8] sm:$0xff]
        %v8090 = vld [vmem:[%s1704 + $0x7f0] sm:$0xff]
        %v8091 = vld [vmem:[%s1704 + $0x7f8] sm:$0xff]
        %v8092 = vld [vmem:[%s1713] sm:$0x3]
        %v8094 = vlaneseq
        %v8095 = vshrl.u32 %v8094, 7
        %v8096 = vsub.s32 0, %v8095
        %v8097 = vrot.slane %v8092, %v8096
        %v8098 = vlaneseq
        %v8099 = vshrl.u32 %v8098, 7
        %v8100 = vsub.s32 1, %v8099
        %v8101 = vrot.slane %v8092, %v8100
        %v8360 = vunpack.c.l.b16 %v7836
        %v8361 = vunpack.c.h.b16 %v7836
        %v8362 = vunpack.c.l.b16 %v7837
        %v8363 = vunpack.c.h.b16 %v7837
        %v8364 = vunpack.c.l.b16 %v7838
        %v8365 = vunpack.c.h.b16 %v7838
        %v8366 = vunpack.c.l.b16 %v7839
        %v8367 = vunpack.c.h.b16 %v7839
        %v8368 = vunpack.c.l.b16 %v7840
        %v8369 = vunpack.c.h.b16 %v7840
        %v8370 = vunpack.c.l.b16 %v7841
        %v8371 = vunpack.c.h.b16 %v7841
        %v8372 = vunpack.c.l.b16 %v7842
        %v8373 = vunpack.c.h.b16 %v7842
        %v8374 = vunpack.c.l.b16 %v7843
        %v8375 = vunpack.c.h.b16 %v7843
        %v8376 = vunpack.c.l.b16 %v7844
        %v8377 = vunpack.c.h.b16 %v7844
        %v8378 = vunpack.c.l.b16 %v7845
        %v8379 = vunpack.c.h.b16 %v7845
        %v8380 = vunpack.c.l.b16 %v7846
        %v8381 = vunpack.c.h.b16 %v7846
        %v8382 = vunpack.c.l.b16 %v7847
        %v8383 = vunpack.c.h.b16 %v7847
        %v8384 = vunpack.c.l.b16 %v7848
        %v8385 = vunpack.c.h.b16 %v7848
        %v8386 = vunpack.c.l.b16 %v7849
        %v8387 = vunpack.c.h.b16 %v7849
        %v8388 = vunpack.c.l.b16 %v7850
        %v8389 = vunpack.c.h.b16 %v7850
        %v8390 = vunpack.c.l.b16 %v7851
        %v8391 = vunpack.c.h.b16 %v7851
        %v8392 = vunpack.c.l.b16 %v7852
        %v8393 = vunpack.c.h.b16 %v7852
        %v8394 = vunpack.c.l.b16 %v7853
        %v8395 = vunpack.c.h.b16 %v7853
        %v8396 = vunpack.c.l.b16 %v7854
        %v8397 = vunpack.c.h.b16 %v7854
        %v8398 = vunpack.c.l.b16 %v7855
        %v8399 = vunpack.c.h.b16 %v7855
        %v8400 = vunpack.c.l.b16 %v7856
        %v8401 = vunpack.c.h.b16 %v7856
        %v8402 = vunpack.c.l.b16 %v7857
        %v8403 = vunpack.c.h.b16 %v7857
        %v8404 = vunpack.c.l.b16 %v7858
        %v8405 = vunpack.c.h.b16 %v7858
        %v8406 = vunpack.c.l.b16 %v7859
        %v8407 = vunpack.c.h.b16 %v7859
        %v8408 = vunpack.c.l.b16 %v7860
        %v8409 = vunpack.c.h.b16 %v7860
        %v8410 = vunpack.c.l.b16 %v7861
        %v8411 = vunpack.c.h.b16 %v7861
        %v8412 = vunpack.c.l.b16 %v7862
        %v8413 = vunpack.c.h.b16 %v7862
        %v8414 = vunpack.c.l.b16 %v7863
        %v8415 = vunpack.c.h.b16 %v7863
        %v8416 = vunpack.c.l.b16 %v7864
        %v8417 = vunpack.c.h.b16 %v7864
        %v8418 = vunpack.c.l.b16 %v7865
        %v8419 = vunpack.c.h.b16 %v7865
        %v8420 = vunpack.c.l.b16 %v7866
        %v8421 = vunpack.c.h.b16 %v7866
        %v8422 = vunpack.c.l.b16 %v7867
        %v8423 = vunpack.c.h.b16 %v7867
        %v8424 = vunpack.c.l.b16 %v7868
        %v8425 = vunpack.c.h.b16 %v7868
        %v8426 = vunpack.c.l.b16 %v7869
        %v8427 = vunpack.c.h.b16 %v7869
        %v8428 = vunpack.c.l.b16 %v7870
        %v8429 = vunpack.c.h.b16 %v7870
        %v8430 = vunpack.c.l.b16 %v7871
        %v8431 = vunpack.c.h.b16 %v7871
        %v8432 = vunpack.c.l.b16 %v7872
        %v8433 = vunpack.c.h.b16 %v7872
        %v8434 = vunpack.c.l.b16 %v7873
        %v8435 = vunpack.c.h.b16 %v7873
        %v8436 = vunpack.c.l.b16 %v7874
        %v8437 = vunpack.c.h.b16 %v7874
        %v8438 = vunpack.c.l.b16 %v7875
        %v8439 = vunpack.c.h.b16 %v7875
        %v8440 = vunpack.c.l.b16 %v7876
        %v8441 = vunpack.c.h.b16 %v7876
        %v8442 = vunpack.c.l.b16 %v7877
        %v8443 = vunpack.c.h.b16 %v7877
        %v8444 = vunpack.c.l.b16 %v7878
        %v8445 = vunpack.c.h.b16 %v7878
        %v8446 = vunpack.c.l.b16 %v7879
        %v8447 = vunpack.c.h.b16 %v7879
        %v8448 = vunpack.c.l.b16 %v7880
        %v8449 = vunpack.c.h.b16 %v7880
        %v8450 = vunpack.c.l.b16 %v7881
        %v8451 = vunpack.c.h.b16 %v7881
        %v8452 = vunpack.c.l.b16 %v7882
        %v8453 = vunpack.c.h.b16 %v7882
        %v8454 = vunpack.c.l.b16 %v7883
        %v8455 = vunpack.c.h.b16 %v7883
        %v8456 = vunpack.c.l.b16 %v7884
        %v8457 = vunpack.c.h.b16 %v7884
        %v8458 = vunpack.c.l.b16 %v7885
        %v8459 = vunpack.c.h.b16 %v7885
        %v8460 = vunpack.c.l.b16 %v7886
        %v8461 = vunpack.c.h.b16 %v7886
        %v8462 = vunpack.c.l.b16 %v7887
        %v8463 = vunpack.c.h.b16 %v7887
        %v8464 = vunpack.c.l.b16 %v7888
        %v8465 = vunpack.c.h.b16 %v7888
        %v8466 = vunpack.c.l.b16 %v7889
        %v8467 = vunpack.c.h.b16 %v7889
        %v8468 = vunpack.c.l.b16 %v7890
        %v8469 = vunpack.c.h.b16 %v7890
        %v8470 = vunpack.c.l.b16 %v7891
        %v8471 = vunpack.c.h.b16 %v7891
        %v8472 = vunpack.c.l.b16 %v7892
        %v8473 = vunpack.c.h.b16 %v7892
        %v8474 = vunpack.c.l.b16 %v7893
        %v8475 = vunpack.c.h.b16 %v7893
        %v8476 = vunpack.c.l.b16 %v7894
        %v8477 = vunpack.c.h.b16 %v7894
        %v8478 = vunpack.c.l.b16 %v7895
        %v8479 = vunpack.c.h.b16 %v7895
        %v8480 = vunpack.c.l.b16 %v7896
        %v8481 = vunpack.c.h.b16 %v7896
        %v8482 = vunpack.c.l.b16 %v7897
        %v8483 = vunpack.c.h.b16 %v7897
        %v8484 = vunpack.c.l.b16 %v7898
        %v8485 = vunpack.c.h.b16 %v7898
        %v8486 = vunpack.c.l.b16 %v7899
        %v8487 = vunpack.c.h.b16 %v7899
        %v8488 = vunpack.c.l.b16 %v7900
        %v8489 = vunpack.c.h.b16 %v7900
        %v8490 = vunpack.c.l.b16 %v7901
        %v8491 = vunpack.c.h.b16 %v7901
        %v8492 = vunpack.c.l.b16 %v7902
        %v8493 = vunpack.c.h.b16 %v7902
        %v8494 = vunpack.c.l.b16 %v7903
        %v8495 = vunpack.c.h.b16 %v7903
        %v8496 = vunpack.c.l.b16 %v7904
        %v8497 = vunpack.c.h.b16 %v7904
        %v8498 = vunpack.c.l.b16 %v7905
        %v8499 = vunpack.c.h.b16 %v7905
        %v8500 = vunpack.c.l.b16 %v7906
        %v8501 = vunpack.c.h.b16 %v7906
        %v8502 = vunpack.c.l.b16 %v7907
        %v8503 = vunpack.c.h.b16 %v7907
        %v8504 = vunpack.c.l.b16 %v7908
        %v8505 = vunpack.c.h.b16 %v7908
        %v8506 = vunpack.c.l.b16 %v7909
        %v8507 = vunpack.c.h.b16 %v7909
        %v8508 = vunpack.c.l.b16 %v7910
        %v8509 = vunpack.c.h.b16 %v7910
        %v8510 = vunpack.c.l.b16 %v7911
        %v8511 = vunpack.c.h.b16 %v7911
        %v8512 = vunpack.c.l.b16 %v7912
        %v8513 = vunpack.c.h.b16 %v7912
        %v8514 = vunpack.c.l.b16 %v7913
        %v8515 = vunpack.c.h.b16 %v7913
        %v8516 = vunpack.c.l.b16 %v7914
        %v8517 = vunpack.c.h.b16 %v7914
        %v8518 = vunpack.c.l.b16 %v7915
        %v8519 = vunpack.c.h.b16 %v7915
        %v8520 = vunpack.c.l.b16 %v7916
        %v8521 = vunpack.c.h.b16 %v7916
        %v8522 = vunpack.c.l.b16 %v7917
        %v8523 = vunpack.c.h.b16 %v7917
        %v8524 = vunpack.c.l.b16 %v7918
        %v8525 = vunpack.c.h.b16 %v7918
        %v8526 = vunpack.c.l.b16 %v7919
        %v8527 = vunpack.c.h.b16 %v7919
        %v8528 = vunpack.c.l.b16 %v7920
        %v8529 = vunpack.c.h.b16 %v7920
        %v8530 = vunpack.c.l.b16 %v7921
        %v8531 = vunpack.c.h.b16 %v7921
        %v8532 = vunpack.c.l.b16 %v7922
        %v8533 = vunpack.c.h.b16 %v7922
        %v8534 = vunpack.c.l.b16 %v7923
        %v8535 = vunpack.c.h.b16 %v7923
        %v8536 = vunpack.c.l.b16 %v7924
        %v8537 = vunpack.c.h.b16 %v7924
        %v8538 = vunpack.c.l.b16 %v7925
        %v8539 = vunpack.c.h.b16 %v7925
        %v8540 = vunpack.c.l.b16 %v7926
        %v8541 = vunpack.c.h.b16 %v7926
        %v8542 = vunpack.c.l.b16 %v7927
        %v8543 = vunpack.c.h.b16 %v7927
        %v8544 = vunpack.c.l.b16 %v7928
        %v8545 = vunpack.c.h.b16 %v7928
        %v8546 = vunpack.c.l.b16 %v7929
        %v8547 = vunpack.c.h.b16 %v7929
        %v8548 = vunpack.c.l.b16 %v7930
        %v8549 = vunpack.c.h.b16 %v7930
        %v8550 = vunpack.c.l.b16 %v7931
        %v8551 = vunpack.c.h.b16 %v7931
        %v8552 = vunpack.c.l.b16 %v7932
        %v8553 = vunpack.c.h.b16 %v7932
        %v8554 = vunpack.c.l.b16 %v7933
        %v8555 = vunpack.c.h.b16 %v7933
        %v8556 = vunpack.c.l.b16 %v7934
        %v8557 = vunpack.c.h.b16 %v7934
        %v8558 = vunpack.c.l.b16 %v7935
        %v8559 = vunpack.c.h.b16 %v7935
        %v8560 = vunpack.c.l.b16 %v7936
        %v8561 = vunpack.c.h.b16 %v7936
        %v8562 = vunpack.c.l.b16 %v7937
        %v8563 = vunpack.c.h.b16 %v7937
        %v8564 = vunpack.c.l.b16 %v7938
        %v8565 = vunpack.c.h.b16 %v7938
        %v8566 = vunpack.c.l.b16 %v7939
        %v8567 = vunpack.c.h.b16 %v7939
        %v8568 = vunpack.c.l.b16 %v7940
        %v8569 = vunpack.c.h.b16 %v7940
        %v8570 = vunpack.c.l.b16 %v7941
        %v8571 = vunpack.c.h.b16 %v7941
        %v8572 = vunpack.c.l.b16 %v7942
        %v8573 = vunpack.c.h.b16 %v7942
        %v8574 = vunpack.c.l.b16 %v7943
        %v8575 = vunpack.c.h.b16 %v7943
        %v8576 = vunpack.c.l.b16 %v7944
        %v8577 = vunpack.c.h.b16 %v7944
        %v8578 = vunpack.c.l.b16 %v7945
        %v8579 = vunpack.c.h.b16 %v7945
        %v8580 = vunpack.c.l.b16 %v7946
        %v8581 = vunpack.c.h.b16 %v7946
        %v8582 = vunpack.c.l.b16 %v7947
        %v8583 = vunpack.c.h.b16 %v7947
        %v8584 = vunpack.c.l.b16 %v7948
        %v8585 = vunpack.c.h.b16 %v7948
        %v8586 = vunpack.c.l.b16 %v7949
        %v8587 = vunpack.c.h.b16 %v7949
        %v8588 = vunpack.c.l.b16 %v7950
        %v8589 = vunpack.c.h.b16 %v7950
        %v8590 = vunpack.c.l.b16 %v7951
        %v8591 = vunpack.c.h.b16 %v7951
        %v8592 = vunpack.c.l.b16 %v7952
        %v8593 = vunpack.c.h.b16 %v7952
        %v8594 = vunpack.c.l.b16 %v7953
        %v8595 = vunpack.c.h.b16 %v7953
        %v8596 = vunpack.c.l.b16 %v7954
        %v8597 = vunpack.c.h.b16 %v7954
        %v8598 = vunpack.c.l.b16 %v7955
        %v8599 = vunpack.c.h.b16 %v7955
        %v8600 = vunpack.c.l.b16 %v7956
        %v8601 = vunpack.c.h.b16 %v7956
        %v8602 = vunpack.c.l.b16 %v7957
        %v8603 = vunpack.c.h.b16 %v7957
        %v8604 = vunpack.c.l.b16 %v7958
        %v8605 = vunpack.c.h.b16 %v7958
        %v8606 = vunpack.c.l.b16 %v7959
        %v8607 = vunpack.c.h.b16 %v7959
        %v8608 = vunpack.c.l.b16 %v7960
        %v8609 = vunpack.c.h.b16 %v7960
        %v8610 = vunpack.c.l.b16 %v7961
        %v8611 = vunpack.c.h.b16 %v7961
        %v8612 = vunpack.c.l.b16 %v7962
        %v8613 = vunpack.c.h.b16 %v7962
        %v8614 = vunpack.c.l.b16 %v7963
        %v8615 = vunpack.c.h.b16 %v7963
        %v8616 = vunpack.c.l.b16 %v7964
        %v8617 = vunpack.c.h.b16 %v7964
        %v8618 = vunpack.c.l.b16 %v7965
        %v8619 = vunpack.c.h.b16 %v7965
        %v8620 = vunpack.c.l.b16 %v7966
        %v8621 = vunpack.c.h.b16 %v7966
        %v8622 = vunpack.c.l.b16 %v7967
        %v8623 = vunpack.c.h.b16 %v7967
        %v8624 = vunpack.c.l.b16 %v7968
        %v8625 = vunpack.c.h.b16 %v7968
        %v8626 = vunpack.c.l.b16 %v7969
        %v8627 = vunpack.c.h.b16 %v7969
        %v8628 = vunpack.c.l.b16 %v7970
        %v8629 = vunpack.c.h.b16 %v7970
        %v8630 = vunpack.c.l.b16 %v7971
        %v8631 = vunpack.c.h.b16 %v7971
        %v8632 = vunpack.c.l.b16 %v7972
        %v8633 = vunpack.c.h.b16 %v7972
        %v8634 = vunpack.c.l.b16 %v7973
        %v8635 = vunpack.c.h.b16 %v7973
        %v8636 = vunpack.c.l.b16 %v7974
        %v8637 = vunpack.c.h.b16 %v7974
        %v8638 = vunpack.c.l.b16 %v7975
        %v8639 = vunpack.c.h.b16 %v7975
        %v8640 = vunpack.c.l.b16 %v7976
        %v8641 = vunpack.c.h.b16 %v7976
        %v8642 = vunpack.c.l.b16 %v7977
        %v8643 = vunpack.c.h.b16 %v7977
        %v8644 = vunpack.c.l.b16 %v7978
        %v8645 = vunpack.c.h.b16 %v7978
        %v8646 = vunpack.c.l.b16 %v7979
        %v8647 = vunpack.c.h.b16 %v7979
        %v8648 = vunpack.c.l.b16 %v7980
        %v8649 = vunpack.c.h.b16 %v7980
        %v8650 = vunpack.c.l.b16 %v7981
        %v8651 = vunpack.c.h.b16 %v7981
        %v8652 = vunpack.c.l.b16 %v7982
        %v8653 = vunpack.c.h.b16 %v7982
        %v8654 = vunpack.c.l.b16 %v7983
        %v8655 = vunpack.c.h.b16 %v7983
        %v8656 = vunpack.c.l.b16 %v7984
        %v8657 = vunpack.c.h.b16 %v7984
        %v8658 = vunpack.c.l.b16 %v7985
        %v8659 = vunpack.c.h.b16 %v7985
        %v8660 = vunpack.c.l.b16 %v7986
        %v8661 = vunpack.c.h.b16 %v7986
        %v8662 = vunpack.c.l.b16 %v7987
        %v8663 = vunpack.c.h.b16 %v7987
        %v8664 = vunpack.c.l.b16 %v7988
        %v8665 = vunpack.c.h.b16 %v7988
        %v8666 = vunpack.c.l.b16 %v7989
        %v8667 = vunpack.c.h.b16 %v7989
        %v8668 = vunpack.c.l.b16 %v7990
        %v8669 = vunpack.c.h.b16 %v7990
        %v8670 = vunpack.c.l.b16 %v7991
        %v8671 = vunpack.c.h.b16 %v7991
        %v8672 = vunpack.c.l.b16 %v7992
        %v8673 = vunpack.c.h.b16 %v7992
        %v8674 = vunpack.c.l.b16 %v7993
        %v8675 = vunpack.c.h.b16 %v7993
        %v8676 = vunpack.c.l.b16 %v7994
        %v8677 = vunpack.c.h.b16 %v7994
        %v8678 = vunpack.c.l.b16 %v7995
        %v8679 = vunpack.c.h.b16 %v7995
        %v8680 = vunpack.c.l.b16 %v7996
        %v8681 = vunpack.c.h.b16 %v7996
        %v8682 = vunpack.c.l.b16 %v7997
        %v8683 = vunpack.c.h.b16 %v7997
        %v8684 = vunpack.c.l.b16 %v7998
        %v8685 = vunpack.c.h.b16 %v7998
        %v8686 = vunpack.c.l.b16 %v7999
        %v8687 = vunpack.c.h.b16 %v7999
        %v8688 = vunpack.c.l.b16 %v8000
        %v8689 = vunpack.c.h.b16 %v8000
        %v8690 = vunpack.c.l.b16 %v8001
        %v8691 = vunpack.c.h.b16 %v8001
        %v8692 = vunpack.c.l.b16 %v8002
        %v8693 = vunpack.c.h.b16 %v8002
        %v8694 = vunpack.c.l.b16 %v8003
        %v8695 = vunpack.c.h.b16 %v8003
        %v8696 = vunpack.c.l.b16 %v8004
        %v8697 = vunpack.c.h.b16 %v8004
        %v8698 = vunpack.c.l.b16 %v8005
        %v8699 = vunpack.c.h.b16 %v8005
        %v8700 = vunpack.c.l.b16 %v8006
        %v8701 = vunpack.c.h.b16 %v8006
        %v8702 = vunpack.c.l.b16 %v8007
        %v8703 = vunpack.c.h.b16 %v8007
        %v8704 = vunpack.c.l.b16 %v8008
        %v8705 = vunpack.c.h.b16 %v8008
        %v8706 = vunpack.c.l.b16 %v8009
        %v8707 = vunpack.c.h.b16 %v8009
        %v8708 = vunpack.c.l.b16 %v8010
        %v8709 = vunpack.c.h.b16 %v8010
        %v8710 = vunpack.c.l.b16 %v8011
        %v8711 = vunpack.c.h.b16 %v8011
        %v8712 = vunpack.c.l.b16 %v8012
        %v8713 = vunpack.c.h.b16 %v8012
        %v8714 = vunpack.c.l.b16 %v8013
        %v8715 = vunpack.c.h.b16 %v8013
        %v8716 = vunpack.c.l.b16 %v8014
        %v8717 = vunpack.c.h.b16 %v8014
        %v8718 = vunpack.c.l.b16 %v8015
        %v8719 = vunpack.c.h.b16 %v8015
        %v8720 = vunpack.c.l.b16 %v8016
        %v8721 = vunpack.c.h.b16 %v8016
        %v8722 = vunpack.c.l.b16 %v8017
        %v8723 = vunpack.c.h.b16 %v8017
        %v8724 = vunpack.c.l.b16 %v8018
        %v8725 = vunpack.c.h.b16 %v8018
        %v8726 = vunpack.c.l.b16 %v8019
        %v8727 = vunpack.c.h.b16 %v8019
        %v8728 = vunpack.c.l.b16 %v8020
        %v8729 = vunpack.c.h.b16 %v8020
        %v8730 = vunpack.c.l.b16 %v8021
        %v8731 = vunpack.c.h.b16 %v8021
        %v8732 = vunpack.c.l.b16 %v8022
        %v8733 = vunpack.c.h.b16 %v8022
        %v8734 = vunpack.c.l.b16 %v8023
        %v8735 = vunpack.c.h.b16 %v8023
        %v8736 = vunpack.c.l.b16 %v8024
        %v8737 = vunpack.c.h.b16 %v8024
        %v8738 = vunpack.c.l.b16 %v8025
        %v8739 = vunpack.c.h.b16 %v8025
        %v8740 = vunpack.c.l.b16 %v8026
        %v8741 = vunpack.c.h.b16 %v8026
        %v8742 = vunpack.c.l.b16 %v8027
        %v8743 = vunpack.c.h.b16 %v8027
        %v8744 = vunpack.c.l.b16 %v8028
        %v8745 = vunpack.c.h.b16 %v8028
        %v8746 = vunpack.c.l.b16 %v8029
        %v8747 = vunpack.c.h.b16 %v8029
        %v8748 = vunpack.c.l.b16 %v8030
        %v8749 = vunpack.c.h.b16 %v8030
        %v8750 = vunpack.c.l.b16 %v8031
        %v8751 = vunpack.c.h.b16 %v8031
        %v8752 = vunpack.c.l.b16 %v8032
        %v8753 = vunpack.c.h.b16 %v8032
        %v8754 = vunpack.c.l.b16 %v8033
        %v8755 = vunpack.c.h.b16 %v8033
        %v8756 = vunpack.c.l.b16 %v8034
        %v8757 = vunpack.c.h.b16 %v8034
        %v8758 = vunpack.c.l.b16 %v8035
        %v8759 = vunpack.c.h.b16 %v8035
        %v8760 = vunpack.c.l.b16 %v8036
        %v8761 = vunpack.c.h.b16 %v8036
        %v8762 = vunpack.c.l.b16 %v8037
        %v8763 = vunpack.c.h.b16 %v8037
        %v8764 = vunpack.c.l.b16 %v8038
        %v8765 = vunpack.c.h.b16 %v8038
        %v8766 = vunpack.c.l.b16 %v8039
        %v8767 = vunpack.c.h.b16 %v8039
        %v8768 = vunpack.c.l.b16 %v8040
        %v8769 = vunpack.c.h.b16 %v8040
        %v8770 = vunpack.c.l.b16 %v8041
        %v8771 = vunpack.c.h.b16 %v8041
        %v8772 = vunpack.c.l.b16 %v8042
        %v8773 = vunpack.c.h.b16 %v8042
        %v8774 = vunpack.c.l.b16 %v8043
        %v8775 = vunpack.c.h.b16 %v8043
        %v8776 = vunpack.c.l.b16 %v8044
        %v8777 = vunpack.c.h.b16 %v8044
        %v8778 = vunpack.c.l.b16 %v8045
        %v8779 = vunpack.c.h.b16 %v8045
        %v8780 = vunpack.c.l.b16 %v8046
        %v8781 = vunpack.c.h.b16 %v8046
        %v8782 = vunpack.c.l.b16 %v8047
        %v8783 = vunpack.c.h.b16 %v8047
        %v8784 = vunpack.c.l.b16 %v8048
        %v8785 = vunpack.c.h.b16 %v8048
        %v8786 = vunpack.c.l.b16 %v8049
        %v8787 = vunpack.c.h.b16 %v8049
        %v8788 = vunpack.c.l.b16 %v8050
        %v8789 = vunpack.c.h.b16 %v8050
        %v8790 = vunpack.c.l.b16 %v8051
        %v8791 = vunpack.c.h.b16 %v8051
        %v8792 = vunpack.c.l.b16 %v8052
        %v8793 = vunpack.c.h.b16 %v8052
        %v8794 = vunpack.c.l.b16 %v8053
        %v8795 = vunpack.c.h.b16 %v8053
        %v8796 = vunpack.c.l.b16 %v8054
        %v8797 = vunpack.c.h.b16 %v8054
        %v8798 = vunpack.c.l.b16 %v8055
        %v8799 = vunpack.c.h.b16 %v8055
        %v8800 = vunpack.c.l.b16 %v8056
        %v8801 = vunpack.c.h.b16 %v8056
        %v8802 = vunpack.c.l.b16 %v8057
        %v8803 = vunpack.c.h.b16 %v8057
        %v8804 = vunpack.c.l.b16 %v8058
        %v8805 = vunpack.c.h.b16 %v8058
        %v8806 = vunpack.c.l.b16 %v8059
        %v8807 = vunpack.c.h.b16 %v8059
        %v8808 = vunpack.c.l.b16 %v8060
        %v8809 = vunpack.c.h.b16 %v8060
        %v8810 = vunpack.c.l.b16 %v8061
        %v8811 = vunpack.c.h.b16 %v8061
        %v8812 = vunpack.c.l.b16 %v8062
        %v8813 = vunpack.c.h.b16 %v8062
        %v8814 = vunpack.c.l.b16 %v8063
        %v8815 = vunpack.c.h.b16 %v8063
        %v8816 = vunpack.c.l.b16 %v8064
        %v8817 = vunpack.c.h.b16 %v8064
        %v8818 = vunpack.c.l.b16 %v8065
        %v8819 = vunpack.c.h.b16 %v8065
        %v8820 = vunpack.c.l.b16 %v8066
        %v8821 = vunpack.c.h.b16 %v8066
        %v8822 = vunpack.c.l.b16 %v8067
        %v8823 = vunpack.c.h.b16 %v8067
        %v8824 = vunpack.c.l.b16 %v8068
        %v8825 = vunpack.c.h.b16 %v8068
        %v8826 = vunpack.c.l.b16 %v8069
        %v8827 = vunpack.c.h.b16 %v8069
        %v8828 = vunpack.c.l.b16 %v8070
        %v8829 = vunpack.c.h.b16 %v8070
        %v8830 = vunpack.c.l.b16 %v8071
        %v8831 = vunpack.c.h.b16 %v8071
        %v8832 = vunpack.c.l.b16 %v8072
        %v8833 = vunpack.c.h.b16 %v8072
        %v8834 = vunpack.c.l.b16 %v8073
        %v8835 = vunpack.c.h.b16 %v8073
        %v8836 = vunpack.c.l.b16 %v8074
        %v8837 = vunpack.c.h.b16 %v8074
        %v8838 = vunpack.c.l.b16 %v8075
        %v8839 = vunpack.c.h.b16 %v8075
        %v8840 = vunpack.c.l.b16 %v8076
        %v8841 = vunpack.c.h.b16 %v8076
        %v8842 = vunpack.c.l.b16 %v8077
        %v8843 = vunpack.c.h.b16 %v8077
        %v8844 = vunpack.c.l.b16 %v8078
        %v8845 = vunpack.c.h.b16 %v8078
        %v8846 = vunpack.c.l.b16 %v8079
        %v8847 = vunpack.c.h.b16 %v8079
        %v8848 = vunpack.c.l.b16 %v8080
        %v8849 = vunpack.c.h.b16 %v8080
        %v8850 = vunpack.c.l.b16 %v8081
        %v8851 = vunpack.c.h.b16 %v8081
        %v8852 = vunpack.c.l.b16 %v8082
        %v8853 = vunpack.c.h.b16 %v8082
        %v8854 = vunpack.c.l.b16 %v8083
        %v8855 = vunpack.c.h.b16 %v8083
        %v8856 = vunpack.c.l.b16 %v8084
        %v8857 = vunpack.c.h.b16 %v8084
        %v8858 = vunpack.c.l.b16 %v8085
        %v8859 = vunpack.c.h.b16 %v8085
        %v8860 = vunpack.c.l.b16 %v8086
        %v8861 = vunpack.c.h.b16 %v8086
        %v8862 = vunpack.c.l.b16 %v8087
        %v8863 = vunpack.c.h.b16 %v8087
        %v8864 = vunpack.c.l.b16 %v8088
        %v8865 = vunpack.c.h.b16 %v8088
        %v8866 = vunpack.c.l.b16 %v8089
        %v8867 = vunpack.c.h.b16 %v8089
        %v8868 = vunpack.c.l.b16 %v8090
        %v8869 = vunpack.c.h.b16 %v8090
        %v8870 = vunpack.c.l.b16 %v8091
        %v8871 = vunpack.c.h.b16 %v8091
        %v8872 = vpack.c.b16 %v8362, %v8360
        %v8873 = vpack.c.b16 %v8363, %v8361
        %v8874 = vpack.c.b16 %v8366, %v8364
        %v8875 = vpack.c.b16 %v8367, %v8365
        %v8876 = vpack.c.b16 %v8370, %v8368
        %v8877 = vpack.c.b16 %v8371, %v8369
        %v8878 = vpack.c.b16 %v8374, %v8372
        %v8879 = vpack.c.b16 %v8375, %v8373
        %v8880 = vpack.c.b16 %v8378, %v8376
        %v8881 = vpack.c.b16 %v8379, %v8377
        %v8882 = vpack.c.b16 %v8382, %v8380
        %v8883 = vpack.c.b16 %v8383, %v8381
        %v8884 = vpack.c.b16 %v8386, %v8384
        %v8885 = vpack.c.b16 %v8387, %v8385
        %v8886 = vpack.c.b16 %v8390, %v8388
        %v8887 = vpack.c.b16 %v8391, %v8389
        %v8888 = vpack.c.b16 %v8394, %v8392
        %v8889 = vpack.c.b16 %v8395, %v8393
        %v8890 = vpack.c.b16 %v8398, %v8396
        %v8891 = vpack.c.b16 %v8399, %v8397
        %v8892 = vpack.c.b16 %v8402, %v8400
        %v8893 = vpack.c.b16 %v8403, %v8401
        %v8894 = vpack.c.b16 %v8406, %v8404
        %v8895 = vpack.c.b16 %v8407, %v8405
        %v8896 = vpack.c.b16 %v8410, %v8408
        %v8897 = vpack.c.b16 %v8411, %v8409
        %v8898 = vpack.c.b16 %v8414, %v8412
        %v8899 = vpack.c.b16 %v8415, %v8413
        %v8900 = vpack.c.b16 %v8418, %v8416
        %v8901 = vpack.c.b16 %v8419, %v8417
        %v8902 = vpack.c.b16 %v8422, %v8420
        %v8903 = vpack.c.b16 %v8423, %v8421
        %v8904 = vpack.c.b16 %v8426, %v8424
        %v8905 = vpack.c.b16 %v8427, %v8425
        %v8906 = vpack.c.b16 %v8430, %v8428
        %v8907 = vpack.c.b16 %v8431, %v8429
        %v8908 = vpack.c.b16 %v8434, %v8432
        %v8909 = vpack.c.b16 %v8435, %v8433
        %v8910 = vpack.c.b16 %v8438, %v8436
        %v8911 = vpack.c.b16 %v8439, %v8437
        %v8912 = vpack.c.b16 %v8442, %v8440
        %v8913 = vpack.c.b16 %v8443, %v8441
        %v8914 = vpack.c.b16 %v8446, %v8444
        %v8915 = vpack.c.b16 %v8447, %v8445
        %v8916 = vpack.c.b16 %v8450, %v8448
        %v8917 = vpack.c.b16 %v8451, %v8449
        %v8918 = vpack.c.b16 %v8454, %v8452
        %v8919 = vpack.c.b16 %v8455, %v8453
        %v8920 = vpack.c.b16 %v8458, %v8456
        %v8921 = vpack.c.b16 %v8459, %v8457
        %v8922 = vpack.c.b16 %v8462, %v8460
        %v8923 = vpack.c.b16 %v8463, %v8461
        %v8924 = vpack.c.b16 %v8466, %v8464
        %v8925 = vpack.c.b16 %v8467, %v8465
        %v8926 = vpack.c.b16 %v8470, %v8468
        %v8927 = vpack.c.b16 %v8471, %v8469
        %v8928 = vpack.c.b16 %v8474, %v8472
        %v8929 = vpack.c.b16 %v8475, %v8473
        %v8930 = vpack.c.b16 %v8478, %v8476
        %v8931 = vpack.c.b16 %v8479, %v8477
        %v8932 = vpack.c.b16 %v8482, %v8480
        %v8933 = vpack.c.b16 %v8483, %v8481
        %v8934 = vpack.c.b16 %v8486, %v8484
        %v8935 = vpack.c.b16 %v8487, %v8485
        %v8936 = vpack.c.b16 %v8490, %v8488
        %v8937 = vpack.c.b16 %v8491, %v8489
        %v8938 = vpack.c.b16 %v8494, %v8492
        %v8939 = vpack.c.b16 %v8495, %v8493
        %v8940 = vpack.c.b16 %v8498, %v8496
        %v8941 = vpack.c.b16 %v8499, %v8497
        %v8942 = vpack.c.b16 %v8502, %v8500
        %v8943 = vpack.c.b16 %v8503, %v8501
        %v8944 = vpack.c.b16 %v8506, %v8504
        %v8945 = vpack.c.b16 %v8507, %v8505
        %v8946 = vpack.c.b16 %v8510, %v8508
        %v8947 = vpack.c.b16 %v8511, %v8509
        %v8948 = vpack.c.b16 %v8514, %v8512
        %v8949 = vpack.c.b16 %v8515, %v8513
        %v8950 = vpack.c.b16 %v8518, %v8516
        %v8951 = vpack.c.b16 %v8519, %v8517
        %v8952 = vpack.c.b16 %v8522, %v8520
        %v8953 = vpack.c.b16 %v8523, %v8521
        %v8954 = vpack.c.b16 %v8526, %v8524
        %v8955 = vpack.c.b16 %v8527, %v8525
        %v8956 = vpack.c.b16 %v8530, %v8528
        %v8957 = vpack.c.b16 %v8531, %v8529
        %v8958 = vpack.c.b16 %v8534, %v8532
        %v8959 = vpack.c.b16 %v8535, %v8533
        %v8960 = vpack.c.b16 %v8538, %v8536
        %v8961 = vpack.c.b16 %v8539, %v8537
        %v8962 = vpack.c.b16 %v8542, %v8540
        %v8963 = vpack.c.b16 %v8543, %v8541
        %v8964 = vpack.c.b16 %v8546, %v8544
        %v8965 = vpack.c.b16 %v8547, %v8545
        %v8966 = vpack.c.b16 %v8550, %v8548
        %v8967 = vpack.c.b16 %v8551, %v8549
        %v8968 = vpack.c.b16 %v8554, %v8552
        %v8969 = vpack.c.b16 %v8555, %v8553
        %v8970 = vpack.c.b16 %v8558, %v8556
        %v8971 = vpack.c.b16 %v8559, %v8557
        %v8972 = vpack.c.b16 %v8562, %v8560
        %v8973 = vpack.c.b16 %v8563, %v8561
        %v8974 = vpack.c.b16 %v8566, %v8564
        %v8975 = vpack.c.b16 %v8567, %v8565
        %v8976 = vpack.c.b16 %v8570, %v8568
        %v8977 = vpack.c.b16 %v8571, %v8569
        %v8978 = vpack.c.b16 %v8574, %v8572
        %v8979 = vpack.c.b16 %v8575, %v8573
        %v8980 = vpack.c.b16 %v8578, %v8576
        %v8981 = vpack.c.b16 %v8579, %v8577
        %v8982 = vpack.c.b16 %v8582, %v8580
        %v8983 = vpack.c.b16 %v8583, %v8581
        %v8984 = vpack.c.b16 %v8586, %v8584
        %v8985 = vpack.c.b16 %v8587, %v8585
        %v8986 = vpack.c.b16 %v8590, %v8588
        %v8987 = vpack.c.b16 %v8591, %v8589
        %v8988 = vpack.c.b16 %v8594, %v8592
        %v8989 = vpack.c.b16 %v8595, %v8593
        %v8990 = vpack.c.b16 %v8598, %v8596
        %v8991 = vpack.c.b16 %v8599, %v8597
        %v8992 = vpack.c.b16 %v8602, %v8600
        %v8993 = vpack.c.b16 %v8603, %v8601
        %v8994 = vpack.c.b16 %v8606, %v8604
        %v8995 = vpack.c.b16 %v8607, %v8605
        %v8996 = vpack.c.b16 %v8610, %v8608
        %v8997 = vpack.c.b16 %v8611, %v8609
        %v8998 = vpack.c.b16 %v8614, %v8612
        %v8999 = vpack.c.b16 %v8615, %v8613
        %v9000 = vpack.c.b16 %v8618, %v8616
        %v9001 = vpack.c.b16 %v8619, %v8617
        %v9002 = vpack.c.b16 %v8622, %v8620
        %v9003 = vpack.c.b16 %v8623, %v8621
        %v9004 = vpack.c.b16 %v8626, %v8624
        %v9005 = vpack.c.b16 %v8627, %v8625
        %v9006 = vpack.c.b16 %v8630, %v8628
        %v9007 = vpack.c.b16 %v8631, %v8629
        %v9008 = vpack.c.b16 %v8634, %v8632
        %v9009 = vpack.c.b16 %v8635, %v8633
        %v9010 = vpack.c.b16 %v8638, %v8636
        %v9011 = vpack.c.b16 %v8639, %v8637
        %v9012 = vpack.c.b16 %v8642, %v8640
        %v9013 = vpack.c.b16 %v8643, %v8641
        %v9014 = vpack.c.b16 %v8646, %v8644
        %v9015 = vpack.c.b16 %v8647, %v8645
        %v9016 = vpack.c.b16 %v8650, %v8648
        %v9017 = vpack.c.b16 %v8651, %v8649
        %v9018 = vpack.c.b16 %v8654, %v8652
        %v9019 = vpack.c.b16 %v8655, %v8653
        %v9020 = vpack.c.b16 %v8658, %v8656
        %v9021 = vpack.c.b16 %v8659, %v8657
        %v9022 = vpack.c.b16 %v8662, %v8660
        %v9023 = vpack.c.b16 %v8663, %v8661
        %v9024 = vpack.c.b16 %v8666, %v8664
        %v9025 = vpack.c.b16 %v8667, %v8665
        %v9026 = vpack.c.b16 %v8670, %v8668
        %v9027 = vpack.c.b16 %v8671, %v8669
        %v9028 = vpack.c.b16 %v8674, %v8672
        %v9029 = vpack.c.b16 %v8675, %v8673
        %v9030 = vpack.c.b16 %v8678, %v8676
        %v9031 = vpack.c.b16 %v8679, %v8677
        %v9032 = vpack.c.b16 %v8682, %v8680
        %v9033 = vpack.c.b16 %v8683, %v8681
        %v9034 = vpack.c.b16 %v8686, %v8684
        %v9035 = vpack.c.b16 %v8687, %v8685
        %v9036 = vpack.c.b16 %v8690, %v8688
        %v9037 = vpack.c.b16 %v8691, %v8689
        %v9038 = vpack.c.b16 %v8694, %v8692
        %v9039 = vpack.c.b16 %v8695, %v8693
        %v9040 = vpack.c.b16 %v8698, %v8696
        %v9041 = vpack.c.b16 %v8699, %v8697
        %v9042 = vpack.c.b16 %v8702, %v8700
        %v9043 = vpack.c.b16 %v8703, %v8701
        %v9044 = vpack.c.b16 %v8706, %v8704
        %v9045 = vpack.c.b16 %v8707, %v8705
        %v9046 = vpack.c.b16 %v8710, %v8708
        %v9047 = vpack.c.b16 %v8711, %v8709
        %v9048 = vpack.c.b16 %v8714, %v8712
        %v9049 = vpack.c.b16 %v8715, %v8713
        %v9050 = vpack.c.b16 %v8718, %v8716
        %v9051 = vpack.c.b16 %v8719, %v8717
        %v9052 = vpack.c.b16 %v8722, %v8720
        %v9053 = vpack.c.b16 %v8723, %v8721
        %v9054 = vpack.c.b16 %v8726, %v8724
        %v9055 = vpack.c.b16 %v8727, %v8725
        %v9056 = vpack.c.b16 %v8730, %v8728
        %v9057 = vpack.c.b16 %v8731, %v8729
        %v9058 = vpack.c.b16 %v8734, %v8732
        %v9059 = vpack.c.b16 %v8735, %v8733
        %v9060 = vpack.c.b16 %v8738, %v8736
        %v9061 = vpack.c.b16 %v8739, %v8737
        %v9062 = vpack.c.b16 %v8742, %v8740
        %v9063 = vpack.c.b16 %v8743, %v8741
        %v9064 = vpack.c.b16 %v8746, %v8744
        %v9065 = vpack.c.b16 %v8747, %v8745
        %v9066 = vpack.c.b16 %v8750, %v8748
        %v9067 = vpack.c.b16 %v8751, %v8749
        %v9068 = vpack.c.b16 %v8754, %v8752
        %v9069 = vpack.c.b16 %v8755, %v8753
        %v9070 = vpack.c.b16 %v8758, %v8756
        %v9071 = vpack.c.b16 %v8759, %v8757
        %v9072 = vpack.c.b16 %v8762, %v8760
        %v9073 = vpack.c.b16 %v8763, %v8761
        %v9074 = vpack.c.b16 %v8766, %v8764
        %v9075 = vpack.c.b16 %v8767, %v8765
        %v9076 = vpack.c.b16 %v8770, %v8768
        %v9077 = vpack.c.b16 %v8771, %v8769
        %v9078 = vpack.c.b16 %v8774, %v8772
        %v9079 = vpack.c.b16 %v8775, %v8773
        %v9080 = vpack.c.b16 %v8778, %v8776
        %v9081 = vpack.c.b16 %v8779, %v8777
        %v9082 = vpack.c.b16 %v8782, %v8780
        %v9083 = vpack.c.b16 %v8783, %v8781
        %v9084 = vpack.c.b16 %v8786, %v8784
        %v9085 = vpack.c.b16 %v8787, %v8785
        %v9086 = vpack.c.b16 %v8790, %v8788
        %v9087 = vpack.c.b16 %v8791, %v8789
        %v9088 = vpack.c.b16 %v8794, %v8792
        %v9089 = vpack.c.b16 %v8795, %v8793
        %v9090 = vpack.c.b16 %v8798, %v8796
        %v9091 = vpack.c.b16 %v8799, %v8797
        %v9092 = vpack.c.b16 %v8802, %v8800
        %v9093 = vpack.c.b16 %v8803, %v8801
        %v9094 = vpack.c.b16 %v8806, %v8804
        %v9095 = vpack.c.b16 %v8807, %v8805
        %v9096 = vpack.c.b16 %v8810, %v8808
        %v9097 = vpack.c.b16 %v8811, %v8809
        %v9098 = vpack.c.b16 %v8814, %v8812
        %v9099 = vpack.c.b16 %v8815, %v8813
        %v9100 = vpack.c.b16 %v8818, %v8816
        %v9101 = vpack.c.b16 %v8819, %v8817
        %v9102 = vpack.c.b16 %v8822, %v8820
        %v9103 = vpack.c.b16 %v8823, %v8821
        %v9104 = vpack.c.b16 %v8826, %v8824
        %v9105 = vpack.c.b16 %v8827, %v8825
        %v9106 = vpack.c.b16 %v8830, %v8828
        %v9107 = vpack.c.b16 %v8831, %v8829
        %v9108 = vpack.c.b16 %v8834, %v8832
        %v9109 = vpack.c.b16 %v8835, %v8833
        %v9110 = vpack.c.b16 %v8838, %v8836
        %v9111 = vpack.c.b16 %v8839, %v8837
        %v9112 = vpack.c.b16 %v8842, %v8840
        %v9113 = vpack.c.b16 %v8843, %v8841
        %v9114 = vpack.c.b16 %v8846, %v8844
        %v9115 = vpack.c.b16 %v8847, %v8845
        %v9116 = vpack.c.b16 %v8850, %v8848
        %v9117 = vpack.c.b16 %v8851, %v8849
        %v9118 = vpack.c.b16 %v8854, %v8852
        %v9119 = vpack.c.b16 %v8855, %v8853
        %v9120 = vpack.c.b16 %v8858, %v8856
        %v9121 = vpack.c.b16 %v8859, %v8857
        %v9122 = vpack.c.b16 %v8862, %v8860
        %v9123 = vpack.c.b16 %v8863, %v8861
        %v9124 = vpack.c.b16 %v8866, %v8864
        %v9125 = vpack.c.b16 %v8867, %v8865
        %v9126 = vpack.c.b16 %v8870, %v8868
        %v9127 = vpack.c.b16 %v8871, %v8869
        %9384 = vmatprep.subr.bf16.mxu0 %v8873
        %9385 = vmatpush1.bf16.msra.mxu0 %v8872
        %9386 = vmatprep.subr.bf16.mxu0 %v8875
        %9387 = vmatpush1.bf16.msra.mxu0 %v8874
        %9388 = vmatprep.subr.bf16.mxu0 %v8877
        %9389 = vmatpush1.bf16.msra.mxu0 %v8876
        %9390 = vmatprep.subr.bf16.mxu0 %v8879
        %9391 = vmatpush1.bf16.msra.mxu0 %v8878
        %9392 = vmatprep.subr.bf16.mxu0 %v8881
        %9393 = vmatpush1.bf16.msra.mxu0 %v8880
        %9394 = vmatprep.subr.bf16.mxu0 %v8883
        %9395 = vmatpush1.bf16.msra.mxu0 %v8882
        %9396 = vmatprep.subr.bf16.mxu0 %v8885
        %9397 = vmatpush1.bf16.msra.mxu0 %v8884
        %9398 = vmatprep.subr.bf16.mxu0 %v8887
        %9399 = vmatpush1.bf16.msra.mxu0 %v8886
        %9400 = vmatprep.subr.bf16.mxu0 %v8889
        %9401 = vmatpush1.bf16.msra.mxu0 %v8888
        %9402 = vmatprep.subr.bf16.mxu0 %v8891
        %9403 = vmatpush1.bf16.msra.mxu0 %v8890
        %9404 = vmatprep.subr.bf16.mxu0 %v8893
        %9405 = vmatpush1.bf16.msra.mxu0 %v8892
        %9406 = vmatprep.subr.bf16.mxu0 %v8895
        %9407 = vmatpush1.bf16.msra.mxu0 %v8894
        %9408 = vmatprep.subr.bf16.mxu0 %v8897
        %9409 = vmatpush1.bf16.msra.mxu0 %v8896
        %9410 = vmatprep.subr.bf16.mxu0 %v8899
        %9411 = vmatpush1.bf16.msra.mxu0 %v8898
        %9412 = vmatprep.subr.bf16.mxu0 %v8901
        %9413 = vmatpush1.bf16.msra.mxu0 %v8900
        %9414 = vmatprep.subr.bf16.mxu0 %v8903
        %9415 = vmatpush1.bf16.msra.mxu0 %v8902
        %9416 = vmatprep.mubr.bf16.mxu0 %v7821
        %9417 = vmatmul.mubr.bf16.gmra.mrb[0].mxu0 %v7820
        %v9418 = vpop.f32.mrb[0].mxu0
        %v9419 = vadd.f32 %v8097, %v9418
        %v9420 = vpop.f32.mrb[0].mxu0
        %v9421 = vadd.f32 %v8101, %v9420
        %v9422 = vpop.f32.mrb[0].mxu0
        %v9423 = vpop.f32.mrb[0].mxu0
        %9424 = vdwg.mxu0
        %9425 = vmatprep.subr.bf16.mxu0 %v8905
        %9426 = vmatpush1.bf16.msra.mxu0 %v8904
        %9427 = vmatprep.subr.bf16.mxu0 %v8907
        %9428 = vmatpush1.bf16.msra.mxu0 %v8906
        %9429 = vmatprep.subr.bf16.mxu0 %v8909
        %9430 = vmatpush1.bf16.msra.mxu0 %v8908
        %9431 = vmatprep.subr.bf16.mxu0 %v8911
        %9432 = vmatpush1.bf16.msra.mxu0 %v8910
        %9433 = vmatprep.subr.bf16.mxu0 %v8913
        %9434 = vmatpush1.bf16.msra.mxu0 %v8912
        %9435 = vmatprep.subr.bf16.mxu0 %v8915
        %9436 = vmatpush1.bf16.msra.mxu0 %v8914
        %9437 = vmatprep.subr.bf16.mxu0 %v8917
        %9438 = vmatpush1.bf16.msra.mxu0 %v8916
        %9439 = vmatprep.subr.bf16.mxu0 %v8919
        %9440 = vmatpush1.bf16.msra.mxu0 %v8918
        %9441 = vmatprep.subr.bf16.mxu0 %v8921
        %9442 = vmatpush1.bf16.msra.mxu0 %v8920
        %9443 = vmatprep.subr.bf16.mxu0 %v8923
        %9444 = vmatpush1.bf16.msra.mxu0 %v8922
        %9445 = vmatprep.subr.bf16.mxu0 %v8925
        %9446 = vmatpush1.bf16.msra.mxu0 %v8924
        %9447 = vmatprep.subr.bf16.mxu0 %v8927
        %9448 = vmatpush1.bf16.msra.mxu0 %v8926
        %9449 = vmatprep.subr.bf16.mxu0 %v8929
        %9450 = vmatpush1.bf16.msra.mxu0 %v8928
        %9451 = vmatprep.subr.bf16.mxu0 %v8931
        %9452 = vmatpush1.bf16.msra.mxu0 %v8930
        %9453 = vmatprep.subr.bf16.mxu0 %v8933
        %9454 = vmatpush1.bf16.msra.mxu0 %v8932
        %9455 = vmatprep.subr.bf16.mxu0 %v8935
        %9456 = vmatpush1.bf16.msra.mxu0 %v8934
        %9457 = vmatprep.mubr.bf16.mxu0 %v7823
        %9458 = vmatmul.mubr.bf16.gmra.mrb[0].mxu0 %v7822
        %v9459 = vpop.f32.mrb[0].mxu0
        %v9460 = vadd.f32 %v9419, %v9459
        %v9461 = vpop.f32.mrb[0].mxu0
        %v9462 = vadd.f32 %v9421, %v9461
        %v9463 = vpop.f32.mrb[0].mxu0
        %v9464 = vpop.f32.mrb[0].mxu0
        %9465 = vdwg.mxu0
        %9466 = vmatprep.subr.bf16.mxu0 %v8937
        %9467 = vmatpush1.bf16.msra.mxu0 %v8936
        %9468 = vmatprep.subr.bf16.mxu0 %v8939
        %9469 = vmatpush1.bf16.msra.mxu0 %v8938
        %9470 = vmatprep.subr.bf16.mxu0 %v8941
        %9471 = vmatpush1.bf16.msra.mxu0 %v8940
        %9472 = vmatprep.subr.bf16.mxu0 %v8943
        %9473 = vmatpush1.bf16.msra.mxu0 %v8942
        %9474 = vmatprep.subr.bf16.mxu0 %v8945
        %9475 = vmatpush1.bf16.msra.mxu0 %v8944
        %9476 = vmatprep.subr.bf16.mxu0 %v8947
        %9477 = vmatpush1.bf16.msra.mxu0 %v8946
        %9478 = vmatprep.subr.bf16.mxu0 %v8949
        %9479 = vmatpush1.bf16.msra.mxu0 %v8948
        %9480 = vmatprep.subr.bf16.mxu0 %v8951
        %9481 = vmatpush1.bf16.msra.mxu0 %v8950
        %9482 = vmatprep.subr.bf16.mxu0 %v8953
        %9483 = vmatpush1.bf16.msra.mxu0 %v8952
        %9484 = vmatprep.subr.bf16.mxu0 %v8955
        %9485 = vmatpush1.bf16.msra.mxu0 %v8954
        %9486 = vmatprep.subr.bf16.mxu0 %v8957
        %9487 = vmatpush1.bf16.msra.mxu0 %v8956
        %9488 = vmatprep.subr.bf16.mxu0 %v8959
        %9489 = vmatpush1.bf16.msra.mxu0 %v8958
        %9490 = vmatprep.subr.bf16.mxu0 %v8961
        %9491 = vmatpush1.bf16.msra.mxu0 %v8960
        %9492 = vmatprep.subr.bf16.mxu0 %v8963
        %9493 = vmatpush1.bf16.msra.mxu0 %v8962
        %9494 = vmatprep.subr.bf16.mxu0 %v8965
        %9495 = vmatpush1.bf16.msra.mxu0 %v8964
        %9496 = vmatprep.subr.bf16.mxu0 %v8967
        %9497 = vmatpush1.bf16.msra.mxu0 %v8966
        %9498 = vmatprep.mubr.bf16.mxu0 %v7825
        %9499 = vmatmul.mubr.bf16.gmra.mrb[0].mxu0 %v7824
        %v9500 = vpop.f32.mrb[0].mxu0
        %v9501 = vadd.f32 %v9460, %v9500
        %v9502 = vpop.f32.mrb[0].mxu0
        %v9503 = vadd.f32 %v9462, %v9502
        %v9504 = vpop.f32.mrb[0].mxu0
        %v9505 = vpop.f32.mrb[0].mxu0
        %9506 = vdwg.mxu0
        %9507 = vmatprep.subr.bf16.mxu0 %v8969
        %9508 = vmatpush1.bf16.msra.mxu0 %v8968
        %9509 = vmatprep.subr.bf16.mxu0 %v8971
        %9510 = vmatpush1.bf16.msra.mxu0 %v8970
        %9511 = vmatprep.subr.bf16.mxu0 %v8973
        %9512 = vmatpush1.bf16.msra.mxu0 %v8972
        %9513 = vmatprep.subr.bf16.mxu0 %v8975
        %9514 = vmatpush1.bf16.msra.mxu0 %v8974
        %9515 = vmatprep.subr.bf16.mxu0 %v8977
        %9516 = vmatpush1.bf16.msra.mxu0 %v8976
        %9517 = vmatprep.subr.bf16.mxu0 %v8979
        %9518 = vmatpush1.bf16.msra.mxu0 %v8978
        %9519 = vmatprep.subr.bf16.mxu0 %v8981
        %9520 = vmatpush1.bf16.msra.mxu0 %v8980
        %9521 = vmatprep.subr.bf16.mxu0 %v8983
        %9522 = vmatpush1.bf16.msra.mxu0 %v8982
        %9523 = vmatprep.subr.bf16.mxu0 %v8985
        %9524 = vmatpush1.bf16.msra.mxu0 %v8984
        %9525 = vmatprep.subr.bf16.mxu0 %v8987
        %9526 = vmatpush1.bf16.msra.mxu0 %v8986
        %9527 = vmatprep.subr.bf16.mxu0 %v8989
        %9528 = vmatpush1.bf16.msra.mxu0 %v8988
        %9529 = vmatprep.subr.bf16.mxu0 %v8991
        %9530 = vmatpush1.bf16.msra.mxu0 %v8990
        %9531 = vmatprep.subr.bf16.mxu0 %v8993
        %9532 = vmatpush1.bf16.msra.mxu0 %v8992
        %9533 = vmatprep.subr.bf16.mxu0 %v8995
        %9534 = vmatpush1.bf16.msra.mxu0 %v8994
        %9535 = vmatprep.subr.bf16.mxu0 %v8997
        %9536 = vmatpush1.bf16.msra.mxu0 %v8996
        %9537 = vmatprep.subr.bf16.mxu0 %v8999
        %9538 = vmatpush1.bf16.msra.mxu0 %v8998
        %9539 = vmatprep.mubr.bf16.mxu0 %v7827
        %9540 = vmatmul.mubr.bf16.gmra.mrb[0].mxu0 %v7826
        %v9541 = vpop.f32.mrb[0].mxu0
        %v9542 = vadd.f32 %v9501, %v9541
        %v9543 = vpop.f32.mrb[0].mxu0
        %v9544 = vadd.f32 %v9503, %v9543
        %v9545 = vpop.f32.mrb[0].mxu0
        %v9546 = vpop.f32.mrb[0].mxu0
        %9547 = vdwg.mxu0
        %9548 = vmatprep.subr.bf16.mxu0 %v9001
        %9549 = vmatpush1.bf16.msra.mxu0 %v9000
        %9550 = vmatprep.subr.bf16.mxu0 %v9003
        %9551 = vmatpush1.bf16.msra.mxu0 %v9002
        %9552 = vmatprep.subr.bf16.mxu0 %v9005
        %9553 = vmatpush1.bf16.msra.mxu0 %v9004
        %9554 = vmatprep.subr.bf16.mxu0 %v9007
        %9555 = vmatpush1.bf16.msra.mxu0 %v9006
        %9556 = vmatprep.subr.bf16.mxu0 %v9009
        %9557 = vmatpush1.bf16.msra.mxu0 %v9008
        %9558 = vmatprep.subr.bf16.mxu0 %v9011
        %9559 = vmatpush1.bf16.msra.mxu0 %v9010
        %9560 = vmatprep.subr.bf16.mxu0 %v9013
        %9561 = vmatpush1.bf16.msra.mxu0 %v9012
        %9562 = vmatprep.subr.bf16.mxu0 %v9015
        %9563 = vmatpush1.bf16.msra.mxu0 %v9014
        %9564 = vmatprep.subr.bf16.mxu0 %v9017
        %9565 = vmatpush1.bf16.msra.mxu0 %v9016
        %9566 = vmatprep.subr.bf16.mxu0 %v9019
        %9567 = vmatpush1.bf16.msra.mxu0 %v9018
        %9568 = vmatprep.subr.bf16.mxu0 %v9021
        %9569 = vmatpush1.bf16.msra.mxu0 %v9020
        %9570 = vmatprep.subr.bf16.mxu0 %v9023
        %9571 = vmatpush1.bf16.msra.mxu0 %v9022
        %9572 = vmatprep.subr.bf16.mxu0 %v9025
        %9573 = vmatpush1.bf16.msra.mxu0 %v9024
        %9574 = vmatprep.subr.bf16.mxu0 %v9027
        %9575 = vmatpush1.bf16.msra.mxu0 %v9026
        %9576 = vmatprep.subr.bf16.mxu0 %v9029
        %9577 = vmatpush1.bf16.msra.mxu0 %v9028
        %9578 = vmatprep.subr.bf16.mxu0 %v9031
        %9579 = vmatpush1.bf16.msra.mxu0 %v9030
        %9580 = vmatprep.mubr.bf16.mxu0 %v7829
        %9581 = vmatmul.mubr.bf16.gmra.mrb[0].mxu0 %v7828
        %v9582 = vpop.f32.mrb[0].mxu0
        %v9583 = vadd.f32 %v9542, %v9582
        %v9584 = vpop.f32.mrb[0].mxu0
        %v9585 = vadd.f32 %v9544, %v9584
        %v9586 = vpop.f32.mrb[0].mxu0
        %v9587 = vpop.f32.mrb[0].mxu0
        %9588 = vdwg.mxu0
        %9589 = vmatprep.subr.bf16.mxu0 %v9033
        %9590 = vmatpush1.bf16.msra.mxu0 %v9032
        %9591 = vmatprep.subr.bf16.mxu0 %v9035
        %9592 = vmatpush1.bf16.msra.mxu0 %v9034
        %9593 = vmatprep.subr.bf16.mxu0 %v9037
        %9594 = vmatpush1.bf16.msra.mxu0 %v9036
        %9595 = vmatprep.subr.bf16.mxu0 %v9039
        %9596 = vmatpush1.bf16.msra.mxu0 %v9038
        %9597 = vmatprep.subr.bf16.mxu0 %v9041
        %9598 = vmatpush1.bf16.msra.mxu0 %v9040
        %9599 = vmatprep.subr.bf16.mxu0 %v9043
        %9600 = vmatpush1.bf16.msra.mxu0 %v9042
        %9601 = vmatprep.subr.bf16.mxu0 %v9045
        %9602 = vmatpush1.bf16.msra.mxu0 %v9044
        %9603 = vmatprep.subr.bf16.mxu0 %v9047
        %9604 = vmatpush1.bf16.msra.mxu0 %v9046
        %9605 = vmatprep.subr.bf16.mxu0 %v9049
        %9606 = vmatpush1.bf16.msra.mxu0 %v9048
        %9607 = vmatprep.subr.bf16.mxu0 %v9051
        %9608 = vmatpush1.bf16.msra.mxu0 %v9050
        %9609 = vmatprep.subr.bf16.mxu0 %v9053
        %9610 = vmatpush1.bf16.msra.mxu0 %v9052
        %9611 = vmatprep.subr.bf16.mxu0 %v9055
        %9612 = vmatpush1.bf16.msra.mxu0 %v9054
        %9613 = vmatprep.subr.bf16.mxu0 %v9057
        %9614 = vmatpush1.bf16.msra.mxu0 %v9056
        %9615 = vmatprep.subr.bf16.mxu0 %v9059
        %9616 = vmatpush1.bf16.msra.mxu0 %v9058
        %9617 = vmatprep.subr.bf16.mxu0 %v9061
        %9618 = vmatpush1.bf16.msra.mxu0 %v9060
        %9619 = vmatprep.subr.bf16.mxu0 %v9063
        %9620 = vmatpush1.bf16.msra.mxu0 %v9062
        %9621 = vmatprep.mubr.bf16.mxu0 %v7831
        %9622 = vmatmul.mubr.bf16.gmra.mrb[0].mxu0 %v7830
        %v9623 = vpop.f32.mrb[0].mxu0
        %v9624 = vadd.f32 %v9583, %v9623
        %v9625 = vpop.f32.mrb[0].mxu0
        %v9626 = vadd.f32 %v9585, %v9625
        %v9627 = vpop.f32.mrb[0].mxu0
        %v9628 = vpop.f32.mrb[0].mxu0
        %9629 = vdwg.mxu0
        %9630 = vmatprep.subr.bf16.mxu0 %v9065
        %9631 = vmatpush1.bf16.msra.mxu0 %v9064
        %9632 = vmatprep.subr.bf16.mxu0 %v9067
        %9633 = vmatpush1.bf16.msra.mxu0 %v9066
        %9634 = vmatprep.subr.bf16.mxu0 %v9069
        %9635 = vmatpush1.bf16.msra.mxu0 %v9068
        %9636 = vmatprep.subr.bf16.mxu0 %v9071
        %9637 = vmatpush1.bf16.msra.mxu0 %v9070
        %9638 = vmatprep.subr.bf16.mxu0 %v9073
        %9639 = vmatpush1.bf16.msra.mxu0 %v9072
        %9640 = vmatprep.subr.bf16.mxu0 %v9075
        %9641 = vmatpush1.bf16.msra.mxu0 %v9074
        %9642 = vmatprep.subr.bf16.mxu0 %v9077
        %9643 = vmatpush1.bf16.msra.mxu0 %v9076
        %9644 = vmatprep.subr.bf16.mxu0 %v9079
        %9645 = vmatpush1.bf16.msra.mxu0 %v9078
        %9646 = vmatprep.subr.bf16.mxu0 %v9081
        %9647 = vmatpush1.bf16.msra.mxu0 %v9080
        %9648 = vmatprep.subr.bf16.mxu0 %v9083
        %9649 = vmatpush1.bf16.msra.mxu0 %v9082
        %9650 = vmatprep.subr.bf16.mxu0 %v9085
        %9651 = vmatpush1.bf16.msra.mxu0 %v9084
        %9652 = vmatprep.subr.bf16.mxu0 %v9087
        %9653 = vmatpush1.bf16.msra.mxu0 %v9086
        %9654 = vmatprep.subr.bf16.mxu0 %v9089
        %9655 = vmatpush1.bf16.msra.mxu0 %v9088
        %9656 = vmatprep.subr.bf16.mxu0 %v9091
        %9657 = vmatpush1.bf16.msra.mxu0 %v9090
        %9658 = vmatprep.subr.bf16.mxu0 %v9093
        %9659 = vmatpush1.bf16.msra.mxu0 %v9092
        %9660 = vmatprep.subr.bf16.mxu0 %v9095
        %9661 = vmatpush1.bf16.msra.mxu0 %v9094
        %9662 = vmatprep.mubr.bf16.mxu0 %v7833
        %9663 = vmatmul.mubr.bf16.gmra.mrb[0].mxu0 %v7832
        %v9664 = vpop.f32.mrb[0].mxu0
        %v9665 = vadd.f32 %v9624, %v9664
        %v9666 = vpop.f32.mrb[0].mxu0
        %v9667 = vadd.f32 %v9626, %v9666
        %v9668 = vpop.f32.mrb[0].mxu0
        %v9669 = vpop.f32.mrb[0].mxu0
        %9670 = vdwg.mxu0
        %9671 = vmatprep.subr.bf16.mxu0 %v9097
        %9672 = vmatpush1.bf16.msra.mxu0 %v9096
        %9673 = vmatprep.subr.bf16.mxu0 %v9099
        %9674 = vmatpush1.bf16.msra.mxu0 %v9098
        %9675 = vmatprep.subr.bf16.mxu0 %v9101
        %9676 = vmatpush1.bf16.msra.mxu0 %v9100
        %9677 = vmatprep.subr.bf16.mxu0 %v9103
        %9678 = vmatpush1.bf16.msra.mxu0 %v9102
        %9679 = vmatprep.subr.bf16.mxu0 %v9105
        %9680 = vmatpush1.bf16.msra.mxu0 %v9104
        %9681 = vmatprep.subr.bf16.mxu0 %v9107
        %9682 = vmatpush1.bf16.msra.mxu0 %v9106
        %9683 = vmatprep.subr.bf16.mxu0 %v9109
        %9684 = vmatpush1.bf16.msra.mxu0 %v9108
        %9685 = vmatprep.subr.bf16.mxu0 %v9111
        %9686 = vmatpush1.bf16.msra.mxu0 %v9110
        %9687 = vmatprep.subr.bf16.mxu0 %v9113
        %9688 = vmatpush1.bf16.msra.mxu0 %v9112
        %9689 = vmatprep.subr.bf16.mxu0 %v9115
        %9690 = vmatpush1.bf16.msra.mxu0 %v9114
        %9691 = vmatprep.subr.bf16.mxu0 %v9117
        %9692 = vmatpush1.bf16.msra.mxu0 %v9116
        %9693 = vmatprep.subr.bf16.mxu0 %v9119
        %9694 = vmatpush1.bf16.msra.mxu0 %v9118
        %9695 = vmatprep.subr.bf16.mxu0 %v9121
        %9696 = vmatpush1.bf16.msra.mxu0 %v9120
        %9697 = vmatprep.subr.bf16.mxu0 %v9123
        %9698 = vmatpush1.bf16.msra.mxu0 %v9122
        %9699 = vmatprep.subr.bf16.mxu0 %v9125
        %9700 = vmatpush1.bf16.msra.mxu0 %v9124
        %9701 = vmatprep.subr.bf16.mxu0 %v9127
        %9702 = vmatpush1.bf16.msra.mxu0 %v9126
        %9703 = vmatprep.mubr.bf16.mxu0 %v7835
        %9704 = vmatmul.mubr.bf16.gmra.mrb[0].mxu0 %v7834
        %v9705 = vpop.f32.mrb[0].mxu0
        %v9706 = vadd.f32 %v9665, %v9705
        %v9707 = vpop.f32.mrb[0].mxu0
        %v9708 = vadd.f32 %v9667, %v9707
        %v9709 = vpop.f32.mrb[0].mxu0
        %v9710 = vpop.f32.mrb[0].mxu0
        %9711 = vdwg.mxu0
        %v9712 = vadd.f32 %v5852, %v9706
        %v9713 = vadd.f32 %v5853, %v9708
        %v9714 = vld [vmem:[%s1668] sm:$0x3]
        %v9715 = vld [vmem:[%s1677] sm:$0x3]
        %v9716 = vadd.f32 %v9712, %v9713
        %9717 = vadd.xlane.f32.xlu0 %v9716
        %v9718 = vpop.xlane.xlu0 %9717
        %v9719 = vmul.f32 %v9718, %v3416
        %v9720 = vsub.f32 %v9712, %v9719
        %v9721 = vsub.f32 %v9713, %v9719
        %v9722 = vmul.f32 %v9720, %v9720
        %v9723 = vmul.f32 %v9721, %v9721
        %v9724 = vadd.f32 %v9722, %v9723
        %9725 = vadd.xlane.f32.xlu0 %v9724
        %v9726 = vpop.xlane.xlu0 %9725
        %v9727 = vmul.f32 %v9726, %v3416
        %v9728 = vadd.f32 %v9727, 1e-05
        %v9729 = vrsqrt.pop %v9728
        %v9730 = vmul.f32 %v9720, %v9729
        %v9731 = vmul.f32 %v9721, %v9729
        %v9733 = vlaneseq
        %v9734 = vshrl.u32 %v9733, 7
        %v9735 = vsub.s32 0, %v9734
        %v9736 = vrot.slane %v9714, %v9735
        %v9737 = vlaneseq
        %v9738 = vshrl.u32 %v9737, 7
        %v9739 = vsub.s32 1, %v9738
        %v9740 = vrot.slane %v9714, %v9739
        %v9743 = vmul.f32 %v9730, %v9736
        %v9744 = vmul.f32 %v9731, %v9740
        %v9746 = vlaneseq
        %v9747 = vshrl.u32 %v9746, 7
        %v9748 = vsub.s32 0, %v9747
        %v9749 = vrot.slane %v9715, %v9748
        %v9750 = vlaneseq
        %v9751 = vshrl.u32 %v9750, 7
        %v9752 = vsub.s32 1, %v9751
        %v9753 = vrot.slane %v9715, %v9752
        %v9756 = vadd.f32 %v9743, %v9749
        %v9757 = vadd.f32 %v9744, %v9753
        %9758 = vst [vmem:[%s1932] sm:$0xff] %v9756
        %9759 = vst [vmem:[%s1932 + $0x8] sm:$0xff] %v9757
        %p9760 = scmp.eq.s32.totalorder %s118, 5
        // Predicated region
        $region261: #{basic_detr_forward.1} parent=139 // pred_check
          %p9761 = pneg %p9760
        $region262: #{basic_detr_forward.1} parent=139 // pred_check_branch
          %9763 = sbr.rel (%p9761) target = $region264
        $region263: #{basic_detr_forward.1} parent=139 // pred_region
          %v9764 = vpack.c.bf16 %v9756, %v9756
          %v9765 = vpack.c.bf16 %v9757, %v9757
          %v9766 = vld [vmem:[#allocation45] sm:$0xf]
          %v9767 = vld [vmem:[#allocation45 + $0x4] sm:$0xf]
          %v9768 = vld [vmem:[#allocation45 + $0x8] sm:$0xf]
          %v9769 = vld [vmem:[#allocation45 + $0xc] sm:$0xf]
          %v9770 = vld [vmem:[#allocation45 + $0x10] sm:$0xf]
          %v9771 = vld [vmem:[#allocation45 + $0x14] sm:$0xf]
          %v9772 = vld [vmem:[#allocation45 + $0x18] sm:$0xf]
          %v9773 = vld [vmem:[#allocation45 + $0x1c] sm:$0xf]
          %v9774 = vld [vmem:[#allocation45 + $0x20] sm:$0xf]
          %v9775 = vld [vmem:[#allocation45 + $0x24] sm:$0xf]
          %v9776 = vld [vmem:[#allocation45 + $0x28] sm:$0xf]
          %v9777 = vld [vmem:[#allocation45 + $0x2c] sm:$0xf]
          %v9778 = vld [vmem:[#allocation45 + $0x30] sm:$0xf]
          %v9779 = vld [vmem:[#allocation45 + $0x34] sm:$0xf]
          %v9780 = vld [vmem:[#allocation45 + $0x38] sm:$0xf]
          %v9781 = vld [vmem:[#allocation45 + $0x3c] sm:$0xf]
          %v9782 = vld [vmem:[#allocation45 + $0x40] sm:$0xf]
          %v9783 = vld [vmem:[#allocation45 + $0x44] sm:$0xf]
          %v9784 = vld [vmem:[#allocation45 + $0x48] sm:$0xf]
          %v9785 = vld [vmem:[#allocation45 + $0x4c] sm:$0xf]
          %v9786 = vld [vmem:[#allocation45 + $0x50] sm:$0xf]
          %v9787 = vld [vmem:[#allocation45 + $0x54] sm:$0xf]
          %v9788 = vld [vmem:[#allocation45 + $0x58] sm:$0xf]
          %v9789 = vld [vmem:[#allocation45 + $0x5c] sm:$0xf]
          %v9790 = vld [vmem:[#allocation45 + $0x60] sm:$0xf]
          %v9791 = vld [vmem:[#allocation45 + $0x64] sm:$0xf]
          %v9792 = vld [vmem:[#allocation45 + $0x68] sm:$0xf]
          %v9793 = vld [vmem:[#allocation45 + $0x6c] sm:$0xf]
          %v9794 = vld [vmem:[#allocation45 + $0x70] sm:$0xf]
          %v9795 = vld [vmem:[#allocation45 + $0x74] sm:$0xf]
          %v9796 = vld [vmem:[#allocation45 + $0x78] sm:$0xf]
          %v9797 = vld [vmem:[#allocation45 + $0x7c] sm:$0xf]
          %v9798 = vld [vmem:[#allocation47] sm:$0x1]
          %v9831 = vunpack.c.l.b16 %v9766
          %v9832 = vunpack.c.l.b16 %v9767
          %v9833 = vunpack.c.l.b16 %v9768
          %v9834 = vunpack.c.l.b16 %v9769
          %v9835 = vunpack.c.l.b16 %v9770
          %v9836 = vunpack.c.l.b16 %v9771
          %v9837 = vunpack.c.l.b16 %v9772
          %v9838 = vunpack.c.l.b16 %v9773
          %v9839 = vunpack.c.l.b16 %v9774
          %v9840 = vunpack.c.l.b16 %v9775
          %v9841 = vunpack.c.l.b16 %v9776
          %v9842 = vunpack.c.l.b16 %v9777
          %v9843 = vunpack.c.l.b16 %v9778
          %v9844 = vunpack.c.l.b16 %v9779
          %v9845 = vunpack.c.l.b16 %v9780
          %v9846 = vunpack.c.l.b16 %v9781
          %v9847 = vunpack.c.l.b16 %v9782
          %v9848 = vunpack.c.l.b16 %v9783
          %v9849 = vunpack.c.l.b16 %v9784
          %v9850 = vunpack.c.l.b16 %v9785
          %v9851 = vunpack.c.l.b16 %v9786
          %v9852 = vunpack.c.l.b16 %v9787
          %v9853 = vunpack.c.l.b16 %v9788
          %v9854 = vunpack.c.l.b16 %v9789
          %v9855 = vunpack.c.l.b16 %v9790
          %v9856 = vunpack.c.l.b16 %v9791
          %v9857 = vunpack.c.l.b16 %v9792
          %v9858 = vunpack.c.l.b16 %v9793
          %v9859 = vunpack.c.l.b16 %v9794
          %v9860 = vunpack.c.l.b16 %v9795
          %v9861 = vunpack.c.l.b16 %v9796
          %v9862 = vunpack.c.l.b16 %v9797
          %v9863 = vpack.c.b16 %v9832, %v9831
          %v9864 = vpack.c.b16 %v9834, %v9833
          %v9865 = vpack.c.b16 %v9836, %v9835
          %v9866 = vpack.c.b16 %v9838, %v9837
          %v9867 = vpack.c.b16 %v9840, %v9839
          %v9868 = vpack.c.b16 %v9842, %v9841
          %v9869 = vpack.c.b16 %v9844, %v9843
          %v9870 = vpack.c.b16 %v9846, %v9845
          %v9871 = vpack.c.b16 %v9848, %v9847
          %v9872 = vpack.c.b16 %v9850, %v9849
          %v9873 = vpack.c.b16 %v9852, %v9851
          %v9874 = vpack.c.b16 %v9854, %v9853
          %v9875 = vpack.c.b16 %v9856, %v9855
          %v9876 = vpack.c.b16 %v9858, %v9857
          %v9877 = vpack.c.b16 %v9860, %v9859
          %v9878 = vpack.c.b16 %v9862, %v9861
          %9895 = vmatprep.subr.bf16.mxu0 0
          %9896 = vmatpush1.bf16.msra.mxu0 %v9863
          %9897 = vmatprep.subr.bf16.mxu0 0
          %9898 = vmatpush1.bf16.msra.mxu0 %v9864
          %9899 = vmatprep.subr.bf16.mxu0 0
          %9900 = vmatpush1.bf16.msra.mxu0 %v9865
          %9901 = vmatprep.subr.bf16.mxu0 0
          %9902 = vmatpush1.bf16.msra.mxu0 %v9866
          %9903 = vmatprep.subr.bf16.mxu0 0
          %9904 = vmatpush1.bf16.msra.mxu0 %v9867
          %9905 = vmatprep.subr.bf16.mxu0 0
          %9906 = vmatpush1.bf16.msra.mxu0 %v9868
          %9907 = vmatprep.subr.bf16.mxu0 0
          %9908 = vmatpush1.bf16.msra.mxu0 %v9869
          %9909 = vmatprep.subr.bf16.mxu0 0
          %9910 = vmatpush1.bf16.msra.mxu0 %v9870
          %9911 = vmatprep.subr.bf16.mxu0 0
          %9912 = vmatpush1.bf16.msra.mxu0 %v9871
          %9913 = vmatprep.subr.bf16.mxu0 0
          %9914 = vmatpush1.bf16.msra.mxu0 %v9872
          %9915 = vmatprep.subr.bf16.mxu0 0
          %9916 = vmatpush1.bf16.msra.mxu0 %v9873
          %9917 = vmatprep.subr.bf16.mxu0 0
          %9918 = vmatpush1.bf16.msra.mxu0 %v9874
          %9919 = vmatprep.subr.bf16.mxu0 0
          %9920 = vmatpush1.bf16.msra.mxu0 %v9875
          %9921 = vmatprep.subr.bf16.mxu0 0
          %9922 = vmatpush1.bf16.msra.mxu0 %v9876
          %9923 = vmatprep.subr.bf16.mxu0 0
          %9924 = vmatpush1.bf16.msra.mxu0 %v9877
          %9925 = vmatprep.subr.bf16.mxu0 0
          %9926 = vmatpush1.bf16.msra.mxu0 %v9878
          %9927 = vmatprep.mubr.bf16.mxu0 %v9765
          %9928 = vmatmul.mubr.bf16.gmra.mrb[0].mxu0 %v9764
          %v9929 = vpop.f32.mrb[0].mxu0
          %v9930 = vadd.f32 %v9798, %v9929
          %v9931 = vpop.f32.mrb[0].mxu0
          %v9932 = vpop.f32.mrb[0].mxu0
          %v9933 = vpop.f32.mrb[0].mxu0
          %9934 = vdwg.mxu0
          %v9935 = vmax.f32 %v9930, 0.0
          %s9936 = scalar_lea.vmem [#allocation48], %s119
          %9937 = vst [vmem:[%s9936] sm:$0x1] %v9935
        $region264: #{basic_detr_forward.1} parent=139 // pred_fallthru
          _
        // Predicated region
        $region265: #{basic_detr_forward.1} parent=139 // pred_check
          %p9938 = pneg %p899
        $region266: #{basic_detr_forward.1} parent=139 // pred_check_branch
          %9940 = sbr.rel (%p9938) target = $region268
        $region267: #{basic_detr_forward.1} parent=139 // pred_region
          %s9942 = ssub.s32 32, 32
          %9943 = vsyncadd [#allocation5], %s9942
          %s9945 = sshll.u32 [#allocation48], 4
          %s9946 = int_to_ptr.vmem [resolvable:$true] %s9945
          %9948 = dma.vmem_to_hbm [thread:$0]  %s9946, 32, %s61, [#allocation5]
        $region268: #{basic_detr_forward.1} parent=139 // pred_fallthru
          _
        // Predicated region
        $region269: #{basic_detr_forward.1} parent=139 // pred_check
          %p9949 = pneg %p899
        $region270: #{basic_detr_forward.1} parent=139 // pred_check_branch
          %9951 = sbr.rel (%p9949) target = $region272
        $region271: #{basic_detr_forward.1} parent=139 // pred_region
          %9952 = dma.done [#allocation5], 32
        $region272: #{basic_detr_forward.1} parent=139 // pred_fallthru
          _
      $region140: #{basic_detr_forward.1} parent=5 // pred_fallthru
        _
      %p9953 = scmp.le.s32.totalorder 2, %s109
      // Predicated region
      $region273: #{basic_detr_forward.1} parent=5 // pred_check
        %p9954 = pneg %p9953
      $region274: #{basic_detr_forward.1} parent=5 // pred_check_branch
        %9956 = sbr.rel (%p9954) target = $region276
      $region275: #{basic_detr_forward.1} parent=5 // pred_region
        %s9957 = ssub.s32 %s109, 2
      $region276: #{basic_detr_forward.1} parent=5 // pred_fallthru
        _
    $region6: #{basic_detr_forward.1} parent=1 // loop_footer
      %s113 = sadd.s32 1, %s109
    $region7: #{basic_detr_forward.1} parent=1 // loop_footer_branch
      %108 = sbr.rel target = $region3
    $region8: #{basic_detr_forward.1} parent=1 // loop_exit
      _
    %9958 = vsyncpa [#allocation4], 1
    %s9959 = scalar_lea.sflag [#allocation4], 1
    %9960 = vsyncpa %s9959, 1
    %9961 = vsyncpa [#allocation7], 1
    %s9962 = scalar_lea.sflag [#allocation7], 1
    %9963 = vsyncpa %s9962, 1
    %9964 = vsyncpa [#allocation10], 1
    %s9965 = scalar_lea.sflag [#allocation10], 1
    %9966 = vsyncpa %s9965, 1
    %9967 = vsyncpa [#allocation13], 1
    %s9968 = scalar_lea.sflag [#allocation13], 1
    %9969 = vsyncpa %s9968, 1
    %9970 = vsyncpa [#allocation16], 1
    %s9971 = scalar_lea.sflag [#allocation16], 1
    %9972 = vsyncpa %s9971, 1
    %9973 = vsyncpa [#allocation19], 1
    %s9974 = scalar_lea.sflag [#allocation19], 1
    %9975 = vsyncpa %s9974, 1
    %9976 = vsyncpa [#allocation22], 1
    %s9977 = scalar_lea.sflag [#allocation22], 1
    %9978 = vsyncpa %s9977, 1
    %9979 = vsyncpa [#allocation25], 1
    %s9980 = scalar_lea.sflag [#allocation25], 1
    %9981 = vsyncpa %s9980, 1
    %9982 = vsyncpa [#allocation28], 1
    %s9983 = scalar_lea.sflag [#allocation28], 1
    %9984 = vsyncpa %s9983, 1
    %9985 = vsyncpa [#allocation31], 1
    %s9986 = scalar_lea.sflag [#allocation31], 1
    %9987 = vsyncpa %s9986, 1
    %9988 = vsyncpa [#allocation34], 1
    %s9989 = scalar_lea.sflag [#allocation34], 1
    %9990 = vsyncpa %s9989, 1
    %9991 = vsyncpa [#allocation37], 1
    %s9992 = scalar_lea.sflag [#allocation37], 1
    %9993 = vsyncpa %s9992, 1
    %9994 = vsyncpa [#allocation40], 1
    %s9995 = scalar_lea.sflag [#allocation40], 1
    %9996 = vsyncpa %s9995, 1
    %9997 = vsyncpa [#allocation43], 1
    %s9998 = scalar_lea.sflag [#allocation43], 1
    %9999 = vsyncpa %s9998, 1
    %10000 = vsyncpa [#allocation46], 1
    %10001 = vsyncpa [#allocation5], 1
    %s10002 = scalar_lea.sflag [#allocation5], 1
    %10003 = vsyncpa %s10002, 1

</llo_original>
